<compile_context>
chip_gen: v7x
topology: tpu7x:2x2x1
jax: 0.10.0
libtpu: 0.0.40
codegen_flags: <defaults>
</compile_context>

<pallas_src>
import functools

import jax
import jax.numpy as jnp
from jax.experimental import pallas as pl
from jax.experimental.pallas import tpu as pltpu


def _round_up(x, m):
    return ((x + m - 1) // m) * m


# --------------------------------------------------------------- Buffered(1) support probe

def _probe_buffered_support():
    """Runtime probe: can this JAX single-buffer an invariant BlockSpec via pl.Buffered(1)?"""
    def _k(x_ref, o_ref):
        o_ref[...] = x_ref[...] + 1.0
    try:
        spec = pl.BlockSpec((8, 128), lambda i: (0, 0), pipeline_mode=pl.Buffered(1))
        fn = pl.pallas_call(
            _k,
            out_shape=jax.ShapeDtypeStruct((8, 128), jnp.float32),
            grid=(2,),
            in_specs=[spec],
            out_specs=pl.BlockSpec((8, 128), lambda i: (0, 0)),
        )
        jax.block_until_ready(fn(jnp.zeros((8, 128), jnp.float32)))
        return True
    except Exception:
        return False


_HAS_BUFFERED_1 = _probe_buffered_support()


def _inv_spec(shape, index_map):
    """BlockSpec for a grid-invariant operand; single-buffered when supported."""
    if _HAS_BUFFERED_1:
        return pl.BlockSpec(shape, index_map, pipeline_mode=pl.Buffered(1))
    return pl.BlockSpec(shape, index_map)


def _mosaic_params(sem, need_bytes):
    limit = int(min(48 << 20, max(32 << 20, int(need_bytes) + (4 << 20))))
    return pltpu.CompilerParams(dimension_semantics=sem, vmem_limit_bytes=limit)


def _choose_step_tile(n_steps, per_t_bytes, budget=8 << 20):
    """TB timesteps per filter/smoother grid step (8..32), VMEM-budgeted (2x double buffer)."""
    tb = budget // max(2 * per_t_bytes, 1)
    tb = int(max(8, min(32, tb)))
    tb = (tb // 8) * 8
    tb = min(tb, _round_up(n_steps, 8))
    return max(8, tb)


def _choose_time_tile(T, per_t_bytes, budget=12 << 20, cap=256):
    """Projection time tile: budget accounts for double-buffered in+out blocks; keep >=2 tiles."""
    tb = budget // max(2 * per_t_bytes, 1)
    tb = int(max(8, min(cap, tb)))
    tb = (tb // 8) * 8
    if T >= 16:
        tb = min(tb, max(8, (((T + 1) // 2) // 8) * 8))   # >=2 grid tiles -> v7x 2nd core
    tb = min(tb, _round_up(T, 8))
    return max(8, tb)


# --------------------------------------------------------------------- in-kernel linear solve

def _gj_solve(S, RHS):
    """Solve S @ X = RHS for SPD S (n, n), RHS (n, m) with a rank-1 Gauss-Jordan sweep.

    Pivot row/column are extracted with one-hot MXU matvecs (idle slot during the solve)
    instead of full-matrix mask/select/XLU reductions; the pivot-row restore is folded into
    the rank-1 update via (col - e_i).  SPD => positive diagonal pivots, no pivoting needed.
    """
    n = S.shape[0]
    col_iota = jax.lax.broadcasted_iota(jnp.int32, (n, 1), 0)
    lane_iota = jax.lax.broadcasted_iota(jnp.int32, (1, n), 1)

    def body(i, carry):
        Sw, Xw = carry
        e = (col_iota == i).astype(jnp.float32)                               # (n, 1)
        prow_S = jax.lax.dot_general(e, Sw, (((0,), (0,)), ((), ())),
                                     preferred_element_type=jnp.float32)      # (1, n)
        prow_X = jax.lax.dot_general(e, Xw, (((0,), (0,)), ((), ())),
                                     preferred_element_type=jnp.float32)      # (1, m)
        colv = jnp.dot(Sw, e, preferred_element_type=jnp.float32)             # (n, 1)
        pivot = jnp.sum(jnp.where(lane_iota == i, prow_S, 0.0))
        inv_p = 1.0 / pivot
        factor = colv - e
        Sw = Sw - factor * (prow_S * inv_p)
        Xw = Xw - factor * (prow_X * inv_p)
        return Sw, Xw

    _, X = jax.lax.fori_loop(0, n, body, (S, RHS))
    return X


# ----------------------------------------------------------------------------- Pallas kernels

def _matern32_gram_kernel(hp_ref, x1_ref, x2_ref, out_ref, *, normalize_rows):
    ls = hp_ref[0]
    mag = hp_ref[1]
    x1 = x1_ref[...]                                                      # (tr, d)
    x2 = x2_ref[...]                                                      # (n2, d)
    sq1 = jnp.sum(x1 * x1, axis=1, keepdims=True)                         # (tr, 1)
    ones_row = jnp.ones((1, x2.shape[1]), jnp.float32)
    sq2 = jax.lax.dot_general(ones_row, x2 * x2, (((1,), (1,)), ((), ())),
                              preferred_element_type=jnp.float32)         # (1, n2)
    cross = jax.lax.dot_general(x1, x2, (((1,), (1,)), ((), ())),
                                preferred_element_type=jnp.float32)       # (tr, n2)
    d2 = jnp.maximum(sq1 + sq2 - 2.0 * cross, 0.0)
    # TODO(synk): sqrt at d2==0 is fine in the forward pass but gives NaN gradients; use a
    #             safe-sqrt if the hyperparameters are ever trained through this kernel.
    arg = jnp.float32(3.0 ** 0.5) * jnp.sqrt(d2) / ls
    k = mag * (1.0 + arg) * jnp.exp(-arg)
    if normalize_rows:
        k = k / jnp.sum(k, axis=1, keepdims=True)
    out_ref[...] = k


def matern32_gram(x1, x2, lengthscale, magnitude, normalize_rows=False):
    """Matern-3/2 Gram matrix, row-tiled over x1 so large n1 stays within scoped VMEM."""
    x1 = x1.astype(jnp.float32)
    x2 = x2.astype(jnp.float32)
    n1, d = x1.shape
    n2 = x2.shape[0]
    tr = _round_up(min(n1, 128), 8)
    n1_pad = _round_up(n1, tr)
    if n1_pad != n1:
        x1 = jnp.pad(x1, ((0, n1_pad - n1), (0, 0)))
    hp = jnp.stack([jnp.asarray(lengthscale, jnp.float32), jnp.asarray(magnitude, jnp.float32)])
    kern = functools.partial(_matern32_gram_kernel, normalize_rows=bool(normalize_rows))
    out = pl.pallas_call(
        kern,
        out_shape=jax.ShapeDtypeStruct((n1_pad, n2), jnp.float32),
        grid=(n1_pad // tr,),
        in_specs=[pl.BlockSpec(memory_space=pltpu.MemorySpace.SMEM),   # [lengthscale, magnitude]
                  pl.BlockSpec((tr, d), lambda i: (i, 0)),
                  _inv_spec((n2, d), lambda i: (0, 0))],
        out_specs=pl.BlockSpec((tr, n2), lambda i: (i, 0)),
        compiler_params=pltpu.CompilerParams(dimension_semantics=("parallel",)),
    )(hp, x1, x2)
    return out[:n1]


# ---- fused Kalman filter: TB timesteps per grid step, state carried in VMEM scratch ----

def _filter_kernel(valid_ref,                                    # SMEM (n_t_pad,), int32 prefetch
                   m0_ref, P0_ref, A_ref, Sig_ref, B_ref, Bt_ref, KcR_ref, Y_ref,
                   mf_ref, Pf_ref, mp_ref, Pp_ref,
                   m_sc, P_sc, *, tb):
    c = pl.program_id(0)
    A = A_ref[...]
    Sig = Sig_ref[...]
    Bm = B_ref[...]                                               # (n_r, L)
    Bt = Bt_ref[...]                                              # (L, n_r)
    KcR = KcR_ref[...]                                            # (n_r, n_r)

    def step(i, carry):
        t = c * tb + i

        @pl.when(t == 0)
        def _():
            m0 = m0_ref[...]
            P0 = P0_ref[...]
            m_sc[...] = m0
            P_sc[...] = P0
            mf_ref[i] = m0
            Pf_ref[i] = P0
            mp_ref[i] = m0
            Pp_ref[i] = P0

        @pl.when(t > 0)
        def _():
            m = m_sc[...]                    # (1, L) lane-dense row state
            P = P_sc[...]                    # (L, L)
            m_pred = jax.lax.dot_general(m, A, (((1,), (1,)), ((), ())),
                                         preferred_element_type=jnp.float32)     # m @ A.T
            AP = jnp.dot(A, P, preferred_element_type=jnp.float32)
            P_pred = jax.lax.dot_general(AP, A, (((1,), (1,)), ((), ())),
                                         preferred_element_type=jnp.float32) + Sig
            mp_ref[i] = m_pred
            Pp_ref[i] = P_pred

            v = valid_ref[t]

            @pl.when(v != 0)
            def _():
                Y = Y_ref[i]                                                      # (1, n_r)
                f_hat = jnp.dot(m_pred, Bt, preferred_element_type=jnp.float32)   # (1, n_r)
                BP = jnp.dot(Bm, P_pred, preferred_element_type=jnp.float32)      # (n_r, L)
                S = jnp.dot(BP, Bt, preferred_element_type=jnp.float32) + KcR     # (n_r, n_r)
                KT = _gj_solve(S, BP)              # K^T = S^{-1} (B P_pred)
                innov = Y - f_hat                  # non-robust: R (R^-1 Y) - f_hat == Y - f_hat
                m_new = m_pred + jnp.dot(innov, KT, preferred_element_type=jnp.float32)
                P_new = P_pred - jax.lax.dot_general(BP, KT, (((0,), (0,)), ((), ())),
                                                     preferred_element_type=jnp.float32)
                P_new = 0.5 * (P_new + P_new.T)    # keep SPD solves well behaved over many steps
                m_sc[...] = m_new
                P_sc[...] = P_new

            @pl.when(v == 0)
            def _():
                m_sc[...] = m_pred
                P_sc[...] = P_pred

            mf_ref[i] = m_sc[...]
            Pf_ref[i] = P_sc[...]

        return carry

    jax.lax.fori_loop(0, tb, step, 0)


def run_filter(valid, m0, P0, A, Sig, B, Bt, KcR, Ys_rows, tb):
    n_t_pad = Ys_rows.shape[0]
    n_r = B.shape[0]
    L = A.shape[0]
    nblocks = n_t_pad // tb
    need = 2 * tb * 4 * (n_r + 2 * (L * L + L)) + 4 * (3 * L * L + 2 * n_r * L + n_r * n_r + L)
    grid_spec = pltpu.PrefetchScalarGridSpec(
        num_scalar_prefetch=1,
        grid=(nblocks,),
        in_specs=[_inv_spec((1, L), lambda c, v: (0, 0)),              # m0
                  _inv_spec((L, L), lambda c, v: (0, 0)),              # P0
                  _inv_spec((L, L), lambda c, v: (0, 0)),              # A
                  _inv_spec((L, L), lambda c, v: (0, 0)),              # Sig
                  _inv_spec((n_r, L), lambda c, v: (0, 0)),            # B
                  _inv_spec((L, n_r), lambda c, v: (0, 0)),            # B^T
                  _inv_spec((n_r, n_r), lambda c, v: (0, 0)),          # Kcorr + var_y*I
                  pl.BlockSpec((tb, 1, n_r), lambda c, v: (c, 0, 0))],  # Ys chunk
        out_specs=(pl.BlockSpec((tb, 1, L), lambda c, v: (c, 0, 0)),    # filtered means
                   pl.BlockSpec((tb, L, L), lambda c, v: (c, 0, 0)),    # filtered covs
                   pl.BlockSpec((tb, 1, L), lambda c, v: (c, 0, 0)),    # predicted means
                   pl.BlockSpec((tb, L, L), lambda c, v: (c, 0, 0))),   # predicted covs
        scratch_shapes=[pltpu.VMEM((1, L), jnp.float32),
                        pltpu.VMEM((L, L), jnp.float32)])
    return pl.pallas_call(
        functools.partial(_filter_kernel, tb=tb),
        grid_spec=grid_spec,
        out_shape=(jax.ShapeDtypeStruct((n_t_pad, 1, L), jnp.float32),
                   jax.ShapeDtypeStruct((n_t_pad, L, L), jnp.float32),
                   jax.ShapeDtypeStruct((n_t_pad, 1, L), jnp.float32),
                   jax.ShapeDtypeStruct((n_t_pad, L, L), jnp.float32)),
        compiler_params=_mosaic_params(("arbitrary",), need),
    )(valid, m0, P0, A, Sig, B, Bt, KcR, Ys_rows)


# ---- fused RTS smoother: TB backward steps per grid step, state carried in VMEM scratch ----

def _smoother_kernel(mf_ref, Pf_ref, mp1_ref, Pp1_ref, mT_ref, PT_ref, A_ref,
                     m_out, P_out, m_sc, P_sc, *, tb, extra, nblocks):
    c = pl.program_id(0)

    @pl.when(c == 0)
    def _():
        m_sc[...] = mT_ref[0]          # smoothed state at k+1 starts as the last filtered state
        P_sc[...] = PT_ref[0]

    A = A_ref[...]
    base = (nblocks - 1 - c) * tb      # padded row offset of this (descending) block

    def step(i, carry):
        r = tb - 1 - i                 # walk the block's rows in descending time order
        g = base + r                   # padded global index; original k = g - extra

        @pl.when(g >= extra)
        def _():
            m_k = mf_ref[r]            # (1, L) filtered mean at k
            P_k = Pf_ref[r]            # (L, L) filtered cov at k
            m_p1 = mp1_ref[r]          # (1, L) predicted mean at k+1
            P_p1 = Pp1_ref[r]          # (L, L) predicted cov at k+1
            G = jax.lax.dot_general(A, P_k, (((1,), (1,)), ((), ())),
                                    preferred_element_type=jnp.float32)        # A @ P_k^T
            CT = _gj_solve(P_p1, G)                                            # C^T
            dm = m_sc[...] - m_p1
            dP = P_sc[...] - P_p1
            m_new = m_k + jnp.dot(dm, CT, preferred_element_type=jnp.float32)
            dPCT = jnp.dot(dP, CT, preferred_element_type=jnp.float32)
            P_new = P_k + jax.lax.dot_general(CT, dPCT, (((0,), (0,)), ((), ())),
                                              preferred_element_type=jnp.float32)
            P_new = 0.5 * (P_new + P_new.T)
            m_sc[...] = m_new
            P_sc[...] = P_new
            m_out[r] = m_new
            P_out[r] = P_new

        return carry

    jax.lax.fori_loop(0, tb, step, 0)


def run_smoother(ms_f, Ps_f, m_preds, P_preds, A):
    n_t = ms_f.shape[0]
    L = A.shape[0]
    nsteps = n_t - 1
    per_t = 4 * (3 * (L * L + L))
    tb = _choose_step_tile(nsteps, per_t)
    n_pad = _round_up(nsteps, tb)
    extra = n_pad - nsteps
    nblocks = n_pad // tb

    mT = ms_f[n_t - 1:]                # (1, 1, L) smoother seed = last filtered state
    PT = Ps_f[n_t - 1:]                # (1, L, L)

    def pad_front(x):
        if extra == 0:
            return x
        widths = ((extra, 0),) + ((0, 0),) * (x.ndim - 1)
        return jnp.pad(x, widths)

    # shift preds by one so every operand shares the same (descending) block index map
    mf_arr = pad_front(ms_f[:nsteps])
    Pf_arr = pad_front(Ps_f[:nsteps])
    mp1_arr = pad_front(m_preds[1:])
    Pp1_arr = pad_front(P_preds[1:])

    rev3 = lambda c: (nblocks - 1 - c, 0, 0)
    need = 2 * per_t * tb + 4 * (2 * L * L + 3 * L)
    kern = functools.partial(_smoother_kernel, tb=tb, extra=extra, nblocks=nblocks)
    m_sm, P_sm = pl.pallas_call(
        kern,
        out_shape=(jax.ShapeDtypeStruct((n_pad, 1, L), jnp.float32),
                   jax.ShapeDtypeStruct((n_pad, L, L), jnp.float32)),
        grid=(nblocks,),
        in_specs=[pl.BlockSpec((tb, 1, L), rev3),
                  pl.BlockSpec((tb, L, L), rev3),
                  pl.BlockSpec((tb, 1, L), rev3),
                  pl.BlockSpec((tb, L, L), rev3),
                  _inv_spec((1, 1, L), lambda c: (0, 0, 0)),
                  _inv_spec((1, L, L), lambda c: (0, 0, 0)),
                  _inv_spec((L, L), lambda c: (0, 0))],
        out_specs=(pl.BlockSpec((tb, 1, L), rev3),
                   pl.BlockSpec((tb, L, L), rev3)),
        scratch_shapes=[pltpu.VMEM((1, L), jnp.float32),
                        pltpu.VMEM((L, L), jnp.float32)],
        compiler_params=_mosaic_params(("arbitrary",), need),
    )(mf_arr, Pf_arr, mp1_arr, Pp1_arr, mT, PT, A)

    ms_out = jnp.concatenate([m_sm[extra:], mT], axis=0)
    Ps_out = jnp.concatenate([P_sm[extra:], PT], axis=0)
    return ms_out, Ps_out


# ---- projection to the observation grid ----------------------------------------------------

def _project_full_kernel(b_ref, bt_ref, kc_ref, m_ref, p_ref, pred_ref, cov_ref, pbt_sc, *, tb):
    Bm = b_ref[...]                                                     # (n_r, L)
    Bt = bt_ref[...]                                                    # (L, n_r)
    Kc = kc_ref[...]                                                    # (n_r, n_r)
    L = Bt.shape[0]
    n_r = Bt.shape[1]
    pred_ref[...] = jnp.dot(m_ref[...], Bt, preferred_element_type=jnp.float32)   # (tb, n_r)
    # fuse the first contraction across the whole time tile: one (tb*L, L) @ (L, n_r) matmul
    PBt = jnp.dot(p_ref[...].reshape(tb * L, L), Bt, preferred_element_type=jnp.float32)
    pbt_sc[...] = PBt.reshape(tb, L, n_r)

    def body(tt, carry):
        cov_ref[tt] = jnp.dot(Bm, pbt_sc[tt], preferred_element_type=jnp.float32) + Kc
        return carry

    jax.lax.fori_loop(0, tb, body, 0)


def project_full(B, Bt, Kcorr, m_rows, P_all):
    """preds[t] = B m[t]; covs[t] = B P[t] B^T + Kcorr (full), time-tiled / parallel grid."""
    T, L = m_rows.shape
    n_r = B.shape[0]
    per_t = 4 * (L * L + L + n_r * n_r + n_r)
    tb = _choose_time_tile(T, per_t)
    T_pad = _round_up(T, tb)
    if T_pad != T:
        m_rows = jnp.pad(m_rows, ((0, T_pad - T), (0, 0)))
        P_all = jnp.pad(P_all, ((0, T_pad - T), (0, 0), (0, 0)))
    need = 2 * per_t * tb + tb * L * n_r * 4 + 4 * (2 * n_r * L + n_r * n_r)
    kern = functools.partial(_project_full_kernel, tb=tb)
    preds, covs = pl.pallas_call(
        kern,
        out_shape=(jax.ShapeDtypeStruct((T_pad, n_r), jnp.float32),
                   jax.ShapeDtypeStruct((T_pad, n_r, n_r), jnp.float32)),
        grid=(T_pad // tb,),
        in_specs=[_inv_spec((n_r, L), lambda t: (0, 0)),
                  _inv_spec((L, n_r), lambda t: (0, 0)),
                  _inv_spec((n_r, n_r), lambda t: (0, 0)),
                  pl.BlockSpec((tb, L), lambda t: (t, 0)),
                  pl.BlockSpec((tb, L, L), lambda t: (t, 0, 0))],
        out_specs=(pl.BlockSpec((tb, n_r), lambda t: (t, 0)),
                   pl.BlockSpec((tb, n_r, n_r), lambda t: (t, 0, 0))),
        scratch_shapes=[pltpu.VMEM((tb, L, n_r), jnp.float32)],
        compiler_params=_mosaic_params(("parallel",), need),
    )(B, Bt, Kcorr, m_rows, P_all)
    return preds[:T], covs[:T]


def _project_diag_kernel(bt_ref, kcd_ref, m_ref, p_ref, pred_ref, var_ref, *, tb):
    Bt = bt_ref[...]                                                    # (L, n_r)
    kcd = kcd_ref[...]                                                  # (1, n_r)
    L = Bt.shape[0]
    n_r = Bt.shape[1]
    pred_ref[...] = jnp.dot(m_ref[...], Bt, preferred_element_type=jnp.float32)   # (tb, n_r)
    PBt = jnp.dot(p_ref[...].reshape(tb * L, L), Bt,
                  preferred_element_type=jnp.float32).reshape(tb, L, n_r)
    # diag(B P B^T)[r] = sum_l B^T[l, r] * (P B^T)[l, r]
    var_ref[...] = jnp.sum(PBt * Bt[None, :, :], axis=1) + kcd


def project_diag(Bt, kc_diag, m_rows, P_all):
    """preds[t] = B m[t]; vars[t] = diag(B P[t] B^T + Kcorr) only (smoothed half)."""
    T, L = m_rows.shape
    n_r = Bt.shape[1]
    per_t = 4 * (L * L + L + 2 * n_r)
    tb = _choose_time_tile(T, per_t)
    T_pad = _round_up(T, tb)
    if T_pad != T:
        m_rows = jnp.pad(m_rows, ((0, T_pad - T), (0, 0)))
        P_all = jnp.pad(P_all, ((0, T_pad - T), (0, 0), (0, 0)))
    need = 2 * per_t * tb + 4 * (n_r * L + n_r)
    kern = functools.partial(_project_diag_kernel, tb=tb)
    preds, variances = pl.pallas_call(
        kern,
        out_shape=(jax.ShapeDtypeStruct((T_pad, n_r), jnp.float32),
                   jax.ShapeDtypeStruct((T_pad, n_r), jnp.float32)),
        grid=(T_pad // tb,),
        in_specs=[_inv_spec((L, n_r), lambda t: (0, 0)),
                  _inv_spec((1, n_r), lambda t: (0, 0)),
                  pl.BlockSpec((tb, L), lambda t: (t, 0)),
                  pl.BlockSpec((tb, L, L), lambda t: (t, 0, 0))],
        out_specs=(pl.BlockSpec((tb, n_r), lambda t: (t, 0)),
                   pl.BlockSpec((tb, n_r), lambda t: (t, 0))),
        compiler_params=_mosaic_params(("parallel",), need),
    )(Bt, kc_diag, m_rows, P_all)
    return preds[:T], variances[:T]


# ------------------------------------------------------------------- reference helper (unused in
# the default non-robust forward; kept for parity with the PyTorch module)
def imq_and_gradient(Y, m, beta, c, alpha=0.5):
    diff = (Y - m) / c
    opd = 1.0 + diff * diff
    IMQ = beta * opd ** (-alpha)
    grad = -beta * 2.0 * alpha * diff * (1.0 / c) * opd ** (-alpha - 1.0)
    return IMQ, grad


# --------------------------------------------------------------------------- jitted forward

@functools.partial(jax.jit, static_argnames=("smoothing",))
def _rcgp_forward(raw_var_y, raw_t_ls, raw_t_mag, raw_s_ls, raw_s_mag,
                  ts, Ys, grid, sparse_grid, H, *, smoothing):
    var_y = jax.nn.softplus(raw_var_y)
    t_ls = jax.nn.softplus(raw_t_ls)
    t_mag = jax.nn.softplus(raw_t_mag)
    s_ls = jax.nn.softplus(raw_s_ls)
    s_mag = jax.nn.softplus(raw_s_mag)

    n_t, n_r, _ = Ys.shape
    n_u = sparse_grid.shape[0]
    L = H.shape[1]

    # ---- spatial Gram matrices (Pallas). K_w is skipped: unused in the non-robust path. ----
    K_uu = matern32_gram(sparse_grid, sparse_grid, s_ls, s_mag)
    K_zu = matern32_gram(grid, sparse_grid, s_ls, s_mag)
    K_zz = matern32_gram(grid, grid, s_ls, s_mag)

    # one-off small GEMMs / inverse outside the hot loop: leave to XLA.
    K_uu_inv = jnp.linalg.inv(K_uu)
    T0 = K_zu @ K_uu_inv
    B = (T0 @ H).astype(jnp.float32)                                   # (n_r, L)
    Bt = jnp.transpose(B)
    Kcorr = (t_mag * (K_zz - T0 @ K_zu.T)).astype(jnp.float32)         # (n_r, n_r)
    I_nr = jnp.eye(n_r, dtype=jnp.float32)
    KcR = Kcorr + var_y * I_nr

    # ---- temporal Matern-3/2 SDE (p = 1): state [f, f'] ----
    dt = ts[1, 0] - ts[0, 0]
    lam = jnp.sqrt(3.0) / t_ls
    Sig0 = jnp.diag(jnp.stack([t_mag, lam * lam * t_mag])).astype(jnp.float32)
    e = jnp.exp(-lam * dt)
    At = (e * jnp.stack([jnp.stack([1.0 + lam * dt, dt]),
                         jnp.stack([-(lam * lam) * dt, 1.0 - lam * dt])])).astype(jnp.float32)
    Sigt = (Sig0 - At @ Sig0 @ At.T).astype(jnp.float32)
    I_nu = jnp.eye(n_u, dtype=jnp.float32)
    # TODO(synk): A = kron(I, At) is 2x2-block-diagonal; switch to a structured per-pair apply
    #             inside the filter kernel once L exceeds a single MXU tile.
    A = jnp.kron(I_nu, At).astype(jnp.float32)
    Sig = jnp.kron(K_uu, Sigt).astype(jnp.float32)
    P0 = jnp.kron(K_uu, Sig0).astype(jnp.float32)
    m0 = jnp.zeros((1, L), jnp.float32)

    # Per-timestep validity mask computed once on-device; consumed in-kernel via scalar prefetch.
    valid0 = jnp.logical_not(jnp.any(jnp.isnan(Ys), axis=(1, 2))).astype(jnp.int32)  # (n_t,)
    Ys_rows = jnp.nan_to_num(jnp.reshape(Ys, (n_t, 1, n_r)))

    # ---- fused Kalman filter: TB timesteps per grid step, state resident in VMEM ----
    per_t_f = 4 * (n_r + 2 * (L * L + L))
    tb_f = _choose_step_tile(n_t, per_t_f)
    n_t_pad = _round_up(n_t, tb_f)
    valid = valid0
    if n_t_pad != n_t:
        valid = jnp.pad(valid0, (0, n_t_pad - n_t))
        Ys_rows = jnp.pad(Ys_rows, ((0, n_t_pad - n_t), (0, 0), (0, 0)))
    ms_f, Ps_f, m_preds, P_preds = run_filter(valid, m0, P0, A, Sig, B, Bt, KcR, Ys_rows, tb_f)
    ms_f = ms_f[:n_t]
    Ps_f = Ps_f[:n_t]
    m_preds = m_preds[:n_t]
    P_preds = P_preds[:n_t]

    # ---- fused RTS smoother (TB backward steps per grid step) ----
    if smoothing:
        ms_out, Ps_out = run_smoother(ms_f, Ps_f, m_preds, P_preds, A)
    else:
        ms_out, Ps_out = ms_f, Ps_f

    # ---- projections: full covariances only for the filter half, diag-only for smoothed ----
    preds_filt2, covs_filt = project_full(B, Bt, Kcorr,
                                          m_preds[1:n_t - 1].reshape(n_t - 2, L),
                                          P_preds[1:n_t - 1])
    preds_filt = preds_filt2[..., None]                       # (n_t-2, n_r, 1)

    kc_diag = jnp.diagonal(Kcorr)[None, :]
    preds_smooth, vars_smooth = project_diag(Bt, kc_diag,
                                             ms_out[1:n_t - 1].reshape(n_t - 2, L),
                                             Ps_out[1:n_t - 1])
    stds_smooth = jnp.sqrt(jnp.maximum(vars_smooth, 0.0))

    beta = jnp.sqrt(var_y / 2.0)                               # non-robust weight sqrt(var_y/2)
    R = var_y * I_nr
    Ws = valid0.astype(jnp.float32)[:, None, None] * beta * jnp.ones((n_t, n_r, 1), jnp.float32)
    Ws_norm = Ws[1:-1] / jnp.sum(Ws)
    eff = (Ws / beta)[1:-1]

    ms_ret = ms_out.reshape(n_t, L, 1)
    return ((preds_smooth, stds_smooth, eff),
            (preds_filt, covs_filt, R, Ws_norm),
            (ms_ret, Ps_out))


# ----------------------------------------------------------------------------- module (JAX)

class SparseSpatioTemporalRCGP:
    def __init__(self, ts, grid, Ys, sparse_pts, p=1,
                 raw_var_y_init=1.0, raw_temporal_lengthscale_init=1.0,
                 raw_temporal_magnitude_init=1.0, raw_spatial_lengthscale_init=1.0,
                 raw_spatial_magnitude_init=1.0, IMQ_exponent=0.5, key=None):
        assert p == 1  # TODO(synk): general-p MaternProcess needs a matrix exponential; p=1 only.
        self.p = p
        self.n_r = grid.shape[0]
        self.d = grid.shape[1] + 1
        self.grid = grid.astype(jnp.float32)
        self._ts = ts.astype(jnp.float32)
        self._Ys = Ys.astype(jnp.float32)

        # padding (one NaN row at each end, extrapolated time stamps)
        t0 = (self._ts[0] - (self._ts[1] - self._ts[0]))[None, :]
        tf = (self._ts[-1] + (self._ts[-1] - self._ts[-2]))[None, :]
        self.ts = jnp.concatenate([t0, self._ts, tf], axis=0)
        nan_row = jnp.full((1, self.n_r, 1), jnp.nan, jnp.float32)
        self.Ys = jnp.concatenate([nan_row, self._Ys, nan_row], axis=0)
        self.n_t = self.ts.shape[0]

        # raw (unconstrained) parameters, deterministic init
        self._raw_var_y = jnp.asarray(raw_var_y_init, jnp.float32)
        self._raw_temporal_lengthscale = jnp.asarray(raw_temporal_lengthscale_init, jnp.float32)
        self._raw_temporal_magnitude = jnp.asarray(raw_temporal_magnitude_init, jnp.float32)
        self._raw_spatial_lengthscale = jnp.asarray(raw_spatial_lengthscale_init, jnp.float32)
        self._raw_spatial_magnitude = jnp.asarray(raw_spatial_magnitude_init, jnp.float32)

        self.n_u = int(sparse_pts)
        key = jax.random.PRNGKey(0) if key is None else key
        self.sparse_grid = jax.random.uniform(key, (self.n_u, self.d - 1), dtype=jnp.float32)

        self.IMQ_exponent = float(IMQ_exponent)
        H0 = jnp.zeros((1, p + 1), jnp.float32).at[0, 0].set(1.0)          # eye(1, p+1)
        self.H = jnp.kron(jnp.eye(self.n_u, dtype=jnp.float32), H0)        # (n_u, n_u*(p+1))
        self.latent_size = self.n_u * (p + 1)
        self.K_w = None
        self._K_w_lengthscale = 4.0

    # constrained hyperparameters
    @property
    def var_y(self): return jax.nn.softplus(self._raw_var_y)
    @property
    def temporal_lengthscale(self): return jax.nn.softplus(self._raw_temporal_lengthscale)
    @property
    def temporal_magnitude(self): return jax.nn.softplus(self._raw_temporal_magnitude)
    @property
    def spatial_lengthscale(self): return jax.nn.softplus(self._raw_spatial_lengthscale)
    @property
    def spatial_magnitude(self): return jax.nn.softplus(self._raw_spatial_magnitude)
    @property
    def beta(self): return jnp.sqrt(self.var_y / 2.0)

    def compute_K_w(self):
        # Row-normalized Matern-3/2 weights; only the robust / local prior-mean paths need this.
        return matern32_gram(self.grid, self.grid, self._K_w_lengthscale, 1.0,
                             normalize_rows=True)

    def forward(self, smoothing=True):
        return _rcgp_forward(self._raw_var_y, self._raw_temporal_lengthscale,
                             self._raw_temporal_magnitude, self._raw_spatial_lengthscale,
                             self._raw_spatial_magnitude,
                             self.ts, self.Ys, self.grid, self.sparse_grid, self.H,
                             smoothing=bool(smoothing))


# ----------------------------------------------------------------------------- main

if __name__ == "__main__":
    key = jax.random.PRNGKey(0)
    k_grid, k_y, k_sparse = jax.random.split(key, 3)

    n_t, n_r, n_u, d_spatial, p = 8, 16, 8, 2, 1
    ts = (jnp.arange(n_t, dtype=jnp.float32) * 0.1).reshape(n_t, 1)
    grid = jax.random.uniform(k_grid, (n_r, d_spatial), dtype=jnp.float32)
    Ys = jax.random.normal(k_y, (n_t, n_r, 1), dtype=jnp.float32)

    model = SparseSpatioTemporalRCGP(ts=ts, grid=grid, Ys=Ys, sparse_pts=n_u, p=p, key=k_sparse)
    out = model.forward(smoothing=True)
    jax.block_until_ready(out)

    (preds_smooth, stds_smooth, eff), (preds_filt, covs_filt, R, Ws_norm), (ms, Ps) = out
    assert preds_smooth.shape == (n_t, n_r)
    assert stds_smooth.shape == (n_t, n_r)
    assert eff.shape == (n_t, n_r, 1)
    assert preds_filt.shape == (n_t, n_r, 1)
    assert covs_filt.shape == (n_t, n_r, n_r)
    assert R.shape == (n_r, n_r)
    assert Ws_norm.shape == (n_t, n_r, 1)
    assert ms.shape == (n_t + 2, n_u * (p + 1), 1)
    assert Ps.shape == (n_t + 2, n_u * (p + 1), n_u * (p + 1))
    assert bool(jnp.all(jnp.isfinite(preds_smooth))) and bool(jnp.all(jnp.isfinite(stds_smooth)))
    print("KERNEL_OK")
</pallas_src>

<mosaic_0001>
module attributes {stable_mosaic.version = 11 : i64} {
  func.func @_k(%arg0: i32, %arg1: memref<8x128xf32, #tpu.memory_space<vmem>>, %arg2: memref<8x128xf32, #tpu.memory_space<vmem>>) attributes {dimension_semantics = [#tpu.dimension_semantics<arbitrary>], iteration_bounds = array<i64: 2>, scalar_prefetch = 0 : i64, scratch_operands = 0 : i64, tpu.core_type = #tpu.core_type<tc>, window_params = [{pipeline_mode = #tpu.pipeline_mode<synchronous>, transform_indices = @transform_0, window_bounds = array<i64: 8, 128>}, {pipeline_mode = #tpu.pipeline_mode<synchronous>, transform_indices = @transform_1, window_bounds = array<i64: 8, 128>}]} {
    %c0 = arith.constant 0 : index
    %c0_0 = arith.constant 0 : index
    %0 = vector.load %arg1[%c0, %c0_0] : memref<8x128xf32, #tpu.memory_space<vmem>>, vector<8x128xf32>
    %cst = arith.constant 1.000000e+00 : f32
    %1 = vector.broadcast %cst : f32 to vector<8x128xf32>
    %2 = arith.addf %0, %1 : vector<8x128xf32>
    %c0_1 = arith.constant 0 : index
    %c0_2 = arith.constant 0 : index
    %3 = vector.load %arg2[%c0_1, %c0_2] : memref<8x128xf32, #tpu.memory_space<vmem>>, vector<8x128xf32>
    tpu.vector_store %arg2[%c0_1, %c0_2], %2 {strides = array<i32>} : memref<8x128xf32, #tpu.memory_space<vmem>>, vector<8x128xf32>,
    return
  }
  func.func @transform_0(%arg0: i32) -> (i32, i32) {
    %c0_i32 = arith.constant 0 : i32
    %c0_i32_0 = arith.constant 0 : i32
    %c0_i32_1 = arith.constant 0 : i32
    return %c0_i32, %c0_i32_0 : i32, i32
  }
  func.func @transform_1(%arg0: i32) -> (i32, i32) {
    %c0_i32 = arith.constant 0 : i32
    %c0_i32_0 = arith.constant 0 : i32
    %c0_i32_1 = arith.constant 0 : i32
    return %c0_i32, %c0_i32_0 : i32, i32
  }
}

module attributes {stable_mosaic.version = 11 : i64} {
  func.func @_matern32_gram_kernel(%arg0: i32, %arg1: memref<2xf32, #tpu.memory_space<smem>>, %arg2: memref<8x2xf32, #tpu.memory_space<vmem>>, %arg3: memref<8x2xf32, #tpu.memory_space<vmem>>, %arg4: memref<8x8xf32, #tpu.memory_space<vmem>>) attributes {dimension_semantics = [#tpu.dimension_semantics<parallel>], iteration_bounds = array<i64: 1>, scalar_prefetch = 0 : i64, scratch_operands = 0 : i64, tpu.core_type = #tpu.core_type<tc>, window_params = [{transform_indices = @transform_0, window_bounds = array<i64: 2>}, {transform_indices = @transform_1, window_bounds = array<i64: 8, 2>}, {pipeline_mode = #tpu.pipeline_mode<synchronous>, transform_indices = @transform_2, window_bounds = array<i64: 8, 2>}, {transform_indices = @transform_3, window_bounds = array<i64: 8, 8>}]} {
    %c0 = arith.constant 0 : index
    %0 = memref.load %arg1[%c0] : memref<2xf32, #tpu.memory_space<smem>>
    %c1 = arith.constant 1 : index
    %1 = memref.load %arg1[%c1] : memref<2xf32, #tpu.memory_space<smem>>
    %c0_0 = arith.constant 0 : index
    %c0_1 = arith.constant 0 : index
    %2 = vector.load %arg2[%c0_0, %c0_1] : memref<8x2xf32, #tpu.memory_space<vmem>>, vector<8x2xf32>
    %c0_2 = arith.constant 0 : index
    %c0_3 = arith.constant 0 : index
    %3 = vector.load %arg3[%c0_2, %c0_3] : memref<8x2xf32, #tpu.memory_space<vmem>>, vector<8x2xf32>
    %4 = arith.mulf %2, %2 : vector<8x2xf32>
    %cst = arith.constant dense<0.000000e+00> : vector<8xf32>
    %5 = vector.multi_reduction <add>, %4, %cst [1] : vector<8x2xf32> to vector<8xf32>
    %6 = vector.shape_cast %5 : vector<8xf32> to vector<8x1xf32>
    %cst_4 = arith.constant 1.000000e+00 : f32
    %7 = vector.broadcast %cst_4 : f32 to vector<1x2xf32>
    %8 = arith.mulf %3, %3 : vector<8x2xf32>
    %cst_5 = arith.constant dense<0.000000e+00> : vector<1x8xf32>
    %9 = tpu.matmul %7, %8, %cst_5 {dimension_numbers = #tpu.dot_dimension_numbers<[1], [1], [0], [0], [0, 0, 1, 0], [], []>} : vector<1x2xf32>, vector<8x2xf32>, vector<1x8xf32> -> vector<1x8xf32>
    %cst_6 = arith.constant dense<0.000000e+00> : vector<8x8xf32>
    %10 = tpu.matmul %2, %3, %cst_6 {dimension_numbers = #tpu.dot_dimension_numbers<[1], [1], [0], [0], [0, 0, 1, 0], [], []>} : vector<8x2xf32>, vector<8x2xf32>, vector<8x8xf32> -> vector<8x8xf32>
    %11 = vector.broadcast %6 : vector<8x1xf32> to vector<8x8xf32>
    %12 = vector.broadcast %9 : vector<1x8xf32> to vector<8x8xf32>
    %13 = arith.addf %11, %12 : vector<8x8xf32>
    %cst_7 = arith.constant 2.000000e+00 : f32
    %14 = vector.broadcast %cst_7 : f32 to vector<8x8xf32>
    %15 = arith.mulf %14, %10 : vector<8x8xf32>
    %16 = arith.subf %13, %15 : vector<8x8xf32>
    %cst_8 = arith.constant 0.000000e+00 : f32
    %17 = vector.broadcast %cst_8 : f32 to vector<8x8xf32>
    %18 = arith.maximumf %16, %17 : vector<8x8xf32>
    %19 = math.sqrt %18 : vector<8x8xf32>
    %cst_9 = arith.constant 1.73205078 : f32
    %20 = vector.broadcast %cst_9 : f32 to vector<8x8xf32>
    %21 = arith.mulf %20, %19 : vector<8x8xf32>
    %22 = vector.broadcast %0 : f32 to vector<8x8xf32>
    %23 = arith.divf %21, %22 : vector<8x8xf32>
    %cst_10 = arith.constant 1.000000e+00 : f32
    %24 = vector.broadcast %cst_10 : f32 to vector<8x8xf32>
    %25 = arith.addf %24, %23 : vector<8x8xf32>
    %26 = vector.broadcast %1 : f32 to vector<8x8xf32>
    %27 = arith.mulf %26, %25 : vector<8x8xf32>
    %cst_11 = arith.constant 0.000000e+00 : f32
    %28 = vector.broadcast %cst_11 : f32 to vector<8x8xf32>
    %29 = arith.subf %28, %23 : vector<8x8xf32>
    %30 = math.exp %29 : vector<8x8xf32>
    %31 = arith.mulf %27, %30 : vector<8x8xf32>
    %c0_12 = arith.constant 0 : index
    %c0_13 = arith.constant 0 : index
    %32 = vector.load %arg4[%c0_12, %c0_13] : memref<8x8xf32, #tpu.memory_space<vmem>>, vector<8x8xf32>
    tpu.vector_store %arg4[%c0_12, %c0_13], %31 {strides = array<i32>} : memref<8x8xf32, #tpu.memory_space<vmem>>, vector<8x8xf32>,
    return
  }
  func.func @transform_0(%arg0: i32) -> i32 {
    %c0_i32 = arith.constant 0 : i32
    %c0_i32_0 = arith.constant 0 : i32
    return %c0_i32 : i32
  }
  func.func @transform_1(%arg0: i32) -> (i32, i32) {
    %c0_i32 = arith.constant 0 : i32
    %c0_i32_0 = arith.constant 0 : i32
    return %arg0, %c0_i32 : i32, i32
  }
  func.func @transform_2(%arg0: i32) -> (i32, i32) {
    %c0_i32 = arith.constant 0 : i32
    %c0_i32_0 = arith.constant 0 : i32
    %c0_i32_1 = arith.constant 0 : i32
    return %c0_i32, %c0_i32_0 : i32, i32
  }
  func.func @transform_3(%arg0: i32) -> (i32, i32) {
    %c0_i32 = arith.constant 0 : i32
    %c0_i32_0 = arith.constant 0 : i32
    return %arg0, %c0_i32 : i32, i32
  }
}

module attributes {stable_mosaic.version = 11 : i64} {
  func.func @_matern32_gram_kernel(%arg0: i32, %arg1: memref<2xf32, #tpu.memory_space<smem>>, %arg2: memref<16x2xf32, #tpu.memory_space<vmem>>, %arg3: memref<16x2xf32, #tpu.memory_space<vmem>>, %arg4: memref<16x16xf32, #tpu.memory_space<vmem>>) attributes {dimension_semantics = [#tpu.dimension_semantics<parallel>], iteration_bounds = array<i64: 1>, scalar_prefetch = 0 : i64, scratch_operands = 0 : i64, tpu.core_type = #tpu.core_type<tc>, window_params = [{transform_indices = @transform_0, window_bounds = array<i64: 2>}, {transform_indices = @transform_1, window_bounds = array<i64: 16, 2>}, {pipeline_mode = #tpu.pipeline_mode<synchronous>, transform_indices = @transform_2, window_bounds = array<i64: 16, 2>}, {transform_indices = @transform_3, window_bounds = array<i64: 16, 16>}]} {
    %c0 = arith.constant 0 : index
    %0 = memref.load %arg1[%c0] : memref<2xf32, #tpu.memory_space<smem>>
    %c1 = arith.constant 1 : index
    %1 = memref.load %arg1[%c1] : memref<2xf32, #tpu.memory_space<smem>>
    %c0_0 = arith.constant 0 : index
    %c0_1 = arith.constant 0 : index
    %2 = vector.load %arg2[%c0_0, %c0_1] : memref<16x2xf32, #tpu.memory_space<vmem>>, vector<16x2xf32>
    %c0_2 = arith.constant 0 : index
    %c0_3 = arith.constant 0 : index
    %3 = vector.load %arg3[%c0_2, %c0_3] : memref<16x2xf32, #tpu.memory_space<vmem>>, vector<16x2xf32>
    %4 = arith.mulf %2, %2 : vector<16x2xf32>
    %cst = arith.constant dense<0.000000e+00> : vector<16xf32>
    %5 = vector.multi_reduction <add>, %4, %cst [1] : vector<16x2xf32> to vector<16xf32>
    %6 = vector.shape_cast %5 : vector<16xf32> to vector<16x1xf32>
    %cst_4 = arith.constant 1.000000e+00 : f32
    %7 = vector.broadcast %cst_4 : f32 to vector<1x2xf32>
    %8 = arith.mulf %3, %3 : vector<16x2xf32>
    %cst_5 = arith.constant dense<0.000000e+00> : vector<1x16xf32>
    %9 = tpu.matmul %7, %8, %cst_5 {dimension_numbers = #tpu.dot_dimension_numbers<[1], [1], [0], [0], [0, 0, 1, 0], [], []>} : vector<1x2xf32>, vector<16x2xf32>, vector<1x16xf32> -> vector<1x16xf32>
    %cst_6 = arith.constant dense<0.000000e+00> : vector<16x16xf32>
    %10 = tpu.matmul %2, %3, %cst_6 {dimension_numbers = #tpu.dot_dimension_numbers<[1], [1], [0], [0], [0, 0, 1, 0], [], []>} : vector<16x2xf32>, vector<16x2xf32>, vector<16x16xf32> -> vector<16x16xf32>
    %11 = vector.broadcast %6 : vector<16x1xf32> to vector<16x16xf32>
    %12 = vector.broadcast %9 : vector<1x16xf32> to vector<16x16xf32>
    %13 = arith.addf %11, %12 : vector<16x16xf32>
    %cst_7 = arith.constant 2.000000e+00 : f32
    %14 = vector.broadcast %cst_7 : f32 to vector<16x16xf32>
    %15 = arith.mulf %14, %10 : vector<16x16xf32>
    %16 = arith.subf %13, %15 : vector<16x16xf32>
    %cst_8 = arith.constant 0.000000e+00 : f32
    %17 = vector.broadcast %cst_8 : f32 to vector<16x16xf32>
    %18 = arith.maximumf %16, %17 : vector<16x16xf32>
    %19 = math.sqrt %18 : vector<16x16xf32>
    %cst_9 = arith.constant 1.73205078 : f32
    %20 = vector.broadcast %cst_9 : f32 to vector<16x16xf32>
    %21 = arith.mulf %20, %19 : vector<16x16xf32>
    %22 = vector.broadcast %0 : f32 to vector<16x16xf32>
    %23 = arith.divf %21, %22 : vector<16x16xf32>
    %cst_10 = arith.constant 1.000000e+00 : f32
    %24 = vector.broadcast %cst_10 : f32 to vector<16x16xf32>
    %25 = arith.addf %24, %23 : vector<16x16xf32>
    %26 = vector.broadcast %1 : f32 to vector<16x16xf32>
    %27 = arith.mulf %26, %25 : vector<16x16xf32>
    %cst_11 = arith.constant 0.000000e+00 : f32
    %28 = vector.broadcast %cst_11 : f32 to vector<16x16xf32>
    %29 = arith.subf %28, %23 : vector<16x16xf32>
    %30 = math.exp %29 : vector<16x16xf32>
    %31 = arith.mulf %27, %30 : vector<16x16xf32>
    %c0_12 = arith.constant 0 : index
    %c0_13 = arith.constant 0 : index
    %32 = vector.load %arg4[%c0_12, %c0_13] : memref<16x16xf32, #tpu.memory_space<vmem>>, vector<16x16xf32>
    tpu.vector_store %arg4[%c0_12, %c0_13], %31 {strides = array<i32>} : memref<16x16xf32, #tpu.memory_space<vmem>>, vector<16x16xf32>,
    return
  }
  func.func @transform_0(%arg0: i32) -> i32 {
    %c0_i32 = arith.constant 0 : i32
    %c0_i32_0 = arith.constant 0 : i32
    return %c0_i32 : i32
  }
  func.func @transform_1(%arg0: i32) -> (i32, i32) {
    %c0_i32 = arith.constant 0 : i32
    %c0_i32_0 = arith.constant 0 : i32
    return %arg0, %c0_i32 : i32, i32
  }
  func.func @transform_2(%arg0: i32) -> (i32, i32) {
    %c0_i32 = arith.constant 0 : i32
    %c0_i32_0 = arith.constant 0 : i32
    %c0_i32_1 = arith.constant 0 : i32
    return %c0_i32, %c0_i32_0 : i32, i32
  }
  func.func @transform_3(%arg0: i32) -> (i32, i32) {
    %c0_i32 = arith.constant 0 : i32
    %c0_i32_0 = arith.constant 0 : i32
    return %arg0, %c0_i32 : i32, i32
  }
}

module attributes {stable_mosaic.version = 11 : i64} {
  func.func @_matern32_gram_kernel(%arg0: i32, %arg1: memref<2xf32, #tpu.memory_space<smem>>, %arg2: memref<16x2xf32, #tpu.memory_space<vmem>>, %arg3: memref<8x2xf32, #tpu.memory_space<vmem>>, %arg4: memref<16x8xf32, #tpu.memory_space<vmem>>) attributes {dimension_semantics = [#tpu.dimension_semantics<parallel>], iteration_bounds = array<i64: 1>, scalar_prefetch = 0 : i64, scratch_operands = 0 : i64, tpu.core_type = #tpu.core_type<tc>, window_params = [{transform_indices = @transform_0, window_bounds = array<i64: 2>}, {transform_indices = @transform_1, window_bounds = array<i64: 16, 2>}, {pipeline_mode = #tpu.pipeline_mode<synchronous>, transform_indices = @transform_2, window_bounds = array<i64: 8, 2>}, {transform_indices = @transform_3, window_bounds = array<i64: 16, 8>}]} {
    %c0 = arith.constant 0 : index
    %0 = memref.load %arg1[%c0] : memref<2xf32, #tpu.memory_space<smem>>
    %c1 = arith.constant 1 : index
    %1 = memref.load %arg1[%c1] : memref<2xf32, #tpu.memory_space<smem>>
    %c0_0 = arith.constant 0 : index
    %c0_1 = arith.constant 0 : index
    %2 = vector.load %arg2[%c0_0, %c0_1] : memref<16x2xf32, #tpu.memory_space<vmem>>, vector<16x2xf32>
    %c0_2 = arith.constant 0 : index
    %c0_3 = arith.constant 0 : index
    %3 = vector.load %arg3[%c0_2, %c0_3] : memref<8x2xf32, #tpu.memory_space<vmem>>, vector<8x2xf32>
    %4 = arith.mulf %2, %2 : vector<16x2xf32>
    %cst = arith.constant dense<0.000000e+00> : vector<16xf32>
    %5 = vector.multi_reduction <add>, %4, %cst [1] : vector<16x2xf32> to vector<16xf32>
    %6 = vector.shape_cast %5 : vector<16xf32> to vector<16x1xf32>
    %cst_4 = arith.constant 1.000000e+00 : f32
    %7 = vector.broadcast %cst_4 : f32 to vector<1x2xf32>
    %8 = arith.mulf %3, %3 : vector<8x2xf32>
    %cst_5 = arith.constant dense<0.000000e+00> : vector<1x8xf32>
    %9 = tpu.matmul %7, %8, %cst_5 {dimension_numbers = #tpu.dot_dimension_numbers<[1], [1], [0], [0], [0, 0, 1, 0], [], []>} : vector<1x2xf32>, vector<8x2xf32>, vector<1x8xf32> -> vector<1x8xf32>
    %cst_6 = arith.constant dense<0.000000e+00> : vector<16x8xf32>
    %10 = tpu.matmul %2, %3, %cst_6 {dimension_numbers = #tpu.dot_dimension_numbers<[1], [1], [0], [0], [0, 0, 1, 0], [], []>} : vector<16x2xf32>, vector<8x2xf32>, vector<16x8xf32> -> vector<16x8xf32>
    %11 = vector.broadcast %6 : vector<16x1xf32> to vector<16x8xf32>
    %12 = vector.broadcast %9 : vector<1x8xf32> to vector<16x8xf32>
    %13 = arith.addf %11, %12 : vector<16x8xf32>
    %cst_7 = arith.constant 2.000000e+00 : f32
    %14 = vector.broadcast %cst_7 : f32 to vector<16x8xf32>
    %15 = arith.mulf %14, %10 : vector<16x8xf32>
    %16 = arith.subf %13, %15 : vector<16x8xf32>
    %cst_8 = arith.constant 0.000000e+00 : f32
    %17 = vector.broadcast %cst_8 : f32 to vector<16x8xf32>
    %18 = arith.maximumf %16, %17 : vector<16x8xf32>
    %19 = math.sqrt %18 : vector<16x8xf32>
    %cst_9 = arith.constant 1.73205078 : f32
    %20 = vector.broadcast %cst_9 : f32 to vector<16x8xf32>
    %21 = arith.mulf %20, %19 : vector<16x8xf32>
    %22 = vector.broadcast %0 : f32 to vector<16x8xf32>
    %23 = arith.divf %21, %22 : vector<16x8xf32>
    %cst_10 = arith.constant 1.000000e+00 : f32
    %24 = vector.broadcast %cst_10 : f32 to vector<16x8xf32>
    %25 = arith.addf %24, %23 : vector<16x8xf32>
    %26 = vector.broadcast %1 : f32 to vector<16x8xf32>
    %27 = arith.mulf %26, %25 : vector<16x8xf32>
    %cst_11 = arith.constant 0.000000e+00 : f32
    %28 = vector.broadcast %cst_11 : f32 to vector<16x8xf32>
    %29 = arith.subf %28, %23 : vector<16x8xf32>
    %30 = math.exp %29 : vector<16x8xf32>
    %31 = arith.mulf %27, %30 : vector<16x8xf32>
    %c0_12 = arith.constant 0 : index
    %c0_13 = arith.constant 0 : index
    %32 = vector.load %arg4[%c0_12, %c0_13] : memref<16x8xf32, #tpu.memory_space<vmem>>, vector<16x8xf32>
    tpu.vector_store %arg4[%c0_12, %c0_13], %31 {strides = array<i32>} : memref<16x8xf32, #tpu.memory_space<vmem>>, vector<16x8xf32>,
    return
  }
  func.func @transform_0(%arg0: i32) -> i32 {
    %c0_i32 = arith.constant 0 : i32
    %c0_i32_0 = arith.constant 0 : i32
    return %c0_i32 : i32
  }
  func.func @transform_1(%arg0: i32) -> (i32, i32) {
    %c0_i32 = arith.constant 0 : i32
    %c0_i32_0 = arith.constant 0 : i32
    return %arg0, %c0_i32 : i32, i32
  }
  func.func @transform_2(%arg0: i32) -> (i32, i32) {
    %c0_i32 = arith.constant 0 : i32
    %c0_i32_0 = arith.constant 0 : i32
    %c0_i32_1 = arith.constant 0 : i32
    return %c0_i32, %c0_i32_0 : i32, i32
  }
  func.func @transform_3(%arg0: i32) -> (i32, i32) {
    %c0_i32 = arith.constant 0 : i32
    %c0_i32_0 = arith.constant 0 : i32
    return %arg0, %c0_i32 : i32, i32
  }
}

module attributes {stable_mosaic.version = 11 : i64} {
  func.func @_filter_kernel(%arg0: i32, %arg1: memref<16xi32, #tpu.memory_space<smem>>, %arg2: memref<1x16xf32, #tpu.memory_space<vmem>>, %arg3: memref<16x16xf32, #tpu.memory_space<vmem>>, %arg4: memref<16x16xf32, #tpu.memory_space<vmem>>, %arg5: memref<16x16xf32, #tpu.memory_space<vmem>>, %arg6: memref<16x16xf32, #tpu.memory_space<vmem>>, %arg7: memref<16x16xf32, #tpu.memory_space<vmem>>, %arg8: memref<16x16xf32, #tpu.memory_space<vmem>>, %arg9: memref<16x1x16xf32, #tpu.memory_space<vmem>>, %arg10: memref<16x1x16xf32, #tpu.memory_space<vmem>>, %arg11: memref<16x16x16xf32, #tpu.memory_space<vmem>>, %arg12: memref<16x1x16xf32, #tpu.memory_space<vmem>>, %arg13: memref<16x16x16xf32, #tpu.memory_space<vmem>>, %arg14: memref<1x16xf32, #tpu.memory_space<vmem>>, %arg15: memref<16x16xf32, #tpu.memory_space<vmem>>) attributes {dimension_semantics = [#tpu.dimension_semantics<arbitrary>], iteration_bounds = array<i64: 1>, scalar_prefetch = 1 : i64, scratch_operands = 2 : i64, tpu.core_type = #tpu.core_type<tc>, window_params = [{pipeline_mode = #tpu.pipeline_mode<synchronous>, transform_indices = @transform_0, window_bounds = array<i64: 1, 16>}, {pipeline_mode = #tpu.pipeline_mode<synchronous>, transform_indices = @transform_1, window_bounds = array<i64: 16, 16>}, {pipeline_mode = #tpu.pipeline_mode<synchronous>, transform_indices = @transform_2, window_bounds = array<i64: 16, 16>}, {pipeline_mode = #tpu.pipeline_mode<synchronous>, transform_indices = @transform_3, window_bounds = array<i64: 16, 16>}, {pipeline_mode = #tpu.pipeline_mode<synchronous>, transform_indices = @transform_4, window_bounds = array<i64: 16, 16>}, {pipeline_mode = #tpu.pipeline_mode<synchronous>, transform_indices = @transform_5, window_bounds = array<i64: 16, 16>}, {pipeline_mode = #tpu.pipeline_mode<synchronous>, transform_indices = @transform_6, window_bounds = array<i64: 16, 16>}, {transform_indices = @transform_7, window_bounds = array<i64: 16, 1, 16>}, {transform_indices = @transform_8, window_bounds = array<i64: 16, 1, 16>}, {transform_indices = @transform_9, window_bounds = array<i64: 16, 16, 16>}, {transform_indices = @transform_10, window_bounds = array<i64: 16, 1, 16>}, {transform_indices = @transform_11, window_bounds = array<i64: 16, 16, 16>}]} {
    %c0 = arith.constant 0 : index
    %c0_0 = arith.constant 0 : index
    %0 = vector.load %arg4[%c0, %c0_0] : memref<16x16xf32, #tpu.memory_space<vmem>>, vector<16x16xf32>
    %c0_1 = arith.constant 0 : index
    %c0_2 = arith.constant 0 : index
    %1 = vector.load %arg5[%c0_1, %c0_2] : memref<16x16xf32, #tpu.memory_space<vmem>>, vector<16x16xf32>
    %c0_3 = arith.constant 0 : index
    %c0_4 = arith.constant 0 : index
    %2 = vector.load %arg6[%c0_3, %c0_4] : memref<16x16xf32, #tpu.memory_space<vmem>>, vector<16x16xf32>
    %c0_5 = arith.constant 0 : index
    %c0_6 = arith.constant 0 : index
    %3 = vector.load %arg7[%c0_5, %c0_6] : memref<16x16xf32, #tpu.memory_space<vmem>>, vector<16x16xf32>
    %c0_7 = arith.constant 0 : index
    %c0_8 = arith.constant 0 : index
    %4 = vector.load %arg8[%c0_7, %c0_8] : memref<16x16xf32, #tpu.memory_space<vmem>>, vector<16x16xf32>
    %c0_i32 = arith.constant 0 : i32
    %c16_i32 = arith.constant 16 : i32
    %5 = arith.addi %c0_i32, %c16_i32 : i32
    %c1_i32 = arith.constant 1 : i32
    scf.for %arg16 = %c0_i32 to %5 step %c1_i32  : i32 {
      %c16_i32_10 = arith.constant 16 : i32
      %6 = arith.muli %arg0, %c16_i32_10 : i32
      %7 = arith.addi %6, %arg16 : i32
      %c0_i32_11 = arith.constant 0 : i32
      %8 = arith.cmpi eq, %7, %c0_i32_11 : i32
      %9 = arith.extui %8 : i1 to i32
      %c0_i32_12 = arith.constant 0 : i32
      %10 = arith.cmpi ne, %9, %c0_i32_12 : i32
      scf.if %10 {
        %c0_15 = arith.constant 0 : index
        %c0_16 = arith.constant 0 : index
        %14 = vector.load %arg2[%c0_15, %c0_16] : memref<1x16xf32, #tpu.memory_space<vmem>>, vector<1x16xf32>
        %c0_17 = arith.constant 0 : index
        %c0_18 = arith.constant 0 : index
        %15 = vector.load %arg3[%c0_17, %c0_18] : memref<16x16xf32, #tpu.memory_space<vmem>>, vector<16x16xf32>
        %c0_19 = arith.constant 0 : index
        %c0_20 = arith.constant 0 : index
        %16 = vector.load %arg14[%c0_19, %c0_20] : memref<1x16xf32, #tpu.memory_space<vmem>>, vector<1x16xf32>
        tpu.vector_store %arg14[%c0_19, %c0_20], %14 {strides = array<i32>} : memref<1x16xf32, #tpu.memory_space<vmem>>, vector<1x16xf32>,
        %c0_21 = arith.constant 0 : index
        %c0_22 = arith.constant 0 : index
        %17 = vector.load %arg15[%c0_21, %c0_22] : memref<16x16xf32, #tpu.memory_space<vmem>>, vector<16x16xf32>
        tpu.vector_store %arg15[%c0_21, %c0_22], %15 {strides = array<i32>} : memref<16x16xf32, #tpu.memory_space<vmem>>, vector<16x16xf32>,
        %18 = arith.index_cast %arg16 : i32 to index
        %c0_23 = arith.constant 0 : index
        %c0_24 = arith.constant 0 : index
        %19 = vector.load %arg10[%18, %c0_23, %c0_24] : memref<16x1x16xf32, #tpu.memory_space<vmem>>, vector<1x1x16xf32>
        %20 = vector.shape_cast %19 : vector<1x1x16xf32> to vector<1x16xf32>
        %21 = vector.shape_cast %14 : vector<1x16xf32> to vector<1x1x16xf32>
        tpu.vector_store %arg10[%18, %c0_23, %c0_24], %21 {strides = array<i32>} : memref<16x1x16xf32, #tpu.memory_space<vmem>>, vector<1x1x16xf32>,
        %22 = arith.index_cast %arg16 : i32 to index
        %c0_25 = arith.constant 0 : index
        %c0_26 = arith.constant 0 : index
        %23 = vector.load %arg11[%22, %c0_25, %c0_26] : memref<16x16x16xf32, #tpu.memory_space<vmem>>, vector<1x16x16xf32>
        %24 = vector.shape_cast %23 : vector<1x16x16xf32> to vector<16x16xf32>
        %25 = vector.shape_cast %15 : vector<16x16xf32> to vector<1x16x16xf32>
        tpu.vector_store %arg11[%22, %c0_25, %c0_26], %25 {strides = array<i32>} : memref<16x16x16xf32, #tpu.memory_space<vmem>>, vector<1x16x16xf32>,
        %26 = arith.index_cast %arg16 : i32 to index
        %c0_27 = arith.constant 0 : index
        %c0_28 = arith.constant 0 : index
        %27 = vector.load %arg12[%26, %c0_27, %c0_28] : memref<16x1x16xf32, #tpu.memory_space<vmem>>, vector<1x1x16xf32>
        %28 = vector.shape_cast %27 : vector<1x1x16xf32> to vector<1x16xf32>
        %29 = vector.shape_cast %14 : vector<1x16xf32> to vector<1x1x16xf32>
        tpu.vector_store %arg12[%26, %c0_27, %c0_28], %29 {strides = array<i32>} : memref<16x1x16xf32, #tpu.memory_space<vmem>>, vector<1x1x16xf32>,
        %30 = arith.index_cast %arg16 : i32 to index
        %c0_29 = arith.constant 0 : index
        %c0_30 = arith.constant 0 : index
        %31 = vector.load %arg13[%30, %c0_29, %c0_30] : memref<16x16x16xf32, #tpu.memory_space<vmem>>, vector<1x16x16xf32>
        %32 = vector.shape_cast %31 : vector<1x16x16xf32> to vector<16x16xf32>
        %33 = vector.shape_cast %15 : vector<16x16xf32> to vector<1x16x16xf32>
        tpu.vector_store %arg13[%30, %c0_29, %c0_30], %33 {strides = array<i32>} : memref<16x16x16xf32, #tpu.memory_space<vmem>>, vector<1x16x16xf32>,
      } else {
      }
      %c0_i32_13 = arith.constant 0 : i32
      %11 = arith.cmpi sgt, %7, %c0_i32_13 : i32
      %12 = arith.extui %11 : i1 to i32
      %c0_i32_14 = arith.constant 0 : i32
      %13 = arith.cmpi ne, %12, %c0_i32_14 : i32
      scf.if %13 {
        %c0_15 = arith.constant 0 : index
        %c0_16 = arith.constant 0 : index
        %14 = vector.load %arg14[%c0_15, %c0_16] : memref<1x16xf32, #tpu.memory_space<vmem>>, vector<1x16xf32>
        %c0_17 = arith.constant 0 : index
        %c0_18 = arith.constant 0 : index
        %15 = vector.load %arg15[%c0_17, %c0_18] : memref<16x16xf32, #tpu.memory_space<vmem>>, vector<16x16xf32>
        %cst = arith.constant dense<0.000000e+00> : vector<1x16xf32>
        %16 = tpu.matmul %14, %0, %cst {dimension_numbers = #tpu.dot_dimension_numbers<[1], [1], [0], [0], [0, 0, 1, 0], [], []>} : vector<1x16xf32>, vector<16x16xf32>, vector<1x16xf32> -> vector<1x16xf32>
        %cst_19 = arith.constant dense<0.000000e+00> : vector<16x16xf32>
        %17 = tpu.matmul %0, %15, %cst_19 {dimension_numbers = #tpu.dot_dimension_numbers<[1], [0], [0], [1], [0, 0, 1, 1], [], []>} : vector<16x16xf32>, vector<16x16xf32>, vector<16x16xf32> -> vector<16x16xf32>
        %cst_20 = arith.constant dense<0.000000e+00> : vector<16x16xf32>
        %18 = tpu.matmul %17, %0, %cst_20 {dimension_numbers = #tpu.dot_dimension_numbers<[1], [1], [0], [0], [0, 0, 1, 0], [], []>} : vector<16x16xf32>, vector<16x16xf32>, vector<16x16xf32> -> vector<16x16xf32>
        %19 = arith.addf %18, %1 : vector<16x16xf32>
        %20 = arith.index_cast %arg16 : i32 to index
        %c0_21 = arith.constant 0 : index
        %c0_22 = arith.constant 0 : index
        %21 = vector.load %arg12[%20, %c0_21, %c0_22] : memref<16x1x16xf32, #tpu.memory_space<vmem>>, vector<1x1x16xf32>
        %22 = vector.shape_cast %21 : vector<1x1x16xf32> to vector<1x16xf32>
        %23 = vector.shape_cast %16 : vector<1x16xf32> to vector<1x1x16xf32>
        tpu.vector_store %arg12[%20, %c0_21, %c0_22], %23 {strides = array<i32>} : memref<16x1x16xf32, #tpu.memory_space<vmem>>, vector<1x1x16xf32>,
        %24 = arith.index_cast %arg16 : i32 to index
        %c0_23 = arith.constant 0 : index
        %c0_24 = arith.constant 0 : index
        %25 = vector.load %arg13[%24, %c0_23, %c0_24] : memref<16x16x16xf32, #tpu.memory_space<vmem>>, vector<1x16x16xf32>
        %26 = vector.shape_cast %25 : vector<1x16x16xf32> to vector<16x16xf32>
        %27 = vector.shape_cast %19 : vector<16x16xf32> to vector<1x16x16xf32>
        tpu.vector_store %arg13[%24, %c0_23, %c0_24], %27 {strides = array<i32>} : memref<16x16x16xf32, #tpu.memory_space<vmem>>, vector<1x16x16xf32>,
        %28 = arith.index_cast %7 : i32 to index
        %29 = memref.load %arg1[%28] : memref<16xi32, #tpu.memory_space<smem>>
        %c0_i32_25 = arith.constant 0 : i32
        %30 = arith.cmpi ne, %29, %c0_i32_25 : i32
        %31 = arith.extui %30 : i1 to i32
        %c0_i32_26 = arith.constant 0 : i32
        %32 = arith.cmpi ne, %31, %c0_i32_26 : i32
        scf.if %32 {
          %46 = arith.index_cast %arg16 : i32 to index
          %c0_37 = arith.constant 0 : index
          %c0_38 = arith.constant 0 : index
          %47 = vector.load %arg9[%46, %c0_37, %c0_38] : memref<16x1x16xf32, #tpu.memory_space<vmem>>, vector<1x1x16xf32>
          %48 = vector.shape_cast %47 : vector<1x1x16xf32> to vector<1x16xf32>
          %cst_39 = arith.constant dense<0.000000e+00> : vector<1x16xf32>
          %49 = tpu.matmul %16, %3, %cst_39 {dimension_numbers = #tpu.dot_dimension_numbers<[1], [0], [0], [1], [0, 0, 1, 1], [], []>} : vector<1x16xf32>, vector<16x16xf32>, vector<1x16xf32> -> vector<1x16xf32>
          %cst_40 = arith.constant dense<0.000000e+00> : vector<16x16xf32>
          %50 = tpu.matmul %2, %19, %cst_40 {dimension_numbers = #tpu.dot_dimension_numbers<[1], [0], [0], [1], [0, 0, 1, 1], [], []>} : vector<16x16xf32>, vector<16x16xf32>, vector<16x16xf32> -> vector<16x16xf32>
          %cst_41 = arith.constant dense<0.000000e+00> : vector<16x16xf32>
          %51 = tpu.matmul %50, %3, %cst_41 {dimension_numbers = #tpu.dot_dimension_numbers<[1], [0], [0], [1], [0, 0, 1, 1], [], []>} : vector<16x16xf32>, vector<16x16xf32>, vector<16x16xf32> -> vector<16x16xf32>
          %52 = arith.addf %51, %4 : vector<16x16xf32>
          %53 = tpu.iota {dimensions = array<i32: 0>} : vector<16x1xi32>
          %54 = tpu.iota {dimensions = array<i32: 1>} : vector<1x16xi32>
          %c0_i32_42 = arith.constant 0 : i32
          %c16_i32_43 = arith.constant 16 : i32
          %55 = arith.addi %c0_i32_42, %c16_i32_43 : i32
          %c1_i32_44 = arith.constant 1 : i32
          %56:2 = scf.for %arg17 = %c0_i32_42 to %55 step %c1_i32_44 iter_args(%arg18 = %52, %arg19 = %50) -> (vector<16x16xf32>, vector<16x16xf32>)  : i32 {
            %68 = vector.broadcast %arg17 : i32 to vector<16x1xi32>
            %69 = arith.cmpi eq, %53, %68 : vector<16x1xi32>
            %70 = arith.extui %69 : vector<16x1xi1> to vector<16x1xi32>
            %71 = arith.sitofp %70 : vector<16x1xi32> to vector<16x1xf32>
            %cst_53 = arith.constant dense<0.000000e+00> : vector<1x16xf32>
            %72 = tpu.matmul %71, %arg18, %cst_53 {dimension_numbers = #tpu.dot_dimension_numbers<[0], [0], [1], [1], [0, 1, 1, 1], [], []>} : vector<16x1xf32>, vector<16x16xf32>, vector<1x16xf32> -> vector<1x16xf32>
            %cst_54 = arith.constant dense<0.000000e+00> : vector<1x16xf32>
            %73 = tpu.matmul %71, %arg19, %cst_54 {dimension_numbers = #tpu.dot_dimension_numbers<[0], [0], [1], [1], [0, 1, 1, 1], [], []>} : vector<16x1xf32>, vector<16x16xf32>, vector<1x16xf32> -> vector<1x16xf32>
            %cst_55 = arith.constant dense<0.000000e+00> : vector<16x1xf32>
            %74 = tpu.matmul %arg18, %71, %cst_55 {dimension_numbers = #tpu.dot_dimension_numbers<[1], [0], [0], [1], [0, 0, 1, 1], [], []>} : vector<16x16xf32>, vector<16x1xf32>, vector<16x1xf32> -> vector<16x1xf32>
            %75 = vector.broadcast %arg17 : i32 to vector<1x16xi32>
            %76 = arith.cmpi eq, %54, %75 : vector<1x16xi32>
            %cst_56 = arith.constant 0.000000e+00 : f32
            %77 = vector.broadcast %cst_56 : f32 to vector<1x16xf32>
            %78 = arith.select %76, %72, %77 : vector<1x16xi1>, vector<1x16xf32>
            %79 = vector.shape_cast %78 : vector<1x16xf32> to vector<1x1x16xf32>
            %cst_57 = arith.constant dense<0.000000e+00> : vector<1xf32>
            %80 = vector.multi_reduction <add>, %79, %cst_57 [1, 2] : vector<1x1x16xf32> to vector<1xf32>
            %81 = vector.shape_cast %80 : vector<1xf32> to vector<1x1x1xf32>
            %82 = vector.extract %81[0, 0, 0] : f32 from vector<1x1x1xf32>
            %cst_58 = arith.constant 1.000000e+00 : f32
            %83 = arith.divf %cst_58, %82 : f32
            %84 = arith.subf %74, %71 : vector<16x1xf32>
            %85 = vector.broadcast %83 : f32 to vector<1x16xf32>
            %86 = arith.mulf %72, %85 : vector<1x16xf32>
            %87 = vector.broadcast %84 : vector<16x1xf32> to vector<16x16xf32>
            %88 = vector.broadcast %86 : vector<1x16xf32> to vector<16x16xf32>
            %89 = arith.mulf %87, %88 : vector<16x16xf32>
            %90 = arith.subf %arg18, %89 : vector<16x16xf32>
            %91 = vector.broadcast %83 : f32 to vector<1x16xf32>
            %92 = arith.mulf %73, %91 : vector<1x16xf32>
            %93 = vector.broadcast %84 : vector<16x1xf32> to vector<16x16xf32>
            %94 = vector.broadcast %92 : vector<1x16xf32> to vector<16x16xf32>
            %95 = arith.mulf %93, %94 : vector<16x16xf32>
            %96 = arith.subf %arg19, %95 : vector<16x16xf32>
            scf.yield %90, %96 : vector<16x16xf32>, vector<16x16xf32>
          }
          %c16_i32_45 = arith.constant 16 : i32
          %57 = arith.subf %48, %49 : vector<1x16xf32>
          %cst_46 = arith.constant dense<0.000000e+00> : vector<1x16xf32>
          %58 = tpu.matmul %57, %56#1, %cst_46 {dimension_numbers = #tpu.dot_dimension_numbers<[1], [0], [0], [1], [0, 0, 1, 1], [], []>} : vector<1x16xf32>, vector<16x16xf32>, vector<1x16xf32> -> vector<1x16xf32>
          %59 = arith.addf %16, %58 : vector<1x16xf32>
          %cst_47 = arith.constant dense<0.000000e+00> : vector<16x16xf32>
          %60 = tpu.matmul %50, %56#1, %cst_47 {dimension_numbers = #tpu.dot_dimension_numbers<[0], [0], [1], [1], [0, 1, 1, 1], [], []>} : vector<16x16xf32>, vector<16x16xf32>, vector<16x16xf32> -> vector<16x16xf32>
          %61 = arith.subf %19, %60 : vector<16x16xf32>
          %62 = tpu.transpose %61, [1, 0] : vector<16x16xf32> -> vector<16x16xf32>
          %63 = arith.addf %61, %62 : vector<16x16xf32>
          %cst_48 = arith.constant 5.000000e-01 : f32
          %64 = vector.broadcast %cst_48 : f32 to vector<16x16xf32>
          %65 = arith.mulf %64, %63 : vector<16x16xf32>
          %c0_49 = arith.constant 0 : index
          %c0_50 = arith.constant 0 : index
          %66 = vector.load %arg14[%c0_49, %c0_50] : memref<1x16xf32, #tpu.memory_space<vmem>>, vector<1x16xf32>
          tpu.vector_store %arg14[%c0_49, %c0_50], %59 {strides = array<i32>} : memref<1x16xf32, #tpu.memory_space<vmem>>, vector<1x16xf32>,
          %c0_51 = arith.constant 0 : index
          %c0_52 = arith.constant 0 : index
          %67 = vector.load %arg15[%c0_51, %c0_52] : memref<16x16xf32, #tpu.memory_space<vmem>>, vector<16x16xf32>
          tpu.vector_store %arg15[%c0_51, %c0_52], %65 {strides = array<i32>} : memref<16x16xf32, #tpu.memory_space<vmem>>, vector<16x16xf32>,
        } else {
        }
        %c0_i32_27 = arith.constant 0 : i32
        %33 = arith.cmpi eq, %29, %c0_i32_27 : i32
        %34 = arith.extui %33 : i1 to i32
        %c0_i32_28 = arith.constant 0 : i32
        %35 = arith.cmpi ne, %34, %c0_i32_28 : i32
        scf.if %35 {
          %c0_37 = arith.constant 0 : index
          %c0_38 = arith.constant 0 : index
          %46 = vector.load %arg14[%c0_37, %c0_38] : memref<1x16xf32, #tpu.memory_space<vmem>>, vector<1x16xf32>
          tpu.vector_store %arg14[%c0_37, %c0_38], %16 {strides = array<i32>} : memref<1x16xf32, #tpu.memory_space<vmem>>, vector<1x16xf32>,
          %c0_39 = arith.constant 0 : index
          %c0_40 = arith.constant 0 : index
          %47 = vector.load %arg15[%c0_39, %c0_40] : memref<16x16xf32, #tpu.memory_space<vmem>>, vector<16x16xf32>
          tpu.vector_store %arg15[%c0_39, %c0_40], %19 {strides = array<i32>} : memref<16x16xf32, #tpu.memory_space<vmem>>, vector<16x16xf32>,
        } else {
        }
        %c0_29 = arith.constant 0 : index
        %c0_30 = arith.constant 0 : index
        %36 = vector.load %arg14[%c0_29, %c0_30] : memref<1x16xf32, #tpu.memory_space<vmem>>, vector<1x16xf32>
        %37 = arith.index_cast %arg16 : i32 to index
        %c0_31 = arith.constant 0 : index
        %c0_32 = arith.constant 0 : index
        %38 = vector.load %arg10[%37, %c0_31, %c0_32] : memref<16x1x16xf32, #tpu.memory_space<vmem>>, vector<1x1x16xf32>
        %39 = vector.shape_cast %38 : vector<1x1x16xf32> to vector<1x16xf32>
        %40 = vector.shape_cast %36 : vector<1x16xf32> to vector<1x1x16xf32>
        tpu.vector_store %arg10[%37, %c0_31, %c0_32], %40 {strides = array<i32>} : memref<16x1x16xf32, #tpu.memory_space<vmem>>, vector<1x1x16xf32>,
        %c0_33 = arith.constant 0 : index
        %c0_34 = arith.constant 0 : index
        %41 = vector.load %arg15[%c0_33, %c0_34] : memref<16x16xf32, #tpu.memory_space<vmem>>, vector<16x16xf32>
        %42 = arith.index_cast %arg16 : i32 to index
        %c0_35 = arith.constant 0 : index
        %c0_36 = arith.constant 0 : index
        %43 = vector.load %arg11[%42, %c0_35, %c0_36] : memref<16x16x16xf32, #tpu.memory_space<vmem>>, vector<1x16x16xf32>
        %44 = vector.shape_cast %43 : vector<1x16x16xf32> to vector<16x16xf32>
        %45 = vector.shape_cast %41 : vector<16x16xf32> to vector<1x16x16xf32>
        tpu.vector_store %arg11[%42, %c0_35, %c0_36], %45 {strides = array<i32>} : memref<16x16x16xf32, #tpu.memory_space<vmem>>, vector<1x16x16xf32>,
      } else {
      }
    }
    %c16_i32_9 = arith.constant 16 : i32
    return
  }
  func.func @transform_0(%arg0: i32, %arg1: memref<16xi32, #tpu.memory_space<smem>>) -> (i32, i32) {
    %c0_i32 = arith.constant 0 : i32
    %c0_i32_0 = arith.constant 0 : i32
    %c0_i32_1 = arith.constant 0 : i32
    return %c0_i32, %c0_i32_0 : i32, i32
  }
  func.func @transform_1(%arg0: i32, %arg1: memref<16xi32, #tpu.memory_space<smem>>) -> (i32, i32) {
    %c0_i32 = arith.constant 0 : i32
    %c0_i32_0 = arith.constant 0 : i32
    %c0_i32_1 = arith.constant 0 : i32
    return %c0_i32, %c0_i32_0 : i32, i32
  }
  func.func @transform_2(%arg0: i32, %arg1: memref<16xi32, #tpu.memory_space<smem>>) -> (i32, i32) {
    %c0_i32 = arith.constant 0 : i32
    %c0_i32_0 = arith.constant 0 : i32
    %c0_i32_1 = arith.constant 0 : i32
    return %c0_i32, %c0_i32_0 : i32, i32
  }
  func.func @transform_3(%arg0: i32, %arg1: memref<16xi32, #tpu.memory_space<smem>>) -> (i32, i32) {
    %c0_i32 = arith.constant 0 : i32
    %c0_i32_0 = arith.constant 0 : i32
    %c0_i32_1 = arith.constant 0 : i32
    return %c0_i32, %c0_i32_0 : i32, i32
  }
  func.func @transform_4(%arg0: i32, %arg1: memref<16xi32, #tpu.memory_space<smem>>) -> (i32, i32) {
    %c0_i32 = arith.constant 0 : i32
    %c0_i32_0 = arith.constant 0 : i32
    %c0_i32_1 = arith.constant 0 : i32
    return %c0_i32, %c0_i32_0 : i32, i32
  }
  func.func @transform_5(%arg0: i32, %arg1: memref<16xi32, #tpu.memory_space<smem>>) -> (i32, i32) {
    %c0_i32 = arith.constant 0 : i32
    %c0_i32_0 = arith.constant 0 : i32
    %c0_i32_1 = arith.constant 0 : i32
    return %c0_i32, %c0_i32_0 : i32, i32
  }
  func.func @transform_6(%arg0: i32, %arg1: memref<16xi32, #tpu.memory_space<smem>>) -> (i32, i32) {
    %c0_i32 = arith.constant 0 : i32
    %c0_i32_0 = arith.constant 0 : i32
    %c0_i32_1 = arith.constant 0 : i32
    return %c0_i32, %c0_i32_0 : i32, i32
  }
  func.func @transform_7(%arg0: i32, %arg1: memref<16xi32, #tpu.memory_space<smem>>) -> (i32, i32, i32) {
    %c0_i32 = arith.constant 0 : i32
    %c0_i32_0 = arith.constant 0 : i32
    %c0_i32_1 = arith.constant 0 : i32
    return %arg0, %c0_i32, %c0_i32_0 : i32, i32, i32
  }
  func.func @transform_8(%arg0: i32, %arg1: memref<16xi32, #tpu.memory_space<smem>>) -> (i32, i32, i32) {
    %c0_i32 = arith.constant 0 : i32
    %c0_i32_0 = arith.constant 0 : i32
    %c0_i32_1 = arith.constant 0 : i32
    return %arg0, %c0_i32, %c0_i32_0 : i32, i32, i32
  }
  func.func @transform_9(%arg0: i32, %arg1: memref<16xi32, #tpu.memory_space<smem>>) -> (i32, i32, i32) {
    %c0_i32 = arith.constant 0 : i32
    %c0_i32_0 = arith.constant 0 : i32
    %c0_i32_1 = arith.constant 0 : i32
    return %arg0, %c0_i32, %c0_i32_0 : i32, i32, i32
  }
  func.func @transform_10(%arg0: i32, %arg1: memref<16xi32, #tpu.memory_space<smem>>) -> (i32, i32, i32) {
    %c0_i32 = arith.constant 0 : i32
    %c0_i32_0 = arith.constant 0 : i32
    %c0_i32_1 = arith.constant 0 : i32
    return %arg0, %c0_i32, %c0_i32_0 : i32, i32, i32
  }
  func.func @transform_11(%arg0: i32, %arg1: memref<16xi32, #tpu.memory_space<smem>>) -> (i32, i32, i32) {
    %c0_i32 = arith.constant 0 : i32
    %c0_i32_0 = arith.constant 0 : i32
    %c0_i32_1 = arith.constant 0 : i32
    return %arg0, %c0_i32, %c0_i32_0 : i32, i32, i32
  }
}

module attributes {stable_mosaic.version = 11 : i64} {
  func.func @_smoother_kernel(%arg0: i32, %arg1: memref<16x1x16xf32, #tpu.memory_space<vmem>>, %arg2: memref<16x16x16xf32, #tpu.memory_space<vmem>>, %arg3: memref<16x1x16xf32, #tpu.memory_space<vmem>>, %arg4: memref<16x16x16xf32, #tpu.memory_space<vmem>>, %arg5: memref<1x1x16xf32, #tpu.memory_space<vmem>>, %arg6: memref<1x16x16xf32, #tpu.memory_space<vmem>>, %arg7: memref<16x16xf32, #tpu.memory_space<vmem>>, %arg8: memref<16x1x16xf32, #tpu.memory_space<vmem>>, %arg9: memref<16x16x16xf32, #tpu.memory_space<vmem>>, %arg10: memref<1x16xf32, #tpu.memory_space<vmem>>, %arg11: memref<16x16xf32, #tpu.memory_space<vmem>>) attributes {dimension_semantics = [#tpu.dimension_semantics<arbitrary>], iteration_bounds = array<i64: 1>, scalar_prefetch = 0 : i64, scratch_operands = 2 : i64, tpu.core_type = #tpu.core_type<tc>, window_params = [{transform_indices = @transform_0, window_bounds = array<i64: 16, 1, 16>}, {transform_indices = @transform_1, window_bounds = array<i64: 16, 16, 16>}, {transform_indices = @transform_2, window_bounds = array<i64: 16, 1, 16>}, {transform_indices = @transform_3, window_bounds = array<i64: 16, 16, 16>}, {pipeline_mode = #tpu.pipeline_mode<synchronous>, transform_indices = @transform_4, window_bounds = array<i64: 1, 1, 16>}, {pipeline_mode = #tpu.pipeline_mode<synchronous>, transform_indices = @transform_5, window_bounds = array<i64: 1, 16, 16>}, {pipeline_mode = #tpu.pipeline_mode<synchronous>, transform_indices = @transform_6, window_bounds = array<i64: 16, 16>}, {transform_indices = @transform_7, window_bounds = array<i64: 16, 1, 16>}, {transform_indices = @transform_8, window_bounds = array<i64: 16, 16, 16>}]} {
    %c0_i32 = arith.constant 0 : i32
    %0 = arith.cmpi eq, %arg0, %c0_i32 : i32
    %1 = arith.extui %0 : i1 to i32
    %c0_i32_0 = arith.constant 0 : i32
    %2 = arith.cmpi ne, %1, %c0_i32_0 : i32
    scf.if %2 {
      %c0_6 = arith.constant 0 : index
      %c0_7 = arith.constant 0 : index
      %c0_8 = arith.constant 0 : index
      %7 = vector.load %arg5[%c0_6, %c0_7, %c0_8] : memref<1x1x16xf32, #tpu.memory_space<vmem>>, vector<1x1x16xf32>
      %8 = vector.shape_cast %7 : vector<1x1x16xf32> to vector<1x16xf32>
      %c0_9 = arith.constant 0 : index
      %c0_10 = arith.constant 0 : index
      %9 = vector.load %arg10[%c0_9, %c0_10] : memref<1x16xf32, #tpu.memory_space<vmem>>, vector<1x16xf32>
      tpu.vector_store %arg10[%c0_9, %c0_10], %8 {strides = array<i32>} : memref<1x16xf32, #tpu.memory_space<vmem>>, vector<1x16xf32>,
      %c0_11 = arith.constant 0 : index
      %c0_12 = arith.constant 0 : index
      %c0_13 = arith.constant 0 : index
      %10 = vector.load %arg6[%c0_11, %c0_12, %c0_13] : memref<1x16x16xf32, #tpu.memory_space<vmem>>, vector<1x16x16xf32>
      %11 = vector.shape_cast %10 : vector<1x16x16xf32> to vector<16x16xf32>
      %c0_14 = arith.constant 0 : index
      %c0_15 = arith.constant 0 : index
      %12 = vector.load %arg11[%c0_14, %c0_15] : memref<16x16xf32, #tpu.memory_space<vmem>>, vector<16x16xf32>
      tpu.vector_store %arg11[%c0_14, %c0_15], %11 {strides = array<i32>} : memref<16x16xf32, #tpu.memory_space<vmem>>, vector<16x16xf32>,
    } else {
    }
    %c0 = arith.constant 0 : index
    %c0_1 = arith.constant 0 : index
    %3 = vector.load %arg7[%c0, %c0_1] : memref<16x16xf32, #tpu.memory_space<vmem>>, vector<16x16xf32>
    %c0_i32_2 = arith.constant 0 : i32
    %4 = arith.subi %c0_i32_2, %arg0 : i32
    %c16_i32 = arith.constant 16 : i32
    %5 = arith.muli %4, %c16_i32 : i32
    %c0_i32_3 = arith.constant 0 : i32
    %c16_i32_4 = arith.constant 16 : i32
    %6 = arith.addi %c0_i32_3, %c16_i32_4 : i32
    %c1_i32 = arith.constant 1 : i32
    scf.for %arg12 = %c0_i32_3 to %6 step %c1_i32  : i32 {
      %c15_i32 = arith.constant 15 : i32
      %7 = arith.subi %c15_i32, %arg12 : i32
      %8 = arith.addi %5, %7 : i32
      %c7_i32 = arith.constant 7 : i32
      %9 = arith.cmpi sge, %8, %c7_i32 : i32
      %10 = arith.extui %9 : i1 to i32
      %c0_i32_6 = arith.constant 0 : i32
      %11 = arith.cmpi ne, %10, %c0_i32_6 : i32
      scf.if %11 {
        %12 = arith.index_cast %7 : i32 to index
        %c0_7 = arith.constant 0 : index
        %c0_8 = arith.constant 0 : index
        %13 = vector.load %arg1[%12, %c0_7, %c0_8] : memref<16x1x16xf32, #tpu.memory_space<vmem>>, vector<1x1x16xf32>
        %14 = vector.shape_cast %13 : vector<1x1x16xf32> to vector<1x16xf32>
        %15 = arith.index_cast %7 : i32 to index
        %c0_9 = arith.constant 0 : index
        %c0_10 = arith.constant 0 : index
        %16 = vector.load %arg2[%15, %c0_9, %c0_10] : memref<16x16x16xf32, #tpu.memory_space<vmem>>, vector<1x16x16xf32>
        %17 = vector.shape_cast %16 : vector<1x16x16xf32> to vector<16x16xf32>
        %18 = arith.index_cast %7 : i32 to index
        %c0_11 = arith.constant 0 : index
        %c0_12 = arith.constant 0 : index
        %19 = vector.load %arg3[%18, %c0_11, %c0_12] : memref<16x1x16xf32, #tpu.memory_space<vmem>>, vector<1x1x16xf32>
        %20 = vector.shape_cast %19 : vector<1x1x16xf32> to vector<1x16xf32>
        %21 = arith.index_cast %7 : i32 to index
        %c0_13 = arith.constant 0 : index
        %c0_14 = arith.constant 0 : index
        %22 = vector.load %arg4[%21, %c0_13, %c0_14] : memref<16x16x16xf32, #tpu.memory_space<vmem>>, vector<1x16x16xf32>
        %23 = vector.shape_cast %22 : vector<1x16x16xf32> to vector<16x16xf32>
        %cst = arith.constant dense<0.000000e+00> : vector<16x16xf32>
        %24 = tpu.matmul %3, %17, %cst {dimension_numbers = #tpu.dot_dimension_numbers<[1], [1], [0], [0], [0, 0, 1, 0], [], []>} : vector<16x16xf32>, vector<16x16xf32>, vector<16x16xf32> -> vector<16x16xf32>
        %25 = tpu.iota {dimensions = array<i32: 0>} : vector<16x1xi32>
        %26 = tpu.iota {dimensions = array<i32: 1>} : vector<1x16xi32>
        %c0_i32_15 = arith.constant 0 : i32
        %c16_i32_16 = arith.constant 16 : i32
        %27 = arith.addi %c0_i32_15, %c16_i32_16 : i32
        %c1_i32_17 = arith.constant 1 : i32
        %28:2 = scf.for %arg13 = %c0_i32_15 to %27 step %c1_i32_17 iter_args(%arg14 = %23, %arg15 = %24) -> (vector<16x16xf32>, vector<16x16xf32>)  : i32 {
          %52 = vector.broadcast %arg13 : i32 to vector<16x1xi32>
          %53 = arith.cmpi eq, %25, %52 : vector<16x1xi32>
          %54 = arith.extui %53 : vector<16x1xi1> to vector<16x1xi32>
          %55 = arith.sitofp %54 : vector<16x1xi32> to vector<16x1xf32>
          %cst_35 = arith.constant dense<0.000000e+00> : vector<1x16xf32>
          %56 = tpu.matmul %55, %arg14, %cst_35 {dimension_numbers = #tpu.dot_dimension_numbers<[0], [0], [1], [1], [0, 1, 1, 1], [], []>} : vector<16x1xf32>, vector<16x16xf32>, vector<1x16xf32> -> vector<1x16xf32>
          %cst_36 = arith.constant dense<0.000000e+00> : vector<1x16xf32>
          %57 = tpu.matmul %55, %arg15, %cst_36 {dimension_numbers = #tpu.dot_dimension_numbers<[0], [0], [1], [1], [0, 1, 1, 1], [], []>} : vector<16x1xf32>, vector<16x16xf32>, vector<1x16xf32> -> vector<1x16xf32>
          %cst_37 = arith.constant dense<0.000000e+00> : vector<16x1xf32>
          %58 = tpu.matmul %arg14, %55, %cst_37 {dimension_numbers = #tpu.dot_dimension_numbers<[1], [0], [0], [1], [0, 0, 1, 1], [], []>} : vector<16x16xf32>, vector<16x1xf32>, vector<16x1xf32> -> vector<16x1xf32>
          %59 = vector.broadcast %arg13 : i32 to vector<1x16xi32>
          %60 = arith.cmpi eq, %26, %59 : vector<1x16xi32>
          %cst_38 = arith.constant 0.000000e+00 : f32
          %61 = vector.broadcast %cst_38 : f32 to vector<1x16xf32>
          %62 = arith.select %60, %56, %61 : vector<1x16xi1>, vector<1x16xf32>
          %63 = vector.shape_cast %62 : vector<1x16xf32> to vector<1x1x16xf32>
          %cst_39 = arith.constant dense<0.000000e+00> : vector<1xf32>
          %64 = vector.multi_reduction <add>, %63, %cst_39 [1, 2] : vector<1x1x16xf32> to vector<1xf32>
          %65 = vector.shape_cast %64 : vector<1xf32> to vector<1x1x1xf32>
          %66 = vector.extract %65[0, 0, 0] : f32 from vector<1x1x1xf32>
          %cst_40 = arith.constant 1.000000e+00 : f32
          %67 = arith.divf %cst_40, %66 : f32
          %68 = arith.subf %58, %55 : vector<16x1xf32>
          %69 = vector.broadcast %67 : f32 to vector<1x16xf32>
          %70 = arith.mulf %56, %69 : vector<1x16xf32>
          %71 = vector.broadcast %68 : vector<16x1xf32> to vector<16x16xf32>
          %72 = vector.broadcast %70 : vector<1x16xf32> to vector<16x16xf32>
          %73 = arith.mulf %71, %72 : vector<16x16xf32>
          %74 = arith.subf %arg14, %73 : vector<16x16xf32>
          %75 = vector.broadcast %67 : f32 to vector<1x16xf32>
          %76 = arith.mulf %57, %75 : vector<1x16xf32>
          %77 = vector.broadcast %68 : vector<16x1xf32> to vector<16x16xf32>
          %78 = vector.broadcast %76 : vector<1x16xf32> to vector<16x16xf32>
          %79 = arith.mulf %77, %78 : vector<16x16xf32>
          %80 = arith.subf %arg15, %79 : vector<16x16xf32>
          scf.yield %74, %80 : vector<16x16xf32>, vector<16x16xf32>
        }
        %c16_i32_18 = arith.constant 16 : i32
        %c0_19 = arith.constant 0 : index
        %c0_20 = arith.constant 0 : index
        %29 = vector.load %arg10[%c0_19, %c0_20] : memref<1x16xf32, #tpu.memory_space<vmem>>, vector<1x16xf32>
        %30 = arith.subf %29, %20 : vector<1x16xf32>
        %c0_21 = arith.constant 0 : index
        %c0_22 = arith.constant 0 : index
        %31 = vector.load %arg11[%c0_21, %c0_22] : memref<16x16xf32, #tpu.memory_space<vmem>>, vector<16x16xf32>
        %32 = arith.subf %31, %23 : vector<16x16xf32>
        %cst_23 = arith.constant dense<0.000000e+00> : vector<1x16xf32>
        %33 = tpu.matmul %30, %28#1, %cst_23 {dimension_numbers = #tpu.dot_dimension_numbers<[1], [0], [0], [1], [0, 0, 1, 1], [], []>} : vector<1x16xf32>, vector<16x16xf32>, vector<1x16xf32> -> vector<1x16xf32>
        %34 = arith.addf %14, %33 : vector<1x16xf32>
        %cst_24 = arith.constant dense<0.000000e+00> : vector<16x16xf32>
        %35 = tpu.matmul %32, %28#1, %cst_24 {dimension_numbers = #tpu.dot_dimension_numbers<[1], [0], [0], [1], [0, 0, 1, 1], [], []>} : vector<16x16xf32>, vector<16x16xf32>, vector<16x16xf32> -> vector<16x16xf32>
        %cst_25 = arith.constant dense<0.000000e+00> : vector<16x16xf32>
        %36 = tpu.matmul %28#1, %35, %cst_25 {dimension_numbers = #tpu.dot_dimension_numbers<[0], [0], [1], [1], [0, 1, 1, 1], [], []>} : vector<16x16xf32>, vector<16x16xf32>, vector<16x16xf32> -> vector<16x16xf32>
        %37 = arith.addf %17, %36 : vector<16x16xf32>
        %38 = tpu.transpose %37, [1, 0] : vector<16x16xf32> -> vector<16x16xf32>
        %39 = arith.addf %37, %38 : vector<16x16xf32>
        %cst_26 = arith.constant 5.000000e-01 : f32
        %40 = vector.broadcast %cst_26 : f32 to vector<16x16xf32>
        %41 = arith.mulf %40, %39 : vector<16x16xf32>
        %c0_27 = arith.constant 0 : index
        %c0_28 = arith.constant 0 : index
        %42 = vector.load %arg10[%c0_27, %c0_28] : memref<1x16xf32, #tpu.memory_space<vmem>>, vector<1x16xf32>
        tpu.vector_store %arg10[%c0_27, %c0_28], %34 {strides = array<i32>} : memref<1x16xf32, #tpu.memory_space<vmem>>, vector<1x16xf32>,
        %c0_29 = arith.constant 0 : index
        %c0_30 = arith.constant 0 : index
        %43 = vector.load %arg11[%c0_29, %c0_30] : memref<16x16xf32, #tpu.memory_space<vmem>>, vector<16x16xf32>
        tpu.vector_store %arg11[%c0_29, %c0_30], %41 {strides = array<i32>} : memref<16x16xf32, #tpu.memory_space<vmem>>, vector<16x16xf32>,
        %44 = arith.index_cast %7 : i32 to index
        %c0_31 = arith.constant 0 : index
        %c0_32 = arith.constant 0 : index
        %45 = vector.load %arg8[%44, %c0_31, %c0_32] : memref<16x1x16xf32, #tpu.memory_space<vmem>>, vector<1x1x16xf32>
        %46 = vector.shape_cast %45 : vector<1x1x16xf32> to vector<1x16xf32>
        %47 = vector.shape_cast %34 : vector<1x16xf32> to vector<1x1x16xf32>
        tpu.vector_store %arg8[%44, %c0_31, %c0_32], %47 {strides = array<i32>} : memref<16x1x16xf32, #tpu.memory_space<vmem>>, vector<1x1x16xf32>,
        %48 = arith.index_cast %7 : i32 to index
        %c0_33 = arith.constant 0 : index
        %c0_34 = arith.constant 0 : index
        %49 = vector.load %arg9[%48, %c0_33, %c0_34] : memref<16x16x16xf32, #tpu.memory_space<vmem>>, vector<1x16x16xf32>
        %50 = vector.shape_cast %49 : vector<1x16x16xf32> to vector<16x16xf32>
        %51 = vector.shape_cast %41 : vector<16x16xf32> to vector<1x16x16xf32>
        tpu.vector_store %arg9[%48, %c0_33, %c0_34], %51 {strides = array<i32>} : memref<16x16x16xf32, #tpu.memory_space<vmem>>, vector<1x16x16xf32>,
      } else {
      }
    }
    %c16_i32_5 = arith.constant 16 : i32
    return
  }
  func.func @transform_0(%arg0: i32) -> (i32, i32, i32) {
    %c0_i32 = arith.constant 0 : i32
    %0 = arith.subi %c0_i32, %arg0 : i32
    %c0_i32_0 = arith.constant 0 : i32
    %c0_i32_1 = arith.constant 0 : i32
    %c0_i32_2 = arith.constant 0 : i32
    return %0, %c0_i32_0, %c0_i32_1 : i32, i32, i32
  }
  func.func @transform_1(%arg0: i32) -> (i32, i32, i32) {
    %c0_i32 = arith.constant 0 : i32
    %0 = arith.subi %c0_i32, %arg0 : i32
    %c0_i32_0 = arith.constant 0 : i32
    %c0_i32_1 = arith.constant 0 : i32
    %c0_i32_2 = arith.constant 0 : i32
    return %0, %c0_i32_0, %c0_i32_1 : i32, i32, i32
  }
  func.func @transform_2(%arg0: i32) -> (i32, i32, i32) {
    %c0_i32 = arith.constant 0 : i32
    %0 = arith.subi %c0_i32, %arg0 : i32
    %c0_i32_0 = arith.constant 0 : i32
    %c0_i32_1 = arith.constant 0 : i32
    %c0_i32_2 = arith.constant 0 : i32
    return %0, %c0_i32_0, %c0_i32_1 : i32, i32, i32
  }
  func.func @transform_3(%arg0: i32) -> (i32, i32, i32) {
    %c0_i32 = arith.constant 0 : i32
    %0 = arith.subi %c0_i32, %arg0 : i32
    %c0_i32_0 = arith.constant 0 : i32
    %c0_i32_1 = arith.constant 0 : i32
    %c0_i32_2 = arith.constant 0 : i32
    return %0, %c0_i32_0, %c0_i32_1 : i32, i32, i32
  }
  func.func @transform_4(%arg0: i32) -> (i32, i32, i32) {
    %c0_i32 = arith.constant 0 : i32
    %c0_i32_0 = arith.constant 0 : i32
    %c0_i32_1 = arith.constant 0 : i32
    %c0_i32_2 = arith.constant 0 : i32
    return %c0_i32, %c0_i32_0, %c0_i32_1 : i32, i32, i32
  }
  func.func @transform_5(%arg0: i32) -> (i32, i32, i32) {
    %c0_i32 = arith.constant 0 : i32
    %c0_i32_0 = arith.constant 0 : i32
    %c0_i32_1 = arith.constant 0 : i32
    %c0_i32_2 = arith.constant 0 : i32
    return %c0_i32, %c0_i32_0, %c0_i32_1 : i32, i32, i32
  }
  func.func @transform_6(%arg0: i32) -> (i32, i32) {
    %c0_i32 = arith.constant 0 : i32
    %c0_i32_0 = arith.constant 0 : i32
    %c0_i32_1 = arith.constant 0 : i32
    return %c0_i32, %c0_i32_0 : i32, i32
  }
  func.func @transform_7(%arg0: i32) -> (i32, i32, i32) {
    %c0_i32 = arith.constant 0 : i32
    %0 = arith.subi %c0_i32, %arg0 : i32
    %c0_i32_0 = arith.constant 0 : i32
    %c0_i32_1 = arith.constant 0 : i32
    %c0_i32_2 = arith.constant 0 : i32
    return %0, %c0_i32_0, %c0_i32_1 : i32, i32, i32
  }
  func.func @transform_8(%arg0: i32) -> (i32, i32, i32) {
    %c0_i32 = arith.constant 0 : i32
    %0 = arith.subi %c0_i32, %arg0 : i32
    %c0_i32_0 = arith.constant 0 : i32
    %c0_i32_1 = arith.constant 0 : i32
    %c0_i32_2 = arith.constant 0 : i32
    return %0, %c0_i32_0, %c0_i32_1 : i32, i32, i32
  }
}

module attributes {stable_mosaic.version = 11 : i64} {
  func.func @_project_full_kernel(%arg0: i32, %arg1: memref<16x16xf32, #tpu.memory_space<vmem>>, %arg2: memref<16x16xf32, #tpu.memory_space<vmem>>, %arg3: memref<16x16xf32, #tpu.memory_space<vmem>>, %arg4: memref<8x16xf32, #tpu.memory_space<vmem>>, %arg5: memref<8x16x16xf32, #tpu.memory_space<vmem>>, %arg6: memref<8x16xf32, #tpu.memory_space<vmem>>, %arg7: memref<8x16x16xf32, #tpu.memory_space<vmem>>, %arg8: memref<8x16x16xf32, #tpu.memory_space<vmem>>) attributes {dimension_semantics = [#tpu.dimension_semantics<parallel>], iteration_bounds = array<i64: 1>, scalar_prefetch = 0 : i64, scratch_operands = 1 : i64, tpu.core_type = #tpu.core_type<tc>, window_params = [{pipeline_mode = #tpu.pipeline_mode<synchronous>, transform_indices = @transform_0, window_bounds = array<i64: 16, 16>}, {pipeline_mode = #tpu.pipeline_mode<synchronous>, transform_indices = @transform_1, window_bounds = array<i64: 16, 16>}, {pipeline_mode = #tpu.pipeline_mode<synchronous>, transform_indices = @transform_2, window_bounds = array<i64: 16, 16>}, {transform_indices = @transform_3, window_bounds = array<i64: 8, 16>}, {transform_indices = @transform_4, window_bounds = array<i64: 8, 16, 16>}, {transform_indices = @transform_5, window_bounds = array<i64: 8, 16>}, {transform_indices = @transform_6, window_bounds = array<i64: 8, 16, 16>}]} {
    %c0 = arith.constant 0 : index
    %c0_0 = arith.constant 0 : index
    %0 = vector.load %arg1[%c0, %c0_0] : memref<16x16xf32, #tpu.memory_space<vmem>>, vector<16x16xf32>
    %c0_1 = arith.constant 0 : index
    %c0_2 = arith.constant 0 : index
    %1 = vector.load %arg2[%c0_1, %c0_2] : memref<16x16xf32, #tpu.memory_space<vmem>>, vector<16x16xf32>
    %c0_3 = arith.constant 0 : index
    %c0_4 = arith.constant 0 : index
    %2 = vector.load %arg3[%c0_3, %c0_4] : memref<16x16xf32, #tpu.memory_space<vmem>>, vector<16x16xf32>
    %c0_5 = arith.constant 0 : index
    %c0_6 = arith.constant 0 : index
    %3 = vector.load %arg4[%c0_5, %c0_6] : memref<8x16xf32, #tpu.memory_space<vmem>>, vector<8x16xf32>
    %cst = arith.constant dense<0.000000e+00> : vector<8x16xf32>
    %4 = tpu.matmul %3, %1, %cst {dimension_numbers = #tpu.dot_dimension_numbers<[1], [0], [0], [1], [0, 0, 1, 1], [], []>} : vector<8x16xf32>, vector<16x16xf32>, vector<8x16xf32> -> vector<8x16xf32>
    %c0_7 = arith.constant 0 : index
    %c0_8 = arith.constant 0 : index
    %5 = vector.load %arg6[%c0_7, %c0_8] : memref<8x16xf32, #tpu.memory_space<vmem>>, vector<8x16xf32>
    tpu.vector_store %arg6[%c0_7, %c0_8], %4 {strides = array<i32>} : memref<8x16xf32, #tpu.memory_space<vmem>>, vector<8x16xf32>,
    %c0_9 = arith.constant 0 : index
    %c0_10 = arith.constant 0 : index
    %c0_11 = arith.constant 0 : index
    %6 = vector.load %arg5[%c0_9, %c0_10, %c0_11] : memref<8x16x16xf32, #tpu.memory_space<vmem>>, vector<8x16x16xf32>
    %7 = vector.shape_cast %6 : vector<8x16x16xf32> to vector<128x16xf32>
    %cst_12 = arith.constant dense<0.000000e+00> : vector<128x16xf32>
    %8 = tpu.matmul %7, %1, %cst_12 {dimension_numbers = #tpu.dot_dimension_numbers<[1], [0], [0], [1], [0, 0, 1, 1], [], []>} : vector<128x16xf32>, vector<16x16xf32>, vector<128x16xf32> -> vector<128x16xf32>
    %9 = vector.shape_cast %8 : vector<128x16xf32> to vector<8x16x16xf32>
    %c0_13 = arith.constant 0 : index
    %c0_14 = arith.constant 0 : index
    %c0_15 = arith.constant 0 : index
    %10 = vector.load %arg8[%c0_13, %c0_14, %c0_15] : memref<8x16x16xf32, #tpu.memory_space<vmem>>, vector<8x16x16xf32>
    tpu.vector_store %arg8[%c0_13, %c0_14, %c0_15], %9 {strides = array<i32>} : memref<8x16x16xf32, #tpu.memory_space<vmem>>, vector<8x16x16xf32>,
    %c0_i32 = arith.constant 0 : i32
    %c8_i32 = arith.constant 8 : i32
    %11 = arith.addi %c0_i32, %c8_i32 : i32
    %c1_i32 = arith.constant 1 : i32
    scf.for %arg9 = %c0_i32 to %11 step %c1_i32  : i32 {
      %12 = arith.index_cast %arg9 : i32 to index
      %c0_17 = arith.constant 0 : index
      %c0_18 = arith.constant 0 : index
      %13 = vector.load %arg8[%12, %c0_17, %c0_18] : memref<8x16x16xf32, #tpu.memory_space<vmem>>, vector<1x16x16xf32>
      %14 = vector.shape_cast %13 : vector<1x16x16xf32> to vector<16x16xf32>
      %cst_19 = arith.constant dense<0.000000e+00> : vector<16x16xf32>
      %15 = tpu.matmul %0, %14, %cst_19 {dimension_numbers = #tpu.dot_dimension_numbers<[1], [0], [0], [1], [0, 0, 1, 1], [], []>} : vector<16x16xf32>, vector<16x16xf32>, vector<16x16xf32> -> vector<16x16xf32>
      %16 = arith.addf %15, %2 : vector<16x16xf32>
      %17 = arith.index_cast %arg9 : i32 to index
      %c0_20 = arith.constant 0 : index
      %c0_21 = arith.constant 0 : index
      %18 = vector.load %arg7[%17, %c0_20, %c0_21] : memref<8x16x16xf32, #tpu.memory_space<vmem>>, vector<1x16x16xf32>
      %19 = vector.shape_cast %18 : vector<1x16x16xf32> to vector<16x16xf32>
      %20 = vector.shape_cast %16 : vector<16x16xf32> to vector<1x16x16xf32>
      tpu.vector_store %arg7[%17, %c0_20, %c0_21], %20 {strides = array<i32>} : memref<8x16x16xf32, #tpu.memory_space<vmem>>, vector<1x16x16xf32>,
    }
    %c8_i32_16 = arith.constant 8 : i32
    return
  }
  func.func @transform_0(%arg0: i32) -> (i32, i32) {
    %c0_i32 = arith.constant 0 : i32
    %c0_i32_0 = arith.constant 0 : i32
    %c0_i32_1 = arith.constant 0 : i32
    return %c0_i32, %c0_i32_0 : i32, i32
  }
  func.func @transform_1(%arg0: i32) -> (i32, i32) {
    %c0_i32 = arith.constant 0 : i32
    %c0_i32_0 = arith.constant 0 : i32
    %c0_i32_1 = arith.constant 0 : i32
    return %c0_i32, %c0_i32_0 : i32, i32
  }
  func.func @transform_2(%arg0: i32) -> (i32, i32) {
    %c0_i32 = arith.constant 0 : i32
    %c0_i32_0 = arith.constant 0 : i32
    %c0_i32_1 = arith.constant 0 : i32
    return %c0_i32, %c0_i32_0 : i32, i32
  }
  func.func @transform_3(%arg0: i32) -> (i32, i32) {
    %c0_i32 = arith.constant 0 : i32
    %c0_i32_0 = arith.constant 0 : i32
    return %arg0, %c0_i32 : i32, i32
  }
  func.func @transform_4(%arg0: i32) -> (i32, i32, i32) {
    %c0_i32 = arith.constant 0 : i32
    %c0_i32_0 = arith.constant 0 : i32
    %c0_i32_1 = arith.constant 0 : i32
    return %arg0, %c0_i32, %c0_i32_0 : i32, i32, i32
  }
  func.func @transform_5(%arg0: i32) -> (i32, i32) {
    %c0_i32 = arith.constant 0 : i32
    %c0_i32_0 = arith.constant 0 : i32
    return %arg0, %c0_i32 : i32, i32
  }
  func.func @transform_6(%arg0: i32) -> (i32, i32, i32) {
    %c0_i32 = arith.constant 0 : i32
    %c0_i32_0 = arith.constant 0 : i32
    %c0_i32_1 = arith.constant 0 : i32
    return %arg0, %c0_i32, %c0_i32_0 : i32, i32, i32
  }
}

module attributes {stable_mosaic.version = 11 : i64} {
  func.func @_project_diag_kernel(%arg0: i32, %arg1: memref<16x16xf32, #tpu.memory_space<vmem>>, %arg2: memref<1x16xf32, #tpu.memory_space<vmem>>, %arg3: memref<8x16xf32, #tpu.memory_space<vmem>>, %arg4: memref<8x16x16xf32, #tpu.memory_space<vmem>>, %arg5: memref<8x16xf32, #tpu.memory_space<vmem>>, %arg6: memref<8x16xf32, #tpu.memory_space<vmem>>) attributes {dimension_semantics = [#tpu.dimension_semantics<parallel>], iteration_bounds = array<i64: 1>, scalar_prefetch = 0 : i64, scratch_operands = 0 : i64, tpu.core_type = #tpu.core_type<tc>, window_params = [{pipeline_mode = #tpu.pipeline_mode<synchronous>, transform_indices = @transform_0, window_bounds = array<i64: 16, 16>}, {pipeline_mode = #tpu.pipeline_mode<synchronous>, transform_indices = @transform_1, window_bounds = array<i64: 1, 16>}, {transform_indices = @transform_2, window_bounds = array<i64: 8, 16>}, {transform_indices = @transform_3, window_bounds = array<i64: 8, 16, 16>}, {transform_indices = @transform_4, window_bounds = array<i64: 8, 16>}, {transform_indices = @transform_5, window_bounds = array<i64: 8, 16>}]} {
    %c0 = arith.constant 0 : index
    %c0_0 = arith.constant 0 : index
    %0 = vector.load %arg1[%c0, %c0_0] : memref<16x16xf32, #tpu.memory_space<vmem>>, vector<16x16xf32>
    %c0_1 = arith.constant 0 : index
    %c0_2 = arith.constant 0 : index
    %1 = vector.load %arg2[%c0_1, %c0_2] : memref<1x16xf32, #tpu.memory_space<vmem>>, vector<1x16xf32>
    %c0_3 = arith.constant 0 : index
    %c0_4 = arith.constant 0 : index
    %2 = vector.load %arg3[%c0_3, %c0_4] : memref<8x16xf32, #tpu.memory_space<vmem>>, vector<8x16xf32>
    %cst = arith.constant dense<0.000000e+00> : vector<8x16xf32>
    %3 = tpu.matmul %2, %0, %cst {dimension_numbers = #tpu.dot_dimension_numbers<[1], [0], [0], [1], [0, 0, 1, 1], [], []>} : vector<8x16xf32>, vector<16x16xf32>, vector<8x16xf32> -> vector<8x16xf32>
    %c0_5 = arith.constant 0 : index
    %c0_6 = arith.constant 0 : index
    %4 = vector.load %arg5[%c0_5, %c0_6] : memref<8x16xf32, #tpu.memory_space<vmem>>, vector<8x16xf32>
    tpu.vector_store %arg5[%c0_5, %c0_6], %3 {strides = array<i32>} : memref<8x16xf32, #tpu.memory_space<vmem>>, vector<8x16xf32>,
    %c0_7 = arith.constant 0 : index
    %c0_8 = arith.constant 0 : index
    %c0_9 = arith.constant 0 : index
    %5 = vector.load %arg4[%c0_7, %c0_8, %c0_9] : memref<8x16x16xf32, #tpu.memory_space<vmem>>, vector<8x16x16xf32>
    %6 = vector.shape_cast %5 : vector<8x16x16xf32> to vector<128x16xf32>
    %cst_10 = arith.constant dense<0.000000e+00> : vector<128x16xf32>
    %7 = tpu.matmul %6, %0, %cst_10 {dimension_numbers = #tpu.dot_dimension_numbers<[1], [0], [0], [1], [0, 0, 1, 1], [], []>} : vector<128x16xf32>, vector<16x16xf32>, vector<128x16xf32> -> vector<128x16xf32>
    %8 = vector.shape_cast %7 : vector<128x16xf32> to vector<8x16x16xf32>
    %9 = vector.shape_cast %0 : vector<16x16xf32> to vector<1x16x16xf32>
    %10 = vector.broadcast %9 : vector<1x16x16xf32> to vector<8x16x16xf32>
    %11 = arith.mulf %8, %10 : vector<8x16x16xf32>
    %cst_11 = arith.constant dense<0.000000e+00> : vector<8x16xf32>
    %12 = vector.multi_reduction <add>, %11, %cst_11 [1] : vector<8x16x16xf32> to vector<8x16xf32>
    %13 = vector.broadcast %1 : vector<1x16xf32> to vector<8x16xf32>
    %14 = arith.addf %12, %13 : vector<8x16xf32>
    %c0_12 = arith.constant 0 : index
    %c0_13 = arith.constant 0 : index
    %15 = vector.load %arg6[%c0_12, %c0_13] : memref<8x16xf32, #tpu.memory_space<vmem>>, vector<8x16xf32>
    tpu.vector_store %arg6[%c0_12, %c0_13], %14 {strides = array<i32>} : memref<8x16xf32, #tpu.memory_space<vmem>>, vector<8x16xf32>,
    return
  }
  func.func @transform_0(%arg0: i32) -> (i32, i32) {
    %c0_i32 = arith.constant 0 : i32
    %c0_i32_0 = arith.constant 0 : i32
    %c0_i32_1 = arith.constant 0 : i32
    return %c0_i32, %c0_i32_0 : i32, i32
  }
  func.func @transform_1(%arg0: i32) -> (i32, i32) {
    %c0_i32 = arith.constant 0 : i32
    %c0_i32_0 = arith.constant 0 : i32
    %c0_i32_1 = arith.constant 0 : i32
    return %c0_i32, %c0_i32_0 : i32, i32
  }
  func.func @transform_2(%arg0: i32) -> (i32, i32) {
    %c0_i32 = arith.constant 0 : i32
    %c0_i32_0 = arith.constant 0 : i32
    return %arg0, %c0_i32 : i32, i32
  }
  func.func @transform_3(%arg0: i32) -> (i32, i32, i32) {
    %c0_i32 = arith.constant 0 : i32
    %c0_i32_0 = arith.constant 0 : i32
    %c0_i32_1 = arith.constant 0 : i32
    return %arg0, %c0_i32, %c0_i32_0 : i32, i32, i32
  }
  func.func @transform_4(%arg0: i32) -> (i32, i32) {
    %c0_i32 = arith.constant 0 : i32
    %c0_i32_0 = arith.constant 0 : i32
    return %arg0, %c0_i32 : i32, i32
  }
  func.func @transform_5(%arg0: i32) -> (i32, i32) {
    %c0_i32 = arith.constant 0 : i32
    %c0_i32_0 = arith.constant 0 : i32
    return %arg0, %c0_i32 : i32, i32
  }
}

</mosaic_0001>

<llo_original>
// kernel: tpu_custom_call.1
$region0: #{tpu_custom_call.1}
  #allocation0 [shape = 'u32[]', space=smem, size = 0x4, offset = 0x4, fixed_abs, tag = 'smem constant byte address 0x4 - core index']
  #allocation1 [shape = 'u32[144,128]{1,0:T(1,128)}', space=vmem, size = 0x12000, scoped, tag = 'internal scratch']
  %s0 = inlined_call_operand.hbm [shape: f32[8,128], index: 0, kind: input, shape index: {}]
  %s1 = inlined_call_operand.hbm [shape: f32[8,128], index: 1, kind: output, shape index: {}]
  %s2 = sld [smem:[#allocation0]]
  $region41: #{tpu_custom_call.1} parent=0
    _
  %s4 = ssub.s32 1, %s2
  %s5 = scalar_select 0, %s4, %s2
  $region1: #{tpu_custom_call.1} parent=0
    #allocation2 [shape = 'u8[4096]{0}', space=vmem, size = 0x1000, scoped, tag = 'input window, operand 0, single buffered']
    #allocation3 [shape = 's32[2]{0}', space=sflag, size = 0x8, scoped, tag = 'scoped memory for tpu_custom_call.1']
    #allocation4 [shape = 's32[2]{0}', space=sflag, size = 0x8, scoped, tag = 'scoped memory for tpu_custom_call.1']
    #allocation5 [shape = 'u8[4096]{0}', space=vmem, size = 0x1000, scoped, tag = 'output window, operand 0, single buffered']
    %6 = vsyncpa [#allocation3], 0
    %7 = vsyncpa [#allocation4], 0
    loop: start=0, step=1, limit=4
    $region2: #{tpu_custom_call.1} parent=1 // loop_pre_header
      _
    $region3: #{tpu_custom_call.1} parent=1 // loop_header
      %s9 = sphi 0, %s13
      %p10 = scmp.ge.s32.totalorder %s9, 4
      %s17 = sphi 0, %s17
      %s19 = sphi 0, %s17
      %s20 = sphi 0, %s19
      %s34 = sphi 0, %s20
      %s38 = sphi 0, %s38
      %s40 = sphi 0, %s38
      %s41 = sphi 0, %s40
      %s55 = sphi 0, %s41
    $region4: #{tpu_custom_call.1} parent=1 // loop_header_branch
      %12 = sbr.rel (%p10) target = $region8
    $region5: #{tpu_custom_call.1} parent=1 // loop_body
      %s14 = ssub.s32 %s9, 1
      %s15 = ssub.s32 %s9, 2
      %s16 = sadd.s32 %s9, 1
      %s18 = sadd.s32 %s17, 1
      %p21 = scmp.eq.s32.totalorder %s9, 1
      %p22 = scmp.ne.s32.totalorder %s17, %s19
      %p23 = scmp.eq.s32.totalorder %s9, 0
      %p24 = por %p22, %p23
      %p25 = scmp.ne.s32.totalorder %s17, %s19
      %p26 = scmp.eq.s32.totalorder %s14, 1
      %p27 = por %p25, %p26
      %p28 = scmp.ne.s32.totalorder %s19, %s20
      %p29 = scmp.eq.s32.totalorder %s14, 0
      %p30 = por %p28, %p29
      %p31 = scmp.ne.s32.totalorder %s19, %s20
      %p32 = scmp.eq.s32.totalorder %s15, 1
      %p33 = por %p31, %p32
      %p35 = scmp.ne.s32.totalorder %s20, %s34
      %p36 = scmp.eq.s32.totalorder %s15, 0
      %p37 = por %p35, %p36
      %s39 = sadd.s32 %s38, 1
      %p42 = scmp.eq.s32.totalorder %s9, 1
      %p43 = scmp.ne.s32.totalorder %s38, %s40
      %p44 = scmp.eq.s32.totalorder %s9, 0
      %p45 = por %p43, %p44
      %p46 = scmp.ne.s32.totalorder %s38, %s40
      %p47 = scmp.eq.s32.totalorder %s14, 1
      %p48 = por %p46, %p47
      %p49 = scmp.ne.s32.totalorder %s40, %s41
      %p50 = scmp.eq.s32.totalorder %s14, 0
      %p51 = por %p49, %p50
      %p52 = scmp.ne.s32.totalorder %s40, %s41
      %p53 = scmp.eq.s32.totalorder %s15, 1
      %p54 = por %p52, %p53
      %p56 = scmp.ne.s32.totalorder %s41, %s55
      %p57 = scmp.eq.s32.totalorder %s15, 0
      %p58 = por %p56, %p57
      %p59 = scmp.le.s32.totalorder 1, %s9
      %p60 = scmp.lt.s32.totalorder %s9, 3
      %p61 = pnand %p59, %p60
      %p62 = pneg %p61
      // Predicated region
      $region9: #{tpu_custom_call.1} parent=5 // pred_check
        _
      $region10: #{tpu_custom_call.1} parent=5 // pred_check_branch
        %64 = sbr.rel (%p61) target = $region12
      $region11: #{tpu_custom_call.1} parent=5 // pred_region
        %s65 = ssub.s32 %s9, 1
        // Predicated region
        $region13: #{tpu_custom_call.1} parent=11 // pred_check
          %p66 = pneg %p30
        $region14: #{tpu_custom_call.1} parent=11 // pred_check_branch
          %68 = sbr.rel (%p66) target = $region16
        $region15: #{tpu_custom_call.1} parent=11 // pred_region
          %s70 = ssub.s32 128, 128
          %71 = vsyncadd [#allocation3], %s70
          %s73 = sshll.u32 [#allocation2], 4
          %s74 = int_to_ptr.vmem [resolvable:$true] %s73
          %76 = dma.hbm_to_vmem [thread:$0]  %s0, 128, %s74, [#allocation3]
        $region16: #{tpu_custom_call.1} parent=11 // pred_fallthru
          _
      $region12: #{tpu_custom_call.1} parent=5 // pred_fallthru
        _
      %p77 = scmp.lt.s32.totalorder %s9, 2
      // Predicated region
      $region17: #{tpu_custom_call.1} parent=5 // pred_check
        %p78 = pneg %p77
      $region18: #{tpu_custom_call.1} parent=5 // pred_check_branch
        %80 = sbr.rel (%p78) target = $region20
      $region19: #{tpu_custom_call.1} parent=5 // pred_region
        _
      $region20: #{tpu_custom_call.1} parent=5 // pred_fallthru
        _
      %p81 = scmp.le.s32.totalorder 1, %s9
      %p82 = scmp.lt.s32.totalorder %s9, 3
      %p83 = pnand %p81, %p82
      %p84 = pneg %p83
      // Predicated region
      $region21: #{tpu_custom_call.1} parent=5 // pred_check
        _
      $region22: #{tpu_custom_call.1} parent=5 // pred_check_branch
        %86 = sbr.rel (%p83) target = $region24
      $region23: #{tpu_custom_call.1} parent=5 // pred_region
        %s87 = ssub.s32 %s9, 1
        // Predicated region
        $region25: #{tpu_custom_call.1} parent=23 // pred_check
          %p88 = pneg %p30
        $region26: #{tpu_custom_call.1} parent=23 // pred_check_branch
          %90 = sbr.rel (%p88) target = $region28
        $region27: #{tpu_custom_call.1} parent=23 // pred_region
          %91 = dma.done [#allocation3], 128
        $region28: #{tpu_custom_call.1} parent=23 // pred_fallthru
          _
        %p92 = pneg %p30
        %p93 = pneg %p27
        %p94 = pneg %p51
        %p95 = pneg %p48
        %v96 = vld [vmem:[#allocation2] sm:$0xff]
        %v97 = vadd.f32 %v96, 1.0
        %98 = vst [vmem:[#allocation5] sm:$0xff] %v97
        // Predicated region
        $region29: #{tpu_custom_call.1} parent=23 // pred_check
          %p99 = pneg %p48
        $region30: #{tpu_custom_call.1} parent=23 // pred_check_branch
          %101 = sbr.rel (%p99) target = $region32
        $region31: #{tpu_custom_call.1} parent=23 // pred_region
          %s103 = ssub.s32 128, 128
          %104 = vsyncadd [#allocation4], %s103
          %s106 = sshll.u32 [#allocation5], 4
          %s107 = int_to_ptr.vmem [resolvable:$true] %s106
          %109 = dma.vmem_to_hbm [thread:$0]  %s107, 128, %s1, [#allocation4]
        $region32: #{tpu_custom_call.1} parent=23 // pred_fallthru
          _
        // Predicated region
        $region33: #{tpu_custom_call.1} parent=23 // pred_check
          %p110 = pneg %p48
        $region34: #{tpu_custom_call.1} parent=23 // pred_check_branch
          %112 = sbr.rel (%p110) target = $region36
        $region35: #{tpu_custom_call.1} parent=23 // pred_region
          %113 = dma.done [#allocation4], 128
        $region36: #{tpu_custom_call.1} parent=23 // pred_fallthru
          _
      $region24: #{tpu_custom_call.1} parent=5 // pred_fallthru
        _
      %p114 = scmp.le.s32.totalorder 2, %s9
      // Predicated region
      $region37: #{tpu_custom_call.1} parent=5 // pred_check
        %p115 = pneg %p114
      $region38: #{tpu_custom_call.1} parent=5 // pred_check_branch
        %117 = sbr.rel (%p115) target = $region40
      $region39: #{tpu_custom_call.1} parent=5 // pred_region
        %s118 = ssub.s32 %s9, 2
      $region40: #{tpu_custom_call.1} parent=5 // pred_fallthru
        _
    $region6: #{tpu_custom_call.1} parent=1 // loop_footer
      %s13 = sadd.s32 1, %s9
    $region7: #{tpu_custom_call.1} parent=1 // loop_footer_branch
      %8 = sbr.rel target = $region3
    $region8: #{tpu_custom_call.1} parent=1 // loop_exit
      _
    %119 = vsyncpa [#allocation3], 1
    %s120 = scalar_lea.sflag [#allocation3], 1
    %121 = vsyncpa %s120, 1
    %122 = vsyncpa [#allocation4], 1
    %s123 = scalar_lea.sflag [#allocation4], 1
    %124 = vsyncpa %s123, 1

// kernel: custom-call.11
$region0: #{custom-call.11}
  %s0 = inlined_call_operand.vmem [shape: f32[8,8], index: 0, kind: input, shape index: {}]
  %s1 = inlined_call_operand.vmem [shape: f32[8,8], index: 1, kind: output, shape index: {0}]
  %s2 = inlined_call_operand.hbm [shape: s32[8], index: 2, kind: output, shape index: {1}]
  %s3 = inlined_call_operand.vmem [shape: s32[8], index: 3, kind: output, shape index: {2}]
  %4 = xla_tuple %s1, %s2, %s3
  $region1: #{custom-call.11} parent=0
    #allocation0 [shape = 'u8[4096]{0}', space=vmem, size = 0x1000, scoped, tag = 'operand span for operand 0']
    #allocation1 [shape = 'u8[4096]{0}', space=vmem, size = 0x1000, scoped, tag = 'operand span for operand 1']
    #allocation2 [shape = 'u8[4096]{0}', space=vmem, size = 0x1000, scoped, tag = 'operand span for operand 2']
    #allocation3 [shape = 'u8[512]{0}', space=vmem, size = 0x400, scoped, tag = 'packed  for operand 2']
    #allocation4 [shape = 's32[1]{0}', space=sflag, size = 0x4, scoped, tag = 'scoped memory for custom-call.11']
    #allocation5 [shape = 'u8[4096]{0}', space=vmem, size = 0x1000, scoped, tag = 'operand span for operand 3']
    #allocation6 [shape = 'u8[512]{0}', space=vmem, size = 0x400, scoped, tag = 'packed  for operand 3']
    #allocation7 [shape = 's32[8,128]{1,0}', space=vmem, size = 0x1000, scoped, tag = 'scratch for permutations']
    %5 = vsyncpa [#allocation4], 0
    %p7 = scmp.gt.s32.totalorder 8, 0
    // Predicated region
    $region2: #{custom-call.11} parent=1 // pred_check
      %p8 = pneg %p7
    $region3: #{custom-call.11} parent=1 // pred_check_branch
      %10 = sbr.rel (%p8) target = $region5
    $region4: #{custom-call.11} parent=1 // pred_region
      %s11 = sshra.s32 8, 3
      %p12 = scmp.gt.s32.totalorder %s11, 0
      // Predicated region
      $region6: #{custom-call.11} parent=4 // pred_check
        %p13 = pneg %p12
      $region7: #{custom-call.11} parent=4 // pred_check_branch
        %15 = sbr.rel (%p13) target = $region9
      $region8: #{custom-call.11} parent=4 // pred_region
        %s16 = ssub.s32 %s11, 1
        %s17 = smul.u32 %s16, 128
        %s18 = sshra.s32 %s17, 4
        %s19 = scalar_lea.vmem %s0, %s18
        %v20 = vld [vmem:[%s0] sm:$0xff]
        // While loop
        $region10: #{custom-call.11} parent=8 // loop_pre_header
          _
        $region11: #{custom-call.11} parent=8 // loop_header
          %s21 = sphi %s0, %s43
          %s22 = sphi [#allocation0], %s44
          %v23 = vphi %v20, %v45
          %s24 = ssub.s32 %s19, 64
          %p25 = scmp.gt.s32.totalorder %s21, %s24
        $region12: #{custom-call.11} parent=8 // loop_header_branch
          %27 = sbr.rel (%p25) target = $region16
        $region13: #{custom-call.11} parent=8 // loop_body
          %28 = vst [vmem:[%s22] sm:$0xff] %v23
          %v29 = vld [vmem:[%s21 + $0x8] sm:$0xff]
          %30 = vst [vmem:[%s22 + $0x8] sm:$0xff] %v29
          %v31 = vld [vmem:[%s21 + $0x10] sm:$0xff]
          %32 = vst [vmem:[%s22 + $0x10] sm:$0xff] %v31
          %v33 = vld [vmem:[%s21 + $0x18] sm:$0xff]
          %34 = vst [vmem:[%s22 + $0x18] sm:$0xff] %v33
          %v35 = vld [vmem:[%s21 + $0x20] sm:$0xff]
          %36 = vst [vmem:[%s22 + $0x20] sm:$0xff] %v35
          %v37 = vld [vmem:[%s21 + $0x28] sm:$0xff]
          %38 = vst [vmem:[%s22 + $0x28] sm:$0xff] %v37
          %v39 = vld [vmem:[%s21 + $0x30] sm:$0xff]
          %40 = vst [vmem:[%s22 + $0x30] sm:$0xff] %v39
          %v41 = vld [vmem:[%s21 + $0x38] sm:$0xff]
          %42 = vst [vmem:[%s22 + $0x38] sm:$0xff] %v41
        $region14: #{custom-call.11} parent=8 // loop_footer
          %s43 = scalar_lea.vmem %s21, 64
          %s44 = scalar_lea.vmem %s22, 64
          %v45 = vld [vmem:[%s21 + $0x40] sm:$0xff]
        $region15: #{custom-call.11} parent=8 // loop_footer_branch
          %46 = sbr.rel target = $region11
        $region16: #{custom-call.11} parent=8 // loop_exit
          _
        // While loop
        $region17: #{custom-call.11} parent=8 // loop_pre_header
          _
        $region18: #{custom-call.11} parent=8 // loop_header
          %s47 = sphi %s21, %s55
          %s48 = sphi %s22, %s56
          %v49 = vphi %v23, %v49
          %p50 = scmp.gt.s32.totalorder %s47, %s19
        $region19: #{custom-call.11} parent=8 // loop_header_branch
          %52 = sbr.rel (%p50) target = $region23
        $region20: #{custom-call.11} parent=8 // loop_body
          %v53 = vld [vmem:[%s47] sm:$0xff]
          %54 = vst [vmem:[%s48] sm:$0xff] %v53
        $region21: #{custom-call.11} parent=8 // loop_footer
          %s55 = scalar_lea.vmem %s47, 8
          %s56 = scalar_lea.vmem %s48, 8
        $region22: #{custom-call.11} parent=8 // loop_footer_branch
          %57 = sbr.rel target = $region18
        $region23: #{custom-call.11} parent=8 // loop_exit
          _
      $region9: #{custom-call.11} parent=4 // pred_fallthru
        _
      %s58 = sand.u32 8, 7
      %s59 = sshllo.u32 0, %s58
      %s60 = smul.u32 %s11, 128
      %s61 = sshra.s32 %s60, 4
      %s62 = scalar_lea.vmem [#allocation0], %s61
      %s63 = smul.u32 %s11, 128
      %s64 = sshra.s32 %s63, 4
      %s65 = scalar_lea.vmem %s0, %s64
      %v66 = vld [vmem:[%s65] sm:%s59]
      %67 = vst [vmem:[%s62] sm:%s59] %v66
    $region5: #{custom-call.11} parent=1 // pred_fallthru
      _
    %v68 = vld [vmem:[#allocation0] sm:$0xff]
    %69 = vst [vmem:[#allocation1] sm:$0xff] %v68
    %70 = vst [vmem:[#allocation2] sm:$0x1] 0
    %v71 = vlaneseq
    %v72 = vshrl.u32 %v71, 7
    %v73 = vmov %v72
    %75 = vst [vmem:[#allocation7] sm:$0xff] %v73
    loop: start=0, step=1, limit=8
    $region25: #{custom-call.11} parent=1 // loop_pre_header
      _
    $region26: #{custom-call.11} parent=1 // loop_header
      %s77 = sphi 0, %s81
      %p78 = scmp.ge.s32.totalorder %s77, 8
    $region27: #{custom-call.11} parent=1 // loop_header_branch
      %80 = sbr.rel (%p78) target = $region31
    $region28: #{custom-call.11} parent=1 // loop_body
      %v82 = vstv %s77
      %v83 = vlaneseq
      %v84 = vshrl.u32 %v83, 7
      %v85 = vmov %v84
      %v86 = vld [vmem:[#allocation1] sm:$0xff]
      %v87 = vand.u32 2147483647, %v86
      %v89 = vstv %s77
      %vm90 = vcmp.ge.s32.totalorder %v85, %v89
      %vm91 = vcmp.lt.s32.totalorder %v85, 8
      %vm92 = vmand %vm90, %vm91
      %vm93 = vcmp.lt.f32.partialorder -inf, %v87
      %vm94 = vmand %vm92, %vm93
      %v95 = vsel %vm94, %v85, %v82
      %v96 = vsel %vm94, %v87, -inf
      %v97 = vrot.slane %v96, 1
      %v98 = vrot.slane %v95, 1
      %vm99 = vcmp.ge.f32.partialorder %v97, %v96
      %v100 = vsel %vm99, %v97, %v96
      %v101 = vsel %vm99, %v98, %v95
      %v102 = vrot.slane %v97, 1
      %v103 = vrot.slane %v98, 1
      %vm104 = vcmp.ge.f32.partialorder %v102, %v100
      %v105 = vsel %vm104, %v102, %v100
      %v106 = vsel %vm104, %v103, %v101
      %v107 = vrot.slane %v102, 1
      %v108 = vrot.slane %v103, 1
      %vm109 = vcmp.ge.f32.partialorder %v107, %v105
      %v110 = vsel %vm109, %v107, %v105
      %v111 = vsel %vm109, %v108, %v106
      %v112 = vrot.slane %v107, 1
      %v113 = vrot.slane %v108, 1
      %vm114 = vcmp.ge.f32.partialorder %v112, %v110
      %v115 = vsel %vm114, %v112, %v110
      %v116 = vsel %vm114, %v113, %v111
      %v117 = vrot.slane %v112, 1
      %v118 = vrot.slane %v113, 1
      %vm119 = vcmp.ge.f32.partialorder %v117, %v115
      %v120 = vsel %vm119, %v117, %v115
      %v121 = vsel %vm119, %v118, %v116
      %v122 = vrot.slane %v117, 1
      %v123 = vrot.slane %v118, 1
      %vm124 = vcmp.ge.f32.partialorder %v122, %v120
      %v125 = vsel %vm124, %v122, %v120
      %v126 = vsel %vm124, %v123, %v121
      %v127 = vrot.slane %v122, 1
      %v128 = vrot.slane %v123, 1
      %vm129 = vcmp.ge.f32.partialorder %v127, %v125
      %v130 = vsel %vm129, %v127, %v125
      %v131 = vsel %vm129, %v128, %v126
      %s132 = ssub.s32 128, %s77
      %133 = vrot.lane.b32.xlu0 %v131, %s132
      %v134 = vpop.permute.xlu0 %133
      %s135 = vtos %v134
      %v136 = vstv %s77
      %v137 = vlaneseq
      %v138 = vand.u32 %v137, 127
      %vm139 = vcmp.eq.s32.totalorder %v138, %v136
      %v140 = vstv %s135
      %v141 = vld [vmem:[#allocation2] ss:$0 sm:$0xff]
      %v142 = vsel %vm139, %v140, %v141
      %143 = vst [vmem:[#allocation2] sm:$0x1] %v142
      %s144 = scalar_lea.vmem [#allocation1], %s77
      %s145 = scalar_lea.vmem [#allocation1], %s135
      %v146 = vld [vmem:[%s144] ss:$0 sm:$0xff]
      %v147 = vld [vmem:[%s145] ss:$0 sm:$0xff]
      %148 = vst [vmem:[%s145] sm:$0x1] %v146
      %149 = vst [vmem:[%s144] sm:$0x1] %v147
      %s150 = scalar_lea.vmem [#allocation7], %s77
      %s151 = scalar_lea.vmem [#allocation7], %s135
      %v152 = vld [vmem:[%s150] ss:$0 sm:$0xff]
      %v153 = vld [vmem:[%s151] ss:$0 sm:$0xff]
      %154 = vst [vmem:[%s151] sm:$0x1] %v152
      %155 = vst [vmem:[%s150] sm:$0x1] %v153
      %vm156 = vcmp.ne.f32.partialorder %v147, 0.0
      %vm157 = vmand %vm139, %vm156
      %v158 = vsel %vm157, %v147, 1.0
      %v159 = vlaneseq
      %v160 = vand.u32 %v159, 127
      %v161 = vstv %s77
      %vm162 = vcmp.gt.s32.totalorder %v160, %v161
      %v163 = vsel %vm162, %v147, 0.0
      %v164 = vlaneseq
      %v165 = vshrl.u32 %v164, 7
      %v166 = vmov %v165
      %v167 = vld [vmem:[#allocation1] sm:$0xff]
      %v169 = vstv %s77
      %vm170 = vcmp.gt.s32.totalorder %v166, %v169
      %v171 = vsel %vm170, %v158, 1.0
      %v172 = vrcp.pop %v171
      %v173 = vmul.f32 %v167, %v172
      %vm174 = vmand %vm170, %vm139
      %v175 = vsel %vm174, %v173, 0.0
      %176 = vadd.xlane.f32.xlu0 %v175
      %v177 = vpop.xlane.xlu0 %176
      %v178 = vmul.f32 %v177, %v163
      %v179 = vsub.f32 %v173, %v178
      %180 = vst [vmem:[#allocation1] sm:$0xff] %v179
    $region29: #{custom-call.11} parent=1 // loop_footer
      %s81 = sadd.s32 1, %s77
    $region30: #{custom-call.11} parent=1 // loop_footer_branch
      %76 = sbr.rel target = $region26
    $region31: #{custom-call.11} parent=1 // loop_exit
      _
    %v181 = vld [vmem:[#allocation7] sm:$0xff]
    %s182 = scalar_lea.vmem [#allocation7], 8
    %s183 = scalar_lea.vmem [#allocation7], 16
    %s184 = scalar_lea.vmem [#allocation7], 24
    %s185 = scalar_lea.vmem [#allocation7], 32
    %s186 = scalar_lea.vmem [#allocation7], 40
    %s187 = scalar_lea.vmem [#allocation7], 48
    %s188 = scalar_lea.vmem [#allocation7], 56
    %s189 = scalar_lea.vmem [#allocation7], 64
    %s190 = scalar_lea.vmem [#allocation7], 72
    %s191 = scalar_lea.vmem [#allocation7], 80
    %s192 = scalar_lea.vmem [#allocation7], 88
    %s193 = scalar_lea.vmem [#allocation7], 96
    %s194 = scalar_lea.vmem [#allocation7], 104
    %s195 = scalar_lea.vmem [#allocation7], 112
    %s196 = scalar_lea.vmem [#allocation7], 120
    %197 = vxpose.xlu0.b32.start [1/16] %v181, 128
    %198 = vxpose.xlu0.b32.cont [2/16] 0, 128
    %199 = vxpose.xlu0.b32.cont [3/16] 0, 128
    %200 = vxpose.xlu0.b32.cont [4/16] 0, 128
    %201 = vxpose.xlu0.b32.cont [5/16] 0, 128
    %202 = vxpose.xlu0.b32.cont [6/16] 0, 128
    %203 = vxpose.xlu0.b32.cont [7/16] 0, 128
    %204 = vxpose.xlu0.b32.cont [8/16] 0, 128
    %205 = vxpose.xlu0.b32.cont [9/16] 0, 128
    %206 = vxpose.xlu0.b32.cont [10/16] 0, 128
    %207 = vxpose.xlu0.b32.cont [11/16] 0, 128
    %208 = vxpose.xlu0.b32.cont [12/16] 0, 128
    %209 = vxpose.xlu0.b32.cont [13/16] 0, 128
    %210 = vxpose.xlu0.b32.cont [14/16] 0, 128
    %211 = vxpose.xlu0.b32.cont [15/16] 0, 128
    %212 = vxpose.xlu0.b32.end [16/16] 0, 128
    %v213 = vpop.trf.xlu0
    %v214 = vpop.trf.xlu0
    %v215 = vpop.trf.xlu0
    %v216 = vpop.trf.xlu0
    %v217 = vpop.trf.xlu0
    %v218 = vpop.trf.xlu0
    %v219 = vpop.trf.xlu0
    %v220 = vpop.trf.xlu0
    %v221 = vpop.trf.xlu0
    %v222 = vpop.trf.xlu0
    %v223 = vpop.trf.xlu0
    %v224 = vpop.trf.xlu0
    %v225 = vpop.trf.xlu0
    %v226 = vpop.trf.xlu0
    %v227 = vpop.trf.xlu0
    %v228 = vpop.trf.xlu0
    %229 = vst [vmem:[#allocation5] sm:$0x1] %v213
    %s231 = sshllo.u32 0, 1
    %v233 = vld [vmem:[#allocation2] sm:%s231]
    %s234 = sshllo.u32 0, 1
    %235 = vst [vmem:[#allocation3] sm:%s234] %v233
    %s237 = sshllo.u32 0, 1
    %v239 = vld [vmem:[#allocation5] sm:%s237]
    %s240 = sshllo.u32 0, 1
    %241 = vst [vmem:[#allocation6] sm:%s240] %v239
    %p243 = scmp.gt.s32.totalorder 8, 0
    // Predicated region
    $region32: #{custom-call.11} parent=1 // pred_check
      %p244 = pneg %p243
    $region33: #{custom-call.11} parent=1 // pred_check_branch
      %246 = sbr.rel (%p244) target = $region35
    $region34: #{custom-call.11} parent=1 // pred_region
      %s247 = sshra.s32 8, 3
      %p248 = scmp.gt.s32.totalorder %s247, 0
      // Predicated region
      $region36: #{custom-call.11} parent=34 // pred_check
        %p249 = pneg %p248
      $region37: #{custom-call.11} parent=34 // pred_check_branch
        %251 = sbr.rel (%p249) target = $region39
      $region38: #{custom-call.11} parent=34 // pred_region
        %s252 = ssub.s32 %s247, 1
        %s253 = smul.u32 %s252, 128
        %s254 = sshra.s32 %s253, 4
        %s255 = scalar_lea.vmem [#allocation1], %s254
        %v256 = vld [vmem:[#allocation1] sm:$0xff]
        // While loop
        $region40: #{custom-call.11} parent=38 // loop_pre_header
          _
        $region41: #{custom-call.11} parent=38 // loop_header
          %s257 = sphi [#allocation1], %s279
          %s258 = sphi %s1, %s280
          %v259 = vphi %v256, %v281
          %s260 = ssub.s32 %s255, 64
          %p261 = scmp.gt.s32.totalorder %s257, %s260
        $region42: #{custom-call.11} parent=38 // loop_header_branch
          %263 = sbr.rel (%p261) target = $region46
        $region43: #{custom-call.11} parent=38 // loop_body
          %264 = vst [vmem:[%s258] sm:$0xff] %v259
          %v265 = vld [vmem:[%s257 + $0x8] sm:$0xff]
          %266 = vst [vmem:[%s258 + $0x8] sm:$0xff] %v265
          %v267 = vld [vmem:[%s257 + $0x10] sm:$0xff]
          %268 = vst [vmem:[%s258 + $0x10] sm:$0xff] %v267
          %v269 = vld [vmem:[%s257 + $0x18] sm:$0xff]
          %270 = vst [vmem:[%s258 + $0x18] sm:$0xff] %v269
          %v271 = vld [vmem:[%s257 + $0x20] sm:$0xff]
          %272 = vst [vmem:[%s258 + $0x20] sm:$0xff] %v271
          %v273 = vld [vmem:[%s257 + $0x28] sm:$0xff]
          %274 = vst [vmem:[%s258 + $0x28] sm:$0xff] %v273
          %v275 = vld [vmem:[%s257 + $0x30] sm:$0xff]
          %276 = vst [vmem:[%s258 + $0x30] sm:$0xff] %v275
          %v277 = vld [vmem:[%s257 + $0x38] sm:$0xff]
          %278 = vst [vmem:[%s258 + $0x38] sm:$0xff] %v277
        $region44: #{custom-call.11} parent=38 // loop_footer
          %s279 = scalar_lea.vmem %s257, 64
          %s280 = scalar_lea.vmem %s258, 64
          %v281 = vld [vmem:[%s257 + $0x40] sm:$0xff]
        $region45: #{custom-call.11} parent=38 // loop_footer_branch
          %282 = sbr.rel target = $region41
        $region46: #{custom-call.11} parent=38 // loop_exit
          _
        // While loop
        $region47: #{custom-call.11} parent=38 // loop_pre_header
          _
        $region48: #{custom-call.11} parent=38 // loop_header
          %s283 = sphi %s257, %s291
          %s284 = sphi %s258, %s292
          %v285 = vphi %v259, %v285
          %p286 = scmp.gt.s32.totalorder %s283, %s255
        $region49: #{custom-call.11} parent=38 // loop_header_branch
          %288 = sbr.rel (%p286) target = $region53
        $region50: #{custom-call.11} parent=38 // loop_body
          %v289 = vld [vmem:[%s283] sm:$0xff]
          %290 = vst [vmem:[%s284] sm:$0xff] %v289
        $region51: #{custom-call.11} parent=38 // loop_footer
          %s291 = scalar_lea.vmem %s283, 8
          %s292 = scalar_lea.vmem %s284, 8
        $region52: #{custom-call.11} parent=38 // loop_footer_branch
          %293 = sbr.rel target = $region48
        $region53: #{custom-call.11} parent=38 // loop_exit
          _
      $region39: #{custom-call.11} parent=34 // pred_fallthru
        _
      %s294 = sand.u32 8, 7
      %s295 = sshllo.u32 0, %s294
      %s296 = smul.u32 %s247, 128
      %s297 = sshra.s32 %s296, 4
      %s298 = scalar_lea.vmem %s1, %s297
      %s299 = smul.u32 %s247, 128
      %s300 = sshra.s32 %s299, 4
      %s301 = scalar_lea.vmem [#allocation1], %s300
      %v302 = vld [vmem:[%s301] sm:%s295]
      %303 = vst [vmem:[%s298] sm:%s295] %v302
    $region35: #{custom-call.11} parent=1 // pred_fallthru
      _
    // Predicated region
    $region54: #{custom-call.11} parent=1 // pred_check
      _
    $region55: #{custom-call.11} parent=1 // pred_check_branch
      %305 = sbr.rel (0) target = $region57
    $region56: #{custom-call.11} parent=1 // pred_region
      %s307 = ssub.s32 16, 16
      %308 = vsyncadd [#allocation4], %s307
      %s309 = sshll.u32 [#allocation3], 4
      %s310 = int_to_ptr.vmem [resolvable:$true] %s309
      %312 = dma.vmem_to_hbm [thread:$0]  %s310, 16, %s2, [#allocation4]
    $region57: #{custom-call.11} parent=1 // pred_fallthru
      _
    // Predicated region
    $region58: #{custom-call.11} parent=1 // pred_check
      _
    $region59: #{custom-call.11} parent=1 // pred_check_branch
      %314 = sbr.rel (0) target = $region61
    $region60: #{custom-call.11} parent=1 // pred_region
      %p316 = scmp.gt.s32.totalorder 1, 0
      // Predicated region
      $region62: #{custom-call.11} parent=60 // pred_check
        %p317 = pneg %p316
      $region63: #{custom-call.11} parent=60 // pred_check_branch
        %319 = sbr.rel (%p317) target = $region65
      $region64: #{custom-call.11} parent=60 // pred_region
        %s320 = sshra.s32 1, 3
        %p321 = scmp.gt.s32.totalorder %s320, 0
        // Predicated region
        $region66: #{custom-call.11} parent=64 // pred_check
          %p322 = pneg %p321
        $region67: #{custom-call.11} parent=64 // pred_check_branch
          %324 = sbr.rel (%p322) target = $region69
        $region68: #{custom-call.11} parent=64 // pred_region
          %s325 = ssub.s32 %s320, 1
          %s326 = smul.u32 %s325, 128
          %s327 = sshra.s32 %s326, 4
          %s328 = scalar_lea.vmem [#allocation6], %s327
          %v329 = vld [vmem:[#allocation6] sm:$0xff]
          // While loop
          $region70: #{custom-call.11} parent=68 // loop_pre_header
            _
          $region71: #{custom-call.11} parent=68 // loop_header
            %s330 = sphi [#allocation6], %s352
            %s331 = sphi %s3, %s353
            %v332 = vphi %v329, %v354
            %s333 = ssub.s32 %s328, 64
            %p334 = scmp.gt.s32.totalorder %s330, %s333
          $region72: #{custom-call.11} parent=68 // loop_header_branch
            %336 = sbr.rel (%p334) target = $region76
          $region73: #{custom-call.11} parent=68 // loop_body
            %337 = vst [vmem:[%s331] sm:$0xff] %v332
            %v338 = vld [vmem:[%s330 + $0x8] sm:$0xff]
            %339 = vst [vmem:[%s331 + $0x8] sm:$0xff] %v338
            %v340 = vld [vmem:[%s330 + $0x10] sm:$0xff]
            %341 = vst [vmem:[%s331 + $0x10] sm:$0xff] %v340
            %v342 = vld [vmem:[%s330 + $0x18] sm:$0xff]
            %343 = vst [vmem:[%s331 + $0x18] sm:$0xff] %v342
            %v344 = vld [vmem:[%s330 + $0x20] sm:$0xff]
            %345 = vst [vmem:[%s331 + $0x20] sm:$0xff] %v344
            %v346 = vld [vmem:[%s330 + $0x28] sm:$0xff]
            %347 = vst [vmem:[%s331 + $0x28] sm:$0xff] %v346
            %v348 = vld [vmem:[%s330 + $0x30] sm:$0xff]
            %349 = vst [vmem:[%s331 + $0x30] sm:$0xff] %v348
            %v350 = vld [vmem:[%s330 + $0x38] sm:$0xff]
            %351 = vst [vmem:[%s331 + $0x38] sm:$0xff] %v350
          $region74: #{custom-call.11} parent=68 // loop_footer
            %s352 = scalar_lea.vmem %s330, 64
            %s353 = scalar_lea.vmem %s331, 64
            %v354 = vld [vmem:[%s330 + $0x40] sm:$0xff]
          $region75: #{custom-call.11} parent=68 // loop_footer_branch
            %355 = sbr.rel target = $region71
          $region76: #{custom-call.11} parent=68 // loop_exit
            _
          // While loop
          $region77: #{custom-call.11} parent=68 // loop_pre_header
            _
          $region78: #{custom-call.11} parent=68 // loop_header
            %s356 = sphi %s330, %s364
            %s357 = sphi %s331, %s365
            %v358 = vphi %v332, %v358
            %p359 = scmp.gt.s32.totalorder %s356, %s328
          $region79: #{custom-call.11} parent=68 // loop_header_branch
            %361 = sbr.rel (%p359) target = $region83
          $region80: #{custom-call.11} parent=68 // loop_body
            %v362 = vld [vmem:[%s356] sm:$0xff]
            %363 = vst [vmem:[%s357] sm:$0xff] %v362
          $region81: #{custom-call.11} parent=68 // loop_footer
            %s364 = scalar_lea.vmem %s356, 8
            %s365 = scalar_lea.vmem %s357, 8
          $region82: #{custom-call.11} parent=68 // loop_footer_branch
            %366 = sbr.rel target = $region78
          $region83: #{custom-call.11} parent=68 // loop_exit
            _
        $region69: #{custom-call.11} parent=64 // pred_fallthru
          _
        %s367 = sand.u32 1, 7
        %s368 = sshllo.u32 0, %s367
        %s369 = smul.u32 %s320, 128
        %s370 = sshra.s32 %s369, 4
        %s371 = scalar_lea.vmem %s3, %s370
        %s372 = smul.u32 %s320, 128
        %s373 = sshra.s32 %s372, 4
        %s374 = scalar_lea.vmem [#allocation6], %s373
        %v375 = vld [vmem:[%s374] sm:%s368]
        %376 = vst [vmem:[%s371] sm:%s368] %v375
      $region65: #{custom-call.11} parent=60 // pred_fallthru
        _
    $region61: #{custom-call.11} parent=1 // pred_fallthru
      _
    // Predicated region
    $region84: #{custom-call.11} parent=1 // pred_check
      _
    $region85: #{custom-call.11} parent=1 // pred_check_branch
      %378 = sbr.rel (0) target = $region87
    $region86: #{custom-call.11} parent=1 // pred_region
      %379 = dma.done [#allocation4], 16
    $region87: #{custom-call.11} parent=1 // pred_fallthru
      _
    // Predicated region
    $region88: #{custom-call.11} parent=1 // pred_check
      _
    $region89: #{custom-call.11} parent=1 // pred_check_branch
      %381 = sbr.rel (0) target = $region91
    $region90: #{custom-call.11} parent=1 // pred_region
      _
    $region91: #{custom-call.11} parent=1 // pred_fallthru
      _
    %382 = vsyncpa [#allocation4], 1

// kernel: custom-call.12
$region0: #{custom-call.12}
  %s0 = inlined_call_operand.vmem [shape: f32[1,8,8], index: 0, kind: input, shape index: {}]
  %s1 = inlined_call_operand.vmem [shape: f32[1,8,8], index: 1, kind: output, shape index: {}]
  $region1: #{custom-call.12} parent=0
    #allocation0 [shape = 'u8[4096]{0}', space=vmem, size = 0x1000, scoped, tag = 'operand span for operand 0']
    #allocation1 [shape = 'u8[4096]{0}', space=vmem, size = 0x1000, scoped, tag = 'operand span for operand 1']
    #allocation2 [shape = 'f32[8,8]{1,0}', space=vmem, size = 0x1000, scoped, tag = 'rescaled input a']
    // Predicated region
    $region2: #{custom-call.12} parent=1 // pred_check
      _
    $region3: #{custom-call.12} parent=1 // pred_check_branch
      %3 = sbr.rel (0) target = $region5
    $region4: #{custom-call.12} parent=1 // pred_region
      // Predicated region
      $region6: #{custom-call.12} parent=4 // pred_check
        _
      $region7: #{custom-call.12} parent=4 // pred_check_branch
        %5 = sbr.rel (0) target = $region9
      $region8: #{custom-call.12} parent=4 // pred_region
        // Predicated region
        $region21: #{custom-call.12} parent=8 // pred_check
          _
        $region22: #{custom-call.12} parent=8 // pred_check_branch
          %20 = sbr.rel (0) target = $region24
        $region23: #{custom-call.12} parent=8 // pred_region
          loop: start=0, step=1, limit=1
          $region25: #{custom-call.12} parent=23 // loop_pre_header
            _
          $region26: #{custom-call.12} parent=23 // loop_header
            %s22 = sphi 0, %s26
            %p23 = scmp.ge.s32.totalorder %s22, 1
            %s27 = sphi %s0, %s0
            %s28 = sphi [#allocation0], [#allocation0]
          $region27: #{custom-call.12} parent=23 // loop_header_branch
            %25 = sbr.rel (%p23) target = $region31
          $region28: #{custom-call.12} parent=23 // loop_body
            %v29 = vld [vmem:[%s27] sm:$0xff]
            %30 = vst [vmem:[%s28] sm:$0xff] %v29
          $region29: #{custom-call.12} parent=23 // loop_footer
            %s26 = sadd.s32 1, %s22
          $region30: #{custom-call.12} parent=23 // loop_footer_branch
            %21 = sbr.rel target = $region26
          $region31: #{custom-call.12} parent=23 // loop_exit
            _
        $region24: #{custom-call.12} parent=8 // pred_fallthru
          _
        // Predicated region
        $region32: #{custom-call.12} parent=8 // pred_check
          _
        $region33: #{custom-call.12} parent=8 // pred_check_branch
          %32 = sbr.rel target = $region35
        $region34: #{custom-call.12} parent=8 // pred_region
          _
        $region35: #{custom-call.12} parent=8 // pred_fallthru
          _
      $region9: #{custom-call.12} parent=4 // pred_fallthru
        _
      // Predicated region
      $region10: #{custom-call.12} parent=4 // pred_check
        _
      $region11: #{custom-call.12} parent=4 // pred_check_branch
        %7 = sbr.rel target = $region13
      $region12: #{custom-call.12} parent=4 // pred_region
        loop: start=0, step=1, limit=1
        $region14: #{custom-call.12} parent=12 // loop_pre_header
          _
        $region15: #{custom-call.12} parent=12 // loop_header
          %s10 = sphi 0, %s14
          %p11 = scmp.ge.s32.totalorder %s10, 1
          %s15 = sphi %s0, %s0
          %s16 = sphi [#allocation0], [#allocation0]
        $region16: #{custom-call.12} parent=12 // loop_header_branch
          %13 = sbr.rel (%p11) target = $region20
        $region17: #{custom-call.12} parent=12 // loop_body
          %v17 = vld [vmem:[%s15] sm:$0xff]
          %18 = vst [vmem:[%s16] sm:$0xff] %v17
        $region18: #{custom-call.12} parent=12 // loop_footer
          %s14 = sadd.s32 1, %s10
        $region19: #{custom-call.12} parent=12 // loop_footer_branch
          %9 = sbr.rel target = $region15
        $region20: #{custom-call.12} parent=12 // loop_exit
          _
      $region13: #{custom-call.12} parent=4 // pred_fallthru
        _
    $region5: #{custom-call.12} parent=1 // pred_fallthru
      _
    %33 = vnop
    %v34 = vlaneseq
    %v35 = vand.u32 %v34, 127
    %vm36 = vcmp.lt.s32.totalorder %v35, 8
    %v37 = vlaneseq
    %v38 = vshrl.u32 %v37, 7
    %vm40 = vcmp.eq.s32.totalorder %v38, %v35
    %v41 = vld [vmem:[#allocation0] sm:$0xff]
    %v42 = vsel %vm40, %v41, 0.0
    %43 = vadd.xlane.f32.xlu0 %v42
    %v44 = vpop.xlane.xlu0 %43
    %vm45 = vcmp.le.s32.totalorder %v38, %v35
    %vm46 = vmand %vm45, %vm36
    %v47 = vsel %vm46, %v41, 0.0
    %v48 = vrcp.pop %v44
    %v49 = vmul.f32 %v47, %v48
    %50 = vst [vmem:[#allocation2] sm:$0xff] %v49
    %v51 = vlaneseq
    %v52 = vand.u32 %v51, 127
    %v53 = vlaneseq
    %v54 = vshrl.u32 %v53, 7
    %vm56 = vcmp.eq.s32.totalorder %v52, %v54
    %v57 = vlaneseq
    %v58 = vand.u32 %v57, 127
    %vm59 = vcmp.eq.s32.totalorder %v58, 7
    %v60 = vsel %vm59, 1.0, -1.0
    %v61 = vsel %vm56, %v60, 0.0
    %s62 = scalar_lea.vmem [#allocation2], 6
    %v63 = vld [vmem:[%s62] ss:$0 sm:$0xff]
    %v64 = vxor.u32 %v63, 2147483648
    %v65 = vlaneseq
    %v66 = vand.u32 %v65, 127
    %vm67 = vcmp.eq.s32.totalorder %v66, 6
    %v68 = vmul.f32 %v64, %v61
    %69 = vadd.xlane.f32.xlu0 %v68
    %v70 = vpop.xlane.xlu0 %69
    %v71 = vsel %vm67, %v70, %v61
    %s72 = scalar_lea.vmem [#allocation2], 5
    %v73 = vld [vmem:[%s72] ss:$0 sm:$0xff]
    %v74 = vxor.u32 %v73, 2147483648
    %v75 = vlaneseq
    %v76 = vand.u32 %v75, 127
    %vm77 = vcmp.eq.s32.totalorder %v76, 5
    %v78 = vmul.f32 %v74, %v71
    %79 = vadd.xlane.f32.xlu0 %v78
    %v80 = vpop.xlane.xlu0 %79
    %v81 = vsel %vm77, %v80, %v71
    %s82 = scalar_lea.vmem [#allocation2], 4
    %v83 = vld [vmem:[%s82] ss:$0 sm:$0xff]
    %v84 = vxor.u32 %v83, 2147483648
    %v85 = vlaneseq
    %v86 = vand.u32 %v85, 127
    %vm87 = vcmp.eq.s32.totalorder %v86, 4
    %v88 = vmul.f32 %v84, %v81
    %89 = vadd.xlane.f32.xlu0 %v88
    %v90 = vpop.xlane.xlu0 %89
    %v91 = vsel %vm87, %v90, %v81
    %s92 = scalar_lea.vmem [#allocation2], 3
    %v93 = vld [vmem:[%s92] ss:$0 sm:$0xff]
    %v94 = vxor.u32 %v93, 2147483648
    %v95 = vlaneseq
    %v96 = vand.u32 %v95, 127
    %vm97 = vcmp.eq.s32.totalorder %v96, 3
    %v98 = vmul.f32 %v94, %v91
    %99 = vadd.xlane.f32.xlu0 %v98
    %v100 = vpop.xlane.xlu0 %99
    %v101 = vsel %vm97, %v100, %v91
    %s102 = scalar_lea.vmem [#allocation2], 2
    %v103 = vld [vmem:[%s102] ss:$0 sm:$0xff]
    %v104 = vxor.u32 %v103, 2147483648
    %v105 = vlaneseq
    %v106 = vand.u32 %v105, 127
    %vm107 = vcmp.eq.s32.totalorder %v106, 2
    %v108 = vmul.f32 %v104, %v101
    %109 = vadd.xlane.f32.xlu0 %v108
    %v110 = vpop.xlane.xlu0 %109
    %v111 = vsel %vm107, %v110, %v101
    %s112 = scalar_lea.vmem [#allocation2], 1
    %v113 = vld [vmem:[%s112] ss:$0 sm:$0xff]
    %v114 = vxor.u32 %v113, 2147483648
    %v115 = vlaneseq
    %v116 = vand.u32 %v115, 127
    %vm117 = vcmp.eq.s32.totalorder %v116, 1
    %v118 = vmul.f32 %v114, %v111
    %119 = vadd.xlane.f32.xlu0 %v118
    %v120 = vpop.xlane.xlu0 %119
    %v121 = vsel %vm117, %v120, %v111
    %v122 = vld [vmem:[#allocation2] ss:$0 sm:$0xff]
    %v123 = vxor.u32 %v122, 2147483648
    %v124 = vlaneseq
    %v125 = vand.u32 %v124, 127
    %vm126 = vcmp.eq.s32.totalorder %v125, 0
    %v127 = vmul.f32 %v123, %v121
    %128 = vadd.xlane.f32.xlu0 %v127
    %v129 = vpop.xlane.xlu0 %128
    %v130 = vsel %vm126, %v129, %v121
    %v131 = vrcp.pop %v44
    %v132 = vmul.f32 %v130, %v131
    %vm133 = vweird.f32 %v44
    %v134 = vsel %vm133, %v130, %v132
    %135 = vst [vmem:[#allocation1] sm:$0xff] %v134
    // Predicated region
    $region36: #{custom-call.12} parent=1 // pred_check
      _
    $region37: #{custom-call.12} parent=1 // pred_check_branch
      %137 = sbr.rel (0) target = $region39
    $region38: #{custom-call.12} parent=1 // pred_region
      // Predicated region
      $region40: #{custom-call.12} parent=38 // pred_check
        _
      $region41: #{custom-call.12} parent=38 // pred_check_branch
        %139 = sbr.rel (0) target = $region43
      $region42: #{custom-call.12} parent=38 // pred_region
        // Predicated region
        $region55: #{custom-call.12} parent=42 // pred_check
          _
        $region56: #{custom-call.12} parent=42 // pred_check_branch
          %154 = sbr.rel (0) target = $region58
        $region57: #{custom-call.12} parent=42 // pred_region
          loop: start=0, step=1, limit=1
          $region59: #{custom-call.12} parent=57 // loop_pre_header
            _
          $region60: #{custom-call.12} parent=57 // loop_header
            %s156 = sphi 0, %s160
            %p157 = scmp.ge.s32.totalorder %s156, 1
            %s161 = sphi [#allocation1], [#allocation1]
            %s162 = sphi %s1, %s1
          $region61: #{custom-call.12} parent=57 // loop_header_branch
            %159 = sbr.rel (%p157) target = $region65
          $region62: #{custom-call.12} parent=57 // loop_body
            %v163 = vld [vmem:[%s161] sm:$0xff]
            %164 = vst [vmem:[%s162] sm:$0xff] %v163
          $region63: #{custom-call.12} parent=57 // loop_footer
            %s160 = sadd.s32 1, %s156
          $region64: #{custom-call.12} parent=57 // loop_footer_branch
            %155 = sbr.rel target = $region60
          $region65: #{custom-call.12} parent=57 // loop_exit
            _
        $region58: #{custom-call.12} parent=42 // pred_fallthru
          _
        // Predicated region
        $region66: #{custom-call.12} parent=42 // pred_check
          _
        $region67: #{custom-call.12} parent=42 // pred_check_branch
          %166 = sbr.rel target = $region69
        $region68: #{custom-call.12} parent=42 // pred_region
          _
        $region69: #{custom-call.12} parent=42 // pred_fallthru
          _
      $region43: #{custom-call.12} parent=38 // pred_fallthru
        _
      // Predicated region
      $region44: #{custom-call.12} parent=38 // pred_check
        _
      $region45: #{custom-call.12} parent=38 // pred_check_branch
        %141 = sbr.rel target = $region47
      $region46: #{custom-call.12} parent=38 // pred_region
        loop: start=0, step=1, limit=1
        $region48: #{custom-call.12} parent=46 // loop_pre_header
          _
        $region49: #{custom-call.12} parent=46 // loop_header
          %s144 = sphi 0, %s148
          %p145 = scmp.ge.s32.totalorder %s144, 1
          %s149 = sphi [#allocation1], [#allocation1]
          %s150 = sphi %s1, %s1
        $region50: #{custom-call.12} parent=46 // loop_header_branch
          %147 = sbr.rel (%p145) target = $region54
        $region51: #{custom-call.12} parent=46 // loop_body
          %v151 = vld [vmem:[%s149] sm:$0xff]
          %152 = vst [vmem:[%s150] sm:$0xff] %v151
        $region52: #{custom-call.12} parent=46 // loop_footer
          %s148 = sadd.s32 1, %s144
        $region53: #{custom-call.12} parent=46 // loop_footer_branch
          %143 = sbr.rel target = $region49
        $region54: #{custom-call.12} parent=46 // loop_exit
          _
      $region47: #{custom-call.12} parent=38 // pred_fallthru
        _
    $region39: #{custom-call.12} parent=1 // pred_fallthru
      _
    %167 = vnop

// kernel: custom-call.13
$region0: #{custom-call.13}
  %s0 = inlined_call_operand.vmem [shape: f32[1,8,8], index: 0, kind: input, shape index: {}]
  %s1 = inlined_call_operand.vmem [shape: f32[1,8,8], index: 1, kind: output, shape index: {}]
  $region1: #{custom-call.13} parent=0
    #allocation0 [shape = 'u8[4096]{0}', space=vmem, size = 0x1000, scoped, tag = 'operand span for operand 0']
    #allocation1 [shape = 'u8[4096]{0}', space=vmem, size = 0x1000, scoped, tag = 'operand span for operand 1']
    #allocation2 [shape = 'f32[8,8]{1,0}', space=vmem, size = 0x1000, scoped, tag = 'rescaled input a']
    // Predicated region
    $region2: #{custom-call.13} parent=1 // pred_check
      _
    $region3: #{custom-call.13} parent=1 // pred_check_branch
      %3 = sbr.rel (0) target = $region5
    $region4: #{custom-call.13} parent=1 // pred_region
      // Predicated region
      $region6: #{custom-call.13} parent=4 // pred_check
        _
      $region7: #{custom-call.13} parent=4 // pred_check_branch
        %5 = sbr.rel (0) target = $region9
      $region8: #{custom-call.13} parent=4 // pred_region
        // Predicated region
        $region21: #{custom-call.13} parent=8 // pred_check
          _
        $region22: #{custom-call.13} parent=8 // pred_check_branch
          %20 = sbr.rel (0) target = $region24
        $region23: #{custom-call.13} parent=8 // pred_region
          loop: start=0, step=1, limit=1
          $region25: #{custom-call.13} parent=23 // loop_pre_header
            _
          $region26: #{custom-call.13} parent=23 // loop_header
            %s22 = sphi 0, %s26
            %p23 = scmp.ge.s32.totalorder %s22, 1
            %s27 = sphi %s0, %s0
            %s28 = sphi [#allocation0], [#allocation0]
          $region27: #{custom-call.13} parent=23 // loop_header_branch
            %25 = sbr.rel (%p23) target = $region31
          $region28: #{custom-call.13} parent=23 // loop_body
            %v29 = vld [vmem:[%s27] sm:$0xff]
            %30 = vst [vmem:[%s28] sm:$0xff] %v29
          $region29: #{custom-call.13} parent=23 // loop_footer
            %s26 = sadd.s32 1, %s22
          $region30: #{custom-call.13} parent=23 // loop_footer_branch
            %21 = sbr.rel target = $region26
          $region31: #{custom-call.13} parent=23 // loop_exit
            _
        $region24: #{custom-call.13} parent=8 // pred_fallthru
          _
        // Predicated region
        $region32: #{custom-call.13} parent=8 // pred_check
          _
        $region33: #{custom-call.13} parent=8 // pred_check_branch
          %32 = sbr.rel target = $region35
        $region34: #{custom-call.13} parent=8 // pred_region
          _
        $region35: #{custom-call.13} parent=8 // pred_fallthru
          _
      $region9: #{custom-call.13} parent=4 // pred_fallthru
        _
      // Predicated region
      $region10: #{custom-call.13} parent=4 // pred_check
        _
      $region11: #{custom-call.13} parent=4 // pred_check_branch
        %7 = sbr.rel target = $region13
      $region12: #{custom-call.13} parent=4 // pred_region
        loop: start=0, step=1, limit=1
        $region14: #{custom-call.13} parent=12 // loop_pre_header
          _
        $region15: #{custom-call.13} parent=12 // loop_header
          %s10 = sphi 0, %s14
          %p11 = scmp.ge.s32.totalorder %s10, 1
          %s15 = sphi %s0, %s0
          %s16 = sphi [#allocation0], [#allocation0]
        $region16: #{custom-call.13} parent=12 // loop_header_branch
          %13 = sbr.rel (%p11) target = $region20
        $region17: #{custom-call.13} parent=12 // loop_body
          %v17 = vld [vmem:[%s15] sm:$0xff]
          %18 = vst [vmem:[%s16] sm:$0xff] %v17
        $region18: #{custom-call.13} parent=12 // loop_footer
          %s14 = sadd.s32 1, %s10
        $region19: #{custom-call.13} parent=12 // loop_footer_branch
          %9 = sbr.rel target = $region15
        $region20: #{custom-call.13} parent=12 // loop_exit
          _
      $region13: #{custom-call.13} parent=4 // pred_fallthru
        _
    $region5: #{custom-call.13} parent=1 // pred_fallthru
      _
    %33 = vnop
    %v34 = vlaneseq
    %v35 = vand.u32 %v34, 127
    %vm36 = vcmp.lt.s32.totalorder %v35, 8
    %v37 = vlaneseq
    %v38 = vshrl.u32 %v37, 7
    %vm40 = vcmp.eq.s32.totalorder %v38, %v35
    %v41 = vld [vmem:[#allocation0] sm:$0xff]
    %v42 = vsel %vm40, %v41, 0.0
    %43 = vadd.xlane.f32.xlu0 %v42
    %v44 = vpop.xlane.xlu0 %43
    %vm45 = vcmp.ge.s32.totalorder %v38, %v35
    %vm46 = vmand %vm45, %vm36
    %v47 = vsel %vm46, %v41, 0.0
    %v48 = vrcp.pop %v44
    %v49 = vmul.f32 %v47, %v48
    %50 = vst [vmem:[#allocation2] sm:$0xff] %v49
    %v51 = vlaneseq
    %v52 = vand.u32 %v51, 127
    %v53 = vlaneseq
    %v54 = vshrl.u32 %v53, 7
    %vm56 = vcmp.eq.s32.totalorder %v52, %v54
    %v57 = vlaneseq
    %v58 = vand.u32 %v57, 127
    %vm59 = vcmp.eq.s32.totalorder %v58, 0
    %v60 = vsel %vm59, 1.0, -1.0
    %v61 = vsel %vm56, %v60, 0.0
    %s62 = scalar_lea.vmem [#allocation2], 1
    %v63 = vld [vmem:[%s62] ss:$0 sm:$0xff]
    %v64 = vxor.u32 %v63, 2147483648
    %v65 = vlaneseq
    %v66 = vand.u32 %v65, 127
    %vm67 = vcmp.eq.s32.totalorder %v66, 1
    %v68 = vmul.f32 %v64, %v61
    %69 = vadd.xlane.f32.xlu0 %v68
    %v70 = vpop.xlane.xlu0 %69
    %v71 = vsel %vm67, %v70, %v61
    %s72 = scalar_lea.vmem [#allocation2], 2
    %v73 = vld [vmem:[%s72] ss:$0 sm:$0xff]
    %v74 = vxor.u32 %v73, 2147483648
    %v75 = vlaneseq
    %v76 = vand.u32 %v75, 127
    %vm77 = vcmp.eq.s32.totalorder %v76, 2
    %v78 = vmul.f32 %v74, %v71
    %79 = vadd.xlane.f32.xlu0 %v78
    %v80 = vpop.xlane.xlu0 %79
    %v81 = vsel %vm77, %v80, %v71
    %s82 = scalar_lea.vmem [#allocation2], 3
    %v83 = vld [vmem:[%s82] ss:$0 sm:$0xff]
    %v84 = vxor.u32 %v83, 2147483648
    %v85 = vlaneseq
    %v86 = vand.u32 %v85, 127
    %vm87 = vcmp.eq.s32.totalorder %v86, 3
    %v88 = vmul.f32 %v84, %v81
    %89 = vadd.xlane.f32.xlu0 %v88
    %v90 = vpop.xlane.xlu0 %89
    %v91 = vsel %vm87, %v90, %v81
    %s92 = scalar_lea.vmem [#allocation2], 4
    %v93 = vld [vmem:[%s92] ss:$0 sm:$0xff]
    %v94 = vxor.u32 %v93, 2147483648
    %v95 = vlaneseq
    %v96 = vand.u32 %v95, 127
    %vm97 = vcmp.eq.s32.totalorder %v96, 4
    %v98 = vmul.f32 %v94, %v91
    %99 = vadd.xlane.f32.xlu0 %v98
    %v100 = vpop.xlane.xlu0 %99
    %v101 = vsel %vm97, %v100, %v91
    %s102 = scalar_lea.vmem [#allocation2], 5
    %v103 = vld [vmem:[%s102] ss:$0 sm:$0xff]
    %v104 = vxor.u32 %v103, 2147483648
    %v105 = vlaneseq
    %v106 = vand.u32 %v105, 127
    %vm107 = vcmp.eq.s32.totalorder %v106, 5
    %v108 = vmul.f32 %v104, %v101
    %109 = vadd.xlane.f32.xlu0 %v108
    %v110 = vpop.xlane.xlu0 %109
    %v111 = vsel %vm107, %v110, %v101
    %s112 = scalar_lea.vmem [#allocation2], 6
    %v113 = vld [vmem:[%s112] ss:$0 sm:$0xff]
    %v114 = vxor.u32 %v113, 2147483648
    %v115 = vlaneseq
    %v116 = vand.u32 %v115, 127
    %vm117 = vcmp.eq.s32.totalorder %v116, 6
    %v118 = vmul.f32 %v114, %v111
    %119 = vadd.xlane.f32.xlu0 %v118
    %v120 = vpop.xlane.xlu0 %119
    %v121 = vsel %vm117, %v120, %v111
    %s122 = scalar_lea.vmem [#allocation2], 7
    %v123 = vld [vmem:[%s122] ss:$0 sm:$0xff]
    %v124 = vxor.u32 %v123, 2147483648
    %v125 = vlaneseq
    %v126 = vand.u32 %v125, 127
    %vm127 = vcmp.eq.s32.totalorder %v126, 7
    %v128 = vmul.f32 %v124, %v121
    %129 = vadd.xlane.f32.xlu0 %v128
    %v130 = vpop.xlane.xlu0 %129
    %v131 = vsel %vm127, %v130, %v121
    %v132 = vrcp.pop %v44
    %v133 = vmul.f32 %v131, %v132
    %vm134 = vweird.f32 %v44
    %v135 = vsel %vm134, %v131, %v133
    %136 = vst [vmem:[#allocation1] sm:$0xff] %v135
    // Predicated region
    $region36: #{custom-call.13} parent=1 // pred_check
      _
    $region37: #{custom-call.13} parent=1 // pred_check_branch
      %138 = sbr.rel (0) target = $region39
    $region38: #{custom-call.13} parent=1 // pred_region
      // Predicated region
      $region40: #{custom-call.13} parent=38 // pred_check
        _
      $region41: #{custom-call.13} parent=38 // pred_check_branch
        %140 = sbr.rel (0) target = $region43
      $region42: #{custom-call.13} parent=38 // pred_region
        // Predicated region
        $region55: #{custom-call.13} parent=42 // pred_check
          _
        $region56: #{custom-call.13} parent=42 // pred_check_branch
          %155 = sbr.rel (0) target = $region58
        $region57: #{custom-call.13} parent=42 // pred_region
          loop: start=0, step=1, limit=1
          $region59: #{custom-call.13} parent=57 // loop_pre_header
            _
          $region60: #{custom-call.13} parent=57 // loop_header
            %s157 = sphi 0, %s161
            %p158 = scmp.ge.s32.totalorder %s157, 1
            %s162 = sphi [#allocation1], [#allocation1]
            %s163 = sphi %s1, %s1
          $region61: #{custom-call.13} parent=57 // loop_header_branch
            %160 = sbr.rel (%p158) target = $region65
          $region62: #{custom-call.13} parent=57 // loop_body
            %v164 = vld [vmem:[%s162] sm:$0xff]
            %165 = vst [vmem:[%s163] sm:$0xff] %v164
          $region63: #{custom-call.13} parent=57 // loop_footer
            %s161 = sadd.s32 1, %s157
          $region64: #{custom-call.13} parent=57 // loop_footer_branch
            %156 = sbr.rel target = $region60
          $region65: #{custom-call.13} parent=57 // loop_exit
            _
        $region58: #{custom-call.13} parent=42 // pred_fallthru
          _
        // Predicated region
        $region66: #{custom-call.13} parent=42 // pred_check
          _
        $region67: #{custom-call.13} parent=42 // pred_check_branch
          %167 = sbr.rel target = $region69
        $region68: #{custom-call.13} parent=42 // pred_region
          _
        $region69: #{custom-call.13} parent=42 // pred_fallthru
          _
      $region43: #{custom-call.13} parent=38 // pred_fallthru
        _
      // Predicated region
      $region44: #{custom-call.13} parent=38 // pred_check
        _
      $region45: #{custom-call.13} parent=38 // pred_check_branch
        %142 = sbr.rel target = $region47
      $region46: #{custom-call.13} parent=38 // pred_region
        loop: start=0, step=1, limit=1
        $region48: #{custom-call.13} parent=46 // loop_pre_header
          _
        $region49: #{custom-call.13} parent=46 // loop_header
          %s145 = sphi 0, %s149
          %p146 = scmp.ge.s32.totalorder %s145, 1
          %s150 = sphi [#allocation1], [#allocation1]
          %s151 = sphi %s1, %s1
        $region50: #{custom-call.13} parent=46 // loop_header_branch
          %148 = sbr.rel (%p146) target = $region54
        $region51: #{custom-call.13} parent=46 // loop_body
          %v152 = vld [vmem:[%s150] sm:$0xff]
          %153 = vst [vmem:[%s151] sm:$0xff] %v152
        $region52: #{custom-call.13} parent=46 // loop_footer
          %s149 = sadd.s32 1, %s145
        $region53: #{custom-call.13} parent=46 // loop_footer_branch
          %144 = sbr.rel target = $region49
        $region54: #{custom-call.13} parent=46 // loop_exit
          _
      $region47: #{custom-call.13} parent=38 // pred_fallthru
        _
    $region39: #{custom-call.13} parent=1 // pred_fallthru
      _
    %168 = vnop

// kernel: _rcgp_forward.7
$region0: #{_rcgp_forward.7}
  #allocation0 [shape = 'u32[]', space=smem, size = 0x4, offset = 0x4, fixed_abs, tag = 'smem constant byte address 0x4 - core index']
  #allocation1 [shape = 'u32[144,128]{1,0:T(1,128)}', space=vmem, size = 0x12000, scoped, tag = 'internal scratch']
  %s0 = inlined_call_operand.vmem [shape: f32[2], index: 0, kind: input, shape index: {}]
  %s1 = inlined_call_operand.vmem [shape: f32[8,2], index: 1, kind: input, shape index: {}, may-alias: {1,2}]
  %s2 = inlined_call_operand.vmem [shape: f32[8,2], index: 2, kind: input, shape index: {}, may-alias: {1,2}]
  %s3 = inlined_call_operand.vmem [shape: f32[8,8], index: 3, kind: output, shape index: {}]
  %s4 = sld [smem:[#allocation0]]
  $region26: #{_rcgp_forward.7} parent=0
    _
  %s6 = ssub.s32 1, %s4
  %s7 = scalar_select 0, %s6, %s4
  $region1: #{_rcgp_forward.7} parent=0
    #allocation2 [shape = 'u8[512]{0}', space=smem, size = 0x200, scoped, tag = 'input window, operand 0, single buffered']
    #allocation3 [shape = 's32[1]{0}', space=sflag, size = 0x4, scoped, tag = 'scoped memory for _rcgp_forward.7']
    %8 = vsyncpa [#allocation3], 0
    // Predicated region
    $region2: #{_rcgp_forward.7} parent=1 // pred_check
      _
    $region3: #{_rcgp_forward.7} parent=1 // pred_check_branch
      %10 = sbr.rel (0) target = $region5
    $region4: #{_rcgp_forward.7} parent=1 // pred_region
      %s12 = ssub.s32 16, 16
      %13 = vsyncadd [#allocation3], %s12
      %s15 = sshll.u32 %s0, 4
      %s16 = int_to_ptr.vmem [resolvable:$true] %s15
      %18 = dma.vmem_to_smem %s16, 16, [#allocation2], [#allocation3]
    $region5: #{_rcgp_forward.7} parent=1 // pred_fallthru
      _
    // Predicated region
    $region6: #{_rcgp_forward.7} parent=1 // pred_check
      _
    $region7: #{_rcgp_forward.7} parent=1 // pred_check_branch
      %20 = sbr.rel (0) target = $region9
    $region8: #{_rcgp_forward.7} parent=1 // pred_region
      _
    $region9: #{_rcgp_forward.7} parent=1 // pred_fallthru
      _
    // Predicated region
    $region10: #{_rcgp_forward.7} parent=1 // pred_check
      _
    $region11: #{_rcgp_forward.7} parent=1 // pred_check_branch
      %22 = sbr.rel (0) target = $region13
    $region12: #{_rcgp_forward.7} parent=1 // pred_region
      _
    $region13: #{_rcgp_forward.7} parent=1 // pred_fallthru
      _
    // Predicated region
    $region14: #{_rcgp_forward.7} parent=1 // pred_check
      _
    $region15: #{_rcgp_forward.7} parent=1 // pred_check_branch
      %24 = sbr.rel (0) target = $region17
    $region16: #{_rcgp_forward.7} parent=1 // pred_region
      %25 = dma.done [#allocation3], 16
    $region17: #{_rcgp_forward.7} parent=1 // pred_fallthru
      _
    %26 = sfence
    %s27 = sld [smem:[#allocation2]]
    %s28 = sld [smem:[#allocation2 + $0x1]]
    %v29 = vld [vmem:[%s1] sm:$0xff]
    %v30 = vld [vmem:[%s2] sm:$0xff]
    %v31 = vmul.f32 %v29, %v29
    %vm32 = vcmask 15360
    %v33 = vsel %vm32, %v31, 0.0
    %34 = vadd.xlane.f32.xlu0 %v33
    %v35 = vpop.xlane.xlu0 %34
    %v36 = vmul.f32 %v30, %v30
    %v38 = vsel %vm32, 1.0, 0
    %v41 = vsel %vm32, %v36, 0
    %43 = vmatprep.subr.mxu0 0.0
    %44 = vmatpush1.xpose.msra.mxu0 %v41
    %45 = vmatprep.subr.mxu0 0.0
    %46 = vmatpush1.xpose.msra.mxu0 0.0
    %47 = vmatprep.subr.mxu0 0.0
    %48 = vmatpush1.xpose.msra.mxu0 0.0
    %49 = vmatprep.subr.mxu0 0.0
    %50 = vmatpush1.xpose.msra.mxu0 0.0
    %51 = vmatprep.subr.mxu0 0.0
    %52 = vmatpush1.xpose.msra.mxu0 0.0
    %53 = vmatprep.subr.mxu0 0.0
    %54 = vmatpush1.xpose.msra.mxu0 0.0
    %55 = vmatprep.subr.mxu0 0.0
    %56 = vmatpush1.xpose.msra.mxu0 0.0
    %57 = vmatprep.subr.mxu0 0.0
    %58 = vmatpush1.xpose.msra.mxu0 0.0
    %59 = vmatprep.subr.mxu0 0.0
    %60 = vmatpush1.xpose.msra.mxu0 0.0
    %61 = vmatprep.subr.mxu0 0.0
    %62 = vmatpush1.xpose.msra.mxu0 0.0
    %63 = vmatprep.subr.mxu0 0.0
    %64 = vmatpush1.xpose.msra.mxu0 0.0
    %65 = vmatprep.subr.mxu0 0.0
    %66 = vmatpush1.xpose.msra.mxu0 0.0
    %67 = vmatprep.subr.mxu0 0.0
    %68 = vmatpush1.xpose.msra.mxu0 0.0
    %69 = vmatprep.subr.mxu0 0.0
    %70 = vmatpush1.xpose.msra.mxu0 0.0
    %71 = vmatprep.subr.mxu0 0.0
    %72 = vmatpush1.xpose.msra.mxu0 0.0
    %73 = vmatprep.subr.mxu0 0.0
    %74 = vmatpush1.xpose.msra.mxu0 0.0
    %75 = vmatprep.subr.mxu0 0.0
    %76 = vmatpush1.xpose.msra.mxu0 0.0
    %77 = vmatprep.subr.mxu0 0.0
    %78 = vmatpush1.xpose.msra.mxu0 0.0
    %79 = vmatprep.subr.mxu0 0.0
    %80 = vmatpush1.xpose.msra.mxu0 0.0
    %81 = vmatprep.subr.mxu0 0.0
    %82 = vmatpush1.xpose.msra.mxu0 0.0
    %83 = vmatprep.subr.mxu0 0.0
    %84 = vmatpush1.xpose.msra.mxu0 0.0
    %85 = vmatprep.subr.mxu0 0.0
    %86 = vmatpush1.xpose.msra.mxu0 0.0
    %87 = vmatprep.subr.mxu0 0.0
    %88 = vmatpush1.xpose.msra.mxu0 0.0
    %89 = vmatprep.subr.mxu0 0.0
    %90 = vmatpush1.xpose.msra.mxu0 0.0
    %91 = vmatprep.subr.mxu0 0.0
    %92 = vmatpush1.xpose.msra.mxu0 0.0
    %93 = vmatprep.subr.mxu0 0.0
    %94 = vmatpush1.xpose.msra.mxu0 0.0
    %95 = vmatprep.subr.mxu0 0.0
    %96 = vmatpush1.xpose.msra.mxu0 0.0
    %97 = vmatprep.subr.mxu0 0.0
    %98 = vmatpush1.xpose.msra.mxu0 0.0
    %99 = vmatprep.subr.mxu0 0.0
    %100 = vmatpush1.xpose.msra.mxu0 0.0
    %101 = vmatprep.subr.mxu0 0.0
    %102 = vmatpush1.xpose.msra.mxu0 0.0
    %103 = vmatprep.subr.mxu0 0.0
    %104 = vmatpush1.xpose.msra.mxu0 0.0
    %105 = vmatprep.subr.mxu0 0.0
    %106 = vmatpush1.xpose.msra.mxu0 0.0
    %107 = vmatprep.mubr.f32.mxu0 0.0
    %108 = vmatmul.mubr.f32.gmra.mrb[0].mxu0 %v38
    %v109 = vpop.f32.mrb[0].mxu0
    %v110 = vadd.f32 0.0, %v109
    %v111 = vpop.f32.mrb[0].mxu0
    %112 = vdwg.mxu0
    %v114 = vsel %vm32, %v29, 0
    %v117 = vsel %vm32, %v30, 0
    %119 = vmatprep.subr.mxu0 0.0
    %120 = vmatpush1.xpose.msra.mxu0 %v117
    %121 = vmatprep.subr.mxu0 0.0
    %122 = vmatpush1.xpose.msra.mxu0 0.0
    %123 = vmatprep.subr.mxu0 0.0
    %124 = vmatpush1.xpose.msra.mxu0 0.0
    %125 = vmatprep.subr.mxu0 0.0
    %126 = vmatpush1.xpose.msra.mxu0 0.0
    %127 = vmatprep.subr.mxu0 0.0
    %128 = vmatpush1.xpose.msra.mxu0 0.0
    %129 = vmatprep.subr.mxu0 0.0
    %130 = vmatpush1.xpose.msra.mxu0 0.0
    %131 = vmatprep.subr.mxu0 0.0
    %132 = vmatpush1.xpose.msra.mxu0 0.0
    %133 = vmatprep.subr.mxu0 0.0
    %134 = vmatpush1.xpose.msra.mxu0 0.0
    %135 = vmatprep.subr.mxu0 0.0
    %136 = vmatpush1.xpose.msra.mxu0 0.0
    %137 = vmatprep.subr.mxu0 0.0
    %138 = vmatpush1.xpose.msra.mxu0 0.0
    %139 = vmatprep.subr.mxu0 0.0
    %140 = vmatpush1.xpose.msra.mxu0 0.0
    %141 = vmatprep.subr.mxu0 0.0
    %142 = vmatpush1.xpose.msra.mxu0 0.0
    %143 = vmatprep.subr.mxu0 0.0
    %144 = vmatpush1.xpose.msra.mxu0 0.0
    %145 = vmatprep.subr.mxu0 0.0
    %146 = vmatpush1.xpose.msra.mxu0 0.0
    %147 = vmatprep.subr.mxu0 0.0
    %148 = vmatpush1.xpose.msra.mxu0 0.0
    %149 = vmatprep.subr.mxu0 0.0
    %150 = vmatpush1.xpose.msra.mxu0 0.0
    %151 = vmatprep.subr.mxu0 0.0
    %152 = vmatpush1.xpose.msra.mxu0 0.0
    %153 = vmatprep.subr.mxu0 0.0
    %154 = vmatpush1.xpose.msra.mxu0 0.0
    %155 = vmatprep.subr.mxu0 0.0
    %156 = vmatpush1.xpose.msra.mxu0 0.0
    %157 = vmatprep.subr.mxu0 0.0
    %158 = vmatpush1.xpose.msra.mxu0 0.0
    %159 = vmatprep.subr.mxu0 0.0
    %160 = vmatpush1.xpose.msra.mxu0 0.0
    %161 = vmatprep.subr.mxu0 0.0
    %162 = vmatpush1.xpose.msra.mxu0 0.0
    %163 = vmatprep.subr.mxu0 0.0
    %164 = vmatpush1.xpose.msra.mxu0 0.0
    %165 = vmatprep.subr.mxu0 0.0
    %166 = vmatpush1.xpose.msra.mxu0 0.0
    %167 = vmatprep.subr.mxu0 0.0
    %168 = vmatpush1.xpose.msra.mxu0 0.0
    %169 = vmatprep.subr.mxu0 0.0
    %170 = vmatpush1.xpose.msra.mxu0 0.0
    %171 = vmatprep.subr.mxu0 0.0
    %172 = vmatpush1.xpose.msra.mxu0 0.0
    %173 = vmatprep.subr.mxu0 0.0
    %174 = vmatpush1.xpose.msra.mxu0 0.0
    %175 = vmatprep.subr.mxu0 0.0
    %176 = vmatpush1.xpose.msra.mxu0 0.0
    %177 = vmatprep.subr.mxu0 0.0
    %178 = vmatpush1.xpose.msra.mxu0 0.0
    %179 = vmatprep.subr.mxu0 0.0
    %180 = vmatpush1.xpose.msra.mxu0 0.0
    %181 = vmatprep.subr.mxu0 0.0
    %182 = vmatpush1.xpose.msra.mxu0 0.0
    %183 = vmatprep.mubr.f32.mxu0 0.0
    %184 = vmatmul.mubr.f32.gmra.mrb[0].mxu0 %v114
    %v185 = vpop.f32.mrb[0].mxu0
    %v186 = vadd.f32 0.0, %v185
    %v187 = vpop.f32.mrb[0].mxu0
    %188 = vdwg.mxu0
    %v189 = vlaneseq
    %v190 = vshrl.u32 %v189, 7
    %v191 = vsub.s32 0, %v190
    %v192 = vrot.slane %v110, %v191
    %v193 = vadd.f32 %v35, %v192
    %v194 = vmul.f32 %v186, 2.0
    %v195 = vsub.f32 %v193, %v194
    %v196 = vmax.f32 %v195, 0.0
    %v197 = vrsqrt.pop %v196
    %v198 = vmul.f32 %v196, %v197
    %vm199 = vcmp.eq.f32.partialorder %v196, inf
    %v200 = vsel %vm199, %v196, %v198
    %vm201 = vcmp.eq.f32.partialorder %v196, 0.0
    %v202 = vand.u32 %v196, 2147483648
    %v203 = vsel %vm201, %v202, %v200
    %v204 = vmul.f32 %v203, 1.7320508
    %v205 = vstv %s27
    %v206 = vrcp.pop %v205
    %v207 = vmul.f32 %v204, %v206
    %v208 = vadd.f32 %v207, 1.0
    %v209 = vstv %s28
    %v210 = vmul.f32 %v209, %v208
    %v211 = vsub.f32 0.0, %v207
    %v212 = vmul.f32 %v211, 1.442695
    %v213 = vpow.pop %v212
    %v214 = vmul.f32 %v210, %v213
    %vm215 = vcmask 64512
    %216 = vst.msk [vmem:[%s3] sm:$0xff] %vm215, %v214
    // Predicated region
    $region18: #{_rcgp_forward.7} parent=1 // pred_check
      _
    $region19: #{_rcgp_forward.7} parent=1 // pred_check_branch
      %218 = sbr.rel (0) target = $region21
    $region20: #{_rcgp_forward.7} parent=1 // pred_region
      _
    $region21: #{_rcgp_forward.7} parent=1 // pred_fallthru
      _
    // Predicated region
    $region22: #{_rcgp_forward.7} parent=1 // pred_check
      _
    $region23: #{_rcgp_forward.7} parent=1 // pred_check_branch
      %220 = sbr.rel (0) target = $region25
    $region24: #{_rcgp_forward.7} parent=1 // pred_region
      _
    $region25: #{_rcgp_forward.7} parent=1 // pred_fallthru
      _
    %221 = vsyncpa [#allocation3], 1

// kernel: _rcgp_forward.9
$region0: #{_rcgp_forward.9}
  #allocation0 [shape = 'u32[]', space=smem, size = 0x4, offset = 0x4, fixed_abs, tag = 'smem constant byte address 0x4 - core index']
  #allocation1 [shape = 'u32[144,128]{1,0:T(1,128)}', space=vmem, size = 0x12000, scoped, tag = 'internal scratch']
  %s0 = inlined_call_operand.vmem [shape: f32[2], index: 0, kind: input, shape index: {}]
  %s1 = inlined_call_operand.vmem [shape: f32[16,2], index: 1, kind: input, shape index: {}, may-alias: {1,2}]
  %s2 = inlined_call_operand.vmem [shape: f32[16,2], index: 2, kind: input, shape index: {}, may-alias: {1,2}]
  %s3 = inlined_call_operand.vmem [shape: f32[16,16], index: 3, kind: output, shape index: {}]
  %s4 = sld [smem:[#allocation0]]
  $region26: #{_rcgp_forward.9} parent=0
    _
  %s6 = ssub.s32 1, %s4
  %s7 = scalar_select 0, %s6, %s4
  $region1: #{_rcgp_forward.9} parent=0
    #allocation2 [shape = 'u8[512]{0}', space=smem, size = 0x200, scoped, tag = 'input window, operand 0, single buffered']
    #allocation3 [shape = 's32[1]{0}', space=sflag, size = 0x4, scoped, tag = 'scoped memory for _rcgp_forward.9']
    %8 = vsyncpa [#allocation3], 0
    // Predicated region
    $region2: #{_rcgp_forward.9} parent=1 // pred_check
      _
    $region3: #{_rcgp_forward.9} parent=1 // pred_check_branch
      %10 = sbr.rel (0) target = $region5
    $region4: #{_rcgp_forward.9} parent=1 // pred_region
      %s12 = ssub.s32 16, 16
      %13 = vsyncadd [#allocation3], %s12
      %s15 = sshll.u32 %s0, 4
      %s16 = int_to_ptr.vmem [resolvable:$true] %s15
      %18 = dma.vmem_to_smem %s16, 16, [#allocation2], [#allocation3]
    $region5: #{_rcgp_forward.9} parent=1 // pred_fallthru
      _
    // Predicated region
    $region6: #{_rcgp_forward.9} parent=1 // pred_check
      _
    $region7: #{_rcgp_forward.9} parent=1 // pred_check_branch
      %20 = sbr.rel (0) target = $region9
    $region8: #{_rcgp_forward.9} parent=1 // pred_region
      _
    $region9: #{_rcgp_forward.9} parent=1 // pred_fallthru
      _
    // Predicated region
    $region10: #{_rcgp_forward.9} parent=1 // pred_check
      _
    $region11: #{_rcgp_forward.9} parent=1 // pred_check_branch
      %22 = sbr.rel (0) target = $region13
    $region12: #{_rcgp_forward.9} parent=1 // pred_region
      _
    $region13: #{_rcgp_forward.9} parent=1 // pred_fallthru
      _
    // Predicated region
    $region14: #{_rcgp_forward.9} parent=1 // pred_check
      _
    $region15: #{_rcgp_forward.9} parent=1 // pred_check_branch
      %24 = sbr.rel (0) target = $region17
    $region16: #{_rcgp_forward.9} parent=1 // pred_region
      %25 = dma.done [#allocation3], 16
    $region17: #{_rcgp_forward.9} parent=1 // pred_fallthru
      _
    %26 = sfence
    %s27 = sld [smem:[#allocation2]]
    %s28 = sld [smem:[#allocation2 + $0x1]]
    %v29 = vld [vmem:[%s1] sm:$0xff]
    %v30 = vld [vmem:[%s1 + $0x8] sm:$0xff]
    %v31 = vld [vmem:[%s2] sm:$0xff]
    %v32 = vld [vmem:[%s2 + $0x8] sm:$0xff]
    %v33 = vmul.f32 %v29, %v29
    %v34 = vmul.f32 %v30, %v30
    %vm35 = vcmask 15360
    %v36 = vsel %vm35, %v33, 0.0
    %37 = vadd.xlane.f32.xlu0 %v36
    %v38 = vpop.xlane.xlu0 %37
    %v39 = vsel %vm35, %v34, 0.0
    %40 = vadd.xlane.f32.xlu0 %v39
    %v41 = vpop.xlane.xlu0 %40
    %v42 = vmul.f32 %v31, %v31
    %v43 = vmul.f32 %v32, %v32
    %v45 = vsel %vm35, 1.0, 0
    %v48 = vsel %vm35, %v42, 0
    %v51 = vsel %vm35, %v43, 0
    %53 = vmatprep.subr.mxu0 0.0
    %54 = vmatpush1.xpose.msra.mxu0 %v48
    %55 = vmatprep.subr.mxu0 0.0
    %56 = vmatpush1.xpose.msra.mxu0 %v51
    %57 = vmatprep.subr.mxu0 0.0
    %58 = vmatpush1.xpose.msra.mxu0 0.0
    %59 = vmatprep.subr.mxu0 0.0
    %60 = vmatpush1.xpose.msra.mxu0 0.0
    %61 = vmatprep.subr.mxu0 0.0
    %62 = vmatpush1.xpose.msra.mxu0 0.0
    %63 = vmatprep.subr.mxu0 0.0
    %64 = vmatpush1.xpose.msra.mxu0 0.0
    %65 = vmatprep.subr.mxu0 0.0
    %66 = vmatpush1.xpose.msra.mxu0 0.0
    %67 = vmatprep.subr.mxu0 0.0
    %68 = vmatpush1.xpose.msra.mxu0 0.0
    %69 = vmatprep.subr.mxu0 0.0
    %70 = vmatpush1.xpose.msra.mxu0 0.0
    %71 = vmatprep.subr.mxu0 0.0
    %72 = vmatpush1.xpose.msra.mxu0 0.0
    %73 = vmatprep.subr.mxu0 0.0
    %74 = vmatpush1.xpose.msra.mxu0 0.0
    %75 = vmatprep.subr.mxu0 0.0
    %76 = vmatpush1.xpose.msra.mxu0 0.0
    %77 = vmatprep.subr.mxu0 0.0
    %78 = vmatpush1.xpose.msra.mxu0 0.0
    %79 = vmatprep.subr.mxu0 0.0
    %80 = vmatpush1.xpose.msra.mxu0 0.0
    %81 = vmatprep.subr.mxu0 0.0
    %82 = vmatpush1.xpose.msra.mxu0 0.0
    %83 = vmatprep.subr.mxu0 0.0
    %84 = vmatpush1.xpose.msra.mxu0 0.0
    %85 = vmatprep.subr.mxu0 0.0
    %86 = vmatpush1.xpose.msra.mxu0 0.0
    %87 = vmatprep.subr.mxu0 0.0
    %88 = vmatpush1.xpose.msra.mxu0 0.0
    %89 = vmatprep.subr.mxu0 0.0
    %90 = vmatpush1.xpose.msra.mxu0 0.0
    %91 = vmatprep.subr.mxu0 0.0
    %92 = vmatpush1.xpose.msra.mxu0 0.0
    %93 = vmatprep.subr.mxu0 0.0
    %94 = vmatpush1.xpose.msra.mxu0 0.0
    %95 = vmatprep.subr.mxu0 0.0
    %96 = vmatpush1.xpose.msra.mxu0 0.0
    %97 = vmatprep.subr.mxu0 0.0
    %98 = vmatpush1.xpose.msra.mxu0 0.0
    %99 = vmatprep.subr.mxu0 0.0
    %100 = vmatpush1.xpose.msra.mxu0 0.0
    %101 = vmatprep.subr.mxu0 0.0
    %102 = vmatpush1.xpose.msra.mxu0 0.0
    %103 = vmatprep.subr.mxu0 0.0
    %104 = vmatpush1.xpose.msra.mxu0 0.0
    %105 = vmatprep.subr.mxu0 0.0
    %106 = vmatpush1.xpose.msra.mxu0 0.0
    %107 = vmatprep.subr.mxu0 0.0
    %108 = vmatpush1.xpose.msra.mxu0 0.0
    %109 = vmatprep.subr.mxu0 0.0
    %110 = vmatpush1.xpose.msra.mxu0 0.0
    %111 = vmatprep.subr.mxu0 0.0
    %112 = vmatpush1.xpose.msra.mxu0 0.0
    %113 = vmatprep.subr.mxu0 0.0
    %114 = vmatpush1.xpose.msra.mxu0 0.0
    %115 = vmatprep.subr.mxu0 0.0
    %116 = vmatpush1.xpose.msra.mxu0 0.0
    %117 = vmatprep.mubr.f32.mxu0 0.0
    %118 = vmatmul.mubr.f32.gmra.mrb[0].mxu0 %v45
    %v119 = vpop.f32.mrb[0].mxu0
    %v120 = vadd.f32 0.0, %v119
    %v121 = vpop.f32.mrb[0].mxu0
    %122 = vdwg.mxu0
    %v124 = vsel %vm35, %v29, 0
    %v127 = vsel %vm35, %v30, 0
    %v130 = vsel %vm35, %v31, 0
    %v133 = vsel %vm35, %v32, 0
    %135 = vmatprep.subr.mxu0 0.0
    %136 = vmatpush1.xpose.msra.mxu0 %v130
    %137 = vmatprep.subr.mxu0 0.0
    %138 = vmatpush1.xpose.msra.mxu0 %v133
    %139 = vmatprep.subr.mxu0 0.0
    %140 = vmatpush1.xpose.msra.mxu0 0.0
    %141 = vmatprep.subr.mxu0 0.0
    %142 = vmatpush1.xpose.msra.mxu0 0.0
    %143 = vmatprep.subr.mxu0 0.0
    %144 = vmatpush1.xpose.msra.mxu0 0.0
    %145 = vmatprep.subr.mxu0 0.0
    %146 = vmatpush1.xpose.msra.mxu0 0.0
    %147 = vmatprep.subr.mxu0 0.0
    %148 = vmatpush1.xpose.msra.mxu0 0.0
    %149 = vmatprep.subr.mxu0 0.0
    %150 = vmatpush1.xpose.msra.mxu0 0.0
    %151 = vmatprep.subr.mxu0 0.0
    %152 = vmatpush1.xpose.msra.mxu0 0.0
    %153 = vmatprep.subr.mxu0 0.0
    %154 = vmatpush1.xpose.msra.mxu0 0.0
    %155 = vmatprep.subr.mxu0 0.0
    %156 = vmatpush1.xpose.msra.mxu0 0.0
    %157 = vmatprep.subr.mxu0 0.0
    %158 = vmatpush1.xpose.msra.mxu0 0.0
    %159 = vmatprep.subr.mxu0 0.0
    %160 = vmatpush1.xpose.msra.mxu0 0.0
    %161 = vmatprep.subr.mxu0 0.0
    %162 = vmatpush1.xpose.msra.mxu0 0.0
    %163 = vmatprep.subr.mxu0 0.0
    %164 = vmatpush1.xpose.msra.mxu0 0.0
    %165 = vmatprep.subr.mxu0 0.0
    %166 = vmatpush1.xpose.msra.mxu0 0.0
    %167 = vmatprep.subr.mxu0 0.0
    %168 = vmatpush1.xpose.msra.mxu0 0.0
    %169 = vmatprep.subr.mxu0 0.0
    %170 = vmatpush1.xpose.msra.mxu0 0.0
    %171 = vmatprep.subr.mxu0 0.0
    %172 = vmatpush1.xpose.msra.mxu0 0.0
    %173 = vmatprep.subr.mxu0 0.0
    %174 = vmatpush1.xpose.msra.mxu0 0.0
    %175 = vmatprep.subr.mxu0 0.0
    %176 = vmatpush1.xpose.msra.mxu0 0.0
    %177 = vmatprep.subr.mxu0 0.0
    %178 = vmatpush1.xpose.msra.mxu0 0.0
    %179 = vmatprep.subr.mxu0 0.0
    %180 = vmatpush1.xpose.msra.mxu0 0.0
    %181 = vmatprep.subr.mxu0 0.0
    %182 = vmatpush1.xpose.msra.mxu0 0.0
    %183 = vmatprep.subr.mxu0 0.0
    %184 = vmatpush1.xpose.msra.mxu0 0.0
    %185 = vmatprep.subr.mxu0 0.0
    %186 = vmatpush1.xpose.msra.mxu0 0.0
    %187 = vmatprep.subr.mxu0 0.0
    %188 = vmatpush1.xpose.msra.mxu0 0.0
    %189 = vmatprep.subr.mxu0 0.0
    %190 = vmatpush1.xpose.msra.mxu0 0.0
    %191 = vmatprep.subr.mxu0 0.0
    %192 = vmatpush1.xpose.msra.mxu0 0.0
    %193 = vmatprep.subr.mxu0 0.0
    %194 = vmatpush1.xpose.msra.mxu0 0.0
    %195 = vmatprep.subr.mxu0 0.0
    %196 = vmatpush1.xpose.msra.mxu0 0.0
    %197 = vmatprep.subr.mxu0 0.0
    %198 = vmatpush1.xpose.msra.mxu0 0.0
    %199 = vmatprep.mubr.f32.mxu0 0.0
    %200 = vmatmul.mubr.f32.gmra.mrb[0].mxu0 %v124
    %v201 = vpop.f32.mrb[0].mxu0
    %v202 = vadd.f32 0.0, %v201
    %v203 = vpop.f32.mrb[0].mxu0
    %204 = vmatprep.mubr.f32.mxu0 0.0
    %205 = vmatmul.mubr.f32.gmra.mrb[0].mxu0 %v127
    %v206 = vpop.f32.mrb[0].mxu0
    %v207 = vadd.f32 0.0, %v206
    %v208 = vpop.f32.mrb[0].mxu0
    %209 = vdwg.mxu0
    %v210 = vlaneseq
    %v211 = vshrl.u32 %v210, 7
    %v212 = vsub.s32 0, %v211
    %v213 = vrot.slane %v120, %v212
    %v214 = vadd.f32 %v38, %v213
    %v215 = vadd.f32 %v41, %v213
    %v216 = vmul.f32 %v202, 2.0
    %v217 = vmul.f32 %v207, 2.0
    %v218 = vsub.f32 %v214, %v216
    %v219 = vsub.f32 %v215, %v217
    %v220 = vmax.f32 %v218, 0.0
    %v221 = vmax.f32 %v219, 0.0
    %v222 = vrsqrt.pop %v220
    %v223 = vmul.f32 %v220, %v222
    %vm224 = vcmp.eq.f32.partialorder %v220, inf
    %v225 = vsel %vm224, %v220, %v223
    %vm226 = vcmp.eq.f32.partialorder %v220, 0.0
    %v227 = vand.u32 %v220, 2147483648
    %v228 = vsel %vm226, %v227, %v225
    %v229 = vrsqrt.pop %v221
    %v230 = vmul.f32 %v221, %v229
    %vm231 = vcmp.eq.f32.partialorder %v221, inf
    %v232 = vsel %vm231, %v221, %v230
    %vm233 = vcmp.eq.f32.partialorder %v221, 0.0
    %v234 = vand.u32 %v221, 2147483648
    %v235 = vsel %vm233, %v234, %v232
    %v236 = vmul.f32 %v228, 1.7320508
    %v237 = vmul.f32 %v235, 1.7320508
    %v238 = vstv %s27
    %v239 = vrcp.pop %v238
    %v240 = vmul.f32 %v236, %v239
    %v241 = vmul.f32 %v237, %v239
    %v242 = vadd.f32 %v240, 1.0
    %v243 = vadd.f32 %v241, 1.0
    %v244 = vstv %s28
    %v245 = vmul.f32 %v244, %v242
    %v246 = vmul.f32 %v244, %v243
    %v247 = vsub.f32 0.0, %v240
    %v248 = vsub.f32 0.0, %v241
    %v249 = vmul.f32 %v247, 1.442695
    %v250 = vpow.pop %v249
    %v251 = vmul.f32 %v248, 1.442695
    %v252 = vpow.pop %v251
    %v253 = vmul.f32 %v245, %v250
    %v254 = vmul.f32 %v246, %v252
    %vm255 = vcmask 130048
    %256 = vst.msk [vmem:[%s3] sm:$0xff] %vm255, %v253
    %257 = vst.msk [vmem:[%s3 + $0x8] sm:$0xff] %vm255, %v254
    // Predicated region
    $region18: #{_rcgp_forward.9} parent=1 // pred_check
      _
    $region19: #{_rcgp_forward.9} parent=1 // pred_check_branch
      %259 = sbr.rel (0) target = $region21
    $region20: #{_rcgp_forward.9} parent=1 // pred_region
      _
    $region21: #{_rcgp_forward.9} parent=1 // pred_fallthru
      _
    // Predicated region
    $region22: #{_rcgp_forward.9} parent=1 // pred_check
      _
    $region23: #{_rcgp_forward.9} parent=1 // pred_check_branch
      %261 = sbr.rel (0) target = $region25
    $region24: #{_rcgp_forward.9} parent=1 // pred_region
      _
    $region25: #{_rcgp_forward.9} parent=1 // pred_fallthru
      _
    %262 = vsyncpa [#allocation3], 1

// kernel: _rcgp_forward.8
$region0: #{_rcgp_forward.8}
  #allocation0 [shape = 'u32[]', space=smem, size = 0x4, offset = 0x4, fixed_abs, tag = 'smem constant byte address 0x4 - core index']
  #allocation1 [shape = 'u32[144,128]{1,0:T(1,128)}', space=vmem, size = 0x12000, scoped, tag = 'internal scratch']
  %s0 = inlined_call_operand.vmem [shape: f32[2], index: 0, kind: input, shape index: {}]
  %s1 = inlined_call_operand.vmem [shape: f32[16,2], index: 1, kind: input, shape index: {}]
  %s2 = inlined_call_operand.vmem [shape: f32[8,2], index: 2, kind: input, shape index: {}]
  %s3 = inlined_call_operand.vmem [shape: f32[16,8], index: 3, kind: output, shape index: {}]
  %s4 = sld [smem:[#allocation0]]
  $region26: #{_rcgp_forward.8} parent=0
    _
  %s6 = ssub.s32 1, %s4
  %s7 = scalar_select 0, %s6, %s4
  $region1: #{_rcgp_forward.8} parent=0
    #allocation2 [shape = 'u8[512]{0}', space=smem, size = 0x200, scoped, tag = 'input window, operand 0, single buffered']
    #allocation3 [shape = 's32[1]{0}', space=sflag, size = 0x4, scoped, tag = 'scoped memory for _rcgp_forward.8']
    %8 = vsyncpa [#allocation3], 0
    // Predicated region
    $region2: #{_rcgp_forward.8} parent=1 // pred_check
      _
    $region3: #{_rcgp_forward.8} parent=1 // pred_check_branch
      %10 = sbr.rel (0) target = $region5
    $region4: #{_rcgp_forward.8} parent=1 // pred_region
      %s12 = ssub.s32 16, 16
      %13 = vsyncadd [#allocation3], %s12
      %s15 = sshll.u32 %s0, 4
      %s16 = int_to_ptr.vmem [resolvable:$true] %s15
      %18 = dma.vmem_to_smem %s16, 16, [#allocation2], [#allocation3]
    $region5: #{_rcgp_forward.8} parent=1 // pred_fallthru
      _
    // Predicated region
    $region6: #{_rcgp_forward.8} parent=1 // pred_check
      _
    $region7: #{_rcgp_forward.8} parent=1 // pred_check_branch
      %20 = sbr.rel (0) target = $region9
    $region8: #{_rcgp_forward.8} parent=1 // pred_region
      _
    $region9: #{_rcgp_forward.8} parent=1 // pred_fallthru
      _
    // Predicated region
    $region10: #{_rcgp_forward.8} parent=1 // pred_check
      _
    $region11: #{_rcgp_forward.8} parent=1 // pred_check_branch
      %22 = sbr.rel (0) target = $region13
    $region12: #{_rcgp_forward.8} parent=1 // pred_region
      _
    $region13: #{_rcgp_forward.8} parent=1 // pred_fallthru
      _
    // Predicated region
    $region14: #{_rcgp_forward.8} parent=1 // pred_check
      _
    $region15: #{_rcgp_forward.8} parent=1 // pred_check_branch
      %24 = sbr.rel (0) target = $region17
    $region16: #{_rcgp_forward.8} parent=1 // pred_region
      %25 = dma.done [#allocation3], 16
    $region17: #{_rcgp_forward.8} parent=1 // pred_fallthru
      _
    %26 = sfence
    %s27 = sld [smem:[#allocation2]]
    %s28 = sld [smem:[#allocation2 + $0x1]]
    %v29 = vld [vmem:[%s1] sm:$0xff]
    %v30 = vld [vmem:[%s1 + $0x8] sm:$0xff]
    %v31 = vld [vmem:[%s2] sm:$0xff]
    %v32 = vmul.f32 %v29, %v29
    %v33 = vmul.f32 %v30, %v30
    %vm34 = vcmask 15360
    %v35 = vsel %vm34, %v32, 0.0
    %36 = vadd.xlane.f32.xlu0 %v35
    %v37 = vpop.xlane.xlu0 %36
    %v38 = vsel %vm34, %v33, 0.0
    %39 = vadd.xlane.f32.xlu0 %v38
    %v40 = vpop.xlane.xlu0 %39
    %v41 = vmul.f32 %v31, %v31
    %v43 = vsel %vm34, 1.0, 0
    %v46 = vsel %vm34, %v41, 0
    %48 = vmatprep.subr.mxu0 0.0
    %49 = vmatpush1.xpose.msra.mxu0 %v46
    %50 = vmatprep.subr.mxu0 0.0
    %51 = vmatpush1.xpose.msra.mxu0 0.0
    %52 = vmatprep.subr.mxu0 0.0
    %53 = vmatpush1.xpose.msra.mxu0 0.0
    %54 = vmatprep.subr.mxu0 0.0
    %55 = vmatpush1.xpose.msra.mxu0 0.0
    %56 = vmatprep.subr.mxu0 0.0
    %57 = vmatpush1.xpose.msra.mxu0 0.0
    %58 = vmatprep.subr.mxu0 0.0
    %59 = vmatpush1.xpose.msra.mxu0 0.0
    %60 = vmatprep.subr.mxu0 0.0
    %61 = vmatpush1.xpose.msra.mxu0 0.0
    %62 = vmatprep.subr.mxu0 0.0
    %63 = vmatpush1.xpose.msra.mxu0 0.0
    %64 = vmatprep.subr.mxu0 0.0
    %65 = vmatpush1.xpose.msra.mxu0 0.0
    %66 = vmatprep.subr.mxu0 0.0
    %67 = vmatpush1.xpose.msra.mxu0 0.0
    %68 = vmatprep.subr.mxu0 0.0
    %69 = vmatpush1.xpose.msra.mxu0 0.0
    %70 = vmatprep.subr.mxu0 0.0
    %71 = vmatpush1.xpose.msra.mxu0 0.0
    %72 = vmatprep.subr.mxu0 0.0
    %73 = vmatpush1.xpose.msra.mxu0 0.0
    %74 = vmatprep.subr.mxu0 0.0
    %75 = vmatpush1.xpose.msra.mxu0 0.0
    %76 = vmatprep.subr.mxu0 0.0
    %77 = vmatpush1.xpose.msra.mxu0 0.0
    %78 = vmatprep.subr.mxu0 0.0
    %79 = vmatpush1.xpose.msra.mxu0 0.0
    %80 = vmatprep.subr.mxu0 0.0
    %81 = vmatpush1.xpose.msra.mxu0 0.0
    %82 = vmatprep.subr.mxu0 0.0
    %83 = vmatpush1.xpose.msra.mxu0 0.0
    %84 = vmatprep.subr.mxu0 0.0
    %85 = vmatpush1.xpose.msra.mxu0 0.0
    %86 = vmatprep.subr.mxu0 0.0
    %87 = vmatpush1.xpose.msra.mxu0 0.0
    %88 = vmatprep.subr.mxu0 0.0
    %89 = vmatpush1.xpose.msra.mxu0 0.0
    %90 = vmatprep.subr.mxu0 0.0
    %91 = vmatpush1.xpose.msra.mxu0 0.0
    %92 = vmatprep.subr.mxu0 0.0
    %93 = vmatpush1.xpose.msra.mxu0 0.0
    %94 = vmatprep.subr.mxu0 0.0
    %95 = vmatpush1.xpose.msra.mxu0 0.0
    %96 = vmatprep.subr.mxu0 0.0
    %97 = vmatpush1.xpose.msra.mxu0 0.0
    %98 = vmatprep.subr.mxu0 0.0
    %99 = vmatpush1.xpose.msra.mxu0 0.0
    %100 = vmatprep.subr.mxu0 0.0
    %101 = vmatpush1.xpose.msra.mxu0 0.0
    %102 = vmatprep.subr.mxu0 0.0
    %103 = vmatpush1.xpose.msra.mxu0 0.0
    %104 = vmatprep.subr.mxu0 0.0
    %105 = vmatpush1.xpose.msra.mxu0 0.0
    %106 = vmatprep.subr.mxu0 0.0
    %107 = vmatpush1.xpose.msra.mxu0 0.0
    %108 = vmatprep.subr.mxu0 0.0
    %109 = vmatpush1.xpose.msra.mxu0 0.0
    %110 = vmatprep.subr.mxu0 0.0
    %111 = vmatpush1.xpose.msra.mxu0 0.0
    %112 = vmatprep.mubr.f32.mxu0 0.0
    %113 = vmatmul.mubr.f32.gmra.mrb[0].mxu0 %v43
    %v114 = vpop.f32.mrb[0].mxu0
    %v115 = vadd.f32 0.0, %v114
    %v116 = vpop.f32.mrb[0].mxu0
    %117 = vdwg.mxu0
    %v119 = vsel %vm34, %v29, 0
    %v122 = vsel %vm34, %v30, 0
    %v125 = vsel %vm34, %v31, 0
    %127 = vmatprep.subr.mxu0 0.0
    %128 = vmatpush1.xpose.msra.mxu0 %v125
    %129 = vmatprep.subr.mxu0 0.0
    %130 = vmatpush1.xpose.msra.mxu0 0.0
    %131 = vmatprep.subr.mxu0 0.0
    %132 = vmatpush1.xpose.msra.mxu0 0.0
    %133 = vmatprep.subr.mxu0 0.0
    %134 = vmatpush1.xpose.msra.mxu0 0.0
    %135 = vmatprep.subr.mxu0 0.0
    %136 = vmatpush1.xpose.msra.mxu0 0.0
    %137 = vmatprep.subr.mxu0 0.0
    %138 = vmatpush1.xpose.msra.mxu0 0.0
    %139 = vmatprep.subr.mxu0 0.0
    %140 = vmatpush1.xpose.msra.mxu0 0.0
    %141 = vmatprep.subr.mxu0 0.0
    %142 = vmatpush1.xpose.msra.mxu0 0.0
    %143 = vmatprep.subr.mxu0 0.0
    %144 = vmatpush1.xpose.msra.mxu0 0.0
    %145 = vmatprep.subr.mxu0 0.0
    %146 = vmatpush1.xpose.msra.mxu0 0.0
    %147 = vmatprep.subr.mxu0 0.0
    %148 = vmatpush1.xpose.msra.mxu0 0.0
    %149 = vmatprep.subr.mxu0 0.0
    %150 = vmatpush1.xpose.msra.mxu0 0.0
    %151 = vmatprep.subr.mxu0 0.0
    %152 = vmatpush1.xpose.msra.mxu0 0.0
    %153 = vmatprep.subr.mxu0 0.0
    %154 = vmatpush1.xpose.msra.mxu0 0.0
    %155 = vmatprep.subr.mxu0 0.0
    %156 = vmatpush1.xpose.msra.mxu0 0.0
    %157 = vmatprep.subr.mxu0 0.0
    %158 = vmatpush1.xpose.msra.mxu0 0.0
    %159 = vmatprep.subr.mxu0 0.0
    %160 = vmatpush1.xpose.msra.mxu0 0.0
    %161 = vmatprep.subr.mxu0 0.0
    %162 = vmatpush1.xpose.msra.mxu0 0.0
    %163 = vmatprep.subr.mxu0 0.0
    %164 = vmatpush1.xpose.msra.mxu0 0.0
    %165 = vmatprep.subr.mxu0 0.0
    %166 = vmatpush1.xpose.msra.mxu0 0.0
    %167 = vmatprep.subr.mxu0 0.0
    %168 = vmatpush1.xpose.msra.mxu0 0.0
    %169 = vmatprep.subr.mxu0 0.0
    %170 = vmatpush1.xpose.msra.mxu0 0.0
    %171 = vmatprep.subr.mxu0 0.0
    %172 = vmatpush1.xpose.msra.mxu0 0.0
    %173 = vmatprep.subr.mxu0 0.0
    %174 = vmatpush1.xpose.msra.mxu0 0.0
    %175 = vmatprep.subr.mxu0 0.0
    %176 = vmatpush1.xpose.msra.mxu0 0.0
    %177 = vmatprep.subr.mxu0 0.0
    %178 = vmatpush1.xpose.msra.mxu0 0.0
    %179 = vmatprep.subr.mxu0 0.0
    %180 = vmatpush1.xpose.msra.mxu0 0.0
    %181 = vmatprep.subr.mxu0 0.0
    %182 = vmatpush1.xpose.msra.mxu0 0.0
    %183 = vmatprep.subr.mxu0 0.0
    %184 = vmatpush1.xpose.msra.mxu0 0.0
    %185 = vmatprep.subr.mxu0 0.0
    %186 = vmatpush1.xpose.msra.mxu0 0.0
    %187 = vmatprep.subr.mxu0 0.0
    %188 = vmatpush1.xpose.msra.mxu0 0.0
    %189 = vmatprep.subr.mxu0 0.0
    %190 = vmatpush1.xpose.msra.mxu0 0.0
    %191 = vmatprep.mubr.f32.mxu0 0.0
    %192 = vmatmul.mubr.f32.gmra.mrb[0].mxu0 %v119
    %v193 = vpop.f32.mrb[0].mxu0
    %v194 = vadd.f32 0.0, %v193
    %v195 = vpop.f32.mrb[0].mxu0
    %196 = vmatprep.mubr.f32.mxu0 0.0
    %197 = vmatmul.mubr.f32.gmra.mrb[0].mxu0 %v122
    %v198 = vpop.f32.mrb[0].mxu0
    %v199 = vadd.f32 0.0, %v198
    %v200 = vpop.f32.mrb[0].mxu0
    %201 = vdwg.mxu0
    %v202 = vlaneseq
    %v203 = vshrl.u32 %v202, 7
    %v204 = vsub.s32 0, %v203
    %v205 = vrot.slane %v115, %v204
    %v206 = vadd.f32 %v37, %v205
    %v207 = vadd.f32 %v40, %v205
    %v208 = vmul.f32 %v194, 2.0
    %v209 = vmul.f32 %v199, 2.0
    %v210 = vsub.f32 %v206, %v208
    %v211 = vsub.f32 %v207, %v209
    %v212 = vmax.f32 %v210, 0.0
    %v213 = vmax.f32 %v211, 0.0
    %v214 = vrsqrt.pop %v212
    %v215 = vmul.f32 %v212, %v214
    %vm216 = vcmp.eq.f32.partialorder %v212, inf
    %v217 = vsel %vm216, %v212, %v215
    %vm218 = vcmp.eq.f32.partialorder %v212, 0.0
    %v219 = vand.u32 %v212, 2147483648
    %v220 = vsel %vm218, %v219, %v217
    %v221 = vrsqrt.pop %v213
    %v222 = vmul.f32 %v213, %v221
    %vm223 = vcmp.eq.f32.partialorder %v213, inf
    %v224 = vsel %vm223, %v213, %v222
    %vm225 = vcmp.eq.f32.partialorder %v213, 0.0
    %v226 = vand.u32 %v213, 2147483648
    %v227 = vsel %vm225, %v226, %v224
    %v228 = vmul.f32 %v220, 1.7320508
    %v229 = vmul.f32 %v227, 1.7320508
    %v230 = vstv %s27
    %v231 = vrcp.pop %v230
    %v232 = vmul.f32 %v228, %v231
    %v233 = vmul.f32 %v229, %v231
    %v234 = vadd.f32 %v232, 1.0
    %v235 = vadd.f32 %v233, 1.0
    %v236 = vstv %s28
    %v237 = vmul.f32 %v236, %v234
    %v238 = vmul.f32 %v236, %v235
    %v239 = vsub.f32 0.0, %v232
    %v240 = vsub.f32 0.0, %v233
    %v241 = vmul.f32 %v239, 1.442695
    %v242 = vpow.pop %v241
    %v243 = vmul.f32 %v240, 1.442695
    %v244 = vpow.pop %v243
    %v245 = vmul.f32 %v237, %v242
    %v246 = vmul.f32 %v238, %v244
    %vm247 = vcmask 64512
    %248 = vst.msk [vmem:[%s3] sm:$0xff] %vm247, %v245
    %249 = vst.msk [vmem:[%s3 + $0x8] sm:$0xff] %vm247, %v246
    // Predicated region
    $region18: #{_rcgp_forward.8} parent=1 // pred_check
      _
    $region19: #{_rcgp_forward.8} parent=1 // pred_check_branch
      %251 = sbr.rel (0) target = $region21
    $region20: #{_rcgp_forward.8} parent=1 // pred_region
      _
    $region21: #{_rcgp_forward.8} parent=1 // pred_fallthru
      _
    // Predicated region
    $region22: #{_rcgp_forward.8} parent=1 // pred_check
      _
    $region23: #{_rcgp_forward.8} parent=1 // pred_check_branch
      %253 = sbr.rel (0) target = $region25
    $region24: #{_rcgp_forward.8} parent=1 // pred_region
      _
    $region25: #{_rcgp_forward.8} parent=1 // pred_fallthru
      _
    %254 = vsyncpa [#allocation3], 1

// kernel: _rcgp_forward.13
$region0: #{_rcgp_forward.13}
  #allocation0 [shape = 'u32[]', space=smem, size = 0x4, offset = 0x4, fixed_abs, tag = 'smem constant byte address 0x4 - core index']
  #allocation1 [shape = 'u32[144,128]{1,0:T(1,128)}', space=vmem, size = 0x12000, scoped, tag = 'internal scratch']
  %s0 = inlined_call_operand.vmem [shape: f32[16,16], index: 0, kind: input, shape index: {}]
  %s1 = inlined_call_operand.vmem [shape: f32[1,16], index: 1, kind: input, shape index: {}]
  %s2 = inlined_call_operand.vmem [shape: f32[8,16], index: 2, kind: input, shape index: {}]
  %s3 = inlined_call_operand.vmem [shape: f32[8,16,16], index: 3, kind: input, shape index: {}]
  %s4 = inlined_call_operand.hbm [shape: f32[8,16], index: 4, kind: output, shape index: {0}]
  %s5 = inlined_call_operand.vmem [shape: f32[8,16], index: 5, kind: output, shape index: {1}]
  %6 = xla_tuple %s4, %s5
  %s7 = sld [smem:[#allocation0]]
  $region34: #{_rcgp_forward.13} parent=0
    _
  %s9 = ssub.s32 1, %s7
  %s10 = scalar_select 0, %s9, %s7
  $region1: #{_rcgp_forward.13} parent=0
    #allocation2 [shape = 'u8[4096]{0}', space=vmem, size = 0x1000, scoped, tag = 'output window, operand 0, single buffered']
    #allocation3 [shape = 's32[1]{0}', space=sflag, size = 0x4, scoped, tag = 'scoped memory for _rcgp_forward.13']
    %11 = vsyncpa [#allocation3], 0
    // Predicated region
    $region2: #{_rcgp_forward.13} parent=1 // pred_check
      _
    $region3: #{_rcgp_forward.13} parent=1 // pred_check_branch
      %13 = sbr.rel (0) target = $region5
    $region4: #{_rcgp_forward.13} parent=1 // pred_region
      _
    $region5: #{_rcgp_forward.13} parent=1 // pred_fallthru
      _
    // Predicated region
    $region6: #{_rcgp_forward.13} parent=1 // pred_check
      _
    $region7: #{_rcgp_forward.13} parent=1 // pred_check_branch
      %15 = sbr.rel (0) target = $region9
    $region8: #{_rcgp_forward.13} parent=1 // pred_region
      _
    $region9: #{_rcgp_forward.13} parent=1 // pred_fallthru
      _
    // Predicated region
    $region10: #{_rcgp_forward.13} parent=1 // pred_check
      _
    $region11: #{_rcgp_forward.13} parent=1 // pred_check_branch
      %17 = sbr.rel (0) target = $region13
    $region12: #{_rcgp_forward.13} parent=1 // pred_region
      _
    $region13: #{_rcgp_forward.13} parent=1 // pred_fallthru
      _
    // Predicated region
    $region14: #{_rcgp_forward.13} parent=1 // pred_check
      _
    $region15: #{_rcgp_forward.13} parent=1 // pred_check_branch
      %19 = sbr.rel (0) target = $region17
    $region16: #{_rcgp_forward.13} parent=1 // pred_region
      _
    $region17: #{_rcgp_forward.13} parent=1 // pred_fallthru
      _
    %v20 = vld [vmem:[%s0] sm:$0xff]
    %v21 = vld [vmem:[%s0 + $0x8] sm:$0xff]
    %v22 = vld [vmem:[%s1] sm:$0x1]
    %v23 = vld [vmem:[%s2] sm:$0xff]
    %vm24 = vcmask 130048
    %v26 = vsel %vm24, %v23, 0
    %28 = vmatprep.subr.mxu0 0.0
    %29 = vmatpush1.msra.mxu0 %v20
    %30 = vmatprep.subr.mxu0 0.0
    %31 = vmatpush1.msra.mxu0 %v21
    %32 = vmatprep.subr.mxu0 0.0
    %33 = vmatpush1.msra.mxu0 0.0
    %34 = vmatprep.subr.mxu0 0.0
    %35 = vmatpush1.msra.mxu0 0.0
    %36 = vmatprep.subr.mxu0 0.0
    %37 = vmatpush1.msra.mxu0 0.0
    %38 = vmatprep.subr.mxu0 0.0
    %39 = vmatpush1.msra.mxu0 0.0
    %40 = vmatprep.subr.mxu0 0.0
    %41 = vmatpush1.msra.mxu0 0.0
    %42 = vmatprep.subr.mxu0 0.0
    %43 = vmatpush1.msra.mxu0 0.0
    %44 = vmatprep.subr.mxu0 0.0
    %45 = vmatpush1.msra.mxu0 0.0
    %46 = vmatprep.subr.mxu0 0.0
    %47 = vmatpush1.msra.mxu0 0.0
    %48 = vmatprep.subr.mxu0 0.0
    %49 = vmatpush1.msra.mxu0 0.0
    %50 = vmatprep.subr.mxu0 0.0
    %51 = vmatpush1.msra.mxu0 0.0
    %52 = vmatprep.subr.mxu0 0.0
    %53 = vmatpush1.msra.mxu0 0.0
    %54 = vmatprep.subr.mxu0 0.0
    %55 = vmatpush1.msra.mxu0 0.0
    %56 = vmatprep.subr.mxu0 0.0
    %57 = vmatpush1.msra.mxu0 0.0
    %58 = vmatprep.subr.mxu0 0.0
    %59 = vmatpush1.msra.mxu0 0.0
    %60 = vmatprep.subr.mxu0 0.0
    %61 = vmatpush1.msra.mxu0 0.0
    %62 = vmatprep.subr.mxu0 0.0
    %63 = vmatpush1.msra.mxu0 0.0
    %64 = vmatprep.subr.mxu0 0.0
    %65 = vmatpush1.msra.mxu0 0.0
    %66 = vmatprep.subr.mxu0 0.0
    %67 = vmatpush1.msra.mxu0 0.0
    %68 = vmatprep.subr.mxu0 0.0
    %69 = vmatpush1.msra.mxu0 0.0
    %70 = vmatprep.subr.mxu0 0.0
    %71 = vmatpush1.msra.mxu0 0.0
    %72 = vmatprep.subr.mxu0 0.0
    %73 = vmatpush1.msra.mxu0 0.0
    %74 = vmatprep.subr.mxu0 0.0
    %75 = vmatpush1.msra.mxu0 0.0
    %76 = vmatprep.subr.mxu0 0.0
    %77 = vmatpush1.msra.mxu0 0.0
    %78 = vmatprep.subr.mxu0 0.0
    %79 = vmatpush1.msra.mxu0 0.0
    %80 = vmatprep.subr.mxu0 0.0
    %81 = vmatpush1.msra.mxu0 0.0
    %82 = vmatprep.subr.mxu0 0.0
    %83 = vmatpush1.msra.mxu0 0.0
    %84 = vmatprep.subr.mxu0 0.0
    %85 = vmatpush1.msra.mxu0 0.0
    %86 = vmatprep.subr.mxu0 0.0
    %87 = vmatpush1.msra.mxu0 0.0
    %88 = vmatprep.subr.mxu0 0.0
    %89 = vmatpush1.msra.mxu0 0.0
    %90 = vmatprep.subr.mxu0 0.0
    %91 = vmatpush1.msra.mxu0 0.0
    %92 = vmatprep.mubr.f32.mxu0 0.0
    %93 = vmatmul.mubr.f32.gmra.mrb[0].mxu0 %v26
    %v94 = vpop.f32.mrb[0].mxu0
    %v95 = vadd.f32 0.0, %v94
    %v96 = vpop.f32.mrb[0].mxu0
    %97 = vdwg.mxu0
    %98 = vst.msk [vmem:[#allocation2] sm:$0xff] %vm24, %v95
    %v99 = vld [vmem:[%s3] sm:$0xff]
    %v100 = vld [vmem:[%s3 + $0x8] sm:$0xff]
    %v101 = vld [vmem:[%s3 + $0x10] sm:$0xff]
    %v102 = vld [vmem:[%s3 + $0x18] sm:$0xff]
    %v103 = vld [vmem:[%s3 + $0x20] sm:$0xff]
    %v104 = vld [vmem:[%s3 + $0x28] sm:$0xff]
    %v105 = vld [vmem:[%s3 + $0x30] sm:$0xff]
    %v106 = vld [vmem:[%s3 + $0x38] sm:$0xff]
    %v107 = vld [vmem:[%s3 + $0x40] sm:$0xff]
    %v108 = vld [vmem:[%s3 + $0x48] sm:$0xff]
    %v109 = vld [vmem:[%s3 + $0x50] sm:$0xff]
    %v110 = vld [vmem:[%s3 + $0x58] sm:$0xff]
    %v111 = vld [vmem:[%s3 + $0x60] sm:$0xff]
    %v112 = vld [vmem:[%s3 + $0x68] sm:$0xff]
    %v113 = vld [vmem:[%s3 + $0x70] sm:$0xff]
    %v114 = vld [vmem:[%s3 + $0x78] sm:$0xff]
    %v116 = vsel %vm24, %v99, 0
    %v119 = vsel %vm24, %v100, 0
    %v122 = vsel %vm24, %v101, 0
    %v125 = vsel %vm24, %v102, 0
    %v128 = vsel %vm24, %v103, 0
    %v131 = vsel %vm24, %v104, 0
    %v134 = vsel %vm24, %v105, 0
    %v137 = vsel %vm24, %v106, 0
    %v140 = vsel %vm24, %v107, 0
    %v143 = vsel %vm24, %v108, 0
    %v146 = vsel %vm24, %v109, 0
    %v149 = vsel %vm24, %v110, 0
    %v152 = vsel %vm24, %v111, 0
    %v155 = vsel %vm24, %v112, 0
    %v158 = vsel %vm24, %v113, 0
    %v161 = vsel %vm24, %v114, 0
    %163 = vmatprep.subr.mxu0 0.0
    %164 = vmatpush1.msra.mxu0 %v20
    %165 = vmatprep.subr.mxu0 0.0
    %166 = vmatpush1.msra.mxu0 %v21
    %167 = vmatprep.subr.mxu0 0.0
    %168 = vmatpush1.msra.mxu0 0.0
    %169 = vmatprep.subr.mxu0 0.0
    %170 = vmatpush1.msra.mxu0 0.0
    %171 = vmatprep.subr.mxu0 0.0
    %172 = vmatpush1.msra.mxu0 0.0
    %173 = vmatprep.subr.mxu0 0.0
    %174 = vmatpush1.msra.mxu0 0.0
    %175 = vmatprep.subr.mxu0 0.0
    %176 = vmatpush1.msra.mxu0 0.0
    %177 = vmatprep.subr.mxu0 0.0
    %178 = vmatpush1.msra.mxu0 0.0
    %179 = vmatprep.subr.mxu0 0.0
    %180 = vmatpush1.msra.mxu0 0.0
    %181 = vmatprep.subr.mxu0 0.0
    %182 = vmatpush1.msra.mxu0 0.0
    %183 = vmatprep.subr.mxu0 0.0
    %184 = vmatpush1.msra.mxu0 0.0
    %185 = vmatprep.subr.mxu0 0.0
    %186 = vmatpush1.msra.mxu0 0.0
    %187 = vmatprep.subr.mxu0 0.0
    %188 = vmatpush1.msra.mxu0 0.0
    %189 = vmatprep.subr.mxu0 0.0
    %190 = vmatpush1.msra.mxu0 0.0
    %191 = vmatprep.subr.mxu0 0.0
    %192 = vmatpush1.msra.mxu0 0.0
    %193 = vmatprep.subr.mxu0 0.0
    %194 = vmatpush1.msra.mxu0 0.0
    %195 = vmatprep.subr.mxu0 0.0
    %196 = vmatpush1.msra.mxu0 0.0
    %197 = vmatprep.subr.mxu0 0.0
    %198 = vmatpush1.msra.mxu0 0.0
    %199 = vmatprep.subr.mxu0 0.0
    %200 = vmatpush1.msra.mxu0 0.0
    %201 = vmatprep.subr.mxu0 0.0
    %202 = vmatpush1.msra.mxu0 0.0
    %203 = vmatprep.subr.mxu0 0.0
    %204 = vmatpush1.msra.mxu0 0.0
    %205 = vmatprep.subr.mxu0 0.0
    %206 = vmatpush1.msra.mxu0 0.0
    %207 = vmatprep.subr.mxu0 0.0
    %208 = vmatpush1.msra.mxu0 0.0
    %209 = vmatprep.subr.mxu0 0.0
    %210 = vmatpush1.msra.mxu0 0.0
    %211 = vmatprep.subr.mxu0 0.0
    %212 = vmatpush1.msra.mxu0 0.0
    %213 = vmatprep.subr.mxu0 0.0
    %214 = vmatpush1.msra.mxu0 0.0
    %215 = vmatprep.subr.mxu0 0.0
    %216 = vmatpush1.msra.mxu0 0.0
    %217 = vmatprep.subr.mxu0 0.0
    %218 = vmatpush1.msra.mxu0 0.0
    %219 = vmatprep.subr.mxu0 0.0
    %220 = vmatpush1.msra.mxu0 0.0
    %221 = vmatprep.subr.mxu0 0.0
    %222 = vmatpush1.msra.mxu0 0.0
    %223 = vmatprep.subr.mxu0 0.0
    %224 = vmatpush1.msra.mxu0 0.0
    %225 = vmatprep.subr.mxu0 0.0
    %226 = vmatpush1.msra.mxu0 0.0
    %227 = vmatprep.mubr.f32.mxu0 0.0
    %228 = vmatmul.mubr.f32.gmra.mrb[0].mxu0 %v116
    %v229 = vpop.f32.mrb[0].mxu0
    %v230 = vadd.f32 0.0, %v229
    %v231 = vpop.f32.mrb[0].mxu0
    %232 = vmatprep.mubr.f32.mxu0 0.0
    %233 = vmatmul.mubr.f32.gmra.mrb[0].mxu0 %v119
    %v234 = vpop.f32.mrb[0].mxu0
    %v235 = vadd.f32 0.0, %v234
    %v236 = vpop.f32.mrb[0].mxu0
    %237 = vmatprep.mubr.f32.mxu0 0.0
    %238 = vmatmul.mubr.f32.gmra.mrb[0].mxu0 %v122
    %v239 = vpop.f32.mrb[0].mxu0
    %v240 = vadd.f32 0.0, %v239
    %v241 = vpop.f32.mrb[0].mxu0
    %242 = vmatprep.mubr.f32.mxu0 0.0
    %243 = vmatmul.mubr.f32.gmra.mrb[0].mxu0 %v125
    %v244 = vpop.f32.mrb[0].mxu0
    %v245 = vadd.f32 0.0, %v244
    %v246 = vpop.f32.mrb[0].mxu0
    %247 = vmatprep.mubr.f32.mxu0 0.0
    %248 = vmatmul.mubr.f32.gmra.mrb[0].mxu0 %v128
    %v249 = vpop.f32.mrb[0].mxu0
    %v250 = vadd.f32 0.0, %v249
    %v251 = vpop.f32.mrb[0].mxu0
    %252 = vmatprep.mubr.f32.mxu0 0.0
    %253 = vmatmul.mubr.f32.gmra.mrb[0].mxu0 %v131
    %v254 = vpop.f32.mrb[0].mxu0
    %v255 = vadd.f32 0.0, %v254
    %v256 = vpop.f32.mrb[0].mxu0
    %257 = vmatprep.mubr.f32.mxu0 0.0
    %258 = vmatmul.mubr.f32.gmra.mrb[0].mxu0 %v134
    %v259 = vpop.f32.mrb[0].mxu0
    %v260 = vadd.f32 0.0, %v259
    %v261 = vpop.f32.mrb[0].mxu0
    %262 = vmatprep.mubr.f32.mxu0 0.0
    %263 = vmatmul.mubr.f32.gmra.mrb[0].mxu0 %v137
    %v264 = vpop.f32.mrb[0].mxu0
    %v265 = vadd.f32 0.0, %v264
    %v266 = vpop.f32.mrb[0].mxu0
    %267 = vmatprep.mubr.f32.mxu0 0.0
    %268 = vmatmul.mubr.f32.gmra.mrb[0].mxu0 %v140
    %v269 = vpop.f32.mrb[0].mxu0
    %v270 = vadd.f32 0.0, %v269
    %v271 = vpop.f32.mrb[0].mxu0
    %272 = vmatprep.mubr.f32.mxu0 0.0
    %273 = vmatmul.mubr.f32.gmra.mrb[0].mxu0 %v143
    %v274 = vpop.f32.mrb[0].mxu0
    %v275 = vadd.f32 0.0, %v274
    %v276 = vpop.f32.mrb[0].mxu0
    %277 = vmatprep.mubr.f32.mxu0 0.0
    %278 = vmatmul.mubr.f32.gmra.mrb[0].mxu0 %v146
    %v279 = vpop.f32.mrb[0].mxu0
    %v280 = vadd.f32 0.0, %v279
    %v281 = vpop.f32.mrb[0].mxu0
    %282 = vmatprep.mubr.f32.mxu0 0.0
    %283 = vmatmul.mubr.f32.gmra.mrb[0].mxu0 %v149
    %v284 = vpop.f32.mrb[0].mxu0
    %v285 = vadd.f32 0.0, %v284
    %v286 = vpop.f32.mrb[0].mxu0
    %287 = vmatprep.mubr.f32.mxu0 0.0
    %288 = vmatmul.mubr.f32.gmra.mrb[0].mxu0 %v152
    %v289 = vpop.f32.mrb[0].mxu0
    %v290 = vadd.f32 0.0, %v289
    %v291 = vpop.f32.mrb[0].mxu0
    %292 = vmatprep.mubr.f32.mxu0 0.0
    %293 = vmatmul.mubr.f32.gmra.mrb[0].mxu0 %v155
    %v294 = vpop.f32.mrb[0].mxu0
    %v295 = vadd.f32 0.0, %v294
    %v296 = vpop.f32.mrb[0].mxu0
    %297 = vmatprep.mubr.f32.mxu0 0.0
    %298 = vmatmul.mubr.f32.gmra.mrb[0].mxu0 %v158
    %v299 = vpop.f32.mrb[0].mxu0
    %v300 = vadd.f32 0.0, %v299
    %v301 = vpop.f32.mrb[0].mxu0
    %302 = vmatprep.mubr.f32.mxu0 0.0
    %303 = vmatmul.mubr.f32.gmra.mrb[0].mxu0 %v161
    %v304 = vpop.f32.mrb[0].mxu0
    %v305 = vadd.f32 0.0, %v304
    %v306 = vpop.f32.mrb[0].mxu0
    %307 = vdwg.mxu0
    %v308 = vmul.f32 %v230, %v20
    %v309 = vmul.f32 %v235, %v21
    %v310 = vmul.f32 %v240, %v20
    %v311 = vmul.f32 %v245, %v21
    %v312 = vmul.f32 %v250, %v20
    %v313 = vmul.f32 %v255, %v21
    %v314 = vmul.f32 %v260, %v20
    %v315 = vmul.f32 %v265, %v21
    %v316 = vmul.f32 %v270, %v20
    %v317 = vmul.f32 %v275, %v21
    %v318 = vmul.f32 %v280, %v20
    %v319 = vmul.f32 %v285, %v21
    %v320 = vmul.f32 %v290, %v20
    %v321 = vmul.f32 %v295, %v21
    %v322 = vmul.f32 %v300, %v20
    %v323 = vmul.f32 %v305, %v21
    %v324 = vsel %vm24, %v308, 0.0
    %v325 = vsel %vm24, %v309, 0.0
    %v326 = vadd.f32 %v324, %v325
    %v327 = vrot.slane %v326, 4
    %v328 = vadd.f32 %v326, %v327
    %v329 = vrot.slane %v328, 2
    %v330 = vadd.f32 %v328, %v329
    %v331 = vrot.slane %v330, 1
    %v332 = vadd.f32 %v330, %v331
    %v333 = vsel %vm24, %v310, 0.0
    %v334 = vsel %vm24, %v311, 0.0
    %v335 = vadd.f32 %v333, %v334
    %v336 = vrot.slane %v335, 4
    %v337 = vadd.f32 %v335, %v336
    %v338 = vrot.slane %v337, 2
    %v339 = vadd.f32 %v337, %v338
    %v340 = vrot.slane %v339, 1
    %v341 = vadd.f32 %v339, %v340
    %v342 = vsel %vm24, %v312, 0.0
    %v343 = vsel %vm24, %v313, 0.0
    %v344 = vadd.f32 %v342, %v343
    %v345 = vrot.slane %v344, 4
    %v346 = vadd.f32 %v344, %v345
    %v347 = vrot.slane %v346, 2
    %v348 = vadd.f32 %v346, %v347
    %v349 = vrot.slane %v348, 1
    %v350 = vadd.f32 %v348, %v349
    %v351 = vsel %vm24, %v314, 0.0
    %v352 = vsel %vm24, %v315, 0.0
    %v353 = vadd.f32 %v351, %v352
    %v354 = vrot.slane %v353, 4
    %v355 = vadd.f32 %v353, %v354
    %v356 = vrot.slane %v355, 2
    %v357 = vadd.f32 %v355, %v356
    %v358 = vrot.slane %v357, 1
    %v359 = vadd.f32 %v357, %v358
    %v360 = vsel %vm24, %v316, 0.0
    %v361 = vsel %vm24, %v317, 0.0
    %v362 = vadd.f32 %v360, %v361
    %v363 = vrot.slane %v362, 4
    %v364 = vadd.f32 %v362, %v363
    %v365 = vrot.slane %v364, 2
    %v366 = vadd.f32 %v364, %v365
    %v367 = vrot.slane %v366, 1
    %v368 = vadd.f32 %v366, %v367
    %v369 = vsel %vm24, %v318, 0.0
    %v370 = vsel %vm24, %v319, 0.0
    %v371 = vadd.f32 %v369, %v370
    %v372 = vrot.slane %v371, 4
    %v373 = vadd.f32 %v371, %v372
    %v374 = vrot.slane %v373, 2
    %v375 = vadd.f32 %v373, %v374
    %v376 = vrot.slane %v375, 1
    %v377 = vadd.f32 %v375, %v376
    %v378 = vsel %vm24, %v320, 0.0
    %v379 = vsel %vm24, %v321, 0.0
    %v380 = vadd.f32 %v378, %v379
    %v381 = vrot.slane %v380, 4
    %v382 = vadd.f32 %v380, %v381
    %v383 = vrot.slane %v382, 2
    %v384 = vadd.f32 %v382, %v383
    %v385 = vrot.slane %v384, 1
    %v386 = vadd.f32 %v384, %v385
    %v387 = vsel %vm24, %v322, 0.0
    %v388 = vsel %vm24, %v323, 0.0
    %v389 = vadd.f32 %v387, %v388
    %v390 = vrot.slane %v389, 4
    %v391 = vadd.f32 %v389, %v390
    %v392 = vrot.slane %v391, 2
    %v393 = vadd.f32 %v391, %v392
    %v394 = vrot.slane %v393, 1
    %v395 = vadd.f32 %v393, %v394
    %v397 = vlaneseq
    %v398 = vshrl.u32 %v397, 7
    %v399 = vsub.s32 0, %v398
    %v400 = vrot.slane %v22, %v399
    %v402 = vadd.f32 %v332, %v400
    %v403 = vadd.f32 %v341, %v400
    %v404 = vadd.f32 %v350, %v400
    %v405 = vadd.f32 %v359, %v400
    %v406 = vadd.f32 %v368, %v400
    %v407 = vadd.f32 %v377, %v400
    %v408 = vadd.f32 %v386, %v400
    %v409 = vadd.f32 %v395, %v400
    %v418 = vrot.slane %v403, 7
    %vm419 = vcmask 1041409
    %v420 = vsel %vm419, %v418, %v402
    %v421 = vrot.slane %v404, 6
    %vm422 = vcmask 1042434
    %v423 = vsel %vm422, %v421, %v420
    %v424 = vrot.slane %v405, 5
    %vm425 = vcmask 1043459
    %v426 = vsel %vm425, %v424, %v423
    %v427 = vrot.slane %v406, 4
    %vm428 = vcmask 1044484
    %v429 = vsel %vm428, %v427, %v426
    %v430 = vrot.slane %v407, 3
    %vm431 = vcmask 1045509
    %v432 = vsel %vm431, %v430, %v429
    %v433 = vrot.slane %v408, 2
    %vm434 = vcmask 1046534
    %v435 = vsel %vm434, %v433, %v432
    %v436 = vrot.slane %v409, 1
    %vm437 = vcmask 1047559
    %v438 = vsel %vm437, %v436, %v435
    %440 = vst.msk [vmem:[%s5] sm:$0xff] %vm24, %v438
    // Predicated region
    $region18: #{_rcgp_forward.13} parent=1 // pred_check
      _
    $region19: #{_rcgp_forward.13} parent=1 // pred_check_branch
      %442 = sbr.rel (0) target = $region21
    $region20: #{_rcgp_forward.13} parent=1 // pred_region
      %s444 = ssub.s32 128, 128
      %445 = vsyncadd [#allocation3], %s444
      %s447 = sshll.u32 [#allocation2], 4
      %s448 = int_to_ptr.vmem [resolvable:$true] %s447
      %450 = dma.vmem_to_hbm [thread:$0]  %s448, 128, %s4, [#allocation3]
    $region21: #{_rcgp_forward.13} parent=1 // pred_fallthru
      _
    // Predicated region
    $region22: #{_rcgp_forward.13} parent=1 // pred_check
      _
    $region23: #{_rcgp_forward.13} parent=1 // pred_check_branch
      %452 = sbr.rel (0) target = $region25
    $region24: #{_rcgp_forward.13} parent=1 // pred_region
      _
    $region25: #{_rcgp_forward.13} parent=1 // pred_fallthru
      _
    // Predicated region
    $region26: #{_rcgp_forward.13} parent=1 // pred_check
      _
    $region27: #{_rcgp_forward.13} parent=1 // pred_check_branch
      %454 = sbr.rel (0) target = $region29
    $region28: #{_rcgp_forward.13} parent=1 // pred_region
      %455 = dma.done [#allocation3], 128
    $region29: #{_rcgp_forward.13} parent=1 // pred_fallthru
      _
    // Predicated region
    $region30: #{_rcgp_forward.13} parent=1 // pred_check
      _
    $region31: #{_rcgp_forward.13} parent=1 // pred_check_branch
      %457 = sbr.rel (0) target = $region33
    $region32: #{_rcgp_forward.13} parent=1 // pred_region
      _
    $region33: #{_rcgp_forward.13} parent=1 // pred_fallthru
      _
    %458 = vsyncpa [#allocation3], 1

// kernel: _rcgp_forward.10
$region0: #{_rcgp_forward.10}
  #allocation0 [shape = 'u32[]', space=smem, size = 0x4, offset = 0x4, fixed_abs, tag = 'smem constant byte address 0x4 - core index']
  #allocation1 [shape = 'u32[144,128]{1,0:T(1,128)}', space=vmem, size = 0x12000, scoped, tag = 'internal scratch']
  #allocation2 [shape = 'f32[1,16]{1,0:T(1,128)}', space=vmem, size = 0x200, scoped, tag = 'scratch operand']
  #allocation3 [shape = 'f32[16,16]{1,0:T(8,128)}', space=vmem, size = 0x2000, scoped, tag = 'scratch operand']
  #allocation4 [shape = 's32[1]{0}', space=sflag, size = 0x4, scoped, tag = 'scoped memory for _rcgp_forward.10']
  #allocation5 [shape = 'u8[512]{0}', space=smem, size = 0x200, scoped, tag = 'prefetched SMEM operand 0']
  %s0 = inlined_call_operand.vmem [shape: s32[16], index: 0, kind: input, shape index: {}]
  %s1 = inlined_call_operand.vmem [shape: f32[1,16], index: 1, kind: input, shape index: {}]
  %s2 = inlined_call_operand.vmem [shape: f32[16,16], index: 2, kind: input, shape index: {}]
  %s3 = inlined_call_operand.vmem [shape: f32[16,16], index: 3, kind: input, shape index: {}]
  %s4 = inlined_call_operand.vmem [shape: f32[16,16], index: 4, kind: input, shape index: {}]
  %s5 = inlined_call_operand.vmem [shape: f32[16,16], index: 5, kind: input, shape index: {}]
  %s6 = inlined_call_operand.vmem [shape: f32[16,16], index: 6, kind: input, shape index: {}]
  %s7 = inlined_call_operand.vmem [shape: f32[16,16], index: 7, kind: input, shape index: {}]
  %s8 = inlined_call_operand.vmem [shape: f32[16,1,16], index: 8, kind: input, shape index: {}]
  %s9 = inlined_call_operand.vmem [shape: f32[16,1,16], index: 9, kind: output, shape index: {0}]
  %s10 = inlined_call_operand.vmem [shape: f32[16,16,16], index: 10, kind: output, shape index: {1}]
  %s11 = inlined_call_operand.vmem [shape: f32[16,1,16], index: 11, kind: output, shape index: {2}]
  %s12 = inlined_call_operand.vmem [shape: f32[16,16,16], index: 12, kind: output, shape index: {3}]
  %13 = xla_tuple %s9, %s10, %s11, %s12
  %s14 = sld [smem:[#allocation0]]
  $region96: #{_rcgp_forward.10} parent=0
    _
  %s16 = ssub.s32 1, %s14
  %s17 = scalar_select 0, %s16, %s14
  %s18 = sshll.u32 %s0, 4
  %s19 = int_to_ptr.vmem [resolvable:$true] %s18
  %21 = dma.vmem_to_smem %s19, 16, [#allocation5], [#allocation4]
  %22 = dma.done [#allocation4], 16
  %23 = sfence
  // Predicated region
  $region2: #{_rcgp_forward.10} parent=0 // pred_check
    _
  $region3: #{_rcgp_forward.10} parent=0 // pred_check_branch
    %25 = sbr.rel (0) target = $region5
  $region4: #{_rcgp_forward.10} parent=0 // pred_region
    _
  $region5: #{_rcgp_forward.10} parent=0 // pred_fallthru
    _
  // Predicated region
  $region6: #{_rcgp_forward.10} parent=0 // pred_check
    _
  $region7: #{_rcgp_forward.10} parent=0 // pred_check_branch
    %27 = sbr.rel (0) target = $region9
  $region8: #{_rcgp_forward.10} parent=0 // pred_region
    _
  $region9: #{_rcgp_forward.10} parent=0 // pred_fallthru
    _
  // Predicated region
  $region10: #{_rcgp_forward.10} parent=0 // pred_check
    _
  $region11: #{_rcgp_forward.10} parent=0 // pred_check_branch
    %29 = sbr.rel (0) target = $region13
  $region12: #{_rcgp_forward.10} parent=0 // pred_region
    _
  $region13: #{_rcgp_forward.10} parent=0 // pred_fallthru
    _
  // Predicated region
  $region14: #{_rcgp_forward.10} parent=0 // pred_check
    _
  $region15: #{_rcgp_forward.10} parent=0 // pred_check_branch
    %31 = sbr.rel (0) target = $region17
  $region16: #{_rcgp_forward.10} parent=0 // pred_region
    _
  $region17: #{_rcgp_forward.10} parent=0 // pred_fallthru
    _
  // Predicated region
  $region18: #{_rcgp_forward.10} parent=0 // pred_check
    _
  $region19: #{_rcgp_forward.10} parent=0 // pred_check_branch
    %33 = sbr.rel (0) target = $region21
  $region20: #{_rcgp_forward.10} parent=0 // pred_region
    _
  $region21: #{_rcgp_forward.10} parent=0 // pred_fallthru
    _
  // Predicated region
  $region22: #{_rcgp_forward.10} parent=0 // pred_check
    _
  $region23: #{_rcgp_forward.10} parent=0 // pred_check_branch
    %35 = sbr.rel (0) target = $region25
  $region24: #{_rcgp_forward.10} parent=0 // pred_region
    _
  $region25: #{_rcgp_forward.10} parent=0 // pred_fallthru
    _
  // Predicated region
  $region26: #{_rcgp_forward.10} parent=0 // pred_check
    _
  $region27: #{_rcgp_forward.10} parent=0 // pred_check_branch
    %37 = sbr.rel (0) target = $region29
  $region28: #{_rcgp_forward.10} parent=0 // pred_region
    _
  $region29: #{_rcgp_forward.10} parent=0 // pred_fallthru
    _
  // Predicated region
  $region30: #{_rcgp_forward.10} parent=0 // pred_check
    _
  $region31: #{_rcgp_forward.10} parent=0 // pred_check_branch
    %39 = sbr.rel (0) target = $region33
  $region32: #{_rcgp_forward.10} parent=0 // pred_region
    _
  $region33: #{_rcgp_forward.10} parent=0 // pred_fallthru
    _
  %v40 = vld [vmem:[%s3] sm:$0xff]
  %v41 = vld [vmem:[%s3 + $0x8] sm:$0xff]
  %v42 = vld [vmem:[%s4] sm:$0xff]
  %v43 = vld [vmem:[%s4 + $0x8] sm:$0xff]
  %v44 = vld [vmem:[%s5] sm:$0xff]
  %v45 = vld [vmem:[%s5 + $0x8] sm:$0xff]
  %v46 = vld [vmem:[%s6] sm:$0xff]
  %v47 = vld [vmem:[%s6 + $0x8] sm:$0xff]
  %v48 = vld [vmem:[%s7] sm:$0xff]
  %v49 = vld [vmem:[%s7 + $0x8] sm:$0xff]
  loop: start=0, step=1, limit=16
  $region34: #{_rcgp_forward.10} parent=0 // loop_pre_header
    _
  $region35: #{_rcgp_forward.10} parent=0 // loop_header
    %s51 = sphi 0, %s55
    %p52 = scmp.ge.s32.totalorder %s51, 16
  $region36: #{_rcgp_forward.10} parent=0 // loop_header_branch
    %54 = sbr.rel (%p52) target = $region40
  $region37: #{_rcgp_forward.10} parent=0 // loop_body
    %s56 = smul.u32 0, 16
    %s57 = sadd.s32 %s56, %s51
    %p58 = scmp.eq.s32.totalorder %s57, 0
    // Predicated region
    $region41: #{_rcgp_forward.10} parent=37 // pred_check
      %p59 = pneg %p58
    $region42: #{_rcgp_forward.10} parent=37 // pred_check_branch
      %61 = sbr.rel (%p59) target = $region44
    $region43: #{_rcgp_forward.10} parent=37 // pred_region
      %v62 = vld [vmem:[%s1] sm:$0x1]
      %v63 = vld [vmem:[%s2] sm:$0xff]
      %v64 = vld [vmem:[%s2 + $0x8] sm:$0xff]
      %vm65 = vcmask 122880
      %66 = vst.msk [vmem:[#allocation2] sm:$0x1] %vm65, %v62
      %vm67 = vcmask 130048
      %68 = vst.msk [vmem:[#allocation3] sm:$0xff] %vm67, %v63
      %69 = vst.msk [vmem:[#allocation3 + $0x8] sm:$0xff] %vm67, %v64
      %s70 = scalar_lea.vmem %s9, %s51
      %71 = vst.msk [vmem:[%s70] sm:$0x1] %vm65, %v62
      %s72 = smul.u32 %s51, 16
      %s73 = scalar_lea.vmem %s10, %s72
      %74 = vst.msk [vmem:[%s73] sm:$0xff] %vm67, %v63
      %75 = vst.msk [vmem:[%s73 + $0x8] sm:$0xff] %vm67, %v64
      %s76 = scalar_lea.vmem %s11, %s51
      %77 = vst.msk [vmem:[%s76] sm:$0x1] %vm65, %v62
      %s78 = scalar_lea.vmem %s12, %s72
      %79 = vst.msk [vmem:[%s78] sm:$0xff] %vm67, %v63
      %80 = vst.msk [vmem:[%s78 + $0x8] sm:$0xff] %vm67, %v64
    $region44: #{_rcgp_forward.10} parent=37 // pred_fallthru
      _
    %p81 = scmp.gt.s32.totalorder %s57, 0
    // Predicated region
    $region45: #{_rcgp_forward.10} parent=37 // pred_check
      %p82 = pneg %p81
    $region46: #{_rcgp_forward.10} parent=37 // pred_check_branch
      %84 = sbr.rel (%p82) target = $region48
    $region47: #{_rcgp_forward.10} parent=37 // pred_region
      %v85 = vld [vmem:[#allocation2] sm:$0x1]
      %v86 = vld [vmem:[#allocation3] sm:$0xff]
      %v87 = vld [vmem:[#allocation3 + $0x8] sm:$0xff]
      %vm88 = vcmask 130048
      %v90 = vsel %vm88, %v85, 0
      %v93 = vsel %vm88, %v40, 0
      %v96 = vsel %vm88, %v41, 0
      %98 = vmatprep.subr.mxu0 0.0
      %99 = vmatpush1.xpose.msra.mxu0 %v93
      %100 = vmatprep.subr.mxu0 0.0
      %101 = vmatpush1.xpose.msra.mxu0 %v96
      %102 = vmatprep.subr.mxu0 0.0
      %103 = vmatpush1.xpose.msra.mxu0 0.0
      %104 = vmatprep.subr.mxu0 0.0
      %105 = vmatpush1.xpose.msra.mxu0 0.0
      %106 = vmatprep.subr.mxu0 0.0
      %107 = vmatpush1.xpose.msra.mxu0 0.0
      %108 = vmatprep.subr.mxu0 0.0
      %109 = vmatpush1.xpose.msra.mxu0 0.0
      %110 = vmatprep.subr.mxu0 0.0
      %111 = vmatpush1.xpose.msra.mxu0 0.0
      %112 = vmatprep.subr.mxu0 0.0
      %113 = vmatpush1.xpose.msra.mxu0 0.0
      %114 = vmatprep.subr.mxu0 0.0
      %115 = vmatpush1.xpose.msra.mxu0 0.0
      %116 = vmatprep.subr.mxu0 0.0
      %117 = vmatpush1.xpose.msra.mxu0 0.0
      %118 = vmatprep.subr.mxu0 0.0
      %119 = vmatpush1.xpose.msra.mxu0 0.0
      %120 = vmatprep.subr.mxu0 0.0
      %121 = vmatpush1.xpose.msra.mxu0 0.0
      %122 = vmatprep.subr.mxu0 0.0
      %123 = vmatpush1.xpose.msra.mxu0 0.0
      %124 = vmatprep.subr.mxu0 0.0
      %125 = vmatpush1.xpose.msra.mxu0 0.0
      %126 = vmatprep.subr.mxu0 0.0
      %127 = vmatpush1.xpose.msra.mxu0 0.0
      %128 = vmatprep.subr.mxu0 0.0
      %129 = vmatpush1.xpose.msra.mxu0 0.0
      %130 = vmatprep.subr.mxu0 0.0
      %131 = vmatpush1.xpose.msra.mxu0 0.0
      %132 = vmatprep.subr.mxu0 0.0
      %133 = vmatpush1.xpose.msra.mxu0 0.0
      %134 = vmatprep.subr.mxu0 0.0
      %135 = vmatpush1.xpose.msra.mxu0 0.0
      %136 = vmatprep.subr.mxu0 0.0
      %137 = vmatpush1.xpose.msra.mxu0 0.0
      %138 = vmatprep.subr.mxu0 0.0
      %139 = vmatpush1.xpose.msra.mxu0 0.0
      %140 = vmatprep.subr.mxu0 0.0
      %141 = vmatpush1.xpose.msra.mxu0 0.0
      %142 = vmatprep.subr.mxu0 0.0
      %143 = vmatpush1.xpose.msra.mxu0 0.0
      %144 = vmatprep.subr.mxu0 0.0
      %145 = vmatpush1.xpose.msra.mxu0 0.0
      %146 = vmatprep.subr.mxu0 0.0
      %147 = vmatpush1.xpose.msra.mxu0 0.0
      %148 = vmatprep.subr.mxu0 0.0
      %149 = vmatpush1.xpose.msra.mxu0 0.0
      %150 = vmatprep.subr.mxu0 0.0
      %151 = vmatpush1.xpose.msra.mxu0 0.0
      %152 = vmatprep.subr.mxu0 0.0
      %153 = vmatpush1.xpose.msra.mxu0 0.0
      %154 = vmatprep.subr.mxu0 0.0
      %155 = vmatpush1.xpose.msra.mxu0 0.0
      %156 = vmatprep.subr.mxu0 0.0
      %157 = vmatpush1.xpose.msra.mxu0 0.0
      %158 = vmatprep.subr.mxu0 0.0
      %159 = vmatpush1.xpose.msra.mxu0 0.0
      %160 = vmatprep.subr.mxu0 0.0
      %161 = vmatpush1.xpose.msra.mxu0 0.0
      %162 = vmatprep.mubr.f32.mxu0 0.0
      %163 = vmatmul.mubr.f32.gmra.mrb[0].mxu0 %v90
      %v164 = vpop.f32.mrb[0].mxu0
      %v165 = vadd.f32 0.0, %v164
      %v166 = vpop.f32.mrb[0].mxu0
      %167 = vdwg.mxu0
      %168 = vmatprep.subr.mxu0 0.0
      %169 = vmatpush1.msra.mxu0 %v86
      %170 = vmatprep.subr.mxu0 0.0
      %171 = vmatpush1.msra.mxu0 %v87
      %172 = vmatprep.subr.mxu0 0.0
      %173 = vmatpush1.msra.mxu0 0.0
      %174 = vmatprep.subr.mxu0 0.0
      %175 = vmatpush1.msra.mxu0 0.0
      %176 = vmatprep.subr.mxu0 0.0
      %177 = vmatpush1.msra.mxu0 0.0
      %178 = vmatprep.subr.mxu0 0.0
      %179 = vmatpush1.msra.mxu0 0.0
      %180 = vmatprep.subr.mxu0 0.0
      %181 = vmatpush1.msra.mxu0 0.0
      %182 = vmatprep.subr.mxu0 0.0
      %183 = vmatpush1.msra.mxu0 0.0
      %184 = vmatprep.subr.mxu0 0.0
      %185 = vmatpush1.msra.mxu0 0.0
      %186 = vmatprep.subr.mxu0 0.0
      %187 = vmatpush1.msra.mxu0 0.0
      %188 = vmatprep.subr.mxu0 0.0
      %189 = vmatpush1.msra.mxu0 0.0
      %190 = vmatprep.subr.mxu0 0.0
      %191 = vmatpush1.msra.mxu0 0.0
      %192 = vmatprep.subr.mxu0 0.0
      %193 = vmatpush1.msra.mxu0 0.0
      %194 = vmatprep.subr.mxu0 0.0
      %195 = vmatpush1.msra.mxu0 0.0
      %196 = vmatprep.subr.mxu0 0.0
      %197 = vmatpush1.msra.mxu0 0.0
      %198 = vmatprep.subr.mxu0 0.0
      %199 = vmatpush1.msra.mxu0 0.0
      %200 = vmatprep.subr.mxu0 0.0
      %201 = vmatpush1.msra.mxu0 0.0
      %202 = vmatprep.subr.mxu0 0.0
      %203 = vmatpush1.msra.mxu0 0.0
      %204 = vmatprep.subr.mxu0 0.0
      %205 = vmatpush1.msra.mxu0 0.0
      %206 = vmatprep.subr.mxu0 0.0
      %207 = vmatpush1.msra.mxu0 0.0
      %208 = vmatprep.subr.mxu0 0.0
      %209 = vmatpush1.msra.mxu0 0.0
      %210 = vmatprep.subr.mxu0 0.0
      %211 = vmatpush1.msra.mxu0 0.0
      %212 = vmatprep.subr.mxu0 0.0
      %213 = vmatpush1.msra.mxu0 0.0
      %214 = vmatprep.subr.mxu0 0.0
      %215 = vmatpush1.msra.mxu0 0.0
      %216 = vmatprep.subr.mxu0 0.0
      %217 = vmatpush1.msra.mxu0 0.0
      %218 = vmatprep.subr.mxu0 0.0
      %219 = vmatpush1.msra.mxu0 0.0
      %220 = vmatprep.subr.mxu0 0.0
      %221 = vmatpush1.msra.mxu0 0.0
      %222 = vmatprep.subr.mxu0 0.0
      %223 = vmatpush1.msra.mxu0 0.0
      %224 = vmatprep.subr.mxu0 0.0
      %225 = vmatpush1.msra.mxu0 0.0
      %226 = vmatprep.subr.mxu0 0.0
      %227 = vmatpush1.msra.mxu0 0.0
      %228 = vmatprep.subr.mxu0 0.0
      %229 = vmatpush1.msra.mxu0 0.0
      %230 = vmatprep.subr.mxu0 0.0
      %231 = vmatpush1.msra.mxu0 0.0
      %232 = vmatprep.mubr.f32.mxu0 0.0
      %233 = vmatmul.mubr.f32.gmra.mrb[0].mxu0 %v93
      %v234 = vpop.f32.mrb[0].mxu0
      %v235 = vadd.f32 0.0, %v234
      %v236 = vpop.f32.mrb[0].mxu0
      %237 = vmatprep.mubr.f32.mxu0 0.0
      %238 = vmatmul.mubr.f32.gmra.mrb[0].mxu0 %v96
      %v239 = vpop.f32.mrb[0].mxu0
      %v240 = vadd.f32 0.0, %v239
      %v241 = vpop.f32.mrb[0].mxu0
      %242 = vdwg.mxu0
      %v244 = vsel %vm88, %v235, 0
      %v247 = vsel %vm88, %v240, 0
      %249 = vmatprep.subr.mxu0 0.0
      %250 = vmatpush1.xpose.msra.mxu0 %v93
      %251 = vmatprep.subr.mxu0 0.0
      %252 = vmatpush1.xpose.msra.mxu0 %v96
      %253 = vmatprep.subr.mxu0 0.0
      %254 = vmatpush1.xpose.msra.mxu0 0.0
      %255 = vmatprep.subr.mxu0 0.0
      %256 = vmatpush1.xpose.msra.mxu0 0.0
      %257 = vmatprep.subr.mxu0 0.0
      %258 = vmatpush1.xpose.msra.mxu0 0.0
      %259 = vmatprep.subr.mxu0 0.0
      %260 = vmatpush1.xpose.msra.mxu0 0.0
      %261 = vmatprep.subr.mxu0 0.0
      %262 = vmatpush1.xpose.msra.mxu0 0.0
      %263 = vmatprep.subr.mxu0 0.0
      %264 = vmatpush1.xpose.msra.mxu0 0.0
      %265 = vmatprep.subr.mxu0 0.0
      %266 = vmatpush1.xpose.msra.mxu0 0.0
      %267 = vmatprep.subr.mxu0 0.0
      %268 = vmatpush1.xpose.msra.mxu0 0.0
      %269 = vmatprep.subr.mxu0 0.0
      %270 = vmatpush1.xpose.msra.mxu0 0.0
      %271 = vmatprep.subr.mxu0 0.0
      %272 = vmatpush1.xpose.msra.mxu0 0.0
      %273 = vmatprep.subr.mxu0 0.0
      %274 = vmatpush1.xpose.msra.mxu0 0.0
      %275 = vmatprep.subr.mxu0 0.0
      %276 = vmatpush1.xpose.msra.mxu0 0.0
      %277 = vmatprep.subr.mxu0 0.0
      %278 = vmatpush1.xpose.msra.mxu0 0.0
      %279 = vmatprep.subr.mxu0 0.0
      %280 = vmatpush1.xpose.msra.mxu0 0.0
      %281 = vmatprep.subr.mxu0 0.0
      %282 = vmatpush1.xpose.msra.mxu0 0.0
      %283 = vmatprep.subr.mxu0 0.0
      %284 = vmatpush1.xpose.msra.mxu0 0.0
      %285 = vmatprep.subr.mxu0 0.0
      %286 = vmatpush1.xpose.msra.mxu0 0.0
      %287 = vmatprep.subr.mxu0 0.0
      %288 = vmatpush1.xpose.msra.mxu0 0.0
      %289 = vmatprep.subr.mxu0 0.0
      %290 = vmatpush1.xpose.msra.mxu0 0.0
      %291 = vmatprep.subr.mxu0 0.0
      %292 = vmatpush1.xpose.msra.mxu0 0.0
      %293 = vmatprep.subr.mxu0 0.0
      %294 = vmatpush1.xpose.msra.mxu0 0.0
      %295 = vmatprep.subr.mxu0 0.0
      %296 = vmatpush1.xpose.msra.mxu0 0.0
      %297 = vmatprep.subr.mxu0 0.0
      %298 = vmatpush1.xpose.msra.mxu0 0.0
      %299 = vmatprep.subr.mxu0 0.0
      %300 = vmatpush1.xpose.msra.mxu0 0.0
      %301 = vmatprep.subr.mxu0 0.0
      %302 = vmatpush1.xpose.msra.mxu0 0.0
      %303 = vmatprep.subr.mxu0 0.0
      %304 = vmatpush1.xpose.msra.mxu0 0.0
      %305 = vmatprep.subr.mxu0 0.0
      %306 = vmatpush1.xpose.msra.mxu0 0.0
      %307 = vmatprep.subr.mxu0 0.0
      %308 = vmatpush1.xpose.msra.mxu0 0.0
      %309 = vmatprep.subr.mxu0 0.0
      %310 = vmatpush1.xpose.msra.mxu0 0.0
      %311 = vmatprep.subr.mxu0 0.0
      %312 = vmatpush1.xpose.msra.mxu0 0.0
      %313 = vmatprep.mubr.f32.mxu0 0.0
      %314 = vmatmul.mubr.f32.gmra.mrb[0].mxu0 %v244
      %v315 = vpop.f32.mrb[0].mxu0
      %v316 = vadd.f32 %v42, %v315
      %v317 = vpop.f32.mrb[0].mxu0
      %318 = vmatprep.mubr.f32.mxu0 0.0
      %319 = vmatmul.mubr.f32.gmra.mrb[0].mxu0 %v247
      %v320 = vpop.f32.mrb[0].mxu0
      %v321 = vadd.f32 %v43, %v320
      %v322 = vpop.f32.mrb[0].mxu0
      %323 = vdwg.mxu0
      %s324 = scalar_lea.vmem %s11, %s51
      %vm325 = vcmask 122880
      %326 = vst.msk [vmem:[%s324] sm:$0x1] %vm325, %v165
      %s327 = smul.u32 %s51, 16
      %s328 = scalar_lea.vmem %s12, %s327
      %329 = vst.msk [vmem:[%s328] sm:$0xff] %vm88, %v316
      %330 = vst.msk [vmem:[%s328 + $0x8] sm:$0xff] %vm88, %v321
      %s331 = sld [smem:[#allocation5 + %s57]]
      %p332 = scmp.ne.s32.totalorder %s331, 0
      // Predicated region
      $region49: #{_rcgp_forward.10} parent=47 // pred_check
        %p333 = pneg %p332
      $region50: #{_rcgp_forward.10} parent=47 // pred_check_branch
        %335 = sbr.rel (%p333) target = $region52
      $region51: #{_rcgp_forward.10} parent=47 // pred_region
        %s336 = scalar_lea.vmem %s8, %s51
        %v337 = vld [vmem:[%s336] sm:$0x1]
        %v339 = vsel %vm88, %v165, 0
        %341 = vmatprep.subr.mxu0 0.0
        %342 = vmatpush1.msra.mxu0 %v46
        %343 = vmatprep.subr.mxu0 0.0
        %344 = vmatpush1.msra.mxu0 %v47
        %345 = vmatprep.subr.mxu0 0.0
        %346 = vmatpush1.msra.mxu0 0.0
        %347 = vmatprep.subr.mxu0 0.0
        %348 = vmatpush1.msra.mxu0 0.0
        %349 = vmatprep.subr.mxu0 0.0
        %350 = vmatpush1.msra.mxu0 0.0
        %351 = vmatprep.subr.mxu0 0.0
        %352 = vmatpush1.msra.mxu0 0.0
        %353 = vmatprep.subr.mxu0 0.0
        %354 = vmatpush1.msra.mxu0 0.0
        %355 = vmatprep.subr.mxu0 0.0
        %356 = vmatpush1.msra.mxu0 0.0
        %357 = vmatprep.subr.mxu0 0.0
        %358 = vmatpush1.msra.mxu0 0.0
        %359 = vmatprep.subr.mxu0 0.0
        %360 = vmatpush1.msra.mxu0 0.0
        %361 = vmatprep.subr.mxu0 0.0
        %362 = vmatpush1.msra.mxu0 0.0
        %363 = vmatprep.subr.mxu0 0.0
        %364 = vmatpush1.msra.mxu0 0.0
        %365 = vmatprep.subr.mxu0 0.0
        %366 = vmatpush1.msra.mxu0 0.0
        %367 = vmatprep.subr.mxu0 0.0
        %368 = vmatpush1.msra.mxu0 0.0
        %369 = vmatprep.subr.mxu0 0.0
        %370 = vmatpush1.msra.mxu0 0.0
        %371 = vmatprep.subr.mxu0 0.0
        %372 = vmatpush1.msra.mxu0 0.0
        %373 = vmatprep.subr.mxu0 0.0
        %374 = vmatpush1.msra.mxu0 0.0
        %375 = vmatprep.subr.mxu0 0.0
        %376 = vmatpush1.msra.mxu0 0.0
        %377 = vmatprep.subr.mxu0 0.0
        %378 = vmatpush1.msra.mxu0 0.0
        %379 = vmatprep.subr.mxu0 0.0
        %380 = vmatpush1.msra.mxu0 0.0
        %381 = vmatprep.subr.mxu0 0.0
        %382 = vmatpush1.msra.mxu0 0.0
        %383 = vmatprep.subr.mxu0 0.0
        %384 = vmatpush1.msra.mxu0 0.0
        %385 = vmatprep.subr.mxu0 0.0
        %386 = vmatpush1.msra.mxu0 0.0
        %387 = vmatprep.subr.mxu0 0.0
        %388 = vmatpush1.msra.mxu0 0.0
        %389 = vmatprep.subr.mxu0 0.0
        %390 = vmatpush1.msra.mxu0 0.0
        %391 = vmatprep.subr.mxu0 0.0
        %392 = vmatpush1.msra.mxu0 0.0
        %393 = vmatprep.subr.mxu0 0.0
        %394 = vmatpush1.msra.mxu0 0.0
        %395 = vmatprep.subr.mxu0 0.0
        %396 = vmatpush1.msra.mxu0 0.0
        %397 = vmatprep.subr.mxu0 0.0
        %398 = vmatpush1.msra.mxu0 0.0
        %399 = vmatprep.subr.mxu0 0.0
        %400 = vmatpush1.msra.mxu0 0.0
        %401 = vmatprep.subr.mxu0 0.0
        %402 = vmatpush1.msra.mxu0 0.0
        %403 = vmatprep.subr.mxu0 0.0
        %404 = vmatpush1.msra.mxu0 0.0
        %405 = vmatprep.mubr.f32.mxu0 0.0
        %406 = vmatmul.mubr.f32.gmra.mrb[0].mxu0 %v339
        %v407 = vpop.f32.mrb[0].mxu0
        %v408 = vadd.f32 0.0, %v407
        %v409 = vpop.f32.mrb[0].mxu0
        %410 = vdwg.mxu0
        %v412 = vsel %vm88, %v44, 0
        %v415 = vsel %vm88, %v45, 0
        %417 = vmatprep.subr.mxu0 0.0
        %418 = vmatpush1.msra.mxu0 %v316
        %419 = vmatprep.subr.mxu0 0.0
        %420 = vmatpush1.msra.mxu0 %v321
        %421 = vmatprep.subr.mxu0 0.0
        %422 = vmatpush1.msra.mxu0 0.0
        %423 = vmatprep.subr.mxu0 0.0
        %424 = vmatpush1.msra.mxu0 0.0
        %425 = vmatprep.subr.mxu0 0.0
        %426 = vmatpush1.msra.mxu0 0.0
        %427 = vmatprep.subr.mxu0 0.0
        %428 = vmatpush1.msra.mxu0 0.0
        %429 = vmatprep.subr.mxu0 0.0
        %430 = vmatpush1.msra.mxu0 0.0
        %431 = vmatprep.subr.mxu0 0.0
        %432 = vmatpush1.msra.mxu0 0.0
        %433 = vmatprep.subr.mxu0 0.0
        %434 = vmatpush1.msra.mxu0 0.0
        %435 = vmatprep.subr.mxu0 0.0
        %436 = vmatpush1.msra.mxu0 0.0
        %437 = vmatprep.subr.mxu0 0.0
        %438 = vmatpush1.msra.mxu0 0.0
        %439 = vmatprep.subr.mxu0 0.0
        %440 = vmatpush1.msra.mxu0 0.0
        %441 = vmatprep.subr.mxu0 0.0
        %442 = vmatpush1.msra.mxu0 0.0
        %443 = vmatprep.subr.mxu0 0.0
        %444 = vmatpush1.msra.mxu0 0.0
        %445 = vmatprep.subr.mxu0 0.0
        %446 = vmatpush1.msra.mxu0 0.0
        %447 = vmatprep.subr.mxu0 0.0
        %448 = vmatpush1.msra.mxu0 0.0
        %449 = vmatprep.subr.mxu0 0.0
        %450 = vmatpush1.msra.mxu0 0.0
        %451 = vmatprep.subr.mxu0 0.0
        %452 = vmatpush1.msra.mxu0 0.0
        %453 = vmatprep.subr.mxu0 0.0
        %454 = vmatpush1.msra.mxu0 0.0
        %455 = vmatprep.subr.mxu0 0.0
        %456 = vmatpush1.msra.mxu0 0.0
        %457 = vmatprep.subr.mxu0 0.0
        %458 = vmatpush1.msra.mxu0 0.0
        %459 = vmatprep.subr.mxu0 0.0
        %460 = vmatpush1.msra.mxu0 0.0
        %461 = vmatprep.subr.mxu0 0.0
        %462 = vmatpush1.msra.mxu0 0.0
        %463 = vmatprep.subr.mxu0 0.0
        %464 = vmatpush1.msra.mxu0 0.0
        %465 = vmatprep.subr.mxu0 0.0
        %466 = vmatpush1.msra.mxu0 0.0
        %467 = vmatprep.subr.mxu0 0.0
        %468 = vmatpush1.msra.mxu0 0.0
        %469 = vmatprep.subr.mxu0 0.0
        %470 = vmatpush1.msra.mxu0 0.0
        %471 = vmatprep.subr.mxu0 0.0
        %472 = vmatpush1.msra.mxu0 0.0
        %473 = vmatprep.subr.mxu0 0.0
        %474 = vmatpush1.msra.mxu0 0.0
        %475 = vmatprep.subr.mxu0 0.0
        %476 = vmatpush1.msra.mxu0 0.0
        %477 = vmatprep.subr.mxu0 0.0
        %478 = vmatpush1.msra.mxu0 0.0
        %479 = vmatprep.subr.mxu0 0.0
        %480 = vmatpush1.msra.mxu0 0.0
        %481 = vmatprep.mubr.f32.mxu0 0.0
        %482 = vmatmul.mubr.f32.gmra.mrb[0].mxu0 %v412
        %v483 = vpop.f32.mrb[0].mxu0
        %v484 = vadd.f32 0.0, %v483
        %v485 = vpop.f32.mrb[0].mxu0
        %486 = vmatprep.mubr.f32.mxu0 0.0
        %487 = vmatmul.mubr.f32.gmra.mrb[0].mxu0 %v415
        %v488 = vpop.f32.mrb[0].mxu0
        %v489 = vadd.f32 0.0, %v488
        %v490 = vpop.f32.mrb[0].mxu0
        %491 = vdwg.mxu0
        %v493 = vsel %vm88, %v484, 0
        %v496 = vsel %vm88, %v489, 0
        %498 = vmatprep.subr.mxu0 0.0
        %499 = vmatpush1.msra.mxu0 %v46
        %500 = vmatprep.subr.mxu0 0.0
        %501 = vmatpush1.msra.mxu0 %v47
        %502 = vmatprep.subr.mxu0 0.0
        %503 = vmatpush1.msra.mxu0 0.0
        %504 = vmatprep.subr.mxu0 0.0
        %505 = vmatpush1.msra.mxu0 0.0
        %506 = vmatprep.subr.mxu0 0.0
        %507 = vmatpush1.msra.mxu0 0.0
        %508 = vmatprep.subr.mxu0 0.0
        %509 = vmatpush1.msra.mxu0 0.0
        %510 = vmatprep.subr.mxu0 0.0
        %511 = vmatpush1.msra.mxu0 0.0
        %512 = vmatprep.subr.mxu0 0.0
        %513 = vmatpush1.msra.mxu0 0.0
        %514 = vmatprep.subr.mxu0 0.0
        %515 = vmatpush1.msra.mxu0 0.0
        %516 = vmatprep.subr.mxu0 0.0
        %517 = vmatpush1.msra.mxu0 0.0
        %518 = vmatprep.subr.mxu0 0.0
        %519 = vmatpush1.msra.mxu0 0.0
        %520 = vmatprep.subr.mxu0 0.0
        %521 = vmatpush1.msra.mxu0 0.0
        %522 = vmatprep.subr.mxu0 0.0
        %523 = vmatpush1.msra.mxu0 0.0
        %524 = vmatprep.subr.mxu0 0.0
        %525 = vmatpush1.msra.mxu0 0.0
        %526 = vmatprep.subr.mxu0 0.0
        %527 = vmatpush1.msra.mxu0 0.0
        %528 = vmatprep.subr.mxu0 0.0
        %529 = vmatpush1.msra.mxu0 0.0
        %530 = vmatprep.subr.mxu0 0.0
        %531 = vmatpush1.msra.mxu0 0.0
        %532 = vmatprep.subr.mxu0 0.0
        %533 = vmatpush1.msra.mxu0 0.0
        %534 = vmatprep.subr.mxu0 0.0
        %535 = vmatpush1.msra.mxu0 0.0
        %536 = vmatprep.subr.mxu0 0.0
        %537 = vmatpush1.msra.mxu0 0.0
        %538 = vmatprep.subr.mxu0 0.0
        %539 = vmatpush1.msra.mxu0 0.0
        %540 = vmatprep.subr.mxu0 0.0
        %541 = vmatpush1.msra.mxu0 0.0
        %542 = vmatprep.subr.mxu0 0.0
        %543 = vmatpush1.msra.mxu0 0.0
        %544 = vmatprep.subr.mxu0 0.0
        %545 = vmatpush1.msra.mxu0 0.0
        %546 = vmatprep.subr.mxu0 0.0
        %547 = vmatpush1.msra.mxu0 0.0
        %548 = vmatprep.subr.mxu0 0.0
        %549 = vmatpush1.msra.mxu0 0.0
        %550 = vmatprep.subr.mxu0 0.0
        %551 = vmatpush1.msra.mxu0 0.0
        %552 = vmatprep.subr.mxu0 0.0
        %553 = vmatpush1.msra.mxu0 0.0
        %554 = vmatprep.subr.mxu0 0.0
        %555 = vmatpush1.msra.mxu0 0.0
        %556 = vmatprep.subr.mxu0 0.0
        %557 = vmatpush1.msra.mxu0 0.0
        %558 = vmatprep.subr.mxu0 0.0
        %559 = vmatpush1.msra.mxu0 0.0
        %560 = vmatprep.subr.mxu0 0.0
        %561 = vmatpush1.msra.mxu0 0.0
        %562 = vmatprep.mubr.f32.mxu0 0.0
        %563 = vmatmul.mubr.f32.gmra.mrb[0].mxu0 %v493
        %v564 = vpop.f32.mrb[0].mxu0
        %v565 = vadd.f32 %v48, %v564
        %v566 = vpop.f32.mrb[0].mxu0
        %567 = vmatprep.mubr.f32.mxu0 0.0
        %568 = vmatmul.mubr.f32.gmra.mrb[0].mxu0 %v496
        %v569 = vpop.f32.mrb[0].mxu0
        %v570 = vadd.f32 %v49, %v569
        %v571 = vpop.f32.mrb[0].mxu0
        %572 = vdwg.mxu0
        %v573 = vlaneseq
        %v574 = vshrl.u32 %v573, 7
        %v575 = vadd.s32 %v574, 8
        %v576 = vlaneseq
        %v577 = vand.u32 %v576, 127
        loop: start=0, step=1, limit=16
        $region53: #{_rcgp_forward.10} parent=51 // loop_pre_header
          _
        $region54: #{_rcgp_forward.10} parent=51 // loop_header
          %s579 = sphi 0, %s583
          %p580 = scmp.ge.s32.totalorder %s579, 16
          %v584 = vphi %v565, %v886
          %v585 = vphi %v570, %v887
          %v586 = vphi %v484, %v895
          %v587 = vphi %v489, %v896
        $region55: #{_rcgp_forward.10} parent=51 // loop_header_branch
          %582 = sbr.rel (%p580) target = $region59
        $region56: #{_rcgp_forward.10} parent=51 // loop_body
          %v588 = vstv %s579
          %vm589 = vcmp.eq.s32.totalorder %v574, %v588
          %vm590 = vcmp.eq.s32.totalorder %v575, %v588
          %v591 = vsel %vm589, 1, 0
          %v592 = vsel %vm590, 1, 0
          %v593 = vcvt.s32.f32 %v591
          %v594 = vcvt.s32.f32 %v592
          %595 = vxpose.xlu0.b32.start [1/16] %v593, 128
          %596 = vxpose.xlu0.b32.cont [2/16] %v594, 128
          %597 = vxpose.xlu0.b32.cont [3/16] 0.0, 128
          %598 = vxpose.xlu0.b32.cont [4/16] 0.0, 128
          %599 = vxpose.xlu0.b32.cont [5/16] 0.0, 128
          %600 = vxpose.xlu0.b32.cont [6/16] 0.0, 128
          %601 = vxpose.xlu0.b32.cont [7/16] 0.0, 128
          %602 = vxpose.xlu0.b32.cont [8/16] 0.0, 128
          %603 = vxpose.xlu0.b32.cont [9/16] 0.0, 128
          %604 = vxpose.xlu0.b32.cont [10/16] 0.0, 128
          %605 = vxpose.xlu0.b32.cont [11/16] 0.0, 128
          %606 = vxpose.xlu0.b32.cont [12/16] 0.0, 128
          %607 = vxpose.xlu0.b32.cont [13/16] 0.0, 128
          %608 = vxpose.xlu0.b32.cont [14/16] 0.0, 128
          %609 = vxpose.xlu0.b32.cont [15/16] 0.0, 128
          %610 = vxpose.xlu0.b32.end [16/16] 0.0, 128
          %v611 = vpop.trf.xlu0
          %v612 = vpop.trf.xlu0
          %v613 = vpop.trf.xlu0
          %v614 = vpop.trf.xlu0
          %v615 = vpop.trf.xlu0
          %v616 = vpop.trf.xlu0
          %v617 = vpop.trf.xlu0
          %v618 = vpop.trf.xlu0
          %v619 = vpop.trf.xlu0
          %v620 = vpop.trf.xlu0
          %v621 = vpop.trf.xlu0
          %v622 = vpop.trf.xlu0
          %v623 = vpop.trf.xlu0
          %v624 = vpop.trf.xlu0
          %v625 = vpop.trf.xlu0
          %v626 = vpop.trf.xlu0
          %v628 = vsel %vm88, %v611, 0
          %630 = vmatprep.subr.mxu0 0.0
          %631 = vmatpush1.msra.mxu0 %v584
          %632 = vmatprep.subr.mxu0 0.0
          %633 = vmatpush1.msra.mxu0 %v585
          %634 = vmatprep.subr.mxu0 0.0
          %635 = vmatpush1.msra.mxu0 0.0
          %636 = vmatprep.subr.mxu0 0.0
          %637 = vmatpush1.msra.mxu0 0.0
          %638 = vmatprep.subr.mxu0 0.0
          %639 = vmatpush1.msra.mxu0 0.0
          %640 = vmatprep.subr.mxu0 0.0
          %641 = vmatpush1.msra.mxu0 0.0
          %642 = vmatprep.subr.mxu0 0.0
          %643 = vmatpush1.msra.mxu0 0.0
          %644 = vmatprep.subr.mxu0 0.0
          %645 = vmatpush1.msra.mxu0 0.0
          %646 = vmatprep.subr.mxu0 0.0
          %647 = vmatpush1.msra.mxu0 0.0
          %648 = vmatprep.subr.mxu0 0.0
          %649 = vmatpush1.msra.mxu0 0.0
          %650 = vmatprep.subr.mxu0 0.0
          %651 = vmatpush1.msra.mxu0 0.0
          %652 = vmatprep.subr.mxu0 0.0
          %653 = vmatpush1.msra.mxu0 0.0
          %654 = vmatprep.subr.mxu0 0.0
          %655 = vmatpush1.msra.mxu0 0.0
          %656 = vmatprep.subr.mxu0 0.0
          %657 = vmatpush1.msra.mxu0 0.0
          %658 = vmatprep.subr.mxu0 0.0
          %659 = vmatpush1.msra.mxu0 0.0
          %660 = vmatprep.subr.mxu0 0.0
          %661 = vmatpush1.msra.mxu0 0.0
          %662 = vmatprep.subr.mxu0 0.0
          %663 = vmatpush1.msra.mxu0 0.0
          %664 = vmatprep.subr.mxu0 0.0
          %665 = vmatpush1.msra.mxu0 0.0
          %666 = vmatprep.subr.mxu0 0.0
          %667 = vmatpush1.msra.mxu0 0.0
          %668 = vmatprep.subr.mxu0 0.0
          %669 = vmatpush1.msra.mxu0 0.0
          %670 = vmatprep.subr.mxu0 0.0
          %671 = vmatpush1.msra.mxu0 0.0
          %672 = vmatprep.subr.mxu0 0.0
          %673 = vmatpush1.msra.mxu0 0.0
          %674 = vmatprep.subr.mxu0 0.0
          %675 = vmatpush1.msra.mxu0 0.0
          %676 = vmatprep.subr.mxu0 0.0
          %677 = vmatpush1.msra.mxu0 0.0
          %678 = vmatprep.subr.mxu0 0.0
          %679 = vmatpush1.msra.mxu0 0.0
          %680 = vmatprep.subr.mxu0 0.0
          %681 = vmatpush1.msra.mxu0 0.0
          %682 = vmatprep.subr.mxu0 0.0
          %683 = vmatpush1.msra.mxu0 0.0
          %684 = vmatprep.subr.mxu0 0.0
          %685 = vmatpush1.msra.mxu0 0.0
          %686 = vmatprep.subr.mxu0 0.0
          %687 = vmatpush1.msra.mxu0 0.0
          %688 = vmatprep.subr.mxu0 0.0
          %689 = vmatpush1.msra.mxu0 0.0
          %690 = vmatprep.subr.mxu0 0.0
          %691 = vmatpush1.msra.mxu0 0.0
          %692 = vmatprep.subr.mxu0 0.0
          %693 = vmatpush1.msra.mxu0 0.0
          %694 = vmatprep.mubr.f32.mxu0 0.0
          %695 = vmatmul.mubr.f32.gmra.mrb[0].mxu0 %v628
          %v696 = vpop.f32.mrb[0].mxu0
          %v697 = vadd.f32 0.0, %v696
          %v698 = vpop.f32.mrb[0].mxu0
          %699 = vdwg.mxu0
          %700 = vmatprep.subr.mxu0 0.0
          %701 = vmatpush1.msra.mxu0 %v586
          %702 = vmatprep.subr.mxu0 0.0
          %703 = vmatpush1.msra.mxu0 %v587
          %704 = vmatprep.subr.mxu0 0.0
          %705 = vmatpush1.msra.mxu0 0.0
          %706 = vmatprep.subr.mxu0 0.0
          %707 = vmatpush1.msra.mxu0 0.0
          %708 = vmatprep.subr.mxu0 0.0
          %709 = vmatpush1.msra.mxu0 0.0
          %710 = vmatprep.subr.mxu0 0.0
          %711 = vmatpush1.msra.mxu0 0.0
          %712 = vmatprep.subr.mxu0 0.0
          %713 = vmatpush1.msra.mxu0 0.0
          %714 = vmatprep.subr.mxu0 0.0
          %715 = vmatpush1.msra.mxu0 0.0
          %716 = vmatprep.subr.mxu0 0.0
          %717 = vmatpush1.msra.mxu0 0.0
          %718 = vmatprep.subr.mxu0 0.0
          %719 = vmatpush1.msra.mxu0 0.0
          %720 = vmatprep.subr.mxu0 0.0
          %721 = vmatpush1.msra.mxu0 0.0
          %722 = vmatprep.subr.mxu0 0.0
          %723 = vmatpush1.msra.mxu0 0.0
          %724 = vmatprep.subr.mxu0 0.0
          %725 = vmatpush1.msra.mxu0 0.0
          %726 = vmatprep.subr.mxu0 0.0
          %727 = vmatpush1.msra.mxu0 0.0
          %728 = vmatprep.subr.mxu0 0.0
          %729 = vmatpush1.msra.mxu0 0.0
          %730 = vmatprep.subr.mxu0 0.0
          %731 = vmatpush1.msra.mxu0 0.0
          %732 = vmatprep.subr.mxu0 0.0
          %733 = vmatpush1.msra.mxu0 0.0
          %734 = vmatprep.subr.mxu0 0.0
          %735 = vmatpush1.msra.mxu0 0.0
          %736 = vmatprep.subr.mxu0 0.0
          %737 = vmatpush1.msra.mxu0 0.0
          %738 = vmatprep.subr.mxu0 0.0
          %739 = vmatpush1.msra.mxu0 0.0
          %740 = vmatprep.subr.mxu0 0.0
          %741 = vmatpush1.msra.mxu0 0.0
          %742 = vmatprep.subr.mxu0 0.0
          %743 = vmatpush1.msra.mxu0 0.0
          %744 = vmatprep.subr.mxu0 0.0
          %745 = vmatpush1.msra.mxu0 0.0
          %746 = vmatprep.subr.mxu0 0.0
          %747 = vmatpush1.msra.mxu0 0.0
          %748 = vmatprep.subr.mxu0 0.0
          %749 = vmatpush1.msra.mxu0 0.0
          %750 = vmatprep.subr.mxu0 0.0
          %751 = vmatpush1.msra.mxu0 0.0
          %752 = vmatprep.subr.mxu0 0.0
          %753 = vmatpush1.msra.mxu0 0.0
          %754 = vmatprep.subr.mxu0 0.0
          %755 = vmatpush1.msra.mxu0 0.0
          %756 = vmatprep.subr.mxu0 0.0
          %757 = vmatpush1.msra.mxu0 0.0
          %758 = vmatprep.subr.mxu0 0.0
          %759 = vmatpush1.msra.mxu0 0.0
          %760 = vmatprep.subr.mxu0 0.0
          %761 = vmatpush1.msra.mxu0 0.0
          %762 = vmatprep.subr.mxu0 0.0
          %763 = vmatpush1.msra.mxu0 0.0
          %764 = vmatprep.mubr.f32.mxu0 0.0
          %765 = vmatmul.mubr.f32.gmra.mrb[0].mxu0 %v628
          %v766 = vpop.f32.mrb[0].mxu0
          %v767 = vadd.f32 0.0, %v766
          %v768 = vpop.f32.mrb[0].mxu0
          %769 = vdwg.mxu0
          %v771 = vsel %vm88, %v584, 0
          %v774 = vsel %vm88, %v585, 0
          %776 = vmatprep.subr.mxu0 0.0
          %777 = vmatpush1.msra.mxu0 %v593
          %778 = vmatprep.subr.mxu0 0.0
          %779 = vmatpush1.msra.mxu0 %v594
          %780 = vmatprep.subr.mxu0 0.0
          %781 = vmatpush1.msra.mxu0 0.0
          %782 = vmatprep.subr.mxu0 0.0
          %783 = vmatpush1.msra.mxu0 0.0
          %784 = vmatprep.subr.mxu0 0.0
          %785 = vmatpush1.msra.mxu0 0.0
          %786 = vmatprep.subr.mxu0 0.0
          %787 = vmatpush1.msra.mxu0 0.0
          %788 = vmatprep.subr.mxu0 0.0
          %789 = vmatpush1.msra.mxu0 0.0
          %790 = vmatprep.subr.mxu0 0.0
          %791 = vmatpush1.msra.mxu0 0.0
          %792 = vmatprep.subr.mxu0 0.0
          %793 = vmatpush1.msra.mxu0 0.0
          %794 = vmatprep.subr.mxu0 0.0
          %795 = vmatpush1.msra.mxu0 0.0
          %796 = vmatprep.subr.mxu0 0.0
          %797 = vmatpush1.msra.mxu0 0.0
          %798 = vmatprep.subr.mxu0 0.0
          %799 = vmatpush1.msra.mxu0 0.0
          %800 = vmatprep.subr.mxu0 0.0
          %801 = vmatpush1.msra.mxu0 0.0
          %802 = vmatprep.subr.mxu0 0.0
          %803 = vmatpush1.msra.mxu0 0.0
          %804 = vmatprep.subr.mxu0 0.0
          %805 = vmatpush1.msra.mxu0 0.0
          %806 = vmatprep.subr.mxu0 0.0
          %807 = vmatpush1.msra.mxu0 0.0
          %808 = vmatprep.subr.mxu0 0.0
          %809 = vmatpush1.msra.mxu0 0.0
          %810 = vmatprep.subr.mxu0 0.0
          %811 = vmatpush1.msra.mxu0 0.0
          %812 = vmatprep.subr.mxu0 0.0
          %813 = vmatpush1.msra.mxu0 0.0
          %814 = vmatprep.subr.mxu0 0.0
          %815 = vmatpush1.msra.mxu0 0.0
          %816 = vmatprep.subr.mxu0 0.0
          %817 = vmatpush1.msra.mxu0 0.0
          %818 = vmatprep.subr.mxu0 0.0
          %819 = vmatpush1.msra.mxu0 0.0
          %820 = vmatprep.subr.mxu0 0.0
          %821 = vmatpush1.msra.mxu0 0.0
          %822 = vmatprep.subr.mxu0 0.0
          %823 = vmatpush1.msra.mxu0 0.0
          %824 = vmatprep.subr.mxu0 0.0
          %825 = vmatpush1.msra.mxu0 0.0
          %826 = vmatprep.subr.mxu0 0.0
          %827 = vmatpush1.msra.mxu0 0.0
          %828 = vmatprep.subr.mxu0 0.0
          %829 = vmatpush1.msra.mxu0 0.0
          %830 = vmatprep.subr.mxu0 0.0
          %831 = vmatpush1.msra.mxu0 0.0
          %832 = vmatprep.subr.mxu0 0.0
          %833 = vmatpush1.msra.mxu0 0.0
          %834 = vmatprep.subr.mxu0 0.0
          %835 = vmatpush1.msra.mxu0 0.0
          %836 = vmatprep.subr.mxu0 0.0
          %837 = vmatpush1.msra.mxu0 0.0
          %838 = vmatprep.subr.mxu0 0.0
          %839 = vmatpush1.msra.mxu0 0.0
          %840 = vmatprep.mubr.f32.mxu0 0.0
          %841 = vmatmul.mubr.f32.gmra.mrb[0].mxu0 %v771
          %v842 = vpop.f32.mrb[0].mxu0
          %v843 = vadd.f32 0.0, %v842
          %v844 = vpop.f32.mrb[0].mxu0
          %845 = vmatprep.mubr.f32.mxu0 0.0
          %846 = vmatmul.mubr.f32.gmra.mrb[0].mxu0 %v774
          %v847 = vpop.f32.mrb[0].mxu0
          %v848 = vadd.f32 0.0, %v847
          %v849 = vpop.f32.mrb[0].mxu0
          %850 = vdwg.mxu0
          %vm851 = vcmp.eq.s32.totalorder %v577, %v588
          %v852 = vsel %vm851, %v697, 0.0
          %v853 = vsel %vm325, %v852, 0.0
          %854 = vadd.xlane.f32.xlu0 %v853
          %v855 = vpop.xlane.xlu0 %854
          %v856 = vrot.slane %v855, 4
          %v857 = vadd.f32 %v855, %v856
          %v858 = vrot.slane %v857, 2
          %v859 = vadd.f32 %v857, %v858
          %v860 = vrot.slane %v859, 1
          %v861 = vadd.f32 %v859, %v860
          %s862 = vtos %v861
          %v863 = vstv %s862
          %v864 = vrcp.pop %v863
          %s865 = vtos %v864
          %v866 = vsub.f32 %v843, %v593
          %v867 = vsub.f32 %v848, %v594
          %v868 = vstv %s865
          %v869 = vmul.f32 %v697, %v868
          %871 = vset.pattern.permute.xlu0 0
          %872 = vperm.xlu0 %871, %v866
          %v873 = vpop.permute.xlu0 %872
          %876 = vset.pattern.permute.xlu0 0
          %877 = vperm.xlu0 %876, %v867
          %v878 = vpop.permute.xlu0 %877
          %v880 = vlaneseq
          %v881 = vshrl.u32 %v880, 7
          %v882 = vsub.s32 0, %v881
          %v883 = vrot.slane %v869, %v882
          %v884 = vmul.f32 %v873, %v883
          %v885 = vmul.f32 %v878, %v883
          %v886 = vsub.f32 %v584, %v884
          %v887 = vsub.f32 %v585, %v885
          %v888 = vmul.f32 %v767, %v868
          %v889 = vlaneseq
          %v890 = vshrl.u32 %v889, 7
          %v891 = vsub.s32 0, %v890
          %v892 = vrot.slane %v888, %v891
          %v893 = vmul.f32 %v873, %v892
          %v894 = vmul.f32 %v878, %v892
          %v895 = vsub.f32 %v586, %v893
          %v896 = vsub.f32 %v587, %v894
        $region57: #{_rcgp_forward.10} parent=51 // loop_footer
          %s583 = sadd.s32 1, %s579
        $region58: #{_rcgp_forward.10} parent=51 // loop_footer_branch
          %578 = sbr.rel target = $region54
        $region59: #{_rcgp_forward.10} parent=51 // loop_exit
          _
        %v897 = vsub.f32 %v337, %v408
        %v899 = vsel %vm88, %v897, 0
        %901 = vmatprep.subr.mxu0 0.0
        %902 = vmatpush1.msra.mxu0 %v586
        %903 = vmatprep.subr.mxu0 0.0
        %904 = vmatpush1.msra.mxu0 %v587
        %905 = vmatprep.subr.mxu0 0.0
        %906 = vmatpush1.msra.mxu0 0.0
        %907 = vmatprep.subr.mxu0 0.0
        %908 = vmatpush1.msra.mxu0 0.0
        %909 = vmatprep.subr.mxu0 0.0
        %910 = vmatpush1.msra.mxu0 0.0
        %911 = vmatprep.subr.mxu0 0.0
        %912 = vmatpush1.msra.mxu0 0.0
        %913 = vmatprep.subr.mxu0 0.0
        %914 = vmatpush1.msra.mxu0 0.0
        %915 = vmatprep.subr.mxu0 0.0
        %916 = vmatpush1.msra.mxu0 0.0
        %917 = vmatprep.subr.mxu0 0.0
        %918 = vmatpush1.msra.mxu0 0.0
        %919 = vmatprep.subr.mxu0 0.0
        %920 = vmatpush1.msra.mxu0 0.0
        %921 = vmatprep.subr.mxu0 0.0
        %922 = vmatpush1.msra.mxu0 0.0
        %923 = vmatprep.subr.mxu0 0.0
        %924 = vmatpush1.msra.mxu0 0.0
        %925 = vmatprep.subr.mxu0 0.0
        %926 = vmatpush1.msra.mxu0 0.0
        %927 = vmatprep.subr.mxu0 0.0
        %928 = vmatpush1.msra.mxu0 0.0
        %929 = vmatprep.subr.mxu0 0.0
        %930 = vmatpush1.msra.mxu0 0.0
        %931 = vmatprep.subr.mxu0 0.0
        %932 = vmatpush1.msra.mxu0 0.0
        %933 = vmatprep.subr.mxu0 0.0
        %934 = vmatpush1.msra.mxu0 0.0
        %935 = vmatprep.subr.mxu0 0.0
        %936 = vmatpush1.msra.mxu0 0.0
        %937 = vmatprep.subr.mxu0 0.0
        %938 = vmatpush1.msra.mxu0 0.0
        %939 = vmatprep.subr.mxu0 0.0
        %940 = vmatpush1.msra.mxu0 0.0
        %941 = vmatprep.subr.mxu0 0.0
        %942 = vmatpush1.msra.mxu0 0.0
        %943 = vmatprep.subr.mxu0 0.0
        %944 = vmatpush1.msra.mxu0 0.0
        %945 = vmatprep.subr.mxu0 0.0
        %946 = vmatpush1.msra.mxu0 0.0
        %947 = vmatprep.subr.mxu0 0.0
        %948 = vmatpush1.msra.mxu0 0.0
        %949 = vmatprep.subr.mxu0 0.0
        %950 = vmatpush1.msra.mxu0 0.0
        %951 = vmatprep.subr.mxu0 0.0
        %952 = vmatpush1.msra.mxu0 0.0
        %953 = vmatprep.subr.mxu0 0.0
        %954 = vmatpush1.msra.mxu0 0.0
        %955 = vmatprep.subr.mxu0 0.0
        %956 = vmatpush1.msra.mxu0 0.0
        %957 = vmatprep.subr.mxu0 0.0
        %958 = vmatpush1.msra.mxu0 0.0
        %959 = vmatprep.subr.mxu0 0.0
        %960 = vmatpush1.msra.mxu0 0.0
        %961 = vmatprep.subr.mxu0 0.0
        %962 = vmatpush1.msra.mxu0 0.0
        %963 = vmatprep.subr.mxu0 0.0
        %964 = vmatpush1.msra.mxu0 0.0
        %965 = vmatprep.mubr.f32.mxu0 0.0
        %966 = vmatmul.mubr.f32.gmra.mrb[0].mxu0 %v899
        %v967 = vpop.f32.mrb[0].mxu0
        %v968 = vadd.f32 0.0, %v967
        %v969 = vpop.f32.mrb[0].mxu0
        %970 = vdwg.mxu0
        %v971 = vadd.f32 %v165, %v968
        %972 = vxpose.xlu0.b32.start [1/16] %v484, 128
        %973 = vxpose.xlu0.b32.cont [2/16] %v489, 128
        %974 = vxpose.xlu0.b32.cont [3/16] 0.0, 128
        %975 = vxpose.xlu0.b32.cont [4/16] 0.0, 128
        %976 = vxpose.xlu0.b32.cont [5/16] 0.0, 128
        %977 = vxpose.xlu0.b32.cont [6/16] 0.0, 128
        %978 = vxpose.xlu0.b32.cont [7/16] 0.0, 128
        %979 = vxpose.xlu0.b32.cont [8/16] 0.0, 128
        %980 = vxpose.xlu0.b32.cont [9/16] 0.0, 128
        %981 = vxpose.xlu0.b32.cont [10/16] 0.0, 128
        %982 = vxpose.xlu0.b32.cont [11/16] 0.0, 128
        %983 = vxpose.xlu0.b32.cont [12/16] 0.0, 128
        %984 = vxpose.xlu0.b32.cont [13/16] 0.0, 128
        %985 = vxpose.xlu0.b32.cont [14/16] 0.0, 128
        %986 = vxpose.xlu0.b32.cont [15/16] 0.0, 128
        %987 = vxpose.xlu0.b32.end [16/16] 0.0, 128
        %v988 = vpop.trf.xlu0
        %v989 = vpop.trf.xlu0
        %v990 = vpop.trf.xlu0
        %v991 = vpop.trf.xlu0
        %v992 = vpop.trf.xlu0
        %v993 = vpop.trf.xlu0
        %v994 = vpop.trf.xlu0
        %v995 = vpop.trf.xlu0
        %v996 = vpop.trf.xlu0
        %v997 = vpop.trf.xlu0
        %v998 = vpop.trf.xlu0
        %v999 = vpop.trf.xlu0
        %v1000 = vpop.trf.xlu0
        %v1001 = vpop.trf.xlu0
        %v1002 = vpop.trf.xlu0
        %v1003 = vpop.trf.xlu0
        %v1005 = vsel %vm88, %v988, 0
        %v1008 = vsel %vm88, %v989, 0
        %1010 = vmatprep.subr.mxu0 0.0
        %1011 = vmatpush1.msra.mxu0 %v586
        %1012 = vmatprep.subr.mxu0 0.0
        %1013 = vmatpush1.msra.mxu0 %v587
        %1014 = vmatprep.subr.mxu0 0.0
        %1015 = vmatpush1.msra.mxu0 0.0
        %1016 = vmatprep.subr.mxu0 0.0
        %1017 = vmatpush1.msra.mxu0 0.0
        %1018 = vmatprep.subr.mxu0 0.0
        %1019 = vmatpush1.msra.mxu0 0.0
        %1020 = vmatprep.subr.mxu0 0.0
        %1021 = vmatpush1.msra.mxu0 0.0
        %1022 = vmatprep.subr.mxu0 0.0
        %1023 = vmatpush1.msra.mxu0 0.0
        %1024 = vmatprep.subr.mxu0 0.0
        %1025 = vmatpush1.msra.mxu0 0.0
        %1026 = vmatprep.subr.mxu0 0.0
        %1027 = vmatpush1.msra.mxu0 0.0
        %1028 = vmatprep.subr.mxu0 0.0
        %1029 = vmatpush1.msra.mxu0 0.0
        %1030 = vmatprep.subr.mxu0 0.0
        %1031 = vmatpush1.msra.mxu0 0.0
        %1032 = vmatprep.subr.mxu0 0.0
        %1033 = vmatpush1.msra.mxu0 0.0
        %1034 = vmatprep.subr.mxu0 0.0
        %1035 = vmatpush1.msra.mxu0 0.0
        %1036 = vmatprep.subr.mxu0 0.0
        %1037 = vmatpush1.msra.mxu0 0.0
        %1038 = vmatprep.subr.mxu0 0.0
        %1039 = vmatpush1.msra.mxu0 0.0
        %1040 = vmatprep.subr.mxu0 0.0
        %1041 = vmatpush1.msra.mxu0 0.0
        %1042 = vmatprep.subr.mxu0 0.0
        %1043 = vmatpush1.msra.mxu0 0.0
        %1044 = vmatprep.subr.mxu0 0.0
        %1045 = vmatpush1.msra.mxu0 0.0
        %1046 = vmatprep.subr.mxu0 0.0
        %1047 = vmatpush1.msra.mxu0 0.0
        %1048 = vmatprep.subr.mxu0 0.0
        %1049 = vmatpush1.msra.mxu0 0.0
        %1050 = vmatprep.subr.mxu0 0.0
        %1051 = vmatpush1.msra.mxu0 0.0
        %1052 = vmatprep.subr.mxu0 0.0
        %1053 = vmatpush1.msra.mxu0 0.0
        %1054 = vmatprep.subr.mxu0 0.0
        %1055 = vmatpush1.msra.mxu0 0.0
        %1056 = vmatprep.subr.mxu0 0.0
        %1057 = vmatpush1.msra.mxu0 0.0
        %1058 = vmatprep.subr.mxu0 0.0
        %1059 = vmatpush1.msra.mxu0 0.0
        %1060 = vmatprep.subr.mxu0 0.0
        %1061 = vmatpush1.msra.mxu0 0.0
        %1062 = vmatprep.subr.mxu0 0.0
        %1063 = vmatpush1.msra.mxu0 0.0
        %1064 = vmatprep.subr.mxu0 0.0
        %1065 = vmatpush1.msra.mxu0 0.0
        %1066 = vmatprep.subr.mxu0 0.0
        %1067 = vmatpush1.msra.mxu0 0.0
        %1068 = vmatprep.subr.mxu0 0.0
        %1069 = vmatpush1.msra.mxu0 0.0
        %1070 = vmatprep.subr.mxu0 0.0
        %1071 = vmatpush1.msra.mxu0 0.0
        %1072 = vmatprep.subr.mxu0 0.0
        %1073 = vmatpush1.msra.mxu0 0.0
        %1074 = vmatprep.mubr.f32.mxu0 0.0
        %1075 = vmatmul.mubr.f32.gmra.mrb[0].mxu0 %v1005
        %v1076 = vpop.f32.mrb[0].mxu0
        %v1077 = vadd.f32 0.0, %v1076
        %v1078 = vpop.f32.mrb[0].mxu0
        %1079 = vmatprep.mubr.f32.mxu0 0.0
        %1080 = vmatmul.mubr.f32.gmra.mrb[0].mxu0 %v1008
        %v1081 = vpop.f32.mrb[0].mxu0
        %v1082 = vadd.f32 0.0, %v1081
        %v1083 = vpop.f32.mrb[0].mxu0
        %1084 = vdwg.mxu0
        %v1085 = vsub.f32 %v316, %v1077
        %v1086 = vsub.f32 %v321, %v1082
        %1087 = vxpose.xlu0.b32.start [1/16] %v1085, 128
        %1088 = vxpose.xlu0.b32.cont [2/16] %v1086, 128
        %1089 = vxpose.xlu0.b32.cont [3/16] 0.0, 128
        %1090 = vxpose.xlu0.b32.cont [4/16] 0.0, 128
        %1091 = vxpose.xlu0.b32.cont [5/16] 0.0, 128
        %1092 = vxpose.xlu0.b32.cont [6/16] 0.0, 128
        %1093 = vxpose.xlu0.b32.cont [7/16] 0.0, 128
        %1094 = vxpose.xlu0.b32.cont [8/16] 0.0, 128
        %1095 = vxpose.xlu0.b32.cont [9/16] 0.0, 128
        %1096 = vxpose.xlu0.b32.cont [10/16] 0.0, 128
        %1097 = vxpose.xlu0.b32.cont [11/16] 0.0, 128
        %1098 = vxpose.xlu0.b32.cont [12/16] 0.0, 128
        %1099 = vxpose.xlu0.b32.cont [13/16] 0.0, 128
        %1100 = vxpose.xlu0.b32.cont [14/16] 0.0, 128
        %1101 = vxpose.xlu0.b32.cont [15/16] 0.0, 128
        %1102 = vxpose.xlu0.b32.end [16/16] 0.0, 128
        %v1103 = vpop.trf.xlu0
        %v1104 = vpop.trf.xlu0
        %v1105 = vpop.trf.xlu0
        %v1106 = vpop.trf.xlu0
        %v1107 = vpop.trf.xlu0
        %v1108 = vpop.trf.xlu0
        %v1109 = vpop.trf.xlu0
        %v1110 = vpop.trf.xlu0
        %v1111 = vpop.trf.xlu0
        %v1112 = vpop.trf.xlu0
        %v1113 = vpop.trf.xlu0
        %v1114 = vpop.trf.xlu0
        %v1115 = vpop.trf.xlu0
        %v1116 = vpop.trf.xlu0
        %v1117 = vpop.trf.xlu0
        %v1118 = vpop.trf.xlu0
        %v1119 = vadd.f32 %v1085, %v1103
        %v1120 = vadd.f32 %v1086, %v1104
        %v1121 = vmul.f32 %v1119, 0.5
        %v1122 = vmul.f32 %v1120, 0.5
        %1123 = vst.msk [vmem:[#allocation2] sm:$0x1] %vm325, %v971
        %1124 = vst.msk [vmem:[#allocation3] sm:$0xff] %vm88, %v1121
        %1125 = vst.msk [vmem:[#allocation3 + $0x8] sm:$0xff] %vm88, %v1122
      $region52: #{_rcgp_forward.10} parent=47 // pred_fallthru
        _
      %p1126 = scmp.eq.s32.totalorder %s331, 0
      // Predicated region
      $region60: #{_rcgp_forward.10} parent=47 // pred_check
        %p1127 = pneg %p1126
      $region61: #{_rcgp_forward.10} parent=47 // pred_check_branch
        %1129 = sbr.rel (%p1127) target = $region63
      $region62: #{_rcgp_forward.10} parent=47 // pred_region
        %1130 = vst.msk [vmem:[#allocation2] sm:$0x1] %vm325, %v165
        %1131 = vst.msk [vmem:[#allocation3] sm:$0xff] %vm88, %v316
        %1132 = vst.msk [vmem:[#allocation3 + $0x8] sm:$0xff] %vm88, %v321
      $region63: #{_rcgp_forward.10} parent=47 // pred_fallthru
        _
      %v1133 = vld [vmem:[#allocation2] sm:$0x1]
      %s1134 = scalar_lea.vmem %s9, %s51
      %1135 = vst.msk [vmem:[%s1134] sm:$0x1] %vm325, %v1133
      %v1136 = vld [vmem:[#allocation3] sm:$0xff]
      %v1137 = vld [vmem:[#allocation3 + $0x8] sm:$0xff]
      %s1138 = scalar_lea.vmem %s10, %s327
      %1139 = vst.msk [vmem:[%s1138] sm:$0xff] %vm88, %v1136
      %1140 = vst.msk [vmem:[%s1138 + $0x8] sm:$0xff] %vm88, %v1137
    $region48: #{_rcgp_forward.10} parent=37 // pred_fallthru
      _
  $region38: #{_rcgp_forward.10} parent=0 // loop_footer
    %s55 = sadd.s32 1, %s51
  $region39: #{_rcgp_forward.10} parent=0 // loop_footer_branch
    %50 = sbr.rel target = $region35
  $region40: #{_rcgp_forward.10} parent=0 // loop_exit
    _
  // Predicated region
  $region64: #{_rcgp_forward.10} parent=0 // pred_check
    _
  $region65: #{_rcgp_forward.10} parent=0 // pred_check_branch
    %1142 = sbr.rel (0) target = $region67
  $region66: #{_rcgp_forward.10} parent=0 // pred_region
    _
  $region67: #{_rcgp_forward.10} parent=0 // pred_fallthru
    _
  // Predicated region
  $region68: #{_rcgp_forward.10} parent=0 // pred_check
    _
  $region69: #{_rcgp_forward.10} parent=0 // pred_check_branch
    %1144 = sbr.rel (0) target = $region71
  $region70: #{_rcgp_forward.10} parent=0 // pred_region
    _
  $region71: #{_rcgp_forward.10} parent=0 // pred_fallthru
    _
  // Predicated region
  $region72: #{_rcgp_forward.10} parent=0 // pred_check
    _
  $region73: #{_rcgp_forward.10} parent=0 // pred_check_branch
    %1146 = sbr.rel (0) target = $region75
  $region74: #{_rcgp_forward.10} parent=0 // pred_region
    _
  $region75: #{_rcgp_forward.10} parent=0 // pred_fallthru
    _
  // Predicated region
  $region76: #{_rcgp_forward.10} parent=0 // pred_check
    _
  $region77: #{_rcgp_forward.10} parent=0 // pred_check_branch
    %1148 = sbr.rel (0) target = $region79
  $region78: #{_rcgp_forward.10} parent=0 // pred_region
    _
  $region79: #{_rcgp_forward.10} parent=0 // pred_fallthru
    _
  // Predicated region
  $region80: #{_rcgp_forward.10} parent=0 // pred_check
    _
  $region81: #{_rcgp_forward.10} parent=0 // pred_check_branch
    %1150 = sbr.rel (0) target = $region83
  $region82: #{_rcgp_forward.10} parent=0 // pred_region
    _
  $region83: #{_rcgp_forward.10} parent=0 // pred_fallthru
    _
  // Predicated region
  $region84: #{_rcgp_forward.10} parent=0 // pred_check
    _
  $region85: #{_rcgp_forward.10} parent=0 // pred_check_branch
    %1152 = sbr.rel (0) target = $region87
  $region86: #{_rcgp_forward.10} parent=0 // pred_region
    _
  $region87: #{_rcgp_forward.10} parent=0 // pred_fallthru
    _
  // Predicated region
  $region88: #{_rcgp_forward.10} parent=0 // pred_check
    _
  $region89: #{_rcgp_forward.10} parent=0 // pred_check_branch
    %1154 = sbr.rel (0) target = $region91
  $region90: #{_rcgp_forward.10} parent=0 // pred_region
    _
  $region91: #{_rcgp_forward.10} parent=0 // pred_fallthru
    _
  // Predicated region
  $region92: #{_rcgp_forward.10} parent=0 // pred_check
    _
  $region93: #{_rcgp_forward.10} parent=0 // pred_check_branch
    %1156 = sbr.rel (0) target = $region95
  $region94: #{_rcgp_forward.10} parent=0 // pred_region
    _
  $region95: #{_rcgp_forward.10} parent=0 // pred_fallthru
    _

// kernel: _rcgp_forward.11
$region0: #{_rcgp_forward.11}
  #allocation0 [shape = 'u32[]', space=smem, size = 0x4, offset = 0x4, fixed_abs, tag = 'smem constant byte address 0x4 - core index']
  #allocation1 [shape = 'u32[144,128]{1,0:T(1,128)}', space=vmem, size = 0x12000, scoped, tag = 'internal scratch']
  #allocation2 [shape = 'f32[1,16]{1,0:T(1,128)}', space=vmem, size = 0x200, scoped, tag = 'scratch operand']
  #allocation3 [shape = 'f32[16,16]{1,0:T(8,128)}', space=vmem, size = 0x2000, scoped, tag = 'scratch operand']
  %s0 = inlined_call_operand.vmem [shape: f32[16,1,16], index: 0, kind: input, shape index: {}]
  %s1 = inlined_call_operand.vmem [shape: f32[16,16,16], index: 1, kind: input, shape index: {}]
  %s2 = inlined_call_operand.vmem [shape: f32[16,1,16], index: 2, kind: input, shape index: {}]
  %s3 = inlined_call_operand.vmem [shape: f32[16,16,16], index: 3, kind: input, shape index: {}]
  %s4 = inlined_call_operand.vmem [shape: f32[1,1,16], index: 4, kind: input, shape index: {}]
  %s5 = inlined_call_operand.vmem [shape: f32[1,16,16], index: 5, kind: input, shape index: {}]
  %s6 = inlined_call_operand.vmem [shape: f32[16,16], index: 6, kind: input, shape index: {}]
  %s7 = inlined_call_operand.vmem [shape: f32[16,1,16], index: 7, kind: output, shape index: {0}]
  %s8 = inlined_call_operand.vmem [shape: f32[16,16,16], index: 8, kind: output, shape index: {1}]
  %9 = xla_tuple %s7, %s8
  %s10 = sld [smem:[#allocation0]]
  $region68: #{_rcgp_forward.11} parent=0
    _
  %s12 = ssub.s32 1, %s10
  %s13 = scalar_select 0, %s12, %s10
  // Predicated region
  $region2: #{_rcgp_forward.11} parent=0 // pred_check
    _
  $region3: #{_rcgp_forward.11} parent=0 // pred_check_branch
    %15 = sbr.rel (0) target = $region5
  $region4: #{_rcgp_forward.11} parent=0 // pred_region
    %s16 = ssub.s32 0, 0
    %s17 = smul.u32 16, %s16
    %p18 = scmp.lt.s32.totalorder %s17, 15
    %s19 = scalar_select %p18, %s17, 15
    %s20 = scalar_lea.vmem %s0, %s19
    %s21 = ssub.s32 0, 0
    %s22 = smul.u32 16, %s21
  $region5: #{_rcgp_forward.11} parent=0 // pred_fallthru
    _
  // Predicated region
  $region6: #{_rcgp_forward.11} parent=0 // pred_check
    _
  $region7: #{_rcgp_forward.11} parent=0 // pred_check_branch
    %24 = sbr.rel (0) target = $region9
  $region8: #{_rcgp_forward.11} parent=0 // pred_region
    %s25 = ssub.s32 0, 0
    %s26 = smul.u32 16, %s25
    %p27 = scmp.lt.s32.totalorder %s26, 15
    %s28 = scalar_select %p27, %s26, 15
    %s29 = smul.addr %s28, 2
    %s30 = smul.addr %s29, 8
    %s31 = scalar_lea.vmem %s1, %s30
    %s32 = ssub.s32 0, 0
    %s33 = smul.u32 16, %s32
  $region9: #{_rcgp_forward.11} parent=0 // pred_fallthru
    _
  // Predicated region
  $region10: #{_rcgp_forward.11} parent=0 // pred_check
    _
  $region11: #{_rcgp_forward.11} parent=0 // pred_check_branch
    %35 = sbr.rel (0) target = $region13
  $region12: #{_rcgp_forward.11} parent=0 // pred_region
    %s36 = ssub.s32 0, 0
    %s37 = smul.u32 16, %s36
    %p38 = scmp.lt.s32.totalorder %s37, 15
    %s39 = scalar_select %p38, %s37, 15
    %s40 = scalar_lea.vmem %s2, %s39
    %s41 = ssub.s32 0, 0
    %s42 = smul.u32 16, %s41
  $region13: #{_rcgp_forward.11} parent=0 // pred_fallthru
    _
  // Predicated region
  $region14: #{_rcgp_forward.11} parent=0 // pred_check
    _
  $region15: #{_rcgp_forward.11} parent=0 // pred_check_branch
    %44 = sbr.rel (0) target = $region17
  $region16: #{_rcgp_forward.11} parent=0 // pred_region
    %s45 = ssub.s32 0, 0
    %s46 = smul.u32 16, %s45
    %p47 = scmp.lt.s32.totalorder %s46, 15
    %s48 = scalar_select %p47, %s46, 15
    %s49 = smul.addr %s48, 2
    %s50 = smul.addr %s49, 8
    %s51 = scalar_lea.vmem %s3, %s50
    %s52 = ssub.s32 0, 0
    %s53 = smul.u32 16, %s52
  $region17: #{_rcgp_forward.11} parent=0 // pred_fallthru
    _
  // Predicated region
  $region18: #{_rcgp_forward.11} parent=0 // pred_check
    _
  $region19: #{_rcgp_forward.11} parent=0 // pred_check_branch
    %55 = sbr.rel (0) target = $region21
  $region20: #{_rcgp_forward.11} parent=0 // pred_region
    _
  $region21: #{_rcgp_forward.11} parent=0 // pred_fallthru
    _
  // Predicated region
  $region22: #{_rcgp_forward.11} parent=0 // pred_check
    _
  $region23: #{_rcgp_forward.11} parent=0 // pred_check_branch
    %57 = sbr.rel (0) target = $region25
  $region24: #{_rcgp_forward.11} parent=0 // pred_region
    _
  $region25: #{_rcgp_forward.11} parent=0 // pred_fallthru
    _
  // Predicated region
  $region26: #{_rcgp_forward.11} parent=0 // pred_check
    _
  $region27: #{_rcgp_forward.11} parent=0 // pred_check_branch
    %59 = sbr.rel (0) target = $region29
  $region28: #{_rcgp_forward.11} parent=0 // pred_region
    _
  $region29: #{_rcgp_forward.11} parent=0 // pred_fallthru
    _
  %s60 = ssub.s32 0, 0
  %s61 = smul.u32 16, %s60
  %p62 = scmp.lt.s32.totalorder %s61, 15
  %s63 = scalar_select %p62, %s61, 15
  %s64 = scalar_lea.vmem %s0, %s63
  %s65 = ssub.s32 0, 0
  %s66 = smul.u32 16, %s65
  %p67 = scmp.lt.s32.totalorder %s66, 15
  %s68 = scalar_select %p67, %s66, 15
  %s69 = smul.addr %s68, 2
  %s70 = smul.addr %s69, 8
  %s71 = scalar_lea.vmem %s1, %s70
  %s72 = ssub.s32 0, 0
  %s73 = smul.u32 16, %s72
  %p74 = scmp.lt.s32.totalorder %s73, 15
  %s75 = scalar_select %p74, %s73, 15
  %s76 = scalar_lea.vmem %s2, %s75
  %s77 = ssub.s32 0, 0
  %s78 = smul.u32 16, %s77
  %p79 = scmp.lt.s32.totalorder %s78, 15
  %s80 = scalar_select %p79, %s78, 15
  %s81 = smul.addr %s80, 2
  %s82 = smul.addr %s81, 8
  %s83 = scalar_lea.vmem %s3, %s82
  %s84 = ssub.s32 0, 0
  %s85 = smul.u32 16, %s84
  %p86 = scmp.lt.s32.totalorder %s85, 15
  %s87 = scalar_select %p86, %s85, 15
  %s88 = scalar_lea.vmem %s7, %s87
  %s89 = ssub.s32 0, 0
  %s90 = smul.u32 16, %s89
  %p91 = scmp.lt.s32.totalorder %s90, 15
  %s92 = scalar_select %p91, %s90, 15
  %s93 = smul.addr %s92, 2
  %s94 = smul.addr %s93, 8
  %s95 = scalar_lea.vmem %s8, %s94
  %s96 = ssub.s32 0, 0
  %s97 = smul.u32 16, %s96
  %p98 = scmp.lt.s32.totalorder %s97, 15
  %s99 = scalar_select %p98, %s97, 15
  %s100 = scalar_lea.vmem %s0, %s99
  %s101 = ssub.s32 0, 0
  %s102 = smul.u32 16, %s101
  %s103 = ssub.s32 0, 0
  %s104 = smul.u32 16, %s103
  %p105 = scmp.lt.s32.totalorder %s104, 15
  %s106 = scalar_select %p105, %s104, 15
  %s107 = smul.addr %s106, 2
  %s108 = smul.addr %s107, 8
  %s109 = scalar_lea.vmem %s1, %s108
  %s110 = ssub.s32 0, 0
  %s111 = smul.u32 16, %s110
  %s112 = ssub.s32 0, 0
  %s113 = smul.u32 16, %s112
  %p114 = scmp.lt.s32.totalorder %s113, 15
  %s115 = scalar_select %p114, %s113, 15
  %s116 = scalar_lea.vmem %s2, %s115
  %s117 = ssub.s32 0, 0
  %s118 = smul.u32 16, %s117
  %s119 = ssub.s32 0, 0
  %s120 = smul.u32 16, %s119
  %p121 = scmp.lt.s32.totalorder %s120, 15
  %s122 = scalar_select %p121, %s120, 15
  %s123 = smul.addr %s122, 2
  %s124 = smul.addr %s123, 8
  %s125 = scalar_lea.vmem %s3, %s124
  %s126 = ssub.s32 0, 0
  %s127 = smul.u32 16, %s126
  %s128 = ssub.s32 0, 0
  %s129 = smul.u32 16, %s128
  %p130 = scmp.lt.s32.totalorder %s129, 15
  %s131 = scalar_select %p130, %s129, 15
  %s132 = scalar_lea.vmem %s7, %s131
  %s133 = ssub.s32 0, 0
  %s134 = smul.u32 16, %s133
  %s135 = ssub.s32 0, 0
  %s136 = smul.u32 16, %s135
  %p137 = scmp.lt.s32.totalorder %s136, 15
  %s138 = scalar_select %p137, %s136, 15
  %s139 = smul.addr %s138, 2
  %s140 = smul.addr %s139, 8
  %s141 = scalar_lea.vmem %s8, %s140
  %s142 = ssub.s32 0, 0
  %s143 = smul.u32 16, %s142
  %p144 = scmp.eq.s32.totalorder 0, 0
  // Predicated region
  $region30: #{_rcgp_forward.11} parent=0 // pred_check
    %p145 = pneg %p144
  $region31: #{_rcgp_forward.11} parent=0 // pred_check_branch
    %147 = sbr.rel (%p145) target = $region33
  $region32: #{_rcgp_forward.11} parent=0 // pred_region
    %v148 = vld [vmem:[%s4] sm:$0x1]
    %vm149 = vcmask 122880
    %150 = vst.msk [vmem:[#allocation2] sm:$0x1] %vm149, %v148
    %v151 = vld [vmem:[%s5] sm:$0xff]
    %v152 = vld [vmem:[%s5 + $0x8] sm:$0xff]
    %vm153 = vcmask 130048
    %154 = vst.msk [vmem:[#allocation3] sm:$0xff] %vm153, %v151
    %155 = vst.msk [vmem:[#allocation3 + $0x8] sm:$0xff] %vm153, %v152
  $region33: #{_rcgp_forward.11} parent=0 // pred_fallthru
    _
  %v156 = vld [vmem:[%s6] sm:$0xff]
  %v157 = vld [vmem:[%s6 + $0x8] sm:$0xff]
  %s158 = ssub.s32 0, 0
  %s159 = smul.u32 %s158, 16
  loop: start=0, step=1, limit=16
  $region34: #{_rcgp_forward.11} parent=0 // loop_pre_header
    _
  $region35: #{_rcgp_forward.11} parent=0 // loop_header
    %s161 = sphi 0, %s165
    %p162 = scmp.ge.s32.totalorder %s161, 16
  $region36: #{_rcgp_forward.11} parent=0 // loop_header_branch
    %164 = sbr.rel (%p162) target = $region40
  $region37: #{_rcgp_forward.11} parent=0 // loop_body
    %s166 = ssub.s32 15, %s161
    %s167 = sadd.s32 %s159, %s166
    %p168 = scmp.ge.s32.totalorder %s167, 7
    // Predicated region
    $region41: #{_rcgp_forward.11} parent=37 // pred_check
      %p169 = pneg %p168
    $region42: #{_rcgp_forward.11} parent=37 // pred_check_branch
      %171 = sbr.rel (%p169) target = $region44
    $region43: #{_rcgp_forward.11} parent=37 // pred_region
      %s172 = scalar_lea.vmem %s100, %s166
      %v173 = vld [vmem:[%s172] sm:$0x1]
      %s174 = smul.u32 %s166, 16
      %s175 = scalar_lea.vmem %s109, %s174
      %v176 = vld [vmem:[%s175] sm:$0xff]
      %v177 = vld [vmem:[%s175 + $0x8] sm:$0xff]
      %s178 = scalar_lea.vmem %s116, %s166
      %v179 = vld [vmem:[%s178] sm:$0x1]
      %s180 = scalar_lea.vmem %s125, %s174
      %v181 = vld [vmem:[%s180] sm:$0xff]
      %v182 = vld [vmem:[%s180 + $0x8] sm:$0xff]
      %vm183 = vcmask 130048
      %v185 = vsel %vm183, %v156, 0
      %v188 = vsel %vm183, %v157, 0
      %v191 = vsel %vm183, %v176, 0
      %v194 = vsel %vm183, %v177, 0
      %196 = vmatprep.subr.mxu0 0.0
      %197 = vmatpush1.xpose.msra.mxu0 %v191
      %198 = vmatprep.subr.mxu0 0.0
      %199 = vmatpush1.xpose.msra.mxu0 %v194
      %200 = vmatprep.subr.mxu0 0.0
      %201 = vmatpush1.xpose.msra.mxu0 0.0
      %202 = vmatprep.subr.mxu0 0.0
      %203 = vmatpush1.xpose.msra.mxu0 0.0
      %204 = vmatprep.subr.mxu0 0.0
      %205 = vmatpush1.xpose.msra.mxu0 0.0
      %206 = vmatprep.subr.mxu0 0.0
      %207 = vmatpush1.xpose.msra.mxu0 0.0
      %208 = vmatprep.subr.mxu0 0.0
      %209 = vmatpush1.xpose.msra.mxu0 0.0
      %210 = vmatprep.subr.mxu0 0.0
      %211 = vmatpush1.xpose.msra.mxu0 0.0
      %212 = vmatprep.subr.mxu0 0.0
      %213 = vmatpush1.xpose.msra.mxu0 0.0
      %214 = vmatprep.subr.mxu0 0.0
      %215 = vmatpush1.xpose.msra.mxu0 0.0
      %216 = vmatprep.subr.mxu0 0.0
      %217 = vmatpush1.xpose.msra.mxu0 0.0
      %218 = vmatprep.subr.mxu0 0.0
      %219 = vmatpush1.xpose.msra.mxu0 0.0
      %220 = vmatprep.subr.mxu0 0.0
      %221 = vmatpush1.xpose.msra.mxu0 0.0
      %222 = vmatprep.subr.mxu0 0.0
      %223 = vmatpush1.xpose.msra.mxu0 0.0
      %224 = vmatprep.subr.mxu0 0.0
      %225 = vmatpush1.xpose.msra.mxu0 0.0
      %226 = vmatprep.subr.mxu0 0.0
      %227 = vmatpush1.xpose.msra.mxu0 0.0
      %228 = vmatprep.subr.mxu0 0.0
      %229 = vmatpush1.xpose.msra.mxu0 0.0
      %230 = vmatprep.subr.mxu0 0.0
      %231 = vmatpush1.xpose.msra.mxu0 0.0
      %232 = vmatprep.subr.mxu0 0.0
      %233 = vmatpush1.xpose.msra.mxu0 0.0
      %234 = vmatprep.subr.mxu0 0.0
      %235 = vmatpush1.xpose.msra.mxu0 0.0
      %236 = vmatprep.subr.mxu0 0.0
      %237 = vmatpush1.xpose.msra.mxu0 0.0
      %238 = vmatprep.subr.mxu0 0.0
      %239 = vmatpush1.xpose.msra.mxu0 0.0
      %240 = vmatprep.subr.mxu0 0.0
      %241 = vmatpush1.xpose.msra.mxu0 0.0
      %242 = vmatprep.subr.mxu0 0.0
      %243 = vmatpush1.xpose.msra.mxu0 0.0
      %244 = vmatprep.subr.mxu0 0.0
      %245 = vmatpush1.xpose.msra.mxu0 0.0
      %246 = vmatprep.subr.mxu0 0.0
      %247 = vmatpush1.xpose.msra.mxu0 0.0
      %248 = vmatprep.subr.mxu0 0.0
      %249 = vmatpush1.xpose.msra.mxu0 0.0
      %250 = vmatprep.subr.mxu0 0.0
      %251 = vmatpush1.xpose.msra.mxu0 0.0
      %252 = vmatprep.subr.mxu0 0.0
      %253 = vmatpush1.xpose.msra.mxu0 0.0
      %254 = vmatprep.subr.mxu0 0.0
      %255 = vmatpush1.xpose.msra.mxu0 0.0
      %256 = vmatprep.subr.mxu0 0.0
      %257 = vmatpush1.xpose.msra.mxu0 0.0
      %258 = vmatprep.subr.mxu0 0.0
      %259 = vmatpush1.xpose.msra.mxu0 0.0
      %260 = vmatprep.mubr.f32.mxu0 0.0
      %261 = vmatmul.mubr.f32.gmra.mrb[0].mxu0 %v185
      %v262 = vpop.f32.mrb[0].mxu0
      %v263 = vadd.f32 0.0, %v262
      %v264 = vpop.f32.mrb[0].mxu0
      %265 = vmatprep.mubr.f32.mxu0 0.0
      %266 = vmatmul.mubr.f32.gmra.mrb[0].mxu0 %v188
      %v267 = vpop.f32.mrb[0].mxu0
      %v268 = vadd.f32 0.0, %v267
      %v269 = vpop.f32.mrb[0].mxu0
      %270 = vdwg.mxu0
      %v271 = vlaneseq
      %v272 = vshrl.u32 %v271, 7
      %v273 = vadd.s32 %v272, 8
      %v274 = vlaneseq
      %v275 = vand.u32 %v274, 127
      loop: start=0, step=1, limit=16
      $region45: #{_rcgp_forward.11} parent=43 // loop_pre_header
        _
      $region46: #{_rcgp_forward.11} parent=43 // loop_header
        %s277 = sphi 0, %s281
        %p278 = scmp.ge.s32.totalorder %s277, 16
        %v282 = vphi %v181, %v585
        %v283 = vphi %v182, %v586
        %v284 = vphi %v263, %v594
        %v285 = vphi %v268, %v595
      $region47: #{_rcgp_forward.11} parent=43 // loop_header_branch
        %280 = sbr.rel (%p278) target = $region51
      $region48: #{_rcgp_forward.11} parent=43 // loop_body
        %v286 = vstv %s277
        %vm287 = vcmp.eq.s32.totalorder %v272, %v286
        %vm288 = vcmp.eq.s32.totalorder %v273, %v286
        %v289 = vsel %vm287, 1, 0
        %v290 = vsel %vm288, 1, 0
        %v291 = vcvt.s32.f32 %v289
        %v292 = vcvt.s32.f32 %v290
        %293 = vxpose.xlu0.b32.start [1/16] %v291, 128
        %294 = vxpose.xlu0.b32.cont [2/16] %v292, 128
        %295 = vxpose.xlu0.b32.cont [3/16] 0.0, 128
        %296 = vxpose.xlu0.b32.cont [4/16] 0.0, 128
        %297 = vxpose.xlu0.b32.cont [5/16] 0.0, 128
        %298 = vxpose.xlu0.b32.cont [6/16] 0.0, 128
        %299 = vxpose.xlu0.b32.cont [7/16] 0.0, 128
        %300 = vxpose.xlu0.b32.cont [8/16] 0.0, 128
        %301 = vxpose.xlu0.b32.cont [9/16] 0.0, 128
        %302 = vxpose.xlu0.b32.cont [10/16] 0.0, 128
        %303 = vxpose.xlu0.b32.cont [11/16] 0.0, 128
        %304 = vxpose.xlu0.b32.cont [12/16] 0.0, 128
        %305 = vxpose.xlu0.b32.cont [13/16] 0.0, 128
        %306 = vxpose.xlu0.b32.cont [14/16] 0.0, 128
        %307 = vxpose.xlu0.b32.cont [15/16] 0.0, 128
        %308 = vxpose.xlu0.b32.end [16/16] 0.0, 128
        %v309 = vpop.trf.xlu0
        %v310 = vpop.trf.xlu0
        %v311 = vpop.trf.xlu0
        %v312 = vpop.trf.xlu0
        %v313 = vpop.trf.xlu0
        %v314 = vpop.trf.xlu0
        %v315 = vpop.trf.xlu0
        %v316 = vpop.trf.xlu0
        %v317 = vpop.trf.xlu0
        %v318 = vpop.trf.xlu0
        %v319 = vpop.trf.xlu0
        %v320 = vpop.trf.xlu0
        %v321 = vpop.trf.xlu0
        %v322 = vpop.trf.xlu0
        %v323 = vpop.trf.xlu0
        %v324 = vpop.trf.xlu0
        %v326 = vsel %vm183, %v309, 0
        %328 = vmatprep.subr.mxu0 0.0
        %329 = vmatpush1.msra.mxu0 %v282
        %330 = vmatprep.subr.mxu0 0.0
        %331 = vmatpush1.msra.mxu0 %v283
        %332 = vmatprep.subr.mxu0 0.0
        %333 = vmatpush1.msra.mxu0 0.0
        %334 = vmatprep.subr.mxu0 0.0
        %335 = vmatpush1.msra.mxu0 0.0
        %336 = vmatprep.subr.mxu0 0.0
        %337 = vmatpush1.msra.mxu0 0.0
        %338 = vmatprep.subr.mxu0 0.0
        %339 = vmatpush1.msra.mxu0 0.0
        %340 = vmatprep.subr.mxu0 0.0
        %341 = vmatpush1.msra.mxu0 0.0
        %342 = vmatprep.subr.mxu0 0.0
        %343 = vmatpush1.msra.mxu0 0.0
        %344 = vmatprep.subr.mxu0 0.0
        %345 = vmatpush1.msra.mxu0 0.0
        %346 = vmatprep.subr.mxu0 0.0
        %347 = vmatpush1.msra.mxu0 0.0
        %348 = vmatprep.subr.mxu0 0.0
        %349 = vmatpush1.msra.mxu0 0.0
        %350 = vmatprep.subr.mxu0 0.0
        %351 = vmatpush1.msra.mxu0 0.0
        %352 = vmatprep.subr.mxu0 0.0
        %353 = vmatpush1.msra.mxu0 0.0
        %354 = vmatprep.subr.mxu0 0.0
        %355 = vmatpush1.msra.mxu0 0.0
        %356 = vmatprep.subr.mxu0 0.0
        %357 = vmatpush1.msra.mxu0 0.0
        %358 = vmatprep.subr.mxu0 0.0
        %359 = vmatpush1.msra.mxu0 0.0
        %360 = vmatprep.subr.mxu0 0.0
        %361 = vmatpush1.msra.mxu0 0.0
        %362 = vmatprep.subr.mxu0 0.0
        %363 = vmatpush1.msra.mxu0 0.0
        %364 = vmatprep.subr.mxu0 0.0
        %365 = vmatpush1.msra.mxu0 0.0
        %366 = vmatprep.subr.mxu0 0.0
        %367 = vmatpush1.msra.mxu0 0.0
        %368 = vmatprep.subr.mxu0 0.0
        %369 = vmatpush1.msra.mxu0 0.0
        %370 = vmatprep.subr.mxu0 0.0
        %371 = vmatpush1.msra.mxu0 0.0
        %372 = vmatprep.subr.mxu0 0.0
        %373 = vmatpush1.msra.mxu0 0.0
        %374 = vmatprep.subr.mxu0 0.0
        %375 = vmatpush1.msra.mxu0 0.0
        %376 = vmatprep.subr.mxu0 0.0
        %377 = vmatpush1.msra.mxu0 0.0
        %378 = vmatprep.subr.mxu0 0.0
        %379 = vmatpush1.msra.mxu0 0.0
        %380 = vmatprep.subr.mxu0 0.0
        %381 = vmatpush1.msra.mxu0 0.0
        %382 = vmatprep.subr.mxu0 0.0
        %383 = vmatpush1.msra.mxu0 0.0
        %384 = vmatprep.subr.mxu0 0.0
        %385 = vmatpush1.msra.mxu0 0.0
        %386 = vmatprep.subr.mxu0 0.0
        %387 = vmatpush1.msra.mxu0 0.0
        %388 = vmatprep.subr.mxu0 0.0
        %389 = vmatpush1.msra.mxu0 0.0
        %390 = vmatprep.subr.mxu0 0.0
        %391 = vmatpush1.msra.mxu0 0.0
        %392 = vmatprep.mubr.f32.mxu0 0.0
        %393 = vmatmul.mubr.f32.gmra.mrb[0].mxu0 %v326
        %v394 = vpop.f32.mrb[0].mxu0
        %v395 = vadd.f32 0.0, %v394
        %v396 = vpop.f32.mrb[0].mxu0
        %397 = vdwg.mxu0
        %398 = vmatprep.subr.mxu0 0.0
        %399 = vmatpush1.msra.mxu0 %v284
        %400 = vmatprep.subr.mxu0 0.0
        %401 = vmatpush1.msra.mxu0 %v285
        %402 = vmatprep.subr.mxu0 0.0
        %403 = vmatpush1.msra.mxu0 0.0
        %404 = vmatprep.subr.mxu0 0.0
        %405 = vmatpush1.msra.mxu0 0.0
        %406 = vmatprep.subr.mxu0 0.0
        %407 = vmatpush1.msra.mxu0 0.0
        %408 = vmatprep.subr.mxu0 0.0
        %409 = vmatpush1.msra.mxu0 0.0
        %410 = vmatprep.subr.mxu0 0.0
        %411 = vmatpush1.msra.mxu0 0.0
        %412 = vmatprep.subr.mxu0 0.0
        %413 = vmatpush1.msra.mxu0 0.0
        %414 = vmatprep.subr.mxu0 0.0
        %415 = vmatpush1.msra.mxu0 0.0
        %416 = vmatprep.subr.mxu0 0.0
        %417 = vmatpush1.msra.mxu0 0.0
        %418 = vmatprep.subr.mxu0 0.0
        %419 = vmatpush1.msra.mxu0 0.0
        %420 = vmatprep.subr.mxu0 0.0
        %421 = vmatpush1.msra.mxu0 0.0
        %422 = vmatprep.subr.mxu0 0.0
        %423 = vmatpush1.msra.mxu0 0.0
        %424 = vmatprep.subr.mxu0 0.0
        %425 = vmatpush1.msra.mxu0 0.0
        %426 = vmatprep.subr.mxu0 0.0
        %427 = vmatpush1.msra.mxu0 0.0
        %428 = vmatprep.subr.mxu0 0.0
        %429 = vmatpush1.msra.mxu0 0.0
        %430 = vmatprep.subr.mxu0 0.0
        %431 = vmatpush1.msra.mxu0 0.0
        %432 = vmatprep.subr.mxu0 0.0
        %433 = vmatpush1.msra.mxu0 0.0
        %434 = vmatprep.subr.mxu0 0.0
        %435 = vmatpush1.msra.mxu0 0.0
        %436 = vmatprep.subr.mxu0 0.0
        %437 = vmatpush1.msra.mxu0 0.0
        %438 = vmatprep.subr.mxu0 0.0
        %439 = vmatpush1.msra.mxu0 0.0
        %440 = vmatprep.subr.mxu0 0.0
        %441 = vmatpush1.msra.mxu0 0.0
        %442 = vmatprep.subr.mxu0 0.0
        %443 = vmatpush1.msra.mxu0 0.0
        %444 = vmatprep.subr.mxu0 0.0
        %445 = vmatpush1.msra.mxu0 0.0
        %446 = vmatprep.subr.mxu0 0.0
        %447 = vmatpush1.msra.mxu0 0.0
        %448 = vmatprep.subr.mxu0 0.0
        %449 = vmatpush1.msra.mxu0 0.0
        %450 = vmatprep.subr.mxu0 0.0
        %451 = vmatpush1.msra.mxu0 0.0
        %452 = vmatprep.subr.mxu0 0.0
        %453 = vmatpush1.msra.mxu0 0.0
        %454 = vmatprep.subr.mxu0 0.0
        %455 = vmatpush1.msra.mxu0 0.0
        %456 = vmatprep.subr.mxu0 0.0
        %457 = vmatpush1.msra.mxu0 0.0
        %458 = vmatprep.subr.mxu0 0.0
        %459 = vmatpush1.msra.mxu0 0.0
        %460 = vmatprep.subr.mxu0 0.0
        %461 = vmatpush1.msra.mxu0 0.0
        %462 = vmatprep.mubr.f32.mxu0 0.0
        %463 = vmatmul.mubr.f32.gmra.mrb[0].mxu0 %v326
        %v464 = vpop.f32.mrb[0].mxu0
        %v465 = vadd.f32 0.0, %v464
        %v466 = vpop.f32.mrb[0].mxu0
        %467 = vdwg.mxu0
        %v469 = vsel %vm183, %v282, 0
        %v472 = vsel %vm183, %v283, 0
        %474 = vmatprep.subr.mxu0 0.0
        %475 = vmatpush1.msra.mxu0 %v291
        %476 = vmatprep.subr.mxu0 0.0
        %477 = vmatpush1.msra.mxu0 %v292
        %478 = vmatprep.subr.mxu0 0.0
        %479 = vmatpush1.msra.mxu0 0.0
        %480 = vmatprep.subr.mxu0 0.0
        %481 = vmatpush1.msra.mxu0 0.0
        %482 = vmatprep.subr.mxu0 0.0
        %483 = vmatpush1.msra.mxu0 0.0
        %484 = vmatprep.subr.mxu0 0.0
        %485 = vmatpush1.msra.mxu0 0.0
        %486 = vmatprep.subr.mxu0 0.0
        %487 = vmatpush1.msra.mxu0 0.0
        %488 = vmatprep.subr.mxu0 0.0
        %489 = vmatpush1.msra.mxu0 0.0
        %490 = vmatprep.subr.mxu0 0.0
        %491 = vmatpush1.msra.mxu0 0.0
        %492 = vmatprep.subr.mxu0 0.0
        %493 = vmatpush1.msra.mxu0 0.0
        %494 = vmatprep.subr.mxu0 0.0
        %495 = vmatpush1.msra.mxu0 0.0
        %496 = vmatprep.subr.mxu0 0.0
        %497 = vmatpush1.msra.mxu0 0.0
        %498 = vmatprep.subr.mxu0 0.0
        %499 = vmatpush1.msra.mxu0 0.0
        %500 = vmatprep.subr.mxu0 0.0
        %501 = vmatpush1.msra.mxu0 0.0
        %502 = vmatprep.subr.mxu0 0.0
        %503 = vmatpush1.msra.mxu0 0.0
        %504 = vmatprep.subr.mxu0 0.0
        %505 = vmatpush1.msra.mxu0 0.0
        %506 = vmatprep.subr.mxu0 0.0
        %507 = vmatpush1.msra.mxu0 0.0
        %508 = vmatprep.subr.mxu0 0.0
        %509 = vmatpush1.msra.mxu0 0.0
        %510 = vmatprep.subr.mxu0 0.0
        %511 = vmatpush1.msra.mxu0 0.0
        %512 = vmatprep.subr.mxu0 0.0
        %513 = vmatpush1.msra.mxu0 0.0
        %514 = vmatprep.subr.mxu0 0.0
        %515 = vmatpush1.msra.mxu0 0.0
        %516 = vmatprep.subr.mxu0 0.0
        %517 = vmatpush1.msra.mxu0 0.0
        %518 = vmatprep.subr.mxu0 0.0
        %519 = vmatpush1.msra.mxu0 0.0
        %520 = vmatprep.subr.mxu0 0.0
        %521 = vmatpush1.msra.mxu0 0.0
        %522 = vmatprep.subr.mxu0 0.0
        %523 = vmatpush1.msra.mxu0 0.0
        %524 = vmatprep.subr.mxu0 0.0
        %525 = vmatpush1.msra.mxu0 0.0
        %526 = vmatprep.subr.mxu0 0.0
        %527 = vmatpush1.msra.mxu0 0.0
        %528 = vmatprep.subr.mxu0 0.0
        %529 = vmatpush1.msra.mxu0 0.0
        %530 = vmatprep.subr.mxu0 0.0
        %531 = vmatpush1.msra.mxu0 0.0
        %532 = vmatprep.subr.mxu0 0.0
        %533 = vmatpush1.msra.mxu0 0.0
        %534 = vmatprep.subr.mxu0 0.0
        %535 = vmatpush1.msra.mxu0 0.0
        %536 = vmatprep.subr.mxu0 0.0
        %537 = vmatpush1.msra.mxu0 0.0
        %538 = vmatprep.mubr.f32.mxu0 0.0
        %539 = vmatmul.mubr.f32.gmra.mrb[0].mxu0 %v469
        %v540 = vpop.f32.mrb[0].mxu0
        %v541 = vadd.f32 0.0, %v540
        %v542 = vpop.f32.mrb[0].mxu0
        %543 = vmatprep.mubr.f32.mxu0 0.0
        %544 = vmatmul.mubr.f32.gmra.mrb[0].mxu0 %v472
        %v545 = vpop.f32.mrb[0].mxu0
        %v546 = vadd.f32 0.0, %v545
        %v547 = vpop.f32.mrb[0].mxu0
        %548 = vdwg.mxu0
        %vm549 = vcmp.eq.s32.totalorder %v275, %v286
        %v550 = vsel %vm549, %v395, 0.0
        %vm551 = vcmask 122880
        %v552 = vsel %vm551, %v550, 0.0
        %553 = vadd.xlane.f32.xlu0 %v552
        %v554 = vpop.xlane.xlu0 %553
        %v555 = vrot.slane %v554, 4
        %v556 = vadd.f32 %v554, %v555
        %v557 = vrot.slane %v556, 2
        %v558 = vadd.f32 %v556, %v557
        %v559 = vrot.slane %v558, 1
        %v560 = vadd.f32 %v558, %v559
        %s561 = vtos %v560
        %v562 = vstv %s561
        %v563 = vrcp.pop %v562
        %s564 = vtos %v563
        %v565 = vsub.f32 %v541, %v291
        %v566 = vsub.f32 %v546, %v292
        %v567 = vstv %s564
        %v568 = vmul.f32 %v395, %v567
        %570 = vset.pattern.permute.xlu0 0
        %571 = vperm.xlu0 %570, %v565
        %v572 = vpop.permute.xlu0 %571
        %575 = vset.pattern.permute.xlu0 0
        %576 = vperm.xlu0 %575, %v566
        %v577 = vpop.permute.xlu0 %576
        %v579 = vlaneseq
        %v580 = vshrl.u32 %v579, 7
        %v581 = vsub.s32 0, %v580
        %v582 = vrot.slane %v568, %v581
        %v583 = vmul.f32 %v572, %v582
        %v584 = vmul.f32 %v577, %v582
        %v585 = vsub.f32 %v282, %v583
        %v586 = vsub.f32 %v283, %v584
        %v587 = vmul.f32 %v465, %v567
        %v588 = vlaneseq
        %v589 = vshrl.u32 %v588, 7
        %v590 = vsub.s32 0, %v589
        %v591 = vrot.slane %v587, %v590
        %v592 = vmul.f32 %v572, %v591
        %v593 = vmul.f32 %v577, %v591
        %v594 = vsub.f32 %v284, %v592
        %v595 = vsub.f32 %v285, %v593
      $region49: #{_rcgp_forward.11} parent=43 // loop_footer
        %s281 = sadd.s32 1, %s277
      $region50: #{_rcgp_forward.11} parent=43 // loop_footer_branch
        %276 = sbr.rel target = $region46
      $region51: #{_rcgp_forward.11} parent=43 // loop_exit
        _
      %v596 = vld [vmem:[#allocation2] sm:$0x1]
      %v597 = vsub.f32 %v596, %v179
      %v598 = vld [vmem:[#allocation3] sm:$0xff]
      %v599 = vld [vmem:[#allocation3 + $0x8] sm:$0xff]
      %v600 = vsub.f32 %v598, %v181
      %v601 = vsub.f32 %v599, %v182
      %v603 = vsel %vm183, %v597, 0
      %605 = vmatprep.subr.mxu0 0.0
      %606 = vmatpush1.msra.mxu0 %v284
      %607 = vmatprep.subr.mxu0 0.0
      %608 = vmatpush1.msra.mxu0 %v285
      %609 = vmatprep.subr.mxu0 0.0
      %610 = vmatpush1.msra.mxu0 0.0
      %611 = vmatprep.subr.mxu0 0.0
      %612 = vmatpush1.msra.mxu0 0.0
      %613 = vmatprep.subr.mxu0 0.0
      %614 = vmatpush1.msra.mxu0 0.0
      %615 = vmatprep.subr.mxu0 0.0
      %616 = vmatpush1.msra.mxu0 0.0
      %617 = vmatprep.subr.mxu0 0.0
      %618 = vmatpush1.msra.mxu0 0.0
      %619 = vmatprep.subr.mxu0 0.0
      %620 = vmatpush1.msra.mxu0 0.0
      %621 = vmatprep.subr.mxu0 0.0
      %622 = vmatpush1.msra.mxu0 0.0
      %623 = vmatprep.subr.mxu0 0.0
      %624 = vmatpush1.msra.mxu0 0.0
      %625 = vmatprep.subr.mxu0 0.0
      %626 = vmatpush1.msra.mxu0 0.0
      %627 = vmatprep.subr.mxu0 0.0
      %628 = vmatpush1.msra.mxu0 0.0
      %629 = vmatprep.subr.mxu0 0.0
      %630 = vmatpush1.msra.mxu0 0.0
      %631 = vmatprep.subr.mxu0 0.0
      %632 = vmatpush1.msra.mxu0 0.0
      %633 = vmatprep.subr.mxu0 0.0
      %634 = vmatpush1.msra.mxu0 0.0
      %635 = vmatprep.subr.mxu0 0.0
      %636 = vmatpush1.msra.mxu0 0.0
      %637 = vmatprep.subr.mxu0 0.0
      %638 = vmatpush1.msra.mxu0 0.0
      %639 = vmatprep.subr.mxu0 0.0
      %640 = vmatpush1.msra.mxu0 0.0
      %641 = vmatprep.subr.mxu0 0.0
      %642 = vmatpush1.msra.mxu0 0.0
      %643 = vmatprep.subr.mxu0 0.0
      %644 = vmatpush1.msra.mxu0 0.0
      %645 = vmatprep.subr.mxu0 0.0
      %646 = vmatpush1.msra.mxu0 0.0
      %647 = vmatprep.subr.mxu0 0.0
      %648 = vmatpush1.msra.mxu0 0.0
      %649 = vmatprep.subr.mxu0 0.0
      %650 = vmatpush1.msra.mxu0 0.0
      %651 = vmatprep.subr.mxu0 0.0
      %652 = vmatpush1.msra.mxu0 0.0
      %653 = vmatprep.subr.mxu0 0.0
      %654 = vmatpush1.msra.mxu0 0.0
      %655 = vmatprep.subr.mxu0 0.0
      %656 = vmatpush1.msra.mxu0 0.0
      %657 = vmatprep.subr.mxu0 0.0
      %658 = vmatpush1.msra.mxu0 0.0
      %659 = vmatprep.subr.mxu0 0.0
      %660 = vmatpush1.msra.mxu0 0.0
      %661 = vmatprep.subr.mxu0 0.0
      %662 = vmatpush1.msra.mxu0 0.0
      %663 = vmatprep.subr.mxu0 0.0
      %664 = vmatpush1.msra.mxu0 0.0
      %665 = vmatprep.subr.mxu0 0.0
      %666 = vmatpush1.msra.mxu0 0.0
      %667 = vmatprep.subr.mxu0 0.0
      %668 = vmatpush1.msra.mxu0 0.0
      %669 = vmatprep.mubr.f32.mxu0 0.0
      %670 = vmatmul.mubr.f32.gmra.mrb[0].mxu0 %v603
      %v671 = vpop.f32.mrb[0].mxu0
      %v672 = vadd.f32 0.0, %v671
      %v673 = vpop.f32.mrb[0].mxu0
      %674 = vdwg.mxu0
      %v675 = vadd.f32 %v173, %v672
      %v677 = vsel %vm183, %v600, 0
      %v680 = vsel %vm183, %v601, 0
      %682 = vmatprep.subr.mxu0 0.0
      %683 = vmatpush1.msra.mxu0 %v284
      %684 = vmatprep.subr.mxu0 0.0
      %685 = vmatpush1.msra.mxu0 %v285
      %686 = vmatprep.subr.mxu0 0.0
      %687 = vmatpush1.msra.mxu0 0.0
      %688 = vmatprep.subr.mxu0 0.0
      %689 = vmatpush1.msra.mxu0 0.0
      %690 = vmatprep.subr.mxu0 0.0
      %691 = vmatpush1.msra.mxu0 0.0
      %692 = vmatprep.subr.mxu0 0.0
      %693 = vmatpush1.msra.mxu0 0.0
      %694 = vmatprep.subr.mxu0 0.0
      %695 = vmatpush1.msra.mxu0 0.0
      %696 = vmatprep.subr.mxu0 0.0
      %697 = vmatpush1.msra.mxu0 0.0
      %698 = vmatprep.subr.mxu0 0.0
      %699 = vmatpush1.msra.mxu0 0.0
      %700 = vmatprep.subr.mxu0 0.0
      %701 = vmatpush1.msra.mxu0 0.0
      %702 = vmatprep.subr.mxu0 0.0
      %703 = vmatpush1.msra.mxu0 0.0
      %704 = vmatprep.subr.mxu0 0.0
      %705 = vmatpush1.msra.mxu0 0.0
      %706 = vmatprep.subr.mxu0 0.0
      %707 = vmatpush1.msra.mxu0 0.0
      %708 = vmatprep.subr.mxu0 0.0
      %709 = vmatpush1.msra.mxu0 0.0
      %710 = vmatprep.subr.mxu0 0.0
      %711 = vmatpush1.msra.mxu0 0.0
      %712 = vmatprep.subr.mxu0 0.0
      %713 = vmatpush1.msra.mxu0 0.0
      %714 = vmatprep.subr.mxu0 0.0
      %715 = vmatpush1.msra.mxu0 0.0
      %716 = vmatprep.subr.mxu0 0.0
      %717 = vmatpush1.msra.mxu0 0.0
      %718 = vmatprep.subr.mxu0 0.0
      %719 = vmatpush1.msra.mxu0 0.0
      %720 = vmatprep.subr.mxu0 0.0
      %721 = vmatpush1.msra.mxu0 0.0
      %722 = vmatprep.subr.mxu0 0.0
      %723 = vmatpush1.msra.mxu0 0.0
      %724 = vmatprep.subr.mxu0 0.0
      %725 = vmatpush1.msra.mxu0 0.0
      %726 = vmatprep.subr.mxu0 0.0
      %727 = vmatpush1.msra.mxu0 0.0
      %728 = vmatprep.subr.mxu0 0.0
      %729 = vmatpush1.msra.mxu0 0.0
      %730 = vmatprep.subr.mxu0 0.0
      %731 = vmatpush1.msra.mxu0 0.0
      %732 = vmatprep.subr.mxu0 0.0
      %733 = vmatpush1.msra.mxu0 0.0
      %734 = vmatprep.subr.mxu0 0.0
      %735 = vmatpush1.msra.mxu0 0.0
      %736 = vmatprep.subr.mxu0 0.0
      %737 = vmatpush1.msra.mxu0 0.0
      %738 = vmatprep.subr.mxu0 0.0
      %739 = vmatpush1.msra.mxu0 0.0
      %740 = vmatprep.subr.mxu0 0.0
      %741 = vmatpush1.msra.mxu0 0.0
      %742 = vmatprep.subr.mxu0 0.0
      %743 = vmatpush1.msra.mxu0 0.0
      %744 = vmatprep.subr.mxu0 0.0
      %745 = vmatpush1.msra.mxu0 0.0
      %746 = vmatprep.mubr.f32.mxu0 0.0
      %747 = vmatmul.mubr.f32.gmra.mrb[0].mxu0 %v677
      %v748 = vpop.f32.mrb[0].mxu0
      %v749 = vadd.f32 0.0, %v748
      %v750 = vpop.f32.mrb[0].mxu0
      %751 = vmatprep.mubr.f32.mxu0 0.0
      %752 = vmatmul.mubr.f32.gmra.mrb[0].mxu0 %v680
      %v753 = vpop.f32.mrb[0].mxu0
      %v754 = vadd.f32 0.0, %v753
      %v755 = vpop.f32.mrb[0].mxu0
      %756 = vdwg.mxu0
      %757 = vxpose.xlu0.b32.start [1/16] %v284, 128
      %758 = vxpose.xlu0.b32.cont [2/16] %v285, 128
      %759 = vxpose.xlu0.b32.cont [3/16] 0.0, 128
      %760 = vxpose.xlu0.b32.cont [4/16] 0.0, 128
      %761 = vxpose.xlu0.b32.cont [5/16] 0.0, 128
      %762 = vxpose.xlu0.b32.cont [6/16] 0.0, 128
      %763 = vxpose.xlu0.b32.cont [7/16] 0.0, 128
      %764 = vxpose.xlu0.b32.cont [8/16] 0.0, 128
      %765 = vxpose.xlu0.b32.cont [9/16] 0.0, 128
      %766 = vxpose.xlu0.b32.cont [10/16] 0.0, 128
      %767 = vxpose.xlu0.b32.cont [11/16] 0.0, 128
      %768 = vxpose.xlu0.b32.cont [12/16] 0.0, 128
      %769 = vxpose.xlu0.b32.cont [13/16] 0.0, 128
      %770 = vxpose.xlu0.b32.cont [14/16] 0.0, 128
      %771 = vxpose.xlu0.b32.cont [15/16] 0.0, 128
      %772 = vxpose.xlu0.b32.end [16/16] 0.0, 128
      %v773 = vpop.trf.xlu0
      %v774 = vpop.trf.xlu0
      %v775 = vpop.trf.xlu0
      %v776 = vpop.trf.xlu0
      %v777 = vpop.trf.xlu0
      %v778 = vpop.trf.xlu0
      %v779 = vpop.trf.xlu0
      %v780 = vpop.trf.xlu0
      %v781 = vpop.trf.xlu0
      %v782 = vpop.trf.xlu0
      %v783 = vpop.trf.xlu0
      %v784 = vpop.trf.xlu0
      %v785 = vpop.trf.xlu0
      %v786 = vpop.trf.xlu0
      %v787 = vpop.trf.xlu0
      %v788 = vpop.trf.xlu0
      %v790 = vsel %vm183, %v773, 0
      %v793 = vsel %vm183, %v774, 0
      %795 = vmatprep.subr.mxu0 0.0
      %796 = vmatpush1.msra.mxu0 %v749
      %797 = vmatprep.subr.mxu0 0.0
      %798 = vmatpush1.msra.mxu0 %v754
      %799 = vmatprep.subr.mxu0 0.0
      %800 = vmatpush1.msra.mxu0 0.0
      %801 = vmatprep.subr.mxu0 0.0
      %802 = vmatpush1.msra.mxu0 0.0
      %803 = vmatprep.subr.mxu0 0.0
      %804 = vmatpush1.msra.mxu0 0.0
      %805 = vmatprep.subr.mxu0 0.0
      %806 = vmatpush1.msra.mxu0 0.0
      %807 = vmatprep.subr.mxu0 0.0
      %808 = vmatpush1.msra.mxu0 0.0
      %809 = vmatprep.subr.mxu0 0.0
      %810 = vmatpush1.msra.mxu0 0.0
      %811 = vmatprep.subr.mxu0 0.0
      %812 = vmatpush1.msra.mxu0 0.0
      %813 = vmatprep.subr.mxu0 0.0
      %814 = vmatpush1.msra.mxu0 0.0
      %815 = vmatprep.subr.mxu0 0.0
      %816 = vmatpush1.msra.mxu0 0.0
      %817 = vmatprep.subr.mxu0 0.0
      %818 = vmatpush1.msra.mxu0 0.0
      %819 = vmatprep.subr.mxu0 0.0
      %820 = vmatpush1.msra.mxu0 0.0
      %821 = vmatprep.subr.mxu0 0.0
      %822 = vmatpush1.msra.mxu0 0.0
      %823 = vmatprep.subr.mxu0 0.0
      %824 = vmatpush1.msra.mxu0 0.0
      %825 = vmatprep.subr.mxu0 0.0
      %826 = vmatpush1.msra.mxu0 0.0
      %827 = vmatprep.subr.mxu0 0.0
      %828 = vmatpush1.msra.mxu0 0.0
      %829 = vmatprep.subr.mxu0 0.0
      %830 = vmatpush1.msra.mxu0 0.0
      %831 = vmatprep.subr.mxu0 0.0
      %832 = vmatpush1.msra.mxu0 0.0
      %833 = vmatprep.subr.mxu0 0.0
      %834 = vmatpush1.msra.mxu0 0.0
      %835 = vmatprep.subr.mxu0 0.0
      %836 = vmatpush1.msra.mxu0 0.0
      %837 = vmatprep.subr.mxu0 0.0
      %838 = vmatpush1.msra.mxu0 0.0
      %839 = vmatprep.subr.mxu0 0.0
      %840 = vmatpush1.msra.mxu0 0.0
      %841 = vmatprep.subr.mxu0 0.0
      %842 = vmatpush1.msra.mxu0 0.0
      %843 = vmatprep.subr.mxu0 0.0
      %844 = vmatpush1.msra.mxu0 0.0
      %845 = vmatprep.subr.mxu0 0.0
      %846 = vmatpush1.msra.mxu0 0.0
      %847 = vmatprep.subr.mxu0 0.0
      %848 = vmatpush1.msra.mxu0 0.0
      %849 = vmatprep.subr.mxu0 0.0
      %850 = vmatpush1.msra.mxu0 0.0
      %851 = vmatprep.subr.mxu0 0.0
      %852 = vmatpush1.msra.mxu0 0.0
      %853 = vmatprep.subr.mxu0 0.0
      %854 = vmatpush1.msra.mxu0 0.0
      %855 = vmatprep.subr.mxu0 0.0
      %856 = vmatpush1.msra.mxu0 0.0
      %857 = vmatprep.subr.mxu0 0.0
      %858 = vmatpush1.msra.mxu0 0.0
      %859 = vmatprep.mubr.f32.mxu0 0.0
      %860 = vmatmul.mubr.f32.gmra.mrb[0].mxu0 %v790
      %v861 = vpop.f32.mrb[0].mxu0
      %v862 = vadd.f32 0.0, %v861
      %v863 = vpop.f32.mrb[0].mxu0
      %864 = vmatprep.mubr.f32.mxu0 0.0
      %865 = vmatmul.mubr.f32.gmra.mrb[0].mxu0 %v793
      %v866 = vpop.f32.mrb[0].mxu0
      %v867 = vadd.f32 0.0, %v866
      %v868 = vpop.f32.mrb[0].mxu0
      %869 = vdwg.mxu0
      %v870 = vadd.f32 %v176, %v862
      %v871 = vadd.f32 %v177, %v867
      %872 = vxpose.xlu0.b32.start [1/16] %v870, 128
      %873 = vxpose.xlu0.b32.cont [2/16] %v871, 128
      %874 = vxpose.xlu0.b32.cont [3/16] 0.0, 128
      %875 = vxpose.xlu0.b32.cont [4/16] 0.0, 128
      %876 = vxpose.xlu0.b32.cont [5/16] 0.0, 128
      %877 = vxpose.xlu0.b32.cont [6/16] 0.0, 128
      %878 = vxpose.xlu0.b32.cont [7/16] 0.0, 128
      %879 = vxpose.xlu0.b32.cont [8/16] 0.0, 128
      %880 = vxpose.xlu0.b32.cont [9/16] 0.0, 128
      %881 = vxpose.xlu0.b32.cont [10/16] 0.0, 128
      %882 = vxpose.xlu0.b32.cont [11/16] 0.0, 128
      %883 = vxpose.xlu0.b32.cont [12/16] 0.0, 128
      %884 = vxpose.xlu0.b32.cont [13/16] 0.0, 128
      %885 = vxpose.xlu0.b32.cont [14/16] 0.0, 128
      %886 = vxpose.xlu0.b32.cont [15/16] 0.0, 128
      %887 = vxpose.xlu0.b32.end [16/16] 0.0, 128
      %v888 = vpop.trf.xlu0
      %v889 = vpop.trf.xlu0
      %v890 = vpop.trf.xlu0
      %v891 = vpop.trf.xlu0
      %v892 = vpop.trf.xlu0
      %v893 = vpop.trf.xlu0
      %v894 = vpop.trf.xlu0
      %v895 = vpop.trf.xlu0
      %v896 = vpop.trf.xlu0
      %v897 = vpop.trf.xlu0
      %v898 = vpop.trf.xlu0
      %v899 = vpop.trf.xlu0
      %v900 = vpop.trf.xlu0
      %v901 = vpop.trf.xlu0
      %v902 = vpop.trf.xlu0
      %v903 = vpop.trf.xlu0
      %v904 = vadd.f32 %v870, %v888
      %v905 = vadd.f32 %v871, %v889
      %v906 = vmul.f32 %v904, 0.5
      %v907 = vmul.f32 %v905, 0.5
      %vm908 = vcmask 122880
      %909 = vst.msk [vmem:[#allocation2] sm:$0x1] %vm908, %v675
      %910 = vst.msk [vmem:[#allocation3] sm:$0xff] %vm183, %v906
      %911 = vst.msk [vmem:[#allocation3 + $0x8] sm:$0xff] %vm183, %v907
      %s912 = scalar_lea.vmem %s132, %s166
      %913 = vst.msk [vmem:[%s912] sm:$0x1] %vm908, %v675
      %s914 = scalar_lea.vmem %s141, %s174
      %915 = vst.msk [vmem:[%s914] sm:$0xff] %vm183, %v906
      %916 = vst.msk [vmem:[%s914 + $0x8] sm:$0xff] %vm183, %v907
    $region44: #{_rcgp_forward.11} parent=37 // pred_fallthru
      _
  $region38: #{_rcgp_forward.11} parent=0 // loop_footer
    %s165 = sadd.s32 1, %s161
  $region39: #{_rcgp_forward.11} parent=0 // loop_footer_branch
    %160 = sbr.rel target = $region35
  $region40: #{_rcgp_forward.11} parent=0 // loop_exit
    _
  %s917 = ssub.s32 0, 0
  %s918 = smul.u32 16, %s917
  %p919 = scmp.lt.s32.totalorder %s918, 15
  %s920 = scalar_select %p919, %s918, 15
  %s921 = scalar_lea.vmem %s7, %s920
  %s922 = ssub.s32 0, 0
  %s923 = smul.u32 16, %s922
  %p924 = scmp.lt.s32.totalorder %s923, 15
  %s925 = scalar_select %p924, %s923, 15
  %s926 = smul.addr %s925, 2
  %s927 = smul.addr %s926, 8
  %s928 = scalar_lea.vmem %s8, %s927
  // Predicated region
  $region52: #{_rcgp_forward.11} parent=0 // pred_check
    _
  $region53: #{_rcgp_forward.11} parent=0 // pred_check_branch
    %930 = sbr.rel (0) target = $region55
  $region54: #{_rcgp_forward.11} parent=0 // pred_region
    %s931 = ssub.s32 0, 0
    %s932 = smul.u32 16, %s931
  $region55: #{_rcgp_forward.11} parent=0 // pred_fallthru
    _
  // Predicated region
  $region56: #{_rcgp_forward.11} parent=0 // pred_check
    _
  $region57: #{_rcgp_forward.11} parent=0 // pred_check_branch
    %934 = sbr.rel (0) target = $region59
  $region58: #{_rcgp_forward.11} parent=0 // pred_region
    %s935 = ssub.s32 0, 0
    %s936 = smul.u32 16, %s935
  $region59: #{_rcgp_forward.11} parent=0 // pred_fallthru
    _
  // Predicated region
  $region60: #{_rcgp_forward.11} parent=0 // pred_check
    _
  $region61: #{_rcgp_forward.11} parent=0 // pred_check_branch
    %938 = sbr.rel (0) target = $region63
  $region62: #{_rcgp_forward.11} parent=0 // pred_region
    %s939 = ssub.s32 0, 0
    %s940 = smul.u32 16, %s939
    %p941 = scmp.lt.s32.totalorder %s940, 15
    %s942 = scalar_select %p941, %s940, 15
    %s943 = scalar_lea.vmem %s7, %s942
  $region63: #{_rcgp_forward.11} parent=0 // pred_fallthru
    _
  // Predicated region
  $region64: #{_rcgp_forward.11} parent=0 // pred_check
    _
  $region65: #{_rcgp_forward.11} parent=0 // pred_check_branch
    %945 = sbr.rel (0) target = $region67
  $region66: #{_rcgp_forward.11} parent=0 // pred_region
    %s946 = ssub.s32 0, 0
    %s947 = smul.u32 16, %s946
    %p948 = scmp.lt.s32.totalorder %s947, 15
    %s949 = scalar_select %p948, %s947, 15
    %s950 = smul.addr %s949, 2
    %s951 = smul.addr %s950, 8
    %s952 = scalar_lea.vmem %s8, %s951
  $region67: #{_rcgp_forward.11} parent=0 // pred_fallthru
    _

// kernel: _rcgp_forward.12
$region0: #{_rcgp_forward.12}
  #allocation0 [shape = 'u32[]', space=smem, size = 0x4, offset = 0x4, fixed_abs, tag = 'smem constant byte address 0x4 - core index']
  #allocation1 [shape = 'u32[144,128]{1,0:T(1,128)}', space=vmem, size = 0x12000, scoped, tag = 'internal scratch']
  #allocation2 [shape = 'f32[8,16,16]{2,1,0:T(8,128)}', space=vmem, size = 0x10000, scoped, tag = 'scratch operand']
  %s0 = inlined_call_operand.vmem [shape: f32[16,16], index: 0, kind: input, shape index: {}]
  %s1 = inlined_call_operand.vmem [shape: f32[16,16], index: 1, kind: input, shape index: {}]
  %s2 = inlined_call_operand.vmem [shape: f32[16,16], index: 2, kind: input, shape index: {}]
  %s3 = inlined_call_operand.vmem [shape: f32[8,16], index: 3, kind: input, shape index: {}]
  %s4 = inlined_call_operand.vmem [shape: f32[8,16,16], index: 4, kind: input, shape index: {}]
  %s5 = inlined_call_operand.hbm [shape: f32[8,16], index: 5, kind: output, shape index: {0}]
  %s6 = inlined_call_operand.hbm [shape: f32[8,16,16], index: 6, kind: output, shape index: {1}]
  %7 = xla_tuple %s5, %s6
  %s8 = sld [smem:[#allocation0]]
  $region45: #{_rcgp_forward.12} parent=0
    _
  %s10 = ssub.s32 1, %s8
  %s11 = scalar_select 0, %s10, %s8
  $region1: #{_rcgp_forward.12} parent=0
    #allocation3 [shape = 'u8[4096]{0}', space=vmem, size = 0x1000, scoped, tag = 'output window, operand 0, single buffered']
    #allocation4 [shape = 's32[1]{0}', space=sflag, size = 0x4, scoped, tag = 'scoped memory for _rcgp_forward.12']
    #allocation5 [shape = 'u8[65536]{0}', space=vmem, size = 0x10000, scoped, tag = 'output window, operand 1, single buffered']
    #allocation6 [shape = 's32[1]{0}', space=sflag, size = 0x4, scoped, tag = 'scoped memory for _rcgp_forward.12']
    %12 = vsyncpa [#allocation4], 0
    %13 = vsyncpa [#allocation6], 0
    // Predicated region
    $region2: #{_rcgp_forward.12} parent=1 // pred_check
      _
    $region3: #{_rcgp_forward.12} parent=1 // pred_check_branch
      %15 = sbr.rel (0) target = $region5
    $region4: #{_rcgp_forward.12} parent=1 // pred_region
      _
    $region5: #{_rcgp_forward.12} parent=1 // pred_fallthru
      _
    // Predicated region
    $region6: #{_rcgp_forward.12} parent=1 // pred_check
      _
    $region7: #{_rcgp_forward.12} parent=1 // pred_check_branch
      %17 = sbr.rel (0) target = $region9
    $region8: #{_rcgp_forward.12} parent=1 // pred_region
      _
    $region9: #{_rcgp_forward.12} parent=1 // pred_fallthru
      _
    // Predicated region
    $region10: #{_rcgp_forward.12} parent=1 // pred_check
      _
    $region11: #{_rcgp_forward.12} parent=1 // pred_check_branch
      %19 = sbr.rel (0) target = $region13
    $region12: #{_rcgp_forward.12} parent=1 // pred_region
      _
    $region13: #{_rcgp_forward.12} parent=1 // pred_fallthru
      _
    // Predicated region
    $region14: #{_rcgp_forward.12} parent=1 // pred_check
      _
    $region15: #{_rcgp_forward.12} parent=1 // pred_check_branch
      %21 = sbr.rel (0) target = $region17
    $region16: #{_rcgp_forward.12} parent=1 // pred_region
      _
    $region17: #{_rcgp_forward.12} parent=1 // pred_fallthru
      _
    // Predicated region
    $region18: #{_rcgp_forward.12} parent=1 // pred_check
      _
    $region19: #{_rcgp_forward.12} parent=1 // pred_check_branch
      %23 = sbr.rel (0) target = $region21
    $region20: #{_rcgp_forward.12} parent=1 // pred_region
      _
    $region21: #{_rcgp_forward.12} parent=1 // pred_fallthru
      _
    %v24 = vld [vmem:[%s0] sm:$0xff]
    %v25 = vld [vmem:[%s0 + $0x8] sm:$0xff]
    %v26 = vld [vmem:[%s1] sm:$0xff]
    %v27 = vld [vmem:[%s1 + $0x8] sm:$0xff]
    %v28 = vld [vmem:[%s2] sm:$0xff]
    %v29 = vld [vmem:[%s2 + $0x8] sm:$0xff]
    %v30 = vld [vmem:[%s3] sm:$0xff]
    %vm31 = vcmask 130048
    %v33 = vsel %vm31, %v30, 0
    %35 = vmatprep.subr.mxu0 0.0
    %36 = vmatpush1.msra.mxu0 %v26
    %37 = vmatprep.subr.mxu0 0.0
    %38 = vmatpush1.msra.mxu0 %v27
    %39 = vmatprep.subr.mxu0 0.0
    %40 = vmatpush1.msra.mxu0 0.0
    %41 = vmatprep.subr.mxu0 0.0
    %42 = vmatpush1.msra.mxu0 0.0
    %43 = vmatprep.subr.mxu0 0.0
    %44 = vmatpush1.msra.mxu0 0.0
    %45 = vmatprep.subr.mxu0 0.0
    %46 = vmatpush1.msra.mxu0 0.0
    %47 = vmatprep.subr.mxu0 0.0
    %48 = vmatpush1.msra.mxu0 0.0
    %49 = vmatprep.subr.mxu0 0.0
    %50 = vmatpush1.msra.mxu0 0.0
    %51 = vmatprep.subr.mxu0 0.0
    %52 = vmatpush1.msra.mxu0 0.0
    %53 = vmatprep.subr.mxu0 0.0
    %54 = vmatpush1.msra.mxu0 0.0
    %55 = vmatprep.subr.mxu0 0.0
    %56 = vmatpush1.msra.mxu0 0.0
    %57 = vmatprep.subr.mxu0 0.0
    %58 = vmatpush1.msra.mxu0 0.0
    %59 = vmatprep.subr.mxu0 0.0
    %60 = vmatpush1.msra.mxu0 0.0
    %61 = vmatprep.subr.mxu0 0.0
    %62 = vmatpush1.msra.mxu0 0.0
    %63 = vmatprep.subr.mxu0 0.0
    %64 = vmatpush1.msra.mxu0 0.0
    %65 = vmatprep.subr.mxu0 0.0
    %66 = vmatpush1.msra.mxu0 0.0
    %67 = vmatprep.subr.mxu0 0.0
    %68 = vmatpush1.msra.mxu0 0.0
    %69 = vmatprep.subr.mxu0 0.0
    %70 = vmatpush1.msra.mxu0 0.0
    %71 = vmatprep.subr.mxu0 0.0
    %72 = vmatpush1.msra.mxu0 0.0
    %73 = vmatprep.subr.mxu0 0.0
    %74 = vmatpush1.msra.mxu0 0.0
    %75 = vmatprep.subr.mxu0 0.0
    %76 = vmatpush1.msra.mxu0 0.0
    %77 = vmatprep.subr.mxu0 0.0
    %78 = vmatpush1.msra.mxu0 0.0
    %79 = vmatprep.subr.mxu0 0.0
    %80 = vmatpush1.msra.mxu0 0.0
    %81 = vmatprep.subr.mxu0 0.0
    %82 = vmatpush1.msra.mxu0 0.0
    %83 = vmatprep.subr.mxu0 0.0
    %84 = vmatpush1.msra.mxu0 0.0
    %85 = vmatprep.subr.mxu0 0.0
    %86 = vmatpush1.msra.mxu0 0.0
    %87 = vmatprep.subr.mxu0 0.0
    %88 = vmatpush1.msra.mxu0 0.0
    %89 = vmatprep.subr.mxu0 0.0
    %90 = vmatpush1.msra.mxu0 0.0
    %91 = vmatprep.subr.mxu0 0.0
    %92 = vmatpush1.msra.mxu0 0.0
    %93 = vmatprep.subr.mxu0 0.0
    %94 = vmatpush1.msra.mxu0 0.0
    %95 = vmatprep.subr.mxu0 0.0
    %96 = vmatpush1.msra.mxu0 0.0
    %97 = vmatprep.subr.mxu0 0.0
    %98 = vmatpush1.msra.mxu0 0.0
    %99 = vmatprep.mubr.f32.mxu0 0.0
    %100 = vmatmul.mubr.f32.gmra.mrb[0].mxu0 %v33
    %v101 = vpop.f32.mrb[0].mxu0
    %v102 = vadd.f32 0.0, %v101
    %v103 = vpop.f32.mrb[0].mxu0
    %104 = vdwg.mxu0
    %105 = vst.msk [vmem:[#allocation3] sm:$0xff] %vm31, %v102
    %v106 = vld [vmem:[%s4] sm:$0xff]
    %v107 = vld [vmem:[%s4 + $0x8] sm:$0xff]
    %v108 = vld [vmem:[%s4 + $0x10] sm:$0xff]
    %v109 = vld [vmem:[%s4 + $0x18] sm:$0xff]
    %v110 = vld [vmem:[%s4 + $0x20] sm:$0xff]
    %v111 = vld [vmem:[%s4 + $0x28] sm:$0xff]
    %v112 = vld [vmem:[%s4 + $0x30] sm:$0xff]
    %v113 = vld [vmem:[%s4 + $0x38] sm:$0xff]
    %v114 = vld [vmem:[%s4 + $0x40] sm:$0xff]
    %v115 = vld [vmem:[%s4 + $0x48] sm:$0xff]
    %v116 = vld [vmem:[%s4 + $0x50] sm:$0xff]
    %v117 = vld [vmem:[%s4 + $0x58] sm:$0xff]
    %v118 = vld [vmem:[%s4 + $0x60] sm:$0xff]
    %v119 = vld [vmem:[%s4 + $0x68] sm:$0xff]
    %v120 = vld [vmem:[%s4 + $0x70] sm:$0xff]
    %v121 = vld [vmem:[%s4 + $0x78] sm:$0xff]
    %v123 = vsel %vm31, %v106, 0
    %v126 = vsel %vm31, %v107, 0
    %v129 = vsel %vm31, %v108, 0
    %v132 = vsel %vm31, %v109, 0
    %v135 = vsel %vm31, %v110, 0
    %v138 = vsel %vm31, %v111, 0
    %v141 = vsel %vm31, %v112, 0
    %v144 = vsel %vm31, %v113, 0
    %v147 = vsel %vm31, %v114, 0
    %v150 = vsel %vm31, %v115, 0
    %v153 = vsel %vm31, %v116, 0
    %v156 = vsel %vm31, %v117, 0
    %v159 = vsel %vm31, %v118, 0
    %v162 = vsel %vm31, %v119, 0
    %v165 = vsel %vm31, %v120, 0
    %v168 = vsel %vm31, %v121, 0
    %170 = vmatprep.subr.mxu0 0.0
    %171 = vmatpush1.msra.mxu0 %v26
    %172 = vmatprep.subr.mxu0 0.0
    %173 = vmatpush1.msra.mxu0 %v27
    %174 = vmatprep.subr.mxu0 0.0
    %175 = vmatpush1.msra.mxu0 0.0
    %176 = vmatprep.subr.mxu0 0.0
    %177 = vmatpush1.msra.mxu0 0.0
    %178 = vmatprep.subr.mxu0 0.0
    %179 = vmatpush1.msra.mxu0 0.0
    %180 = vmatprep.subr.mxu0 0.0
    %181 = vmatpush1.msra.mxu0 0.0
    %182 = vmatprep.subr.mxu0 0.0
    %183 = vmatpush1.msra.mxu0 0.0
    %184 = vmatprep.subr.mxu0 0.0
    %185 = vmatpush1.msra.mxu0 0.0
    %186 = vmatprep.subr.mxu0 0.0
    %187 = vmatpush1.msra.mxu0 0.0
    %188 = vmatprep.subr.mxu0 0.0
    %189 = vmatpush1.msra.mxu0 0.0
    %190 = vmatprep.subr.mxu0 0.0
    %191 = vmatpush1.msra.mxu0 0.0
    %192 = vmatprep.subr.mxu0 0.0
    %193 = vmatpush1.msra.mxu0 0.0
    %194 = vmatprep.subr.mxu0 0.0
    %195 = vmatpush1.msra.mxu0 0.0
    %196 = vmatprep.subr.mxu0 0.0
    %197 = vmatpush1.msra.mxu0 0.0
    %198 = vmatprep.subr.mxu0 0.0
    %199 = vmatpush1.msra.mxu0 0.0
    %200 = vmatprep.subr.mxu0 0.0
    %201 = vmatpush1.msra.mxu0 0.0
    %202 = vmatprep.subr.mxu0 0.0
    %203 = vmatpush1.msra.mxu0 0.0
    %204 = vmatprep.subr.mxu0 0.0
    %205 = vmatpush1.msra.mxu0 0.0
    %206 = vmatprep.subr.mxu0 0.0
    %207 = vmatpush1.msra.mxu0 0.0
    %208 = vmatprep.subr.mxu0 0.0
    %209 = vmatpush1.msra.mxu0 0.0
    %210 = vmatprep.subr.mxu0 0.0
    %211 = vmatpush1.msra.mxu0 0.0
    %212 = vmatprep.subr.mxu0 0.0
    %213 = vmatpush1.msra.mxu0 0.0
    %214 = vmatprep.subr.mxu0 0.0
    %215 = vmatpush1.msra.mxu0 0.0
    %216 = vmatprep.subr.mxu0 0.0
    %217 = vmatpush1.msra.mxu0 0.0
    %218 = vmatprep.subr.mxu0 0.0
    %219 = vmatpush1.msra.mxu0 0.0
    %220 = vmatprep.subr.mxu0 0.0
    %221 = vmatpush1.msra.mxu0 0.0
    %222 = vmatprep.subr.mxu0 0.0
    %223 = vmatpush1.msra.mxu0 0.0
    %224 = vmatprep.subr.mxu0 0.0
    %225 = vmatpush1.msra.mxu0 0.0
    %226 = vmatprep.subr.mxu0 0.0
    %227 = vmatpush1.msra.mxu0 0.0
    %228 = vmatprep.subr.mxu0 0.0
    %229 = vmatpush1.msra.mxu0 0.0
    %230 = vmatprep.subr.mxu0 0.0
    %231 = vmatpush1.msra.mxu0 0.0
    %232 = vmatprep.subr.mxu0 0.0
    %233 = vmatpush1.msra.mxu0 0.0
    %234 = vmatprep.mubr.f32.mxu0 0.0
    %235 = vmatmul.mubr.f32.gmra.mrb[0].mxu0 %v123
    %v236 = vpop.f32.mrb[0].mxu0
    %v237 = vadd.f32 0.0, %v236
    %v238 = vpop.f32.mrb[0].mxu0
    %239 = vmatprep.mubr.f32.mxu0 0.0
    %240 = vmatmul.mubr.f32.gmra.mrb[0].mxu0 %v126
    %v241 = vpop.f32.mrb[0].mxu0
    %v242 = vadd.f32 0.0, %v241
    %v243 = vpop.f32.mrb[0].mxu0
    %244 = vmatprep.mubr.f32.mxu0 0.0
    %245 = vmatmul.mubr.f32.gmra.mrb[0].mxu0 %v129
    %v246 = vpop.f32.mrb[0].mxu0
    %v247 = vadd.f32 0.0, %v246
    %v248 = vpop.f32.mrb[0].mxu0
    %249 = vmatprep.mubr.f32.mxu0 0.0
    %250 = vmatmul.mubr.f32.gmra.mrb[0].mxu0 %v132
    %v251 = vpop.f32.mrb[0].mxu0
    %v252 = vadd.f32 0.0, %v251
    %v253 = vpop.f32.mrb[0].mxu0
    %254 = vmatprep.mubr.f32.mxu0 0.0
    %255 = vmatmul.mubr.f32.gmra.mrb[0].mxu0 %v135
    %v256 = vpop.f32.mrb[0].mxu0
    %v257 = vadd.f32 0.0, %v256
    %v258 = vpop.f32.mrb[0].mxu0
    %259 = vmatprep.mubr.f32.mxu0 0.0
    %260 = vmatmul.mubr.f32.gmra.mrb[0].mxu0 %v138
    %v261 = vpop.f32.mrb[0].mxu0
    %v262 = vadd.f32 0.0, %v261
    %v263 = vpop.f32.mrb[0].mxu0
    %264 = vmatprep.mubr.f32.mxu0 0.0
    %265 = vmatmul.mubr.f32.gmra.mrb[0].mxu0 %v141
    %v266 = vpop.f32.mrb[0].mxu0
    %v267 = vadd.f32 0.0, %v266
    %v268 = vpop.f32.mrb[0].mxu0
    %269 = vmatprep.mubr.f32.mxu0 0.0
    %270 = vmatmul.mubr.f32.gmra.mrb[0].mxu0 %v144
    %v271 = vpop.f32.mrb[0].mxu0
    %v272 = vadd.f32 0.0, %v271
    %v273 = vpop.f32.mrb[0].mxu0
    %274 = vmatprep.mubr.f32.mxu0 0.0
    %275 = vmatmul.mubr.f32.gmra.mrb[0].mxu0 %v147
    %v276 = vpop.f32.mrb[0].mxu0
    %v277 = vadd.f32 0.0, %v276
    %v278 = vpop.f32.mrb[0].mxu0
    %279 = vmatprep.mubr.f32.mxu0 0.0
    %280 = vmatmul.mubr.f32.gmra.mrb[0].mxu0 %v150
    %v281 = vpop.f32.mrb[0].mxu0
    %v282 = vadd.f32 0.0, %v281
    %v283 = vpop.f32.mrb[0].mxu0
    %284 = vmatprep.mubr.f32.mxu0 0.0
    %285 = vmatmul.mubr.f32.gmra.mrb[0].mxu0 %v153
    %v286 = vpop.f32.mrb[0].mxu0
    %v287 = vadd.f32 0.0, %v286
    %v288 = vpop.f32.mrb[0].mxu0
    %289 = vmatprep.mubr.f32.mxu0 0.0
    %290 = vmatmul.mubr.f32.gmra.mrb[0].mxu0 %v156
    %v291 = vpop.f32.mrb[0].mxu0
    %v292 = vadd.f32 0.0, %v291
    %v293 = vpop.f32.mrb[0].mxu0
    %294 = vmatprep.mubr.f32.mxu0 0.0
    %295 = vmatmul.mubr.f32.gmra.mrb[0].mxu0 %v159
    %v296 = vpop.f32.mrb[0].mxu0
    %v297 = vadd.f32 0.0, %v296
    %v298 = vpop.f32.mrb[0].mxu0
    %299 = vmatprep.mubr.f32.mxu0 0.0
    %300 = vmatmul.mubr.f32.gmra.mrb[0].mxu0 %v162
    %v301 = vpop.f32.mrb[0].mxu0
    %v302 = vadd.f32 0.0, %v301
    %v303 = vpop.f32.mrb[0].mxu0
    %304 = vmatprep.mubr.f32.mxu0 0.0
    %305 = vmatmul.mubr.f32.gmra.mrb[0].mxu0 %v165
    %v306 = vpop.f32.mrb[0].mxu0
    %v307 = vadd.f32 0.0, %v306
    %v308 = vpop.f32.mrb[0].mxu0
    %309 = vmatprep.mubr.f32.mxu0 0.0
    %310 = vmatmul.mubr.f32.gmra.mrb[0].mxu0 %v168
    %v311 = vpop.f32.mrb[0].mxu0
    %v312 = vadd.f32 0.0, %v311
    %v313 = vpop.f32.mrb[0].mxu0
    %314 = vdwg.mxu0
    %315 = vst.msk [vmem:[#allocation2] sm:$0xff] %vm31, %v237
    %316 = vst.msk [vmem:[#allocation2 + $0x8] sm:$0xff] %vm31, %v242
    %317 = vst.msk [vmem:[#allocation2 + $0x10] sm:$0xff] %vm31, %v247
    %318 = vst.msk [vmem:[#allocation2 + $0x18] sm:$0xff] %vm31, %v252
    %319 = vst.msk [vmem:[#allocation2 + $0x20] sm:$0xff] %vm31, %v257
    %320 = vst.msk [vmem:[#allocation2 + $0x28] sm:$0xff] %vm31, %v262
    %321 = vst.msk [vmem:[#allocation2 + $0x30] sm:$0xff] %vm31, %v267
    %322 = vst.msk [vmem:[#allocation2 + $0x38] sm:$0xff] %vm31, %v272
    %323 = vst.msk [vmem:[#allocation2 + $0x40] sm:$0xff] %vm31, %v277
    %324 = vst.msk [vmem:[#allocation2 + $0x48] sm:$0xff] %vm31, %v282
    %325 = vst.msk [vmem:[#allocation2 + $0x50] sm:$0xff] %vm31, %v287
    %326 = vst.msk [vmem:[#allocation2 + $0x58] sm:$0xff] %vm31, %v292
    %327 = vst.msk [vmem:[#allocation2 + $0x60] sm:$0xff] %vm31, %v297
    %328 = vst.msk [vmem:[#allocation2 + $0x68] sm:$0xff] %vm31, %v302
    %329 = vst.msk [vmem:[#allocation2 + $0x70] sm:$0xff] %vm31, %v307
    %330 = vst.msk [vmem:[#allocation2 + $0x78] sm:$0xff] %vm31, %v312
    loop: start=0, step=1, limit=8
    $region22: #{_rcgp_forward.12} parent=1 // loop_pre_header
      _
    $region23: #{_rcgp_forward.12} parent=1 // loop_header
      %s332 = sphi 0, %s336
      %p333 = scmp.ge.s32.totalorder %s332, 8
    $region24: #{_rcgp_forward.12} parent=1 // loop_header_branch
      %335 = sbr.rel (%p333) target = $region28
    $region25: #{_rcgp_forward.12} parent=1 // loop_body
      %s337 = smul.u32 %s332, 16
      %s338 = scalar_lea.vmem [#allocation2], %s337
      %v339 = vld [vmem:[%s338] sm:$0xff]
      %v340 = vld [vmem:[%s338 + $0x8] sm:$0xff]
      %v342 = vsel %vm31, %v24, 0
      %v345 = vsel %vm31, %v25, 0
      %347 = vmatprep.subr.mxu0 0.0
      %348 = vmatpush1.msra.mxu0 %v339
      %349 = vmatprep.subr.mxu0 0.0
      %350 = vmatpush1.msra.mxu0 %v340
      %351 = vmatprep.subr.mxu0 0.0
      %352 = vmatpush1.msra.mxu0 0.0
      %353 = vmatprep.subr.mxu0 0.0
      %354 = vmatpush1.msra.mxu0 0.0
      %355 = vmatprep.subr.mxu0 0.0
      %356 = vmatpush1.msra.mxu0 0.0
      %357 = vmatprep.subr.mxu0 0.0
      %358 = vmatpush1.msra.mxu0 0.0
      %359 = vmatprep.subr.mxu0 0.0
      %360 = vmatpush1.msra.mxu0 0.0
      %361 = vmatprep.subr.mxu0 0.0
      %362 = vmatpush1.msra.mxu0 0.0
      %363 = vmatprep.subr.mxu0 0.0
      %364 = vmatpush1.msra.mxu0 0.0
      %365 = vmatprep.subr.mxu0 0.0
      %366 = vmatpush1.msra.mxu0 0.0
      %367 = vmatprep.subr.mxu0 0.0
      %368 = vmatpush1.msra.mxu0 0.0
      %369 = vmatprep.subr.mxu0 0.0
      %370 = vmatpush1.msra.mxu0 0.0
      %371 = vmatprep.subr.mxu0 0.0
      %372 = vmatpush1.msra.mxu0 0.0
      %373 = vmatprep.subr.mxu0 0.0
      %374 = vmatpush1.msra.mxu0 0.0
      %375 = vmatprep.subr.mxu0 0.0
      %376 = vmatpush1.msra.mxu0 0.0
      %377 = vmatprep.subr.mxu0 0.0
      %378 = vmatpush1.msra.mxu0 0.0
      %379 = vmatprep.subr.mxu0 0.0
      %380 = vmatpush1.msra.mxu0 0.0
      %381 = vmatprep.subr.mxu0 0.0
      %382 = vmatpush1.msra.mxu0 0.0
      %383 = vmatprep.subr.mxu0 0.0
      %384 = vmatpush1.msra.mxu0 0.0
      %385 = vmatprep.subr.mxu0 0.0
      %386 = vmatpush1.msra.mxu0 0.0
      %387 = vmatprep.subr.mxu0 0.0
      %388 = vmatpush1.msra.mxu0 0.0
      %389 = vmatprep.subr.mxu0 0.0
      %390 = vmatpush1.msra.mxu0 0.0
      %391 = vmatprep.subr.mxu0 0.0
      %392 = vmatpush1.msra.mxu0 0.0
      %393 = vmatprep.subr.mxu0 0.0
      %394 = vmatpush1.msra.mxu0 0.0
      %395 = vmatprep.subr.mxu0 0.0
      %396 = vmatpush1.msra.mxu0 0.0
      %397 = vmatprep.subr.mxu0 0.0
      %398 = vmatpush1.msra.mxu0 0.0
      %399 = vmatprep.subr.mxu0 0.0
      %400 = vmatpush1.msra.mxu0 0.0
      %401 = vmatprep.subr.mxu0 0.0
      %402 = vmatpush1.msra.mxu0 0.0
      %403 = vmatprep.subr.mxu0 0.0
      %404 = vmatpush1.msra.mxu0 0.0
      %405 = vmatprep.subr.mxu0 0.0
      %406 = vmatpush1.msra.mxu0 0.0
      %407 = vmatprep.subr.mxu0 0.0
      %408 = vmatpush1.msra.mxu0 0.0
      %409 = vmatprep.subr.mxu0 0.0
      %410 = vmatpush1.msra.mxu0 0.0
      %411 = vmatprep.mubr.f32.mxu0 0.0
      %412 = vmatmul.mubr.f32.gmra.mrb[0].mxu0 %v342
      %v413 = vpop.f32.mrb[0].mxu0
      %v414 = vadd.f32 %v28, %v413
      %v415 = vpop.f32.mrb[0].mxu0
      %416 = vmatprep.mubr.f32.mxu0 0.0
      %417 = vmatmul.mubr.f32.gmra.mrb[0].mxu0 %v345
      %v418 = vpop.f32.mrb[0].mxu0
      %v419 = vadd.f32 %v29, %v418
      %v420 = vpop.f32.mrb[0].mxu0
      %421 = vdwg.mxu0
      %s422 = scalar_lea.vmem [#allocation5], %s337
      %423 = vst.msk [vmem:[%s422] sm:$0xff] %vm31, %v414
      %424 = vst.msk [vmem:[%s422 + $0x8] sm:$0xff] %vm31, %v419
    $region26: #{_rcgp_forward.12} parent=1 // loop_footer
      %s336 = sadd.s32 1, %s332
    $region27: #{_rcgp_forward.12} parent=1 // loop_footer_branch
      %331 = sbr.rel target = $region23
    $region28: #{_rcgp_forward.12} parent=1 // loop_exit
      _
    // Predicated region
    $region29: #{_rcgp_forward.12} parent=1 // pred_check
      _
    $region30: #{_rcgp_forward.12} parent=1 // pred_check_branch
      %426 = sbr.rel (0) target = $region32
    $region31: #{_rcgp_forward.12} parent=1 // pred_region
      %s428 = ssub.s32 128, 128
      %429 = vsyncadd [#allocation4], %s428
      %s431 = sshll.u32 [#allocation3], 4
      %s432 = int_to_ptr.vmem [resolvable:$true] %s431
      %434 = dma.vmem_to_hbm [thread:$0]  %s432, 128, %s5, [#allocation4]
    $region32: #{_rcgp_forward.12} parent=1 // pred_fallthru
      _
    // Predicated region
    $region33: #{_rcgp_forward.12} parent=1 // pred_check
      _
    $region34: #{_rcgp_forward.12} parent=1 // pred_check_branch
      %436 = sbr.rel (0) target = $region36
    $region35: #{_rcgp_forward.12} parent=1 // pred_region
      %s438 = ssub.s32 2048, 2048
      %439 = vsyncadd [#allocation6], %s438
      %s440 = sshll.u32 [#allocation5], 4
      %s441 = int_to_ptr.vmem [resolvable:$true] %s440
      %446 = dma.vmem_to_hbm [thread:$0]  %s441, 2048, %s6, [#allocation6], 128, 128, 8
    $region36: #{_rcgp_forward.12} parent=1 // pred_fallthru
      _
    // Predicated region
    $region37: #{_rcgp_forward.12} parent=1 // pred_check
      _
    $region38: #{_rcgp_forward.12} parent=1 // pred_check_branch
      %448 = sbr.rel (0) target = $region40
    $region39: #{_rcgp_forward.12} parent=1 // pred_region
      %449 = dma.done [#allocation4], 128
    $region40: #{_rcgp_forward.12} parent=1 // pred_fallthru
      _
    // Predicated region
    $region41: #{_rcgp_forward.12} parent=1 // pred_check
      _
    $region42: #{_rcgp_forward.12} parent=1 // pred_check_branch
      %451 = sbr.rel (0) target = $region44
    $region43: #{_rcgp_forward.12} parent=1 // pred_region
      %452 = dma.done [#allocation6], 2048
    $region44: #{_rcgp_forward.12} parent=1 // pred_fallthru
      _
    %453 = vsyncpa [#allocation4], 1
    %454 = vsyncpa [#allocation6], 1

</llo_original>
